<compile_context>
chip_gen: v6e
topology: v6e:2x2x1
jax: 0.10.0
libtpu: 0.0.40
codegen_flags: <defaults>
</compile_context>

<pallas_src>
import jax
import jax.numpy as jnp
from jax import lax
from jax.experimental import pallas as pl
from jax.experimental.pallas import tpu as pltpu  # noqa: F401

# ----------------------------- model dimensions ------------------------------
B = 2            # batch
S = 8            # sequence length
VOCAB = 64       # vocab size (stand-in for 30522)
H = 64           # bert hidden size (stand-in for 768)
NUM_HEADS = 4
HEAD_DIM = H // NUM_HEADS
FFN = 128        # bert intermediate size (stand-in for 3072)
N_BERT_LAYERS = 2
HL = 32          # lstm hidden size (stand-in for 256)
S_MAX = 16       # max positions for position embeddings

_SCALE = 1.0 / (HEAD_DIM ** 0.5)

# rows of the packed per-layer vector slab enc_vec[L, 9, H]
_BQ, _BK, _BV, _BO, _LN1G, _LN1B, _B2, _LN2G, _LN2B = range(9)


# --------------------------------- helpers -----------------------------------
def _layernorm(x, g, b, eps=1e-12):
    mu = jnp.mean(x, axis=-1, keepdims=True)
    var = jnp.mean((x - mu) ** 2, axis=-1, keepdims=True)
    return (x - mu) * lax.rsqrt(var + eps) * g + b


def _gelu(x):
    # TODO(synk): real BERT uses exact erf-GELU; tanh approximation used here.
    c = 0.7978845608028654  # sqrt(2/pi)
    return 0.5 * x * (1.0 + jnp.tanh(c * (x + 0.044715 * x * x * x)))


# ----------------------------- fused forward kernel ---------------------------
def fused_kernel(x_ref, maskb_ref,
                 wqkv_ref, wo_ref, w1_ref, w2_ref, vec_ref, b1_ref,
                 wih_ref, whh_ref, misc_ref,
                 out_ref):
    f32, bf16 = jnp.float32, jnp.bfloat16
    x = x_ref[...]                                   # [B*S, H] f32, rows ordered (b, s)

    # Mask-bias broadcast hoisted ONCE; merged (head, batch) index = h*B + b.
    mb = jnp.broadcast_to(maskb_ref[...][None], (NUM_HEADS, B, S)
                          ).reshape(NUM_HEADS * B, 1, S)

    def split_heads(t):                              # [B*S, H] -> [NH*B, S, HEAD_DIM]
        blocks = [t[:, h * HEAD_DIM:(h + 1) * HEAD_DIM] for h in range(NUM_HEADS)]
        return jnp.stack(blocks, axis=0).reshape(NUM_HEADS * B, S, HEAD_DIM)

    # ---------------------- BERT encoder (layers unrolled) ----------------------
    for l in range(N_BERT_LAYERS):
        wqkv_l = wqkv_ref[l]                         # [3, H, H] bf16
        vec_l = vec_ref[l]                           # [9, H]    f32
        xb = x.astype(bf16)
        q = jnp.dot(xb, wqkv_l[0], preferred_element_type=f32) + vec_l[_BQ]
        k = jnp.dot(xb, wqkv_l[1], preferred_element_type=f32) + vec_l[_BK]
        v = jnp.dot(xb, wqkv_l[2], preferred_element_type=f32) + vec_l[_BV]

        qh = split_heads(q.astype(bf16))
        kh = split_heads(k.astype(bf16))
        vh = split_heads(v.astype(bf16))

        # ONE score einsum / ONE softmax / ONE context einsum over all heads
        s = jnp.einsum('bqd,bkd->bqk', qh, kh,
                       preferred_element_type=f32) * _SCALE + mb
        s = s - jnp.max(s, axis=-1, keepdims=True)
        p = jnp.exp(s)
        p = p * pl.reciprocal(jnp.sum(p, axis=-1, keepdims=True), approx=True)
        ctx = jnp.einsum('bqk,bkd->bqd', p.astype(bf16), vh,
                         preferred_element_type=f32)          # [NH*B, S, HEAD_DIM]

        # merge heads back into lanes, then a single full-contraction Wo matmul
        ctx = ctx.reshape(NUM_HEADS, B * S, HEAD_DIM)
        ctx = jnp.concatenate([ctx[h] for h in range(NUM_HEADS)], axis=-1)   # [B*S, H]
        attn = jnp.dot(ctx.astype(bf16), wo_ref[l],
                       preferred_element_type=f32) + vec_l[_BO]

        h1 = _layernorm(x + attn, vec_l[_LN1G], vec_l[_LN1B])
        ff = jnp.dot(h1.astype(bf16), w1_ref[l], preferred_element_type=f32) + b1_ref[l]
        ff = _gelu(ff)
        ff = jnp.dot(ff.astype(bf16), w2_ref[l], preferred_element_type=f32) + vec_l[_B2]
        x = _layernorm(h1 + ff, vec_l[_LN2G], vec_l[_LN2B])

    # ------------------------ 2-layer LSTM (interleaved) ------------------------
    wih = wih_ref[...]                               # [H+HL, 4*HL] f32
    wih0, wih1 = wih[:H], wih[H:H + HL]
    whh0, whh1 = whh_ref[0], whh_ref[1]              # [HL, 4*HL] each
    misc = misc_ref[...]                             # [4, 4*HL]
    bg0, bg1 = misc[0], misc[1]
    fc_w = misc[2, :HL]                              # [HL]
    fc_b = misc[3:4, 0:1]                            # [1, 1]

    def gate_update(gates, c):
        i_g = jax.nn.sigmoid(gates[:, 0 * HL:1 * HL])
        f_g = jax.nn.sigmoid(gates[:, 1 * HL:2 * HL])
        g_g = jnp.tanh(gates[:, 2 * HL:3 * HL])
        o_g = jax.nn.sigmoid(gates[:, 3 * HL:4 * HL])
        c = f_g * c + i_g * g_g
        return o_g * jnp.tanh(c), c

    # layer-0 input projection hoisted: one [B*S, H] @ [H, 4*HL] matmul
    xp0 = (jnp.dot(x, wih0, preferred_element_type=f32) + bg0).reshape(B, S, 4 * HL)

    h0 = jnp.zeros((B, HL), f32)
    c0 = jnp.zeros((B, HL), f32)
    h1l = jnp.zeros((B, HL), f32)
    c1l = jnp.zeros((B, HL), f32)
    for t in range(S):
        # layer-0 step t
        g0 = xp0[:, t, :] + jnp.dot(h0, whh0, preferred_element_type=f32)
        h0, c0 = gate_update(g0, c0)
        # layer-1 step t — depends only on layer-0 step t (wavefront-able)
        g1 = (jnp.dot(h0, wih1, preferred_element_type=f32) + bg1
              + jnp.dot(h1l, whh1, preferred_element_type=f32))
        h1l, c1l = gate_update(g1, c1l)

    # final Linear(HL -> 1) as VPU multiply + lane reduce (matches lstm_output[:, -1, :])
    out_ref[...] = jnp.sum(h1l * fc_w[None, :], axis=-1, keepdims=True) + fc_b


def bert_lstm_pallas(x_flat, mask_bias, p):
    # Single grid step; every operand fully VMEM-resident (~200 KiB total).
    # TODO(synk): at real bert-base dims, switch to a per-layer grid with BlockSpec-streamed
    # bf16 weight slabs (v7x VMEM = 64 MiB) instead of this all-resident design.
    return pl.pallas_call(
        fused_kernel,
        out_shape=jax.ShapeDtypeStruct((B, 1), jnp.float32),
    )(x_flat, mask_bias,
      p["wqkv"], p["wo"], p["w1"], p["w2"], p["enc_vec"], p["b1"],
      p["wih"], p["whh"], p["lstm_misc"])


@jax.jit
def forward(params, input_ids, attention_mask):
    bsz, seq = input_ids.shape
    # glue: embedding gather + embedding LayerNorm + additive mask bias
    x = (params["word_emb"][input_ids]
         + params["pos_emb"][:seq][None, :, :]
         + params["type_emb"][0][None, None, :])
    x = _layernorm(x, params["emb_ln_g"], params["emb_ln_b"]).astype(jnp.float32)
    x_flat = x.reshape(bsz * seq, H)
    mask_bias = (1.0 - attention_mask.astype(jnp.float32)) * -1e9     # [B, S]
    return bert_lstm_pallas(x_flat, mask_bias, params)


# ------------------------------ parameter init ---------------------------------
def init_params(key):
    keys = iter(jax.random.split(key, 64))

    def nrm(shape, scale=0.02):
        return (scale * jax.random.normal(next(keys), shape)).astype(jnp.float32)

    L = N_BERT_LAYERS

    # packed per-layer [H] vectors: bq, bk, bv, bo, ln1g, ln1b, b2, ln2g, ln2b
    enc_vec = nrm((L, 9, H))
    enc_vec = enc_vec.at[:, _LN1G, :].set(1.0).at[:, _LN1B, :].set(0.0)
    enc_vec = enc_vec.at[:, _LN2G, :].set(1.0).at[:, _LN2B, :].set(0.0)

    # LSTM misc slab: rows = (bg0, bg1, fc_w padded to 4*HL, fc_b at [3,0]);
    # gate order (i, f, g, o); bias = b_ih + b_hh.
    lstm_misc = jnp.zeros((4, 4 * HL), jnp.float32)
    lstm_misc = lstm_misc.at[0].set(nrm((4 * HL,), 0.1))
    lstm_misc = lstm_misc.at[1].set(nrm((4 * HL,), 0.1))
    lstm_misc = lstm_misc.at[2, :HL].set(nrm((HL,), 0.1))
    lstm_misc = lstm_misc.at[3, 0].set(nrm((), 0.1))

    p = dict(
        word_emb=nrm((VOCAB, H)),
        pos_emb=nrm((S_MAX, H)),
        type_emb=nrm((2, H)),
        emb_ln_g=jnp.ones((H,), jnp.float32),
        emb_ln_b=jnp.zeros((H,), jnp.float32),
        # encoder weight slabs, stored bf16 (MXU-native; halves prologue DMA bytes)
        wqkv=nrm((L, 3, H, H)).astype(jnp.bfloat16),
        wo=nrm((L, H, H)).astype(jnp.bfloat16),
        w1=nrm((L, H, FFN)).astype(jnp.bfloat16),
        w2=nrm((L, FFN, H)).astype(jnp.bfloat16),
        enc_vec=enc_vec,
        b1=nrm((L, FFN)),
        # LSTM slabs: wih = [wih0 ; wih1] stacked along rows ([H+HL, 4*HL]), whh stacked.
        wih=jnp.concatenate([nrm((H, 4 * HL), 0.1), nrm((HL, 4 * HL), 0.1)], axis=0),
        whh=jnp.stack([nrm((HL, 4 * HL), 0.1), nrm((HL, 4 * HL), 0.1)], axis=0),
        lstm_misc=lstm_misc,
    )
    return p


# --------------------------- pure-JAX reference -------------------------------
def forward_reference(params, input_ids, attention_mask):
    bsz, seq = input_ids.shape
    x = (params["word_emb"][input_ids]
         + params["pos_emb"][:seq][None, :, :]
         + params["type_emb"][0][None, None, :])
    x = _layernorm(x, params["emb_ln_g"], params["emb_ln_b"])
    mb = ((1.0 - attention_mask.astype(jnp.float32)) * -1e9)[:, None, None, :]
    for l in range(N_BERT_LAYERS):
        wq = params["wqkv"][l, 0].astype(jnp.float32)
        wk = params["wqkv"][l, 1].astype(jnp.float32)
        wv = params["wqkv"][l, 2].astype(jnp.float32)
        wo = params["wo"][l].astype(jnp.float32)
        vec = params["enc_vec"][l]
        q = x @ wq + vec[_BQ]
        k = x @ wk + vec[_BK]
        v = x @ wv + vec[_BV]

        def split(t):
            return t.reshape(bsz, seq, NUM_HEADS, HEAD_DIM).transpose(0, 2, 1, 3)

        q, k, v = split(q), split(k), split(v)
        s = jnp.einsum('bhqd,bhkd->bhqk', q, k) * _SCALE + mb
        pr = jax.nn.softmax(s, axis=-1)
        ctx = jnp.einsum('bhqk,bhkd->bhqd', pr, v)
        ctx = ctx.transpose(0, 2, 1, 3).reshape(bsz, seq, H)
        attn = ctx @ wo + vec[_BO]
        h1 = _layernorm(x + attn, vec[_LN1G], vec[_LN1B])
        ff = _gelu(h1 @ params["w1"][l].astype(jnp.float32) + params["b1"][l])
        ff = ff @ params["w2"][l].astype(jnp.float32) + vec[_B2]
        x = _layernorm(h1 + ff, vec[_LN2G], vec[_LN2B])

    wih0 = params["wih"][:H]
    wih1 = params["wih"][H:H + HL]
    whh0, whh1 = params["whh"][0], params["whh"][1]
    bg0, bg1 = params["lstm_misc"][0], params["lstm_misc"][1]
    fc_w = params["lstm_misc"][2, :HL]
    fc_b = params["lstm_misc"][3, 0]

    y = x
    for wih, whh, bg in ((wih0, whh0, bg0), (wih1, whh1, bg1)):
        h = jnp.zeros((bsz, HL), jnp.float32)
        c = jnp.zeros((bsz, HL), jnp.float32)
        outs = []
        for t in range(seq):
            gates = y[:, t, :] @ wih + h @ whh + bg
            i_g = jax.nn.sigmoid(gates[:, 0 * HL:1 * HL])
            f_g = jax.nn.sigmoid(gates[:, 1 * HL:2 * HL])
            g_g = jnp.tanh(gates[:, 2 * HL:3 * HL])
            o_g = jax.nn.sigmoid(gates[:, 3 * HL:4 * HL])
            c = f_g * c + i_g * g_g
            h = o_g * jnp.tanh(c)
            outs.append(h)
        y = jnp.stack(outs, axis=1)
    return y[:, -1, :] @ fc_w[:, None] + fc_b


# ----------------------------------- main ---------------------------------------
if __name__ == "__main__":
    key = jax.random.PRNGKey(0)
    k_ids, _ = jax.random.split(key)
    input_ids = jax.random.randint(k_ids, (B, S), 0, VOCAB)
    attention_mask = jnp.ones((B, S), jnp.int32).at[1, 6:].set(0)  # pad tail of sample 1

    params = init_params(jax.random.PRNGKey(42))

    out = forward(params, input_ids, attention_mask)
    out = jax.block_until_ready(out)
    assert out.shape == (B, 1) and out.dtype == jnp.float32
    assert bool(jnp.all(jnp.isfinite(out)))

    # Numerical sanity check against a pure-JAX f32 reference.  Tolerance covers
    # the bf16 MXU-operand rounding + approx softmax reciprocal in the kernel.
    with jax.default_matmul_precision("float32"):
        ref = jax.jit(forward_reference)(params, input_ids, attention_mask)
    ref = jax.block_until_ready(ref)
    assert float(jnp.max(jnp.abs(out - ref))) < 3e-2

    print("KERNEL_OK")
</pallas_src>

<mosaic_0001>
module attributes {stable_mosaic.version = 11 : i64} {
  func.func @fused_kernel(%arg0: memref<16x64xf32, #tpu.memory_space<vmem>>, %arg1: memref<2x8xf32, #tpu.memory_space<vmem>>, %arg2: memref<2x3x64x64xbf16, #tpu.memory_space<vmem>>, %arg3: memref<2x64x64xbf16, #tpu.memory_space<vmem>>, %arg4: memref<2x64x128xbf16, #tpu.memory_space<vmem>>, %arg5: memref<2x128x64xbf16, #tpu.memory_space<vmem>>, %arg6: memref<2x9x64xf32, #tpu.memory_space<vmem>>, %arg7: memref<2x128xf32, #tpu.memory_space<vmem>>, %arg8: memref<96x128xf32, #tpu.memory_space<vmem>>, %arg9: memref<2x32x128xf32, #tpu.memory_space<vmem>>, %arg10: memref<4x128xf32, #tpu.memory_space<vmem>>, %arg11: memref<2x1xf32, #tpu.memory_space<vmem>>) attributes {dimension_semantics = [], scalar_prefetch = 0 : i64, scratch_operands = 0 : i64, tpu.core_type = #tpu.core_type<tc>} {
    %c0 = arith.constant 0 : index
    %c0_0 = arith.constant 0 : index
    %0 = vector.load %arg0[%c0, %c0_0] : memref<16x64xf32, #tpu.memory_space<vmem>>, vector<16x64xf32>
    %c0_1 = arith.constant 0 : index
    %c0_2 = arith.constant 0 : index
    %1 = vector.load %arg1[%c0_1, %c0_2] : memref<2x8xf32, #tpu.memory_space<vmem>>, vector<2x8xf32>
    %2 = vector.shape_cast %1 : vector<2x8xf32> to vector<1x2x8xf32>
    %3 = vector.shape_cast %2 : vector<1x2x8xf32> to vector<1x2x8xf32>
    %4 = vector.broadcast %3 : vector<1x2x8xf32> to vector<4x2x8xf32>
    %5 = vector.shape_cast %4 : vector<4x2x8xf32> to vector<8x1x8xf32>
    %c0_3 = arith.constant 0 : index
    %c0_4 = arith.constant 0 : index
    %c0_5 = arith.constant 0 : index
    %c0_6 = arith.constant 0 : index
    %6 = vector.load %arg2[%c0_3, %c0_4, %c0_5, %c0_6] : memref<2x3x64x64xbf16, #tpu.memory_space<vmem>>, vector<1x3x64x64xbf16>
    %7 = vector.shape_cast %6 : vector<1x3x64x64xbf16> to vector<3x64x64xbf16>
    %c0_7 = arith.constant 0 : index
    %c0_8 = arith.constant 0 : index
    %c0_9 = arith.constant 0 : index
    %8 = vector.load %arg6[%c0_7, %c0_8, %c0_9] : memref<2x9x64xf32, #tpu.memory_space<vmem>>, vector<1x9x64xf32>
    %9 = vector.shape_cast %8 : vector<1x9x64xf32> to vector<9x64xf32>
    %10 = arith.truncf %0 : vector<16x64xf32> to vector<16x64xbf16>
    %11 = vector.extract_strided_slice %7 {offsets = [0, 0, 0], sizes = [1, 64, 64], strides = [1, 1, 1]} : vector<3x64x64xbf16> to vector<1x64x64xbf16>
    %12 = vector.shape_cast %11 : vector<1x64x64xbf16> to vector<64x64xbf16>
    %cst = arith.constant dense<0.000000e+00> : vector<16x64xf32>
    %13 = tpu.matmul %10, %12, %cst {dimension_numbers = #tpu.dot_dimension_numbers<[1], [0], [0], [1], [0, 0, 1, 1], [], []>} : vector<16x64xbf16>, vector<64x64xbf16>, vector<16x64xf32> -> vector<16x64xf32>
    %14 = vector.extract_strided_slice %9 {offsets = [0, 0], sizes = [1, 64], strides = [1, 1]} : vector<9x64xf32> to vector<1x64xf32>
    %15 = vector.shape_cast %14 : vector<1x64xf32> to vector<64xf32>
    %16 = vector.shape_cast %15 : vector<64xf32> to vector<1x64xf32>
    %17 = vector.broadcast %16 : vector<1x64xf32> to vector<16x64xf32>
    %18 = arith.addf %13, %17 : vector<16x64xf32>
    %19 = vector.extract_strided_slice %7 {offsets = [1, 0, 0], sizes = [1, 64, 64], strides = [1, 1, 1]} : vector<3x64x64xbf16> to vector<1x64x64xbf16>
    %20 = vector.shape_cast %19 : vector<1x64x64xbf16> to vector<64x64xbf16>
    %cst_10 = arith.constant dense<0.000000e+00> : vector<16x64xf32>
    %21 = tpu.matmul %10, %20, %cst_10 {dimension_numbers = #tpu.dot_dimension_numbers<[1], [0], [0], [1], [0, 0, 1, 1], [], []>} : vector<16x64xbf16>, vector<64x64xbf16>, vector<16x64xf32> -> vector<16x64xf32>
    %22 = vector.extract_strided_slice %9 {offsets = [1, 0], sizes = [1, 64], strides = [1, 1]} : vector<9x64xf32> to vector<1x64xf32>
    %23 = vector.shape_cast %22 : vector<1x64xf32> to vector<64xf32>
    %24 = vector.shape_cast %23 : vector<64xf32> to vector<1x64xf32>
    %25 = vector.broadcast %24 : vector<1x64xf32> to vector<16x64xf32>
    %26 = arith.addf %21, %25 : vector<16x64xf32>
    %27 = vector.extract_strided_slice %7 {offsets = [2, 0, 0], sizes = [1, 64, 64], strides = [1, 1, 1]} : vector<3x64x64xbf16> to vector<1x64x64xbf16>
    %28 = vector.shape_cast %27 : vector<1x64x64xbf16> to vector<64x64xbf16>
    %cst_11 = arith.constant dense<0.000000e+00> : vector<16x64xf32>
    %29 = tpu.matmul %10, %28, %cst_11 {dimension_numbers = #tpu.dot_dimension_numbers<[1], [0], [0], [1], [0, 0, 1, 1], [], []>} : vector<16x64xbf16>, vector<64x64xbf16>, vector<16x64xf32> -> vector<16x64xf32>
    %30 = vector.extract_strided_slice %9 {offsets = [2, 0], sizes = [1, 64], strides = [1, 1]} : vector<9x64xf32> to vector<1x64xf32>
    %31 = vector.shape_cast %30 : vector<1x64xf32> to vector<64xf32>
    %32 = vector.shape_cast %31 : vector<64xf32> to vector<1x64xf32>
    %33 = vector.broadcast %32 : vector<1x64xf32> to vector<16x64xf32>
    %34 = arith.addf %29, %33 : vector<16x64xf32>
    %35 = arith.truncf %18 : vector<16x64xf32> to vector<16x64xbf16>
    %36 = vector.extract_strided_slice %35 {offsets = [0, 0], sizes = [16, 16], strides = [1, 1]} : vector<16x64xbf16> to vector<16x16xbf16>
    %37 = vector.extract_strided_slice %35 {offsets = [0, 16], sizes = [16, 16], strides = [1, 1]} : vector<16x64xbf16> to vector<16x16xbf16>
    %38 = vector.extract_strided_slice %35 {offsets = [0, 32], sizes = [16, 16], strides = [1, 1]} : vector<16x64xbf16> to vector<16x16xbf16>
    %39 = vector.extract_strided_slice %35 {offsets = [0, 48], sizes = [16, 16], strides = [1, 1]} : vector<16x64xbf16> to vector<16x16xbf16>
    %40 = vector.shape_cast %36 : vector<16x16xbf16> to vector<1x16x16xbf16>
    %41 = vector.shape_cast %37 : vector<16x16xbf16> to vector<1x16x16xbf16>
    %42 = vector.shape_cast %38 : vector<16x16xbf16> to vector<1x16x16xbf16>
    %43 = vector.shape_cast %39 : vector<16x16xbf16> to vector<1x16x16xbf16>
    %44 = tpu.concatenate %40, %41, %42, %43 in 0 : vector<1x16x16xbf16>, vector<1x16x16xbf16>, vector<1x16x16xbf16>, vector<1x16x16xbf16> -> vector<4x16x16xbf16>
    %45 = vector.shape_cast %44 : vector<4x16x16xbf16> to vector<8x8x16xbf16>
    %46 = arith.truncf %26 : vector<16x64xf32> to vector<16x64xbf16>
    %47 = vector.extract_strided_slice %46 {offsets = [0, 0], sizes = [16, 16], strides = [1, 1]} : vector<16x64xbf16> to vector<16x16xbf16>
    %48 = vector.extract_strided_slice %46 {offsets = [0, 16], sizes = [16, 16], strides = [1, 1]} : vector<16x64xbf16> to vector<16x16xbf16>
    %49 = vector.extract_strided_slice %46 {offsets = [0, 32], sizes = [16, 16], strides = [1, 1]} : vector<16x64xbf16> to vector<16x16xbf16>
    %50 = vector.extract_strided_slice %46 {offsets = [0, 48], sizes = [16, 16], strides = [1, 1]} : vector<16x64xbf16> to vector<16x16xbf16>
    %51 = vector.shape_cast %47 : vector<16x16xbf16> to vector<1x16x16xbf16>
    %52 = vector.shape_cast %48 : vector<16x16xbf16> to vector<1x16x16xbf16>
    %53 = vector.shape_cast %49 : vector<16x16xbf16> to vector<1x16x16xbf16>
    %54 = vector.shape_cast %50 : vector<16x16xbf16> to vector<1x16x16xbf16>
    %55 = tpu.concatenate %51, %52, %53, %54 in 0 : vector<1x16x16xbf16>, vector<1x16x16xbf16>, vector<1x16x16xbf16>, vector<1x16x16xbf16> -> vector<4x16x16xbf16>
    %56 = vector.shape_cast %55 : vector<4x16x16xbf16> to vector<8x8x16xbf16>
    %57 = arith.truncf %34 : vector<16x64xf32> to vector<16x64xbf16>
    %58 = vector.extract_strided_slice %57 {offsets = [0, 0], sizes = [16, 16], strides = [1, 1]} : vector<16x64xbf16> to vector<16x16xbf16>
    %59 = vector.extract_strided_slice %57 {offsets = [0, 16], sizes = [16, 16], strides = [1, 1]} : vector<16x64xbf16> to vector<16x16xbf16>
    %60 = vector.extract_strided_slice %57 {offsets = [0, 32], sizes = [16, 16], strides = [1, 1]} : vector<16x64xbf16> to vector<16x16xbf16>
    %61 = vector.extract_strided_slice %57 {offsets = [0, 48], sizes = [16, 16], strides = [1, 1]} : vector<16x64xbf16> to vector<16x16xbf16>
    %62 = vector.shape_cast %58 : vector<16x16xbf16> to vector<1x16x16xbf16>
    %63 = vector.shape_cast %59 : vector<16x16xbf16> to vector<1x16x16xbf16>
    %64 = vector.shape_cast %60 : vector<16x16xbf16> to vector<1x16x16xbf16>
    %65 = vector.shape_cast %61 : vector<16x16xbf16> to vector<1x16x16xbf16>
    %66 = tpu.concatenate %62, %63, %64, %65 in 0 : vector<1x16x16xbf16>, vector<1x16x16xbf16>, vector<1x16x16xbf16>, vector<1x16x16xbf16> -> vector<4x16x16xbf16>
    %67 = vector.shape_cast %66 : vector<4x16x16xbf16> to vector<8x8x16xbf16>
    "tpu.trace_start"() <{level = 10 : i32, message = "bqd,bkd->bqk"}> : () -> ()
    %cst_12 = arith.constant dense<0.000000e+00> : vector<8x8x8xf32>
    %68 = tpu.matmul %45, %56, %cst_12 {dimension_numbers = #tpu.dot_dimension_numbers<[2], [2], [1], [1], [0, 0, 0, 1, 1, 1], [0], [0]>} : vector<8x8x16xbf16>, vector<8x8x16xbf16>, vector<8x8x8xf32> -> vector<8x8x8xf32>
    "tpu.trace_stop"() : () -> ()
    %cst_13 = arith.constant 2.500000e-01 : f32
    %69 = vector.broadcast %cst_13 : f32 to vector<8x8x8xf32>
    %70 = arith.mulf %68, %69 : vector<8x8x8xf32>
    %71 = vector.broadcast %5 : vector<8x1x8xf32> to vector<8x8x8xf32>
    %72 = arith.addf %70, %71 : vector<8x8x8xf32>
    %cst_14 = arith.constant dense<0xFF800000> : vector<8x8xf32>
    %73 = vector.multi_reduction <maximumf>, %72, %cst_14 [2] : vector<8x8x8xf32> to vector<8x8xf32>
    %74 = vector.shape_cast %73 : vector<8x8xf32> to vector<8x8x1xf32>
    %75 = vector.broadcast %74 : vector<8x8x1xf32> to vector<8x8x8xf32>
    %76 = arith.subf %72, %75 : vector<8x8x8xf32>
    %77 = math.exp %76 : vector<8x8x8xf32>
    %cst_15 = arith.constant dense<0.000000e+00> : vector<8x8xf32>
    %78 = vector.multi_reduction <add>, %77, %cst_15 [2] : vector<8x8x8xf32> to vector<8x8xf32>
    %79 = vector.shape_cast %78 : vector<8x8xf32> to vector<8x8x1xf32>
    %80 = tpu.reciprocal %79 {approx = true} : vector<8x8x1xf32> -> vector<8x8x1xf32>
    %81 = vector.broadcast %80 : vector<8x8x1xf32> to vector<8x8x8xf32>
    %82 = arith.mulf %77, %81 : vector<8x8x8xf32>
    %83 = arith.truncf %82 : vector<8x8x8xf32> to vector<8x8x8xbf16>
    "tpu.trace_start"() <{level = 10 : i32, message = "bqk,bkd->bqd"}> : () -> ()
    %cst_16 = arith.constant dense<0.000000e+00> : vector<8x8x16xf32>
    %84 = tpu.matmul %83, %67, %cst_16 {dimension_numbers = #tpu.dot_dimension_numbers<[2], [1], [1], [2], [0, 0, 0, 1, 1, 2], [0], [0]>} : vector<8x8x8xbf16>, vector<8x8x16xbf16>, vector<8x8x16xf32> -> vector<8x8x16xf32>
    "tpu.trace_stop"() : () -> ()
    %85 = vector.shape_cast %84 : vector<8x8x16xf32> to vector<4x16x16xf32>
    %86 = vector.extract_strided_slice %85 {offsets = [0, 0, 0], sizes = [1, 16, 16], strides = [1, 1, 1]} : vector<4x16x16xf32> to vector<1x16x16xf32>
    %87 = vector.shape_cast %86 : vector<1x16x16xf32> to vector<16x16xf32>
    %88 = vector.extract_strided_slice %85 {offsets = [1, 0, 0], sizes = [1, 16, 16], strides = [1, 1, 1]} : vector<4x16x16xf32> to vector<1x16x16xf32>
    %89 = vector.shape_cast %88 : vector<1x16x16xf32> to vector<16x16xf32>
    %90 = vector.extract_strided_slice %85 {offsets = [2, 0, 0], sizes = [1, 16, 16], strides = [1, 1, 1]} : vector<4x16x16xf32> to vector<1x16x16xf32>
    %91 = vector.shape_cast %90 : vector<1x16x16xf32> to vector<16x16xf32>
    %92 = vector.extract_strided_slice %85 {offsets = [3, 0, 0], sizes = [1, 16, 16], strides = [1, 1, 1]} : vector<4x16x16xf32> to vector<1x16x16xf32>
    %93 = vector.shape_cast %92 : vector<1x16x16xf32> to vector<16x16xf32>
    %94 = tpu.concatenate %87, %89, %91, %93 in 1 : vector<16x16xf32>, vector<16x16xf32>, vector<16x16xf32>, vector<16x16xf32> -> vector<16x64xf32>
    %95 = arith.truncf %94 : vector<16x64xf32> to vector<16x64xbf16>
    %c0_17 = arith.constant 0 : index
    %c0_18 = arith.constant 0 : index
    %c0_19 = arith.constant 0 : index
    %96 = vector.load %arg3[%c0_17, %c0_18, %c0_19] : memref<2x64x64xbf16, #tpu.memory_space<vmem>>, vector<1x64x64xbf16>
    %97 = vector.shape_cast %96 : vector<1x64x64xbf16> to vector<64x64xbf16>
    %cst_20 = arith.constant dense<0.000000e+00> : vector<16x64xf32>
    %98 = tpu.matmul %95, %97, %cst_20 {dimension_numbers = #tpu.dot_dimension_numbers<[1], [0], [0], [1], [0, 0, 1, 1], [], []>} : vector<16x64xbf16>, vector<64x64xbf16>, vector<16x64xf32> -> vector<16x64xf32>
    %99 = vector.extract_strided_slice %9 {offsets = [3, 0], sizes = [1, 64], strides = [1, 1]} : vector<9x64xf32> to vector<1x64xf32>
    %100 = vector.shape_cast %99 : vector<1x64xf32> to vector<64xf32>
    %101 = vector.shape_cast %100 : vector<64xf32> to vector<1x64xf32>
    %102 = vector.broadcast %101 : vector<1x64xf32> to vector<16x64xf32>
    %103 = arith.addf %98, %102 : vector<16x64xf32>
    %104 = arith.addf %0, %103 : vector<16x64xf32>
    %105 = vector.extract_strided_slice %9 {offsets = [4, 0], sizes = [1, 64], strides = [1, 1]} : vector<9x64xf32> to vector<1x64xf32>
    %106 = vector.shape_cast %105 : vector<1x64xf32> to vector<64xf32>
    %107 = vector.extract_strided_slice %9 {offsets = [5, 0], sizes = [1, 64], strides = [1, 1]} : vector<9x64xf32> to vector<1x64xf32>
    %108 = vector.shape_cast %107 : vector<1x64xf32> to vector<64xf32>
    %cst_21 = arith.constant dense<0.000000e+00> : vector<16xf32>
    %109 = vector.multi_reduction <add>, %104, %cst_21 [1] : vector<16x64xf32> to vector<16xf32>
    %110 = vector.shape_cast %109 : vector<16xf32> to vector<16x1xf32>
    %cst_22 = arith.constant 6.400000e+01 : f32
    %111 = vector.broadcast %cst_22 : f32 to vector<16x1xf32>
    %112 = arith.divf %110, %111 : vector<16x1xf32>
    %113 = vector.broadcast %112 : vector<16x1xf32> to vector<16x64xf32>
    %114 = arith.subf %104, %113 : vector<16x64xf32>
    %115 = arith.mulf %114, %114 : vector<16x64xf32>
    %cst_23 = arith.constant dense<0.000000e+00> : vector<16xf32>
    %116 = vector.multi_reduction <add>, %115, %cst_23 [1] : vector<16x64xf32> to vector<16xf32>
    %117 = vector.shape_cast %116 : vector<16xf32> to vector<16x1xf32>
    %cst_24 = arith.constant 6.400000e+01 : f32
    %118 = vector.broadcast %cst_24 : f32 to vector<16x1xf32>
    %119 = arith.divf %117, %118 : vector<16x1xf32>
    %120 = vector.broadcast %112 : vector<16x1xf32> to vector<16x64xf32>
    %121 = arith.subf %104, %120 : vector<16x64xf32>
    %cst_25 = arith.constant 9.99999996E-13 : f32
    %122 = vector.broadcast %cst_25 : f32 to vector<16x1xf32>
    %123 = arith.addf %119, %122 : vector<16x1xf32>
    %124 = math.rsqrt %123 : vector<16x1xf32>
    %125 = vector.broadcast %124 : vector<16x1xf32> to vector<16x64xf32>
    %126 = arith.mulf %121, %125 : vector<16x64xf32>
    %127 = vector.shape_cast %106 : vector<64xf32> to vector<1x64xf32>
    %128 = vector.broadcast %127 : vector<1x64xf32> to vector<16x64xf32>
    %129 = arith.mulf %126, %128 : vector<16x64xf32>
    %130 = vector.shape_cast %108 : vector<64xf32> to vector<1x64xf32>
    %131 = vector.broadcast %130 : vector<1x64xf32> to vector<16x64xf32>
    %132 = arith.addf %129, %131 : vector<16x64xf32>
    %133 = arith.truncf %132 : vector<16x64xf32> to vector<16x64xbf16>
    %c0_26 = arith.constant 0 : index
    %c0_27 = arith.constant 0 : index
    %c0_28 = arith.constant 0 : index
    %134 = vector.load %arg4[%c0_26, %c0_27, %c0_28] : memref<2x64x128xbf16, #tpu.memory_space<vmem>>, vector<1x64x128xbf16>
    %135 = vector.shape_cast %134 : vector<1x64x128xbf16> to vector<64x128xbf16>
    %cst_29 = arith.constant dense<0.000000e+00> : vector<16x128xf32>
    %136 = tpu.matmul %133, %135, %cst_29 {dimension_numbers = #tpu.dot_dimension_numbers<[1], [0], [0], [1], [0, 0, 1, 1], [], []>} : vector<16x64xbf16>, vector<64x128xbf16>, vector<16x128xf32> -> vector<16x128xf32>
    %c0_30 = arith.constant 0 : index
    %c0_31 = arith.constant 0 : index
    %137 = vector.load %arg7[%c0_30, %c0_31] : memref<2x128xf32, #tpu.memory_space<vmem>>, vector<1x128xf32>
    %138 = vector.shape_cast %137 : vector<1x128xf32> to vector<128xf32>
    %139 = vector.shape_cast %138 : vector<128xf32> to vector<1x128xf32>
    %140 = vector.broadcast %139 : vector<1x128xf32> to vector<16x128xf32>
    %141 = arith.addf %136, %140 : vector<16x128xf32>
    %cst_32 = arith.constant 5.000000e-01 : f32
    %142 = vector.broadcast %cst_32 : f32 to vector<16x128xf32>
    %143 = arith.mulf %142, %141 : vector<16x128xf32>
    %cst_33 = arith.constant 4.471500e-02 : f32
    %144 = vector.broadcast %cst_33 : f32 to vector<16x128xf32>
    %145 = arith.mulf %144, %141 : vector<16x128xf32>
    %146 = arith.mulf %145, %141 : vector<16x128xf32>
    %147 = arith.mulf %146, %141 : vector<16x128xf32>
    %148 = arith.addf %141, %147 : vector<16x128xf32>
    %cst_34 = arith.constant 0.797884583 : f32
    %149 = vector.broadcast %cst_34 : f32 to vector<16x128xf32>
    %150 = arith.mulf %149, %148 : vector<16x128xf32>
    %151 = math.tanh %150 : vector<16x128xf32>
    %cst_35 = arith.constant 1.000000e+00 : f32
    %152 = vector.broadcast %cst_35 : f32 to vector<16x128xf32>
    %153 = arith.addf %152, %151 : vector<16x128xf32>
    %154 = arith.mulf %143, %153 : vector<16x128xf32>
    %155 = arith.truncf %154 : vector<16x128xf32> to vector<16x128xbf16>
    %c0_36 = arith.constant 0 : index
    %c0_37 = arith.constant 0 : index
    %c0_38 = arith.constant 0 : index
    %156 = vector.load %arg5[%c0_36, %c0_37, %c0_38] : memref<2x128x64xbf16, #tpu.memory_space<vmem>>, vector<1x128x64xbf16>
    %157 = vector.shape_cast %156 : vector<1x128x64xbf16> to vector<128x64xbf16>
    %cst_39 = arith.constant dense<0.000000e+00> : vector<16x64xf32>
    %158 = tpu.matmul %155, %157, %cst_39 {dimension_numbers = #tpu.dot_dimension_numbers<[1], [0], [0], [1], [0, 0, 1, 1], [], []>} : vector<16x128xbf16>, vector<128x64xbf16>, vector<16x64xf32> -> vector<16x64xf32>
    %159 = vector.extract_strided_slice %9 {offsets = [6, 0], sizes = [1, 64], strides = [1, 1]} : vector<9x64xf32> to vector<1x64xf32>
    %160 = vector.shape_cast %159 : vector<1x64xf32> to vector<64xf32>
    %161 = vector.shape_cast %160 : vector<64xf32> to vector<1x64xf32>
    %162 = vector.broadcast %161 : vector<1x64xf32> to vector<16x64xf32>
    %163 = arith.addf %158, %162 : vector<16x64xf32>
    %164 = arith.addf %132, %163 : vector<16x64xf32>
    %165 = vector.extract_strided_slice %9 {offsets = [7, 0], sizes = [1, 64], strides = [1, 1]} : vector<9x64xf32> to vector<1x64xf32>
    %166 = vector.shape_cast %165 : vector<1x64xf32> to vector<64xf32>
    %167 = vector.extract_strided_slice %9 {offsets = [8, 0], sizes = [1, 64], strides = [1, 1]} : vector<9x64xf32> to vector<1x64xf32>
    %168 = vector.shape_cast %167 : vector<1x64xf32> to vector<64xf32>
    %cst_40 = arith.constant dense<0.000000e+00> : vector<16xf32>
    %169 = vector.multi_reduction <add>, %164, %cst_40 [1] : vector<16x64xf32> to vector<16xf32>
    %170 = vector.shape_cast %169 : vector<16xf32> to vector<16x1xf32>
    %cst_41 = arith.constant 6.400000e+01 : f32
    %171 = vector.broadcast %cst_41 : f32 to vector<16x1xf32>
    %172 = arith.divf %170, %171 : vector<16x1xf32>
    %173 = vector.broadcast %172 : vector<16x1xf32> to vector<16x64xf32>
    %174 = arith.subf %164, %173 : vector<16x64xf32>
    %175 = arith.mulf %174, %174 : vector<16x64xf32>
    %cst_42 = arith.constant dense<0.000000e+00> : vector<16xf32>
    %176 = vector.multi_reduction <add>, %175, %cst_42 [1] : vector<16x64xf32> to vector<16xf32>
    %177 = vector.shape_cast %176 : vector<16xf32> to vector<16x1xf32>
    %cst_43 = arith.constant 6.400000e+01 : f32
    %178 = vector.broadcast %cst_43 : f32 to vector<16x1xf32>
    %179 = arith.divf %177, %178 : vector<16x1xf32>
    %180 = vector.broadcast %172 : vector<16x1xf32> to vector<16x64xf32>
    %181 = arith.subf %164, %180 : vector<16x64xf32>
    %cst_44 = arith.constant 9.99999996E-13 : f32
    %182 = vector.broadcast %cst_44 : f32 to vector<16x1xf32>
    %183 = arith.addf %179, %182 : vector<16x1xf32>
    %184 = math.rsqrt %183 : vector<16x1xf32>
    %185 = vector.broadcast %184 : vector<16x1xf32> to vector<16x64xf32>
    %186 = arith.mulf %181, %185 : vector<16x64xf32>
    %187 = vector.shape_cast %166 : vector<64xf32> to vector<1x64xf32>
    %188 = vector.broadcast %187 : vector<1x64xf32> to vector<16x64xf32>
    %189 = arith.mulf %186, %188 : vector<16x64xf32>
    %190 = vector.shape_cast %168 : vector<64xf32> to vector<1x64xf32>
    %191 = vector.broadcast %190 : vector<1x64xf32> to vector<16x64xf32>
    %192 = arith.addf %189, %191 : vector<16x64xf32>
    %c1 = arith.constant 1 : index
    %c0_45 = arith.constant 0 : index
    %c0_46 = arith.constant 0 : index
    %c0_47 = arith.constant 0 : index
    %193 = vector.load %arg2[%c1, %c0_45, %c0_46, %c0_47] : memref<2x3x64x64xbf16, #tpu.memory_space<vmem>>, vector<1x3x64x64xbf16>
    %194 = vector.shape_cast %193 : vector<1x3x64x64xbf16> to vector<3x64x64xbf16>
    %c1_48 = arith.constant 1 : index
    %c0_49 = arith.constant 0 : index
    %c0_50 = arith.constant 0 : index
    %195 = vector.load %arg6[%c1_48, %c0_49, %c0_50] : memref<2x9x64xf32, #tpu.memory_space<vmem>>, vector<1x9x64xf32>
    %196 = vector.shape_cast %195 : vector<1x9x64xf32> to vector<9x64xf32>
    %197 = arith.truncf %192 : vector<16x64xf32> to vector<16x64xbf16>
    %198 = vector.extract_strided_slice %194 {offsets = [0, 0, 0], sizes = [1, 64, 64], strides = [1, 1, 1]} : vector<3x64x64xbf16> to vector<1x64x64xbf16>
    %199 = vector.shape_cast %198 : vector<1x64x64xbf16> to vector<64x64xbf16>
    %cst_51 = arith.constant dense<0.000000e+00> : vector<16x64xf32>
    %200 = tpu.matmul %197, %199, %cst_51 {dimension_numbers = #tpu.dot_dimension_numbers<[1], [0], [0], [1], [0, 0, 1, 1], [], []>} : vector<16x64xbf16>, vector<64x64xbf16>, vector<16x64xf32> -> vector<16x64xf32>
    %201 = vector.extract_strided_slice %196 {offsets = [0, 0], sizes = [1, 64], strides = [1, 1]} : vector<9x64xf32> to vector<1x64xf32>
    %202 = vector.shape_cast %201 : vector<1x64xf32> to vector<64xf32>
    %203 = vector.shape_cast %202 : vector<64xf32> to vector<1x64xf32>
    %204 = vector.broadcast %203 : vector<1x64xf32> to vector<16x64xf32>
    %205 = arith.addf %200, %204 : vector<16x64xf32>
    %206 = vector.extract_strided_slice %194 {offsets = [1, 0, 0], sizes = [1, 64, 64], strides = [1, 1, 1]} : vector<3x64x64xbf16> to vector<1x64x64xbf16>
    %207 = vector.shape_cast %206 : vector<1x64x64xbf16> to vector<64x64xbf16>
    %cst_52 = arith.constant dense<0.000000e+00> : vector<16x64xf32>
    %208 = tpu.matmul %197, %207, %cst_52 {dimension_numbers = #tpu.dot_dimension_numbers<[1], [0], [0], [1], [0, 0, 1, 1], [], []>} : vector<16x64xbf16>, vector<64x64xbf16>, vector<16x64xf32> -> vector<16x64xf32>
    %209 = vector.extract_strided_slice %196 {offsets = [1, 0], sizes = [1, 64], strides = [1, 1]} : vector<9x64xf32> to vector<1x64xf32>
    %210 = vector.shape_cast %209 : vector<1x64xf32> to vector<64xf32>
    %211 = vector.shape_cast %210 : vector<64xf32> to vector<1x64xf32>
    %212 = vector.broadcast %211 : vector<1x64xf32> to vector<16x64xf32>
    %213 = arith.addf %208, %212 : vector<16x64xf32>
    %214 = vector.extract_strided_slice %194 {offsets = [2, 0, 0], sizes = [1, 64, 64], strides = [1, 1, 1]} : vector<3x64x64xbf16> to vector<1x64x64xbf16>
    %215 = vector.shape_cast %214 : vector<1x64x64xbf16> to vector<64x64xbf16>
    %cst_53 = arith.constant dense<0.000000e+00> : vector<16x64xf32>
    %216 = tpu.matmul %197, %215, %cst_53 {dimension_numbers = #tpu.dot_dimension_numbers<[1], [0], [0], [1], [0, 0, 1, 1], [], []>} : vector<16x64xbf16>, vector<64x64xbf16>, vector<16x64xf32> -> vector<16x64xf32>
    %217 = vector.extract_strided_slice %196 {offsets = [2, 0], sizes = [1, 64], strides = [1, 1]} : vector<9x64xf32> to vector<1x64xf32>
    %218 = vector.shape_cast %217 : vector<1x64xf32> to vector<64xf32>
    %219 = vector.shape_cast %218 : vector<64xf32> to vector<1x64xf32>
    %220 = vector.broadcast %219 : vector<1x64xf32> to vector<16x64xf32>
    %221 = arith.addf %216, %220 : vector<16x64xf32>
    %222 = arith.truncf %205 : vector<16x64xf32> to vector<16x64xbf16>
    %223 = vector.extract_strided_slice %222 {offsets = [0, 0], sizes = [16, 16], strides = [1, 1]} : vector<16x64xbf16> to vector<16x16xbf16>
    %224 = vector.extract_strided_slice %222 {offsets = [0, 16], sizes = [16, 16], strides = [1, 1]} : vector<16x64xbf16> to vector<16x16xbf16>
    %225 = vector.extract_strided_slice %222 {offsets = [0, 32], sizes = [16, 16], strides = [1, 1]} : vector<16x64xbf16> to vector<16x16xbf16>
    %226 = vector.extract_strided_slice %222 {offsets = [0, 48], sizes = [16, 16], strides = [1, 1]} : vector<16x64xbf16> to vector<16x16xbf16>
    %227 = vector.shape_cast %223 : vector<16x16xbf16> to vector<1x16x16xbf16>
    %228 = vector.shape_cast %224 : vector<16x16xbf16> to vector<1x16x16xbf16>
    %229 = vector.shape_cast %225 : vector<16x16xbf16> to vector<1x16x16xbf16>
    %230 = vector.shape_cast %226 : vector<16x16xbf16> to vector<1x16x16xbf16>
    %231 = tpu.concatenate %227, %228, %229, %230 in 0 : vector<1x16x16xbf16>, vector<1x16x16xbf16>, vector<1x16x16xbf16>, vector<1x16x16xbf16> -> vector<4x16x16xbf16>
    %232 = vector.shape_cast %231 : vector<4x16x16xbf16> to vector<8x8x16xbf16>
    %233 = arith.truncf %213 : vector<16x64xf32> to vector<16x64xbf16>
    %234 = vector.extract_strided_slice %233 {offsets = [0, 0], sizes = [16, 16], strides = [1, 1]} : vector<16x64xbf16> to vector<16x16xbf16>
    %235 = vector.extract_strided_slice %233 {offsets = [0, 16], sizes = [16, 16], strides = [1, 1]} : vector<16x64xbf16> to vector<16x16xbf16>
    %236 = vector.extract_strided_slice %233 {offsets = [0, 32], sizes = [16, 16], strides = [1, 1]} : vector<16x64xbf16> to vector<16x16xbf16>
    %237 = vector.extract_strided_slice %233 {offsets = [0, 48], sizes = [16, 16], strides = [1, 1]} : vector<16x64xbf16> to vector<16x16xbf16>
    %238 = vector.shape_cast %234 : vector<16x16xbf16> to vector<1x16x16xbf16>
    %239 = vector.shape_cast %235 : vector<16x16xbf16> to vector<1x16x16xbf16>
    %240 = vector.shape_cast %236 : vector<16x16xbf16> to vector<1x16x16xbf16>
    %241 = vector.shape_cast %237 : vector<16x16xbf16> to vector<1x16x16xbf16>
    %242 = tpu.concatenate %238, %239, %240, %241 in 0 : vector<1x16x16xbf16>, vector<1x16x16xbf16>, vector<1x16x16xbf16>, vector<1x16x16xbf16> -> vector<4x16x16xbf16>
    %243 = vector.shape_cast %242 : vector<4x16x16xbf16> to vector<8x8x16xbf16>
    %244 = arith.truncf %221 : vector<16x64xf32> to vector<16x64xbf16>
    %245 = vector.extract_strided_slice %244 {offsets = [0, 0], sizes = [16, 16], strides = [1, 1]} : vector<16x64xbf16> to vector<16x16xbf16>
    %246 = vector.extract_strided_slice %244 {offsets = [0, 16], sizes = [16, 16], strides = [1, 1]} : vector<16x64xbf16> to vector<16x16xbf16>
    %247 = vector.extract_strided_slice %244 {offsets = [0, 32], sizes = [16, 16], strides = [1, 1]} : vector<16x64xbf16> to vector<16x16xbf16>
    %248 = vector.extract_strided_slice %244 {offsets = [0, 48], sizes = [16, 16], strides = [1, 1]} : vector<16x64xbf16> to vector<16x16xbf16>
    %249 = vector.shape_cast %245 : vector<16x16xbf16> to vector<1x16x16xbf16>
    %250 = vector.shape_cast %246 : vector<16x16xbf16> to vector<1x16x16xbf16>
    %251 = vector.shape_cast %247 : vector<16x16xbf16> to vector<1x16x16xbf16>
    %252 = vector.shape_cast %248 : vector<16x16xbf16> to vector<1x16x16xbf16>
    %253 = tpu.concatenate %249, %250, %251, %252 in 0 : vector<1x16x16xbf16>, vector<1x16x16xbf16>, vector<1x16x16xbf16>, vector<1x16x16xbf16> -> vector<4x16x16xbf16>
    %254 = vector.shape_cast %253 : vector<4x16x16xbf16> to vector<8x8x16xbf16>
    "tpu.trace_start"() <{level = 10 : i32, message = "bqd,bkd->bqk"}> : () -> ()
    %cst_54 = arith.constant dense<0.000000e+00> : vector<8x8x8xf32>
    %255 = tpu.matmul %232, %243, %cst_54 {dimension_numbers = #tpu.dot_dimension_numbers<[2], [2], [1], [1], [0, 0, 0, 1, 1, 1], [0], [0]>} : vector<8x8x16xbf16>, vector<8x8x16xbf16>, vector<8x8x8xf32> -> vector<8x8x8xf32>
    "tpu.trace_stop"() : () -> ()
    %cst_55 = arith.constant 2.500000e-01 : f32
    %256 = vector.broadcast %cst_55 : f32 to vector<8x8x8xf32>
    %257 = arith.mulf %255, %256 : vector<8x8x8xf32>
    %258 = vector.broadcast %5 : vector<8x1x8xf32> to vector<8x8x8xf32>
    %259 = arith.addf %257, %258 : vector<8x8x8xf32>
    %cst_56 = arith.constant dense<0xFF800000> : vector<8x8xf32>
    %260 = vector.multi_reduction <maximumf>, %259, %cst_56 [2] : vector<8x8x8xf32> to vector<8x8xf32>
    %261 = vector.shape_cast %260 : vector<8x8xf32> to vector<8x8x1xf32>
    %262 = vector.broadcast %261 : vector<8x8x1xf32> to vector<8x8x8xf32>
    %263 = arith.subf %259, %262 : vector<8x8x8xf32>
    %264 = math.exp %263 : vector<8x8x8xf32>
    %cst_57 = arith.constant dense<0.000000e+00> : vector<8x8xf32>
    %265 = vector.multi_reduction <add>, %264, %cst_57 [2] : vector<8x8x8xf32> to vector<8x8xf32>
    %266 = vector.shape_cast %265 : vector<8x8xf32> to vector<8x8x1xf32>
    %267 = tpu.reciprocal %266 {approx = true} : vector<8x8x1xf32> -> vector<8x8x1xf32>
    %268 = vector.broadcast %267 : vector<8x8x1xf32> to vector<8x8x8xf32>
    %269 = arith.mulf %264, %268 : vector<8x8x8xf32>
    %270 = arith.truncf %269 : vector<8x8x8xf32> to vector<8x8x8xbf16>
    "tpu.trace_start"() <{level = 10 : i32, message = "bqk,bkd->bqd"}> : () -> ()
    %cst_58 = arith.constant dense<0.000000e+00> : vector<8x8x16xf32>
    %271 = tpu.matmul %270, %254, %cst_58 {dimension_numbers = #tpu.dot_dimension_numbers<[2], [1], [1], [2], [0, 0, 0, 1, 1, 2], [0], [0]>} : vector<8x8x8xbf16>, vector<8x8x16xbf16>, vector<8x8x16xf32> -> vector<8x8x16xf32>
    "tpu.trace_stop"() : () -> ()
    %272 = vector.shape_cast %271 : vector<8x8x16xf32> to vector<4x16x16xf32>
    %273 = vector.extract_strided_slice %272 {offsets = [0, 0, 0], sizes = [1, 16, 16], strides = [1, 1, 1]} : vector<4x16x16xf32> to vector<1x16x16xf32>
    %274 = vector.shape_cast %273 : vector<1x16x16xf32> to vector<16x16xf32>
    %275 = vector.extract_strided_slice %272 {offsets = [1, 0, 0], sizes = [1, 16, 16], strides = [1, 1, 1]} : vector<4x16x16xf32> to vector<1x16x16xf32>
    %276 = vector.shape_cast %275 : vector<1x16x16xf32> to vector<16x16xf32>
    %277 = vector.extract_strided_slice %272 {offsets = [2, 0, 0], sizes = [1, 16, 16], strides = [1, 1, 1]} : vector<4x16x16xf32> to vector<1x16x16xf32>
    %278 = vector.shape_cast %277 : vector<1x16x16xf32> to vector<16x16xf32>
    %279 = vector.extract_strided_slice %272 {offsets = [3, 0, 0], sizes = [1, 16, 16], strides = [1, 1, 1]} : vector<4x16x16xf32> to vector<1x16x16xf32>
    %280 = vector.shape_cast %279 : vector<1x16x16xf32> to vector<16x16xf32>
    %281 = tpu.concatenate %274, %276, %278, %280 in 1 : vector<16x16xf32>, vector<16x16xf32>, vector<16x16xf32>, vector<16x16xf32> -> vector<16x64xf32>
    %282 = arith.truncf %281 : vector<16x64xf32> to vector<16x64xbf16>
    %c1_59 = arith.constant 1 : index
    %c0_60 = arith.constant 0 : index
    %c0_61 = arith.constant 0 : index
    %283 = vector.load %arg3[%c1_59, %c0_60, %c0_61] : memref<2x64x64xbf16, #tpu.memory_space<vmem>>, vector<1x64x64xbf16>
    %284 = vector.shape_cast %283 : vector<1x64x64xbf16> to vector<64x64xbf16>
    %cst_62 = arith.constant dense<0.000000e+00> : vector<16x64xf32>
    %285 = tpu.matmul %282, %284, %cst_62 {dimension_numbers = #tpu.dot_dimension_numbers<[1], [0], [0], [1], [0, 0, 1, 1], [], []>} : vector<16x64xbf16>, vector<64x64xbf16>, vector<16x64xf32> -> vector<16x64xf32>
    %286 = vector.extract_strided_slice %196 {offsets = [3, 0], sizes = [1, 64], strides = [1, 1]} : vector<9x64xf32> to vector<1x64xf32>
    %287 = vector.shape_cast %286 : vector<1x64xf32> to vector<64xf32>
    %288 = vector.shape_cast %287 : vector<64xf32> to vector<1x64xf32>
    %289 = vector.broadcast %288 : vector<1x64xf32> to vector<16x64xf32>
    %290 = arith.addf %285, %289 : vector<16x64xf32>
    %291 = arith.addf %192, %290 : vector<16x64xf32>
    %292 = vector.extract_strided_slice %196 {offsets = [4, 0], sizes = [1, 64], strides = [1, 1]} : vector<9x64xf32> to vector<1x64xf32>
    %293 = vector.shape_cast %292 : vector<1x64xf32> to vector<64xf32>
    %294 = vector.extract_strided_slice %196 {offsets = [5, 0], sizes = [1, 64], strides = [1, 1]} : vector<9x64xf32> to vector<1x64xf32>
    %295 = vector.shape_cast %294 : vector<1x64xf32> to vector<64xf32>
    %cst_63 = arith.constant dense<0.000000e+00> : vector<16xf32>
    %296 = vector.multi_reduction <add>, %291, %cst_63 [1] : vector<16x64xf32> to vector<16xf32>
    %297 = vector.shape_cast %296 : vector<16xf32> to vector<16x1xf32>
    %cst_64 = arith.constant 6.400000e+01 : f32
    %298 = vector.broadcast %cst_64 : f32 to vector<16x1xf32>
    %299 = arith.divf %297, %298 : vector<16x1xf32>
    %300 = vector.broadcast %299 : vector<16x1xf32> to vector<16x64xf32>
    %301 = arith.subf %291, %300 : vector<16x64xf32>
    %302 = arith.mulf %301, %301 : vector<16x64xf32>
    %cst_65 = arith.constant dense<0.000000e+00> : vector<16xf32>
    %303 = vector.multi_reduction <add>, %302, %cst_65 [1] : vector<16x64xf32> to vector<16xf32>
    %304 = vector.shape_cast %303 : vector<16xf32> to vector<16x1xf32>
    %cst_66 = arith.constant 6.400000e+01 : f32
    %305 = vector.broadcast %cst_66 : f32 to vector<16x1xf32>
    %306 = arith.divf %304, %305 : vector<16x1xf32>
    %307 = vector.broadcast %299 : vector<16x1xf32> to vector<16x64xf32>
    %308 = arith.subf %291, %307 : vector<16x64xf32>
    %cst_67 = arith.constant 9.99999996E-13 : f32
    %309 = vector.broadcast %cst_67 : f32 to vector<16x1xf32>
    %310 = arith.addf %306, %309 : vector<16x1xf32>
    %311 = math.rsqrt %310 : vector<16x1xf32>
    %312 = vector.broadcast %311 : vector<16x1xf32> to vector<16x64xf32>
    %313 = arith.mulf %308, %312 : vector<16x64xf32>
    %314 = vector.shape_cast %293 : vector<64xf32> to vector<1x64xf32>
    %315 = vector.broadcast %314 : vector<1x64xf32> to vector<16x64xf32>
    %316 = arith.mulf %313, %315 : vector<16x64xf32>
    %317 = vector.shape_cast %295 : vector<64xf32> to vector<1x64xf32>
    %318 = vector.broadcast %317 : vector<1x64xf32> to vector<16x64xf32>
    %319 = arith.addf %316, %318 : vector<16x64xf32>
    %320 = arith.truncf %319 : vector<16x64xf32> to vector<16x64xbf16>
    %c1_68 = arith.constant 1 : index
    %c0_69 = arith.constant 0 : index
    %c0_70 = arith.constant 0 : index
    %321 = vector.load %arg4[%c1_68, %c0_69, %c0_70] : memref<2x64x128xbf16, #tpu.memory_space<vmem>>, vector<1x64x128xbf16>
    %322 = vector.shape_cast %321 : vector<1x64x128xbf16> to vector<64x128xbf16>
    %cst_71 = arith.constant dense<0.000000e+00> : vector<16x128xf32>
    %323 = tpu.matmul %320, %322, %cst_71 {dimension_numbers = #tpu.dot_dimension_numbers<[1], [0], [0], [1], [0, 0, 1, 1], [], []>} : vector<16x64xbf16>, vector<64x128xbf16>, vector<16x128xf32> -> vector<16x128xf32>
    %c1_72 = arith.constant 1 : index
    %c0_73 = arith.constant 0 : index
    %324 = vector.load %arg7[%c1_72, %c0_73] : memref<2x128xf32, #tpu.memory_space<vmem>>, vector<1x128xf32>
    %325 = vector.shape_cast %324 : vector<1x128xf32> to vector<128xf32>
    %326 = vector.shape_cast %325 : vector<128xf32> to vector<1x128xf32>
    %327 = vector.broadcast %326 : vector<1x128xf32> to vector<16x128xf32>
    %328 = arith.addf %323, %327 : vector<16x128xf32>
    %cst_74 = arith.constant 5.000000e-01 : f32
    %329 = vector.broadcast %cst_74 : f32 to vector<16x128xf32>
    %330 = arith.mulf %329, %328 : vector<16x128xf32>
    %cst_75 = arith.constant 4.471500e-02 : f32
    %331 = vector.broadcast %cst_75 : f32 to vector<16x128xf32>
    %332 = arith.mulf %331, %328 : vector<16x128xf32>
    %333 = arith.mulf %332, %328 : vector<16x128xf32>
    %334 = arith.mulf %333, %328 : vector<16x128xf32>
    %335 = arith.addf %328, %334 : vector<16x128xf32>
    %cst_76 = arith.constant 0.797884583 : f32
    %336 = vector.broadcast %cst_76 : f32 to vector<16x128xf32>
    %337 = arith.mulf %336, %335 : vector<16x128xf32>
    %338 = math.tanh %337 : vector<16x128xf32>
    %cst_77 = arith.constant 1.000000e+00 : f32
    %339 = vector.broadcast %cst_77 : f32 to vector<16x128xf32>
    %340 = arith.addf %339, %338 : vector<16x128xf32>
    %341 = arith.mulf %330, %340 : vector<16x128xf32>
    %342 = arith.truncf %341 : vector<16x128xf32> to vector<16x128xbf16>
    %c1_78 = arith.constant 1 : index
    %c0_79 = arith.constant 0 : index
    %c0_80 = arith.constant 0 : index
    %343 = vector.load %arg5[%c1_78, %c0_79, %c0_80] : memref<2x128x64xbf16, #tpu.memory_space<vmem>>, vector<1x128x64xbf16>
    %344 = vector.shape_cast %343 : vector<1x128x64xbf16> to vector<128x64xbf16>
    %cst_81 = arith.constant dense<0.000000e+00> : vector<16x64xf32>
    %345 = tpu.matmul %342, %344, %cst_81 {dimension_numbers = #tpu.dot_dimension_numbers<[1], [0], [0], [1], [0, 0, 1, 1], [], []>} : vector<16x128xbf16>, vector<128x64xbf16>, vector<16x64xf32> -> vector<16x64xf32>
    %346 = vector.extract_strided_slice %196 {offsets = [6, 0], sizes = [1, 64], strides = [1, 1]} : vector<9x64xf32> to vector<1x64xf32>
    %347 = vector.shape_cast %346 : vector<1x64xf32> to vector<64xf32>
    %348 = vector.shape_cast %347 : vector<64xf32> to vector<1x64xf32>
    %349 = vector.broadcast %348 : vector<1x64xf32> to vector<16x64xf32>
    %350 = arith.addf %345, %349 : vector<16x64xf32>
    %351 = arith.addf %319, %350 : vector<16x64xf32>
    %352 = vector.extract_strided_slice %196 {offsets = [7, 0], sizes = [1, 64], strides = [1, 1]} : vector<9x64xf32> to vector<1x64xf32>
    %353 = vector.shape_cast %352 : vector<1x64xf32> to vector<64xf32>
    %354 = vector.extract_strided_slice %196 {offsets = [8, 0], sizes = [1, 64], strides = [1, 1]} : vector<9x64xf32> to vector<1x64xf32>
    %355 = vector.shape_cast %354 : vector<1x64xf32> to vector<64xf32>
    %cst_82 = arith.constant dense<0.000000e+00> : vector<16xf32>
    %356 = vector.multi_reduction <add>, %351, %cst_82 [1] : vector<16x64xf32> to vector<16xf32>
    %357 = vector.shape_cast %356 : vector<16xf32> to vector<16x1xf32>
    %cst_83 = arith.constant 6.400000e+01 : f32
    %358 = vector.broadcast %cst_83 : f32 to vector<16x1xf32>
    %359 = arith.divf %357, %358 : vector<16x1xf32>
    %360 = vector.broadcast %359 : vector<16x1xf32> to vector<16x64xf32>
    %361 = arith.subf %351, %360 : vector<16x64xf32>
    %362 = arith.mulf %361, %361 : vector<16x64xf32>
    %cst_84 = arith.constant dense<0.000000e+00> : vector<16xf32>
    %363 = vector.multi_reduction <add>, %362, %cst_84 [1] : vector<16x64xf32> to vector<16xf32>
    %364 = vector.shape_cast %363 : vector<16xf32> to vector<16x1xf32>
    %cst_85 = arith.constant 6.400000e+01 : f32
    %365 = vector.broadcast %cst_85 : f32 to vector<16x1xf32>
    %366 = arith.divf %364, %365 : vector<16x1xf32>
    %367 = vector.broadcast %359 : vector<16x1xf32> to vector<16x64xf32>
    %368 = arith.subf %351, %367 : vector<16x64xf32>
    %cst_86 = arith.constant 9.99999996E-13 : f32
    %369 = vector.broadcast %cst_86 : f32 to vector<16x1xf32>
    %370 = arith.addf %366, %369 : vector<16x1xf32>
    %371 = math.rsqrt %370 : vector<16x1xf32>
    %372 = vector.broadcast %371 : vector<16x1xf32> to vector<16x64xf32>
    %373 = arith.mulf %368, %372 : vector<16x64xf32>
    %374 = vector.shape_cast %353 : vector<64xf32> to vector<1x64xf32>
    %375 = vector.broadcast %374 : vector<1x64xf32> to vector<16x64xf32>
    %376 = arith.mulf %373, %375 : vector<16x64xf32>
    %377 = vector.shape_cast %355 : vector<64xf32> to vector<1x64xf32>
    %378 = vector.broadcast %377 : vector<1x64xf32> to vector<16x64xf32>
    %379 = arith.addf %376, %378 : vector<16x64xf32>
    %c0_87 = arith.constant 0 : index
    %c0_88 = arith.constant 0 : index
    %380 = vector.load %arg8[%c0_87, %c0_88] : memref<96x128xf32, #tpu.memory_space<vmem>>, vector<96x128xf32>
    %381 = vector.extract_strided_slice %380 {offsets = [0, 0], sizes = [64, 128], strides = [1, 1]} : vector<96x128xf32> to vector<64x128xf32>
    %382 = vector.extract_strided_slice %380 {offsets = [64, 0], sizes = [32, 128], strides = [1, 1]} : vector<96x128xf32> to vector<32x128xf32>
    %c0_89 = arith.constant 0 : index
    %c0_90 = arith.constant 0 : index
    %c0_91 = arith.constant 0 : index
    %383 = vector.load %arg9[%c0_89, %c0_90, %c0_91] : memref<2x32x128xf32, #tpu.memory_space<vmem>>, vector<1x32x128xf32>
    %384 = vector.shape_cast %383 : vector<1x32x128xf32> to vector<32x128xf32>
    %c1_92 = arith.constant 1 : index
    %c0_93 = arith.constant 0 : index
    %c0_94 = arith.constant 0 : index
    %385 = vector.load %arg9[%c1_92, %c0_93, %c0_94] : memref<2x32x128xf32, #tpu.memory_space<vmem>>, vector<1x32x128xf32>
    %386 = vector.shape_cast %385 : vector<1x32x128xf32> to vector<32x128xf32>
    %c0_95 = arith.constant 0 : index
    %c0_96 = arith.constant 0 : index
    %387 = vector.load %arg10[%c0_95, %c0_96] : memref<4x128xf32, #tpu.memory_space<vmem>>, vector<4x128xf32>
    %388 = vector.extract_strided_slice %387 {offsets = [0, 0], sizes = [1, 128], strides = [1, 1]} : vector<4x128xf32> to vector<1x128xf32>
    %389 = vector.shape_cast %388 : vector<1x128xf32> to vector<128xf32>
    %390 = vector.extract_strided_slice %387 {offsets = [1, 0], sizes = [1, 128], strides = [1, 1]} : vector<4x128xf32> to vector<1x128xf32>
    %391 = vector.shape_cast %390 : vector<1x128xf32> to vector<128xf32>
    %392 = vector.extract_strided_slice %387 {offsets = [2, 0], sizes = [1, 32], strides = [1, 1]} : vector<4x128xf32> to vector<1x32xf32>
    %393 = vector.shape_cast %392 : vector<1x32xf32> to vector<32xf32>
    %394 = vector.extract_strided_slice %387 {offsets = [3, 0], sizes = [1, 1], strides = [1, 1]} : vector<4x128xf32> to vector<1x1xf32>
    %cst_97 = arith.constant dense<0.000000e+00> : vector<16x128xf32>
    %395 = tpu.matmul %379, %381, %cst_97 {dimension_numbers = #tpu.dot_dimension_numbers<[1], [0], [0], [1], [0, 0, 1, 1], [], []>} : vector<16x64xf32>, vector<64x128xf32>, vector<16x128xf32> -> vector<16x128xf32>
    %396 = vector.shape_cast %389 : vector<128xf32> to vector<1x128xf32>
    %397 = vector.broadcast %396 : vector<1x128xf32> to vector<16x128xf32>
    %398 = arith.addf %395, %397 : vector<16x128xf32>
    %399 = vector.shape_cast %398 : vector<16x128xf32> to vector<2x8x128xf32>
    %cst_98 = arith.constant 0.000000e+00 : f32
    %400 = vector.broadcast %cst_98 : f32 to vector<2x32xf32>
    %cst_99 = arith.constant 0.000000e+00 : f32
    %401 = vector.broadcast %cst_99 : f32 to vector<2x32xf32>
    %cst_100 = arith.constant 0.000000e+00 : f32
    %402 = vector.broadcast %cst_100 : f32 to vector<2x32xf32>
    %cst_101 = arith.constant 0.000000e+00 : f32
    %403 = vector.broadcast %cst_101 : f32 to vector<2x32xf32>
    %404 = vector.extract_strided_slice %399 {offsets = [0, 0, 0], sizes = [2, 1, 128], strides = [1, 1, 1]} : vector<2x8x128xf32> to vector<2x1x128xf32>
    %405 = vector.shape_cast %404 : vector<2x1x128xf32> to vector<2x128xf32>
    %cst_102 = arith.constant dense<0.000000e+00> : vector<2x128xf32>
    %406 = tpu.matmul %400, %384, %cst_102 {dimension_numbers = #tpu.dot_dimension_numbers<[1], [0], [0], [1], [0, 0, 1, 1], [], []>} : vector<2x32xf32>, vector<32x128xf32>, vector<2x128xf32> -> vector<2x128xf32>
    %407 = arith.addf %405, %406 : vector<2x128xf32>
    %408 = vector.extract_strided_slice %407 {offsets = [0, 0], sizes = [2, 32], strides = [1, 1]} : vector<2x128xf32> to vector<2x32xf32>
    %409 = arith.negf %408 : vector<2x32xf32>
    %410 = math.exp %409 : vector<2x32xf32>
    %cst_103 = arith.constant 1.000000e+00 : f32
    %411 = vector.broadcast %cst_103 : f32 to vector<2x32xf32>
    %412 = arith.addf %411, %410 : vector<2x32xf32>
    %413 = arith.divf %411, %412 : vector<2x32xf32>
    %414 = vector.extract_strided_slice %407 {offsets = [0, 32], sizes = [2, 32], strides = [1, 1]} : vector<2x128xf32> to vector<2x32xf32>
    %415 = arith.negf %414 : vector<2x32xf32>
    %416 = math.exp %415 : vector<2x32xf32>
    %cst_104 = arith.constant 1.000000e+00 : f32
    %417 = vector.broadcast %cst_104 : f32 to vector<2x32xf32>
    %418 = arith.addf %417, %416 : vector<2x32xf32>
    %419 = arith.divf %417, %418 : vector<2x32xf32>
    %420 = vector.extract_strided_slice %407 {offsets = [0, 64], sizes = [2, 32], strides = [1, 1]} : vector<2x128xf32> to vector<2x32xf32>
    %421 = math.tanh %420 : vector<2x32xf32>
    %422 = vector.extract_strided_slice %407 {offsets = [0, 96], sizes = [2, 32], strides = [1, 1]} : vector<2x128xf32> to vector<2x32xf32>
    %423 = arith.negf %422 : vector<2x32xf32>
    %424 = math.exp %423 : vector<2x32xf32>
    %cst_105 = arith.constant 1.000000e+00 : f32
    %425 = vector.broadcast %cst_105 : f32 to vector<2x32xf32>
    %426 = arith.addf %425, %424 : vector<2x32xf32>
    %427 = arith.divf %425, %426 : vector<2x32xf32>
    %428 = arith.mulf %419, %401 : vector<2x32xf32>
    %429 = arith.mulf %413, %421 : vector<2x32xf32>
    %430 = arith.addf %428, %429 : vector<2x32xf32>
    %431 = math.tanh %430 : vector<2x32xf32>
    %432 = arith.mulf %427, %431 : vector<2x32xf32>
    %cst_106 = arith.constant dense<0.000000e+00> : vector<2x128xf32>
    %433 = tpu.matmul %432, %382, %cst_106 {dimension_numbers = #tpu.dot_dimension_numbers<[1], [0], [0], [1], [0, 0, 1, 1], [], []>} : vector<2x32xf32>, vector<32x128xf32>, vector<2x128xf32> -> vector<2x128xf32>
    %434 = vector.shape_cast %391 : vector<128xf32> to vector<1x128xf32>
    %435 = vector.broadcast %434 : vector<1x128xf32> to vector<2x128xf32>
    %436 = arith.addf %433, %435 : vector<2x128xf32>
    %cst_107 = arith.constant dense<0.000000e+00> : vector<2x128xf32>
    %437 = tpu.matmul %402, %386, %cst_107 {dimension_numbers = #tpu.dot_dimension_numbers<[1], [0], [0], [1], [0, 0, 1, 1], [], []>} : vector<2x32xf32>, vector<32x128xf32>, vector<2x128xf32> -> vector<2x128xf32>
    %438 = arith.addf %436, %437 : vector<2x128xf32>
    %439 = vector.extract_strided_slice %438 {offsets = [0, 0], sizes = [2, 32], strides = [1, 1]} : vector<2x128xf32> to vector<2x32xf32>
    %440 = arith.negf %439 : vector<2x32xf32>
    %441 = math.exp %440 : vector<2x32xf32>
    %cst_108 = arith.constant 1.000000e+00 : f32
    %442 = vector.broadcast %cst_108 : f32 to vector<2x32xf32>
    %443 = arith.addf %442, %441 : vector<2x32xf32>
    %444 = arith.divf %442, %443 : vector<2x32xf32>
    %445 = vector.extract_strided_slice %438 {offsets = [0, 32], sizes = [2, 32], strides = [1, 1]} : vector<2x128xf32> to vector<2x32xf32>
    %446 = arith.negf %445 : vector<2x32xf32>
    %447 = math.exp %446 : vector<2x32xf32>
    %cst_109 = arith.constant 1.000000e+00 : f32
    %448 = vector.broadcast %cst_109 : f32 to vector<2x32xf32>
    %449 = arith.addf %448, %447 : vector<2x32xf32>
    %450 = arith.divf %448, %449 : vector<2x32xf32>
    %451 = vector.extract_strided_slice %438 {offsets = [0, 64], sizes = [2, 32], strides = [1, 1]} : vector<2x128xf32> to vector<2x32xf32>
    %452 = math.tanh %451 : vector<2x32xf32>
    %453 = vector.extract_strided_slice %438 {offsets = [0, 96], sizes = [2, 32], strides = [1, 1]} : vector<2x128xf32> to vector<2x32xf32>
    %454 = arith.negf %453 : vector<2x32xf32>
    %455 = math.exp %454 : vector<2x32xf32>
    %cst_110 = arith.constant 1.000000e+00 : f32
    %456 = vector.broadcast %cst_110 : f32 to vector<2x32xf32>
    %457 = arith.addf %456, %455 : vector<2x32xf32>
    %458 = arith.divf %456, %457 : vector<2x32xf32>
    %459 = arith.mulf %450, %403 : vector<2x32xf32>
    %460 = arith.mulf %444, %452 : vector<2x32xf32>
    %461 = arith.addf %459, %460 : vector<2x32xf32>
    %462 = math.tanh %461 : vector<2x32xf32>
    %463 = arith.mulf %458, %462 : vector<2x32xf32>
    %464 = vector.extract_strided_slice %399 {offsets = [0, 1, 0], sizes = [2, 1, 128], strides = [1, 1, 1]} : vector<2x8x128xf32> to vector<2x1x128xf32>
    %465 = vector.shape_cast %464 : vector<2x1x128xf32> to vector<2x128xf32>
    %cst_111 = arith.constant dense<0.000000e+00> : vector<2x128xf32>
    %466 = tpu.matmul %432, %384, %cst_111 {dimension_numbers = #tpu.dot_dimension_numbers<[1], [0], [0], [1], [0, 0, 1, 1], [], []>} : vector<2x32xf32>, vector<32x128xf32>, vector<2x128xf32> -> vector<2x128xf32>
    %467 = arith.addf %465, %466 : vector<2x128xf32>
    %468 = vector.extract_strided_slice %467 {offsets = [0, 0], sizes = [2, 32], strides = [1, 1]} : vector<2x128xf32> to vector<2x32xf32>
    %469 = arith.negf %468 : vector<2x32xf32>
    %470 = math.exp %469 : vector<2x32xf32>
    %cst_112 = arith.constant 1.000000e+00 : f32
    %471 = vector.broadcast %cst_112 : f32 to vector<2x32xf32>
    %472 = arith.addf %471, %470 : vector<2x32xf32>
    %473 = arith.divf %471, %472 : vector<2x32xf32>
    %474 = vector.extract_strided_slice %467 {offsets = [0, 32], sizes = [2, 32], strides = [1, 1]} : vector<2x128xf32> to vector<2x32xf32>
    %475 = arith.negf %474 : vector<2x32xf32>
    %476 = math.exp %475 : vector<2x32xf32>
    %cst_113 = arith.constant 1.000000e+00 : f32
    %477 = vector.broadcast %cst_113 : f32 to vector<2x32xf32>
    %478 = arith.addf %477, %476 : vector<2x32xf32>
    %479 = arith.divf %477, %478 : vector<2x32xf32>
    %480 = vector.extract_strided_slice %467 {offsets = [0, 64], sizes = [2, 32], strides = [1, 1]} : vector<2x128xf32> to vector<2x32xf32>
    %481 = math.tanh %480 : vector<2x32xf32>
    %482 = vector.extract_strided_slice %467 {offsets = [0, 96], sizes = [2, 32], strides = [1, 1]} : vector<2x128xf32> to vector<2x32xf32>
    %483 = arith.negf %482 : vector<2x32xf32>
    %484 = math.exp %483 : vector<2x32xf32>
    %cst_114 = arith.constant 1.000000e+00 : f32
    %485 = vector.broadcast %cst_114 : f32 to vector<2x32xf32>
    %486 = arith.addf %485, %484 : vector<2x32xf32>
    %487 = arith.divf %485, %486 : vector<2x32xf32>
    %488 = arith.mulf %479, %430 : vector<2x32xf32>
    %489 = arith.mulf %473, %481 : vector<2x32xf32>
    %490 = arith.addf %488, %489 : vector<2x32xf32>
    %491 = math.tanh %490 : vector<2x32xf32>
    %492 = arith.mulf %487, %491 : vector<2x32xf32>
    %cst_115 = arith.constant dense<0.000000e+00> : vector<2x128xf32>
    %493 = tpu.matmul %492, %382, %cst_115 {dimension_numbers = #tpu.dot_dimension_numbers<[1], [0], [0], [1], [0, 0, 1, 1], [], []>} : vector<2x32xf32>, vector<32x128xf32>, vector<2x128xf32> -> vector<2x128xf32>
    %494 = vector.shape_cast %391 : vector<128xf32> to vector<1x128xf32>
    %495 = vector.broadcast %494 : vector<1x128xf32> to vector<2x128xf32>
    %496 = arith.addf %493, %495 : vector<2x128xf32>
    %cst_116 = arith.constant dense<0.000000e+00> : vector<2x128xf32>
    %497 = tpu.matmul %463, %386, %cst_116 {dimension_numbers = #tpu.dot_dimension_numbers<[1], [0], [0], [1], [0, 0, 1, 1], [], []>} : vector<2x32xf32>, vector<32x128xf32>, vector<2x128xf32> -> vector<2x128xf32>
    %498 = arith.addf %496, %497 : vector<2x128xf32>
    %499 = vector.extract_strided_slice %498 {offsets = [0, 0], sizes = [2, 32], strides = [1, 1]} : vector<2x128xf32> to vector<2x32xf32>
    %500 = arith.negf %499 : vector<2x32xf32>
    %501 = math.exp %500 : vector<2x32xf32>
    %cst_117 = arith.constant 1.000000e+00 : f32
    %502 = vector.broadcast %cst_117 : f32 to vector<2x32xf32>
    %503 = arith.addf %502, %501 : vector<2x32xf32>
    %504 = arith.divf %502, %503 : vector<2x32xf32>
    %505 = vector.extract_strided_slice %498 {offsets = [0, 32], sizes = [2, 32], strides = [1, 1]} : vector<2x128xf32> to vector<2x32xf32>
    %506 = arith.negf %505 : vector<2x32xf32>
    %507 = math.exp %506 : vector<2x32xf32>
    %cst_118 = arith.constant 1.000000e+00 : f32
    %508 = vector.broadcast %cst_118 : f32 to vector<2x32xf32>
    %509 = arith.addf %508, %507 : vector<2x32xf32>
    %510 = arith.divf %508, %509 : vector<2x32xf32>
    %511 = vector.extract_strided_slice %498 {offsets = [0, 64], sizes = [2, 32], strides = [1, 1]} : vector<2x128xf32> to vector<2x32xf32>
    %512 = math.tanh %511 : vector<2x32xf32>
    %513 = vector.extract_strided_slice %498 {offsets = [0, 96], sizes = [2, 32], strides = [1, 1]} : vector<2x128xf32> to vector<2x32xf32>
    %514 = arith.negf %513 : vector<2x32xf32>
    %515 = math.exp %514 : vector<2x32xf32>
    %cst_119 = arith.constant 1.000000e+00 : f32
    %516 = vector.broadcast %cst_119 : f32 to vector<2x32xf32>
    %517 = arith.addf %516, %515 : vector<2x32xf32>
    %518 = arith.divf %516, %517 : vector<2x32xf32>
    %519 = arith.mulf %510, %461 : vector<2x32xf32>
    %520 = arith.mulf %504, %512 : vector<2x32xf32>
    %521 = arith.addf %519, %520 : vector<2x32xf32>
    %522 = math.tanh %521 : vector<2x32xf32>
    %523 = arith.mulf %518, %522 : vector<2x32xf32>
    %524 = vector.extract_strided_slice %399 {offsets = [0, 2, 0], sizes = [2, 1, 128], strides = [1, 1, 1]} : vector<2x8x128xf32> to vector<2x1x128xf32>
    %525 = vector.shape_cast %524 : vector<2x1x128xf32> to vector<2x128xf32>
    %cst_120 = arith.constant dense<0.000000e+00> : vector<2x128xf32>
    %526 = tpu.matmul %492, %384, %cst_120 {dimension_numbers = #tpu.dot_dimension_numbers<[1], [0], [0], [1], [0, 0, 1, 1], [], []>} : vector<2x32xf32>, vector<32x128xf32>, vector<2x128xf32> -> vector<2x128xf32>
    %527 = arith.addf %525, %526 : vector<2x128xf32>
    %528 = vector.extract_strided_slice %527 {offsets = [0, 0], sizes = [2, 32], strides = [1, 1]} : vector<2x128xf32> to vector<2x32xf32>
    %529 = arith.negf %528 : vector<2x32xf32>
    %530 = math.exp %529 : vector<2x32xf32>
    %cst_121 = arith.constant 1.000000e+00 : f32
    %531 = vector.broadcast %cst_121 : f32 to vector<2x32xf32>
    %532 = arith.addf %531, %530 : vector<2x32xf32>
    %533 = arith.divf %531, %532 : vector<2x32xf32>
    %534 = vector.extract_strided_slice %527 {offsets = [0, 32], sizes = [2, 32], strides = [1, 1]} : vector<2x128xf32> to vector<2x32xf32>
    %535 = arith.negf %534 : vector<2x32xf32>
    %536 = math.exp %535 : vector<2x32xf32>
    %cst_122 = arith.constant 1.000000e+00 : f32
    %537 = vector.broadcast %cst_122 : f32 to vector<2x32xf32>
    %538 = arith.addf %537, %536 : vector<2x32xf32>
    %539 = arith.divf %537, %538 : vector<2x32xf32>
    %540 = vector.extract_strided_slice %527 {offsets = [0, 64], sizes = [2, 32], strides = [1, 1]} : vector<2x128xf32> to vector<2x32xf32>
    %541 = math.tanh %540 : vector<2x32xf32>
    %542 = vector.extract_strided_slice %527 {offsets = [0, 96], sizes = [2, 32], strides = [1, 1]} : vector<2x128xf32> to vector<2x32xf32>
    %543 = arith.negf %542 : vector<2x32xf32>
    %544 = math.exp %543 : vector<2x32xf32>
    %cst_123 = arith.constant 1.000000e+00 : f32
    %545 = vector.broadcast %cst_123 : f32 to vector<2x32xf32>
    %546 = arith.addf %545, %544 : vector<2x32xf32>
    %547 = arith.divf %545, %546 : vector<2x32xf32>
    %548 = arith.mulf %539, %490 : vector<2x32xf32>
    %549 = arith.mulf %533, %541 : vector<2x32xf32>
    %550 = arith.addf %548, %549 : vector<2x32xf32>
    %551 = math.tanh %550 : vector<2x32xf32>
    %552 = arith.mulf %547, %551 : vector<2x32xf32>
    %cst_124 = arith.constant dense<0.000000e+00> : vector<2x128xf32>
    %553 = tpu.matmul %552, %382, %cst_124 {dimension_numbers = #tpu.dot_dimension_numbers<[1], [0], [0], [1], [0, 0, 1, 1], [], []>} : vector<2x32xf32>, vector<32x128xf32>, vector<2x128xf32> -> vector<2x128xf32>
    %554 = vector.shape_cast %391 : vector<128xf32> to vector<1x128xf32>
    %555 = vector.broadcast %554 : vector<1x128xf32> to vector<2x128xf32>
    %556 = arith.addf %553, %555 : vector<2x128xf32>
    %cst_125 = arith.constant dense<0.000000e+00> : vector<2x128xf32>
    %557 = tpu.matmul %523, %386, %cst_125 {dimension_numbers = #tpu.dot_dimension_numbers<[1], [0], [0], [1], [0, 0, 1, 1], [], []>} : vector<2x32xf32>, vector<32x128xf32>, vector<2x128xf32> -> vector<2x128xf32>
    %558 = arith.addf %556, %557 : vector<2x128xf32>
    %559 = vector.extract_strided_slice %558 {offsets = [0, 0], sizes = [2, 32], strides = [1, 1]} : vector<2x128xf32> to vector<2x32xf32>
    %560 = arith.negf %559 : vector<2x32xf32>
    %561 = math.exp %560 : vector<2x32xf32>
    %cst_126 = arith.constant 1.000000e+00 : f32
    %562 = vector.broadcast %cst_126 : f32 to vector<2x32xf32>
    %563 = arith.addf %562, %561 : vector<2x32xf32>
    %564 = arith.divf %562, %563 : vector<2x32xf32>
    %565 = vector.extract_strided_slice %558 {offsets = [0, 32], sizes = [2, 32], strides = [1, 1]} : vector<2x128xf32> to vector<2x32xf32>
    %566 = arith.negf %565 : vector<2x32xf32>
    %567 = math.exp %566 : vector<2x32xf32>
    %cst_127 = arith.constant 1.000000e+00 : f32
    %568 = vector.broadcast %cst_127 : f32 to vector<2x32xf32>
    %569 = arith.addf %568, %567 : vector<2x32xf32>
    %570 = arith.divf %568, %569 : vector<2x32xf32>
    %571 = vector.extract_strided_slice %558 {offsets = [0, 64], sizes = [2, 32], strides = [1, 1]} : vector<2x128xf32> to vector<2x32xf32>
    %572 = math.tanh %571 : vector<2x32xf32>
    %573 = vector.extract_strided_slice %558 {offsets = [0, 96], sizes = [2, 32], strides = [1, 1]} : vector<2x128xf32> to vector<2x32xf32>
    %574 = arith.negf %573 : vector<2x32xf32>
    %575 = math.exp %574 : vector<2x32xf32>
    %cst_128 = arith.constant 1.000000e+00 : f32
    %576 = vector.broadcast %cst_128 : f32 to vector<2x32xf32>
    %577 = arith.addf %576, %575 : vector<2x32xf32>
    %578 = arith.divf %576, %577 : vector<2x32xf32>
    %579 = arith.mulf %570, %521 : vector<2x32xf32>
    %580 = arith.mulf %564, %572 : vector<2x32xf32>
    %581 = arith.addf %579, %580 : vector<2x32xf32>
    %582 = math.tanh %581 : vector<2x32xf32>
    %583 = arith.mulf %578, %582 : vector<2x32xf32>
    %584 = vector.extract_strided_slice %399 {offsets = [0, 3, 0], sizes = [2, 1, 128], strides = [1, 1, 1]} : vector<2x8x128xf32> to vector<2x1x128xf32>
    %585 = vector.shape_cast %584 : vector<2x1x128xf32> to vector<2x128xf32>
    %cst_129 = arith.constant dense<0.000000e+00> : vector<2x128xf32>
    %586 = tpu.matmul %552, %384, %cst_129 {dimension_numbers = #tpu.dot_dimension_numbers<[1], [0], [0], [1], [0, 0, 1, 1], [], []>} : vector<2x32xf32>, vector<32x128xf32>, vector<2x128xf32> -> vector<2x128xf32>
    %587 = arith.addf %585, %586 : vector<2x128xf32>
    %588 = vector.extract_strided_slice %587 {offsets = [0, 0], sizes = [2, 32], strides = [1, 1]} : vector<2x128xf32> to vector<2x32xf32>
    %589 = arith.negf %588 : vector<2x32xf32>
    %590 = math.exp %589 : vector<2x32xf32>
    %cst_130 = arith.constant 1.000000e+00 : f32
    %591 = vector.broadcast %cst_130 : f32 to vector<2x32xf32>
    %592 = arith.addf %591, %590 : vector<2x32xf32>
    %593 = arith.divf %591, %592 : vector<2x32xf32>
    %594 = vector.extract_strided_slice %587 {offsets = [0, 32], sizes = [2, 32], strides = [1, 1]} : vector<2x128xf32> to vector<2x32xf32>
    %595 = arith.negf %594 : vector<2x32xf32>
    %596 = math.exp %595 : vector<2x32xf32>
    %cst_131 = arith.constant 1.000000e+00 : f32
    %597 = vector.broadcast %cst_131 : f32 to vector<2x32xf32>
    %598 = arith.addf %597, %596 : vector<2x32xf32>
    %599 = arith.divf %597, %598 : vector<2x32xf32>
    %600 = vector.extract_strided_slice %587 {offsets = [0, 64], sizes = [2, 32], strides = [1, 1]} : vector<2x128xf32> to vector<2x32xf32>
    %601 = math.tanh %600 : vector<2x32xf32>
    %602 = vector.extract_strided_slice %587 {offsets = [0, 96], sizes = [2, 32], strides = [1, 1]} : vector<2x128xf32> to vector<2x32xf32>
    %603 = arith.negf %602 : vector<2x32xf32>
    %604 = math.exp %603 : vector<2x32xf32>
    %cst_132 = arith.constant 1.000000e+00 : f32
    %605 = vector.broadcast %cst_132 : f32 to vector<2x32xf32>
    %606 = arith.addf %605, %604 : vector<2x32xf32>
    %607 = arith.divf %605, %606 : vector<2x32xf32>
    %608 = arith.mulf %599, %550 : vector<2x32xf32>
    %609 = arith.mulf %593, %601 : vector<2x32xf32>
    %610 = arith.addf %608, %609 : vector<2x32xf32>
    %611 = math.tanh %610 : vector<2x32xf32>
    %612 = arith.mulf %607, %611 : vector<2x32xf32>
    %cst_133 = arith.constant dense<0.000000e+00> : vector<2x128xf32>
    %613 = tpu.matmul %612, %382, %cst_133 {dimension_numbers = #tpu.dot_dimension_numbers<[1], [0], [0], [1], [0, 0, 1, 1], [], []>} : vector<2x32xf32>, vector<32x128xf32>, vector<2x128xf32> -> vector<2x128xf32>
    %614 = vector.shape_cast %391 : vector<128xf32> to vector<1x128xf32>
    %615 = vector.broadcast %614 : vector<1x128xf32> to vector<2x128xf32>
    %616 = arith.addf %613, %615 : vector<2x128xf32>
    %cst_134 = arith.constant dense<0.000000e+00> : vector<2x128xf32>
    %617 = tpu.matmul %583, %386, %cst_134 {dimension_numbers = #tpu.dot_dimension_numbers<[1], [0], [0], [1], [0, 0, 1, 1], [], []>} : vector<2x32xf32>, vector<32x128xf32>, vector<2x128xf32> -> vector<2x128xf32>
    %618 = arith.addf %616, %617 : vector<2x128xf32>
    %619 = vector.extract_strided_slice %618 {offsets = [0, 0], sizes = [2, 32], strides = [1, 1]} : vector<2x128xf32> to vector<2x32xf32>
    %620 = arith.negf %619 : vector<2x32xf32>
    %621 = math.exp %620 : vector<2x32xf32>
    %cst_135 = arith.constant 1.000000e+00 : f32
    %622 = vector.broadcast %cst_135 : f32 to vector<2x32xf32>
    %623 = arith.addf %622, %621 : vector<2x32xf32>
    %624 = arith.divf %622, %623 : vector<2x32xf32>
    %625 = vector.extract_strided_slice %618 {offsets = [0, 32], sizes = [2, 32], strides = [1, 1]} : vector<2x128xf32> to vector<2x32xf32>
    %626 = arith.negf %625 : vector<2x32xf32>
    %627 = math.exp %626 : vector<2x32xf32>
    %cst_136 = arith.constant 1.000000e+00 : f32
    %628 = vector.broadcast %cst_136 : f32 to vector<2x32xf32>
    %629 = arith.addf %628, %627 : vector<2x32xf32>
    %630 = arith.divf %628, %629 : vector<2x32xf32>
    %631 = vector.extract_strided_slice %618 {offsets = [0, 64], sizes = [2, 32], strides = [1, 1]} : vector<2x128xf32> to vector<2x32xf32>
    %632 = math.tanh %631 : vector<2x32xf32>
    %633 = vector.extract_strided_slice %618 {offsets = [0, 96], sizes = [2, 32], strides = [1, 1]} : vector<2x128xf32> to vector<2x32xf32>
    %634 = arith.negf %633 : vector<2x32xf32>
    %635 = math.exp %634 : vector<2x32xf32>
    %cst_137 = arith.constant 1.000000e+00 : f32
    %636 = vector.broadcast %cst_137 : f32 to vector<2x32xf32>
    %637 = arith.addf %636, %635 : vector<2x32xf32>
    %638 = arith.divf %636, %637 : vector<2x32xf32>
    %639 = arith.mulf %630, %581 : vector<2x32xf32>
    %640 = arith.mulf %624, %632 : vector<2x32xf32>
    %641 = arith.addf %639, %640 : vector<2x32xf32>
    %642 = math.tanh %641 : vector<2x32xf32>
    %643 = arith.mulf %638, %642 : vector<2x32xf32>
    %644 = vector.extract_strided_slice %399 {offsets = [0, 4, 0], sizes = [2, 1, 128], strides = [1, 1, 1]} : vector<2x8x128xf32> to vector<2x1x128xf32>
    %645 = vector.shape_cast %644 : vector<2x1x128xf32> to vector<2x128xf32>
    %cst_138 = arith.constant dense<0.000000e+00> : vector<2x128xf32>
    %646 = tpu.matmul %612, %384, %cst_138 {dimension_numbers = #tpu.dot_dimension_numbers<[1], [0], [0], [1], [0, 0, 1, 1], [], []>} : vector<2x32xf32>, vector<32x128xf32>, vector<2x128xf32> -> vector<2x128xf32>
    %647 = arith.addf %645, %646 : vector<2x128xf32>
    %648 = vector.extract_strided_slice %647 {offsets = [0, 0], sizes = [2, 32], strides = [1, 1]} : vector<2x128xf32> to vector<2x32xf32>
    %649 = arith.negf %648 : vector<2x32xf32>
    %650 = math.exp %649 : vector<2x32xf32>
    %cst_139 = arith.constant 1.000000e+00 : f32
    %651 = vector.broadcast %cst_139 : f32 to vector<2x32xf32>
    %652 = arith.addf %651, %650 : vector<2x32xf32>
    %653 = arith.divf %651, %652 : vector<2x32xf32>
    %654 = vector.extract_strided_slice %647 {offsets = [0, 32], sizes = [2, 32], strides = [1, 1]} : vector<2x128xf32> to vector<2x32xf32>
    %655 = arith.negf %654 : vector<2x32xf32>
    %656 = math.exp %655 : vector<2x32xf32>
    %cst_140 = arith.constant 1.000000e+00 : f32
    %657 = vector.broadcast %cst_140 : f32 to vector<2x32xf32>
    %658 = arith.addf %657, %656 : vector<2x32xf32>
    %659 = arith.divf %657, %658 : vector<2x32xf32>
    %660 = vector.extract_strided_slice %647 {offsets = [0, 64], sizes = [2, 32], strides = [1, 1]} : vector<2x128xf32> to vector<2x32xf32>
    %661 = math.tanh %660 : vector<2x32xf32>
    %662 = vector.extract_strided_slice %647 {offsets = [0, 96], sizes = [2, 32], strides = [1, 1]} : vector<2x128xf32> to vector<2x32xf32>
    %663 = arith.negf %662 : vector<2x32xf32>
    %664 = math.exp %663 : vector<2x32xf32>
    %cst_141 = arith.constant 1.000000e+00 : f32
    %665 = vector.broadcast %cst_141 : f32 to vector<2x32xf32>
    %666 = arith.addf %665, %664 : vector<2x32xf32>
    %667 = arith.divf %665, %666 : vector<2x32xf32>
    %668 = arith.mulf %659, %610 : vector<2x32xf32>
    %669 = arith.mulf %653, %661 : vector<2x32xf32>
    %670 = arith.addf %668, %669 : vector<2x32xf32>
    %671 = math.tanh %670 : vector<2x32xf32>
    %672 = arith.mulf %667, %671 : vector<2x32xf32>
    %cst_142 = arith.constant dense<0.000000e+00> : vector<2x128xf32>
    %673 = tpu.matmul %672, %382, %cst_142 {dimension_numbers = #tpu.dot_dimension_numbers<[1], [0], [0], [1], [0, 0, 1, 1], [], []>} : vector<2x32xf32>, vector<32x128xf32>, vector<2x128xf32> -> vector<2x128xf32>
    %674 = vector.shape_cast %391 : vector<128xf32> to vector<1x128xf32>
    %675 = vector.broadcast %674 : vector<1x128xf32> to vector<2x128xf32>
    %676 = arith.addf %673, %675 : vector<2x128xf32>
    %cst_143 = arith.constant dense<0.000000e+00> : vector<2x128xf32>
    %677 = tpu.matmul %643, %386, %cst_143 {dimension_numbers = #tpu.dot_dimension_numbers<[1], [0], [0], [1], [0, 0, 1, 1], [], []>} : vector<2x32xf32>, vector<32x128xf32>, vector<2x128xf32> -> vector<2x128xf32>
    %678 = arith.addf %676, %677 : vector<2x128xf32>
    %679 = vector.extract_strided_slice %678 {offsets = [0, 0], sizes = [2, 32], strides = [1, 1]} : vector<2x128xf32> to vector<2x32xf32>
    %680 = arith.negf %679 : vector<2x32xf32>
    %681 = math.exp %680 : vector<2x32xf32>
    %cst_144 = arith.constant 1.000000e+00 : f32
    %682 = vector.broadcast %cst_144 : f32 to vector<2x32xf32>
    %683 = arith.addf %682, %681 : vector<2x32xf32>
    %684 = arith.divf %682, %683 : vector<2x32xf32>
    %685 = vector.extract_strided_slice %678 {offsets = [0, 32], sizes = [2, 32], strides = [1, 1]} : vector<2x128xf32> to vector<2x32xf32>
    %686 = arith.negf %685 : vector<2x32xf32>
    %687 = math.exp %686 : vector<2x32xf32>
    %cst_145 = arith.constant 1.000000e+00 : f32
    %688 = vector.broadcast %cst_145 : f32 to vector<2x32xf32>
    %689 = arith.addf %688, %687 : vector<2x32xf32>
    %690 = arith.divf %688, %689 : vector<2x32xf32>
    %691 = vector.extract_strided_slice %678 {offsets = [0, 64], sizes = [2, 32], strides = [1, 1]} : vector<2x128xf32> to vector<2x32xf32>
    %692 = math.tanh %691 : vector<2x32xf32>
    %693 = vector.extract_strided_slice %678 {offsets = [0, 96], sizes = [2, 32], strides = [1, 1]} : vector<2x128xf32> to vector<2x32xf32>
    %694 = arith.negf %693 : vector<2x32xf32>
    %695 = math.exp %694 : vector<2x32xf32>
    %cst_146 = arith.constant 1.000000e+00 : f32
    %696 = vector.broadcast %cst_146 : f32 to vector<2x32xf32>
    %697 = arith.addf %696, %695 : vector<2x32xf32>
    %698 = arith.divf %696, %697 : vector<2x32xf32>
    %699 = arith.mulf %690, %641 : vector<2x32xf32>
    %700 = arith.mulf %684, %692 : vector<2x32xf32>
    %701 = arith.addf %699, %700 : vector<2x32xf32>
    %702 = math.tanh %701 : vector<2x32xf32>
    %703 = arith.mulf %698, %702 : vector<2x32xf32>
    %704 = vector.extract_strided_slice %399 {offsets = [0, 5, 0], sizes = [2, 1, 128], strides = [1, 1, 1]} : vector<2x8x128xf32> to vector<2x1x128xf32>
    %705 = vector.shape_cast %704 : vector<2x1x128xf32> to vector<2x128xf32>
    %cst_147 = arith.constant dense<0.000000e+00> : vector<2x128xf32>
    %706 = tpu.matmul %672, %384, %cst_147 {dimension_numbers = #tpu.dot_dimension_numbers<[1], [0], [0], [1], [0, 0, 1, 1], [], []>} : vector<2x32xf32>, vector<32x128xf32>, vector<2x128xf32> -> vector<2x128xf32>
    %707 = arith.addf %705, %706 : vector<2x128xf32>
    %708 = vector.extract_strided_slice %707 {offsets = [0, 0], sizes = [2, 32], strides = [1, 1]} : vector<2x128xf32> to vector<2x32xf32>
    %709 = arith.negf %708 : vector<2x32xf32>
    %710 = math.exp %709 : vector<2x32xf32>
    %cst_148 = arith.constant 1.000000e+00 : f32
    %711 = vector.broadcast %cst_148 : f32 to vector<2x32xf32>
    %712 = arith.addf %711, %710 : vector<2x32xf32>
    %713 = arith.divf %711, %712 : vector<2x32xf32>
    %714 = vector.extract_strided_slice %707 {offsets = [0, 32], sizes = [2, 32], strides = [1, 1]} : vector<2x128xf32> to vector<2x32xf32>
    %715 = arith.negf %714 : vector<2x32xf32>
    %716 = math.exp %715 : vector<2x32xf32>
    %cst_149 = arith.constant 1.000000e+00 : f32
    %717 = vector.broadcast %cst_149 : f32 to vector<2x32xf32>
    %718 = arith.addf %717, %716 : vector<2x32xf32>
    %719 = arith.divf %717, %718 : vector<2x32xf32>
    %720 = vector.extract_strided_slice %707 {offsets = [0, 64], sizes = [2, 32], strides = [1, 1]} : vector<2x128xf32> to vector<2x32xf32>
    %721 = math.tanh %720 : vector<2x32xf32>
    %722 = vector.extract_strided_slice %707 {offsets = [0, 96], sizes = [2, 32], strides = [1, 1]} : vector<2x128xf32> to vector<2x32xf32>
    %723 = arith.negf %722 : vector<2x32xf32>
    %724 = math.exp %723 : vector<2x32xf32>
    %cst_150 = arith.constant 1.000000e+00 : f32
    %725 = vector.broadcast %cst_150 : f32 to vector<2x32xf32>
    %726 = arith.addf %725, %724 : vector<2x32xf32>
    %727 = arith.divf %725, %726 : vector<2x32xf32>
    %728 = arith.mulf %719, %670 : vector<2x32xf32>
    %729 = arith.mulf %713, %721 : vector<2x32xf32>
    %730 = arith.addf %728, %729 : vector<2x32xf32>
    %731 = math.tanh %730 : vector<2x32xf32>
    %732 = arith.mulf %727, %731 : vector<2x32xf32>
    %cst_151 = arith.constant dense<0.000000e+00> : vector<2x128xf32>
    %733 = tpu.matmul %732, %382, %cst_151 {dimension_numbers = #tpu.dot_dimension_numbers<[1], [0], [0], [1], [0, 0, 1, 1], [], []>} : vector<2x32xf32>, vector<32x128xf32>, vector<2x128xf32> -> vector<2x128xf32>
    %734 = vector.shape_cast %391 : vector<128xf32> to vector<1x128xf32>
    %735 = vector.broadcast %734 : vector<1x128xf32> to vector<2x128xf32>
    %736 = arith.addf %733, %735 : vector<2x128xf32>
    %cst_152 = arith.constant dense<0.000000e+00> : vector<2x128xf32>
    %737 = tpu.matmul %703, %386, %cst_152 {dimension_numbers = #tpu.dot_dimension_numbers<[1], [0], [0], [1], [0, 0, 1, 1], [], []>} : vector<2x32xf32>, vector<32x128xf32>, vector<2x128xf32> -> vector<2x128xf32>
    %738 = arith.addf %736, %737 : vector<2x128xf32>
    %739 = vector.extract_strided_slice %738 {offsets = [0, 0], sizes = [2, 32], strides = [1, 1]} : vector<2x128xf32> to vector<2x32xf32>
    %740 = arith.negf %739 : vector<2x32xf32>
    %741 = math.exp %740 : vector<2x32xf32>
    %cst_153 = arith.constant 1.000000e+00 : f32
    %742 = vector.broadcast %cst_153 : f32 to vector<2x32xf32>
    %743 = arith.addf %742, %741 : vector<2x32xf32>
    %744 = arith.divf %742, %743 : vector<2x32xf32>
    %745 = vector.extract_strided_slice %738 {offsets = [0, 32], sizes = [2, 32], strides = [1, 1]} : vector<2x128xf32> to vector<2x32xf32>
    %746 = arith.negf %745 : vector<2x32xf32>
    %747 = math.exp %746 : vector<2x32xf32>
    %cst_154 = arith.constant 1.000000e+00 : f32
    %748 = vector.broadcast %cst_154 : f32 to vector<2x32xf32>
    %749 = arith.addf %748, %747 : vector<2x32xf32>
    %750 = arith.divf %748, %749 : vector<2x32xf32>
    %751 = vector.extract_strided_slice %738 {offsets = [0, 64], sizes = [2, 32], strides = [1, 1]} : vector<2x128xf32> to vector<2x32xf32>
    %752 = math.tanh %751 : vector<2x32xf32>
    %753 = vector.extract_strided_slice %738 {offsets = [0, 96], sizes = [2, 32], strides = [1, 1]} : vector<2x128xf32> to vector<2x32xf32>
    %754 = arith.negf %753 : vector<2x32xf32>
    %755 = math.exp %754 : vector<2x32xf32>
    %cst_155 = arith.constant 1.000000e+00 : f32
    %756 = vector.broadcast %cst_155 : f32 to vector<2x32xf32>
    %757 = arith.addf %756, %755 : vector<2x32xf32>
    %758 = arith.divf %756, %757 : vector<2x32xf32>
    %759 = arith.mulf %750, %701 : vector<2x32xf32>
    %760 = arith.mulf %744, %752 : vector<2x32xf32>
    %761 = arith.addf %759, %760 : vector<2x32xf32>
    %762 = math.tanh %761 : vector<2x32xf32>
    %763 = arith.mulf %758, %762 : vector<2x32xf32>
    %764 = vector.extract_strided_slice %399 {offsets = [0, 6, 0], sizes = [2, 1, 128], strides = [1, 1, 1]} : vector<2x8x128xf32> to vector<2x1x128xf32>
    %765 = vector.shape_cast %764 : vector<2x1x128xf32> to vector<2x128xf32>
    %cst_156 = arith.constant dense<0.000000e+00> : vector<2x128xf32>
    %766 = tpu.matmul %732, %384, %cst_156 {dimension_numbers = #tpu.dot_dimension_numbers<[1], [0], [0], [1], [0, 0, 1, 1], [], []>} : vector<2x32xf32>, vector<32x128xf32>, vector<2x128xf32> -> vector<2x128xf32>
    %767 = arith.addf %765, %766 : vector<2x128xf32>
    %768 = vector.extract_strided_slice %767 {offsets = [0, 0], sizes = [2, 32], strides = [1, 1]} : vector<2x128xf32> to vector<2x32xf32>
    %769 = arith.negf %768 : vector<2x32xf32>
    %770 = math.exp %769 : vector<2x32xf32>
    %cst_157 = arith.constant 1.000000e+00 : f32
    %771 = vector.broadcast %cst_157 : f32 to vector<2x32xf32>
    %772 = arith.addf %771, %770 : vector<2x32xf32>
    %773 = arith.divf %771, %772 : vector<2x32xf32>
    %774 = vector.extract_strided_slice %767 {offsets = [0, 32], sizes = [2, 32], strides = [1, 1]} : vector<2x128xf32> to vector<2x32xf32>
    %775 = arith.negf %774 : vector<2x32xf32>
    %776 = math.exp %775 : vector<2x32xf32>
    %cst_158 = arith.constant 1.000000e+00 : f32
    %777 = vector.broadcast %cst_158 : f32 to vector<2x32xf32>
    %778 = arith.addf %777, %776 : vector<2x32xf32>
    %779 = arith.divf %777, %778 : vector<2x32xf32>
    %780 = vector.extract_strided_slice %767 {offsets = [0, 64], sizes = [2, 32], strides = [1, 1]} : vector<2x128xf32> to vector<2x32xf32>
    %781 = math.tanh %780 : vector<2x32xf32>
    %782 = vector.extract_strided_slice %767 {offsets = [0, 96], sizes = [2, 32], strides = [1, 1]} : vector<2x128xf32> to vector<2x32xf32>
    %783 = arith.negf %782 : vector<2x32xf32>
    %784 = math.exp %783 : vector<2x32xf32>
    %cst_159 = arith.constant 1.000000e+00 : f32
    %785 = vector.broadcast %cst_159 : f32 to vector<2x32xf32>
    %786 = arith.addf %785, %784 : vector<2x32xf32>
    %787 = arith.divf %785, %786 : vector<2x32xf32>
    %788 = arith.mulf %779, %730 : vector<2x32xf32>
    %789 = arith.mulf %773, %781 : vector<2x32xf32>
    %790 = arith.addf %788, %789 : vector<2x32xf32>
    %791 = math.tanh %790 : vector<2x32xf32>
    %792 = arith.mulf %787, %791 : vector<2x32xf32>
    %cst_160 = arith.constant dense<0.000000e+00> : vector<2x128xf32>
    %793 = tpu.matmul %792, %382, %cst_160 {dimension_numbers = #tpu.dot_dimension_numbers<[1], [0], [0], [1], [0, 0, 1, 1], [], []>} : vector<2x32xf32>, vector<32x128xf32>, vector<2x128xf32> -> vector<2x128xf32>
    %794 = vector.shape_cast %391 : vector<128xf32> to vector<1x128xf32>
    %795 = vector.broadcast %794 : vector<1x128xf32> to vector<2x128xf32>
    %796 = arith.addf %793, %795 : vector<2x128xf32>
    %cst_161 = arith.constant dense<0.000000e+00> : vector<2x128xf32>
    %797 = tpu.matmul %763, %386, %cst_161 {dimension_numbers = #tpu.dot_dimension_numbers<[1], [0], [0], [1], [0, 0, 1, 1], [], []>} : vector<2x32xf32>, vector<32x128xf32>, vector<2x128xf32> -> vector<2x128xf32>
    %798 = arith.addf %796, %797 : vector<2x128xf32>
    %799 = vector.extract_strided_slice %798 {offsets = [0, 0], sizes = [2, 32], strides = [1, 1]} : vector<2x128xf32> to vector<2x32xf32>
    %800 = arith.negf %799 : vector<2x32xf32>
    %801 = math.exp %800 : vector<2x32xf32>
    %cst_162 = arith.constant 1.000000e+00 : f32
    %802 = vector.broadcast %cst_162 : f32 to vector<2x32xf32>
    %803 = arith.addf %802, %801 : vector<2x32xf32>
    %804 = arith.divf %802, %803 : vector<2x32xf32>
    %805 = vector.extract_strided_slice %798 {offsets = [0, 32], sizes = [2, 32], strides = [1, 1]} : vector<2x128xf32> to vector<2x32xf32>
    %806 = arith.negf %805 : vector<2x32xf32>
    %807 = math.exp %806 : vector<2x32xf32>
    %cst_163 = arith.constant 1.000000e+00 : f32
    %808 = vector.broadcast %cst_163 : f32 to vector<2x32xf32>
    %809 = arith.addf %808, %807 : vector<2x32xf32>
    %810 = arith.divf %808, %809 : vector<2x32xf32>
    %811 = vector.extract_strided_slice %798 {offsets = [0, 64], sizes = [2, 32], strides = [1, 1]} : vector<2x128xf32> to vector<2x32xf32>
    %812 = math.tanh %811 : vector<2x32xf32>
    %813 = vector.extract_strided_slice %798 {offsets = [0, 96], sizes = [2, 32], strides = [1, 1]} : vector<2x128xf32> to vector<2x32xf32>
    %814 = arith.negf %813 : vector<2x32xf32>
    %815 = math.exp %814 : vector<2x32xf32>
    %cst_164 = arith.constant 1.000000e+00 : f32
    %816 = vector.broadcast %cst_164 : f32 to vector<2x32xf32>
    %817 = arith.addf %816, %815 : vector<2x32xf32>
    %818 = arith.divf %816, %817 : vector<2x32xf32>
    %819 = arith.mulf %810, %761 : vector<2x32xf32>
    %820 = arith.mulf %804, %812 : vector<2x32xf32>
    %821 = arith.addf %819, %820 : vector<2x32xf32>
    %822 = math.tanh %821 : vector<2x32xf32>
    %823 = arith.mulf %818, %822 : vector<2x32xf32>
    %824 = vector.extract_strided_slice %399 {offsets = [0, 7, 0], sizes = [2, 1, 128], strides = [1, 1, 1]} : vector<2x8x128xf32> to vector<2x1x128xf32>
    %825 = vector.shape_cast %824 : vector<2x1x128xf32> to vector<2x128xf32>
    %cst_165 = arith.constant dense<0.000000e+00> : vector<2x128xf32>
    %826 = tpu.matmul %792, %384, %cst_165 {dimension_numbers = #tpu.dot_dimension_numbers<[1], [0], [0], [1], [0, 0, 1, 1], [], []>} : vector<2x32xf32>, vector<32x128xf32>, vector<2x128xf32> -> vector<2x128xf32>
    %827 = arith.addf %825, %826 : vector<2x128xf32>
    %828 = vector.extract_strided_slice %827 {offsets = [0, 0], sizes = [2, 32], strides = [1, 1]} : vector<2x128xf32> to vector<2x32xf32>
    %829 = arith.negf %828 : vector<2x32xf32>
    %830 = math.exp %829 : vector<2x32xf32>
    %cst_166 = arith.constant 1.000000e+00 : f32
    %831 = vector.broadcast %cst_166 : f32 to vector<2x32xf32>
    %832 = arith.addf %831, %830 : vector<2x32xf32>
    %833 = arith.divf %831, %832 : vector<2x32xf32>
    %834 = vector.extract_strided_slice %827 {offsets = [0, 32], sizes = [2, 32], strides = [1, 1]} : vector<2x128xf32> to vector<2x32xf32>
    %835 = arith.negf %834 : vector<2x32xf32>
    %836 = math.exp %835 : vector<2x32xf32>
    %cst_167 = arith.constant 1.000000e+00 : f32
    %837 = vector.broadcast %cst_167 : f32 to vector<2x32xf32>
    %838 = arith.addf %837, %836 : vector<2x32xf32>
    %839 = arith.divf %837, %838 : vector<2x32xf32>
    %840 = vector.extract_strided_slice %827 {offsets = [0, 64], sizes = [2, 32], strides = [1, 1]} : vector<2x128xf32> to vector<2x32xf32>
    %841 = math.tanh %840 : vector<2x32xf32>
    %842 = vector.extract_strided_slice %827 {offsets = [0, 96], sizes = [2, 32], strides = [1, 1]} : vector<2x128xf32> to vector<2x32xf32>
    %843 = arith.negf %842 : vector<2x32xf32>
    %844 = math.exp %843 : vector<2x32xf32>
    %cst_168 = arith.constant 1.000000e+00 : f32
    %845 = vector.broadcast %cst_168 : f32 to vector<2x32xf32>
    %846 = arith.addf %845, %844 : vector<2x32xf32>
    %847 = arith.divf %845, %846 : vector<2x32xf32>
    %848 = arith.mulf %839, %790 : vector<2x32xf32>
    %849 = arith.mulf %833, %841 : vector<2x32xf32>
    %850 = arith.addf %848, %849 : vector<2x32xf32>
    %851 = math.tanh %850 : vector<2x32xf32>
    %852 = arith.mulf %847, %851 : vector<2x32xf32>
    %cst_169 = arith.constant dense<0.000000e+00> : vector<2x128xf32>
    %853 = tpu.matmul %852, %382, %cst_169 {dimension_numbers = #tpu.dot_dimension_numbers<[1], [0], [0], [1], [0, 0, 1, 1], [], []>} : vector<2x32xf32>, vector<32x128xf32>, vector<2x128xf32> -> vector<2x128xf32>
    %854 = vector.shape_cast %391 : vector<128xf32> to vector<1x128xf32>
    %855 = vector.broadcast %854 : vector<1x128xf32> to vector<2x128xf32>
    %856 = arith.addf %853, %855 : vector<2x128xf32>
    %cst_170 = arith.constant dense<0.000000e+00> : vector<2x128xf32>
    %857 = tpu.matmul %823, %386, %cst_170 {dimension_numbers = #tpu.dot_dimension_numbers<[1], [0], [0], [1], [0, 0, 1, 1], [], []>} : vector<2x32xf32>, vector<32x128xf32>, vector<2x128xf32> -> vector<2x128xf32>
    %858 = arith.addf %856, %857 : vector<2x128xf32>
    %859 = vector.extract_strided_slice %858 {offsets = [0, 0], sizes = [2, 32], strides = [1, 1]} : vector<2x128xf32> to vector<2x32xf32>
    %860 = arith.negf %859 : vector<2x32xf32>
    %861 = math.exp %860 : vector<2x32xf32>
    %cst_171 = arith.constant 1.000000e+00 : f32
    %862 = vector.broadcast %cst_171 : f32 to vector<2x32xf32>
    %863 = arith.addf %862, %861 : vector<2x32xf32>
    %864 = arith.divf %862, %863 : vector<2x32xf32>
    %865 = vector.extract_strided_slice %858 {offsets = [0, 32], sizes = [2, 32], strides = [1, 1]} : vector<2x128xf32> to vector<2x32xf32>
    %866 = arith.negf %865 : vector<2x32xf32>
    %867 = math.exp %866 : vector<2x32xf32>
    %cst_172 = arith.constant 1.000000e+00 : f32
    %868 = vector.broadcast %cst_172 : f32 to vector<2x32xf32>
    %869 = arith.addf %868, %867 : vector<2x32xf32>
    %870 = arith.divf %868, %869 : vector<2x32xf32>
    %871 = vector.extract_strided_slice %858 {offsets = [0, 64], sizes = [2, 32], strides = [1, 1]} : vector<2x128xf32> to vector<2x32xf32>
    %872 = math.tanh %871 : vector<2x32xf32>
    %873 = vector.extract_strided_slice %858 {offsets = [0, 96], sizes = [2, 32], strides = [1, 1]} : vector<2x128xf32> to vector<2x32xf32>
    %874 = arith.negf %873 : vector<2x32xf32>
    %875 = math.exp %874 : vector<2x32xf32>
    %cst_173 = arith.constant 1.000000e+00 : f32
    %876 = vector.broadcast %cst_173 : f32 to vector<2x32xf32>
    %877 = arith.addf %876, %875 : vector<2x32xf32>
    %878 = arith.divf %876, %877 : vector<2x32xf32>
    %879 = arith.mulf %870, %821 : vector<2x32xf32>
    %880 = arith.mulf %864, %872 : vector<2x32xf32>
    %881 = arith.addf %879, %880 : vector<2x32xf32>
    %882 = math.tanh %881 : vector<2x32xf32>
    %883 = arith.mulf %878, %882 : vector<2x32xf32>
    %884 = vector.shape_cast %393 : vector<32xf32> to vector<1x32xf32>
    %885 = vector.broadcast %884 : vector<1x32xf32> to vector<2x32xf32>
    %886 = arith.mulf %883, %885 : vector<2x32xf32>
    %cst_174 = arith.constant dense<0.000000e+00> : vector<2xf32>
    %887 = vector.multi_reduction <add>, %886, %cst_174 [1] : vector<2x32xf32> to vector<2xf32>
    %888 = vector.shape_cast %887 : vector<2xf32> to vector<2x1xf32>
    %889 = vector.broadcast %394 : vector<1x1xf32> to vector<2x1xf32>
    %890 = arith.addf %888, %889 : vector<2x1xf32>
    %c0_175 = arith.constant 0 : index
    %c0_176 = arith.constant 0 : index
    %891 = vector.load %arg11[%c0_175, %c0_176] : memref<2x1xf32, #tpu.memory_space<vmem>>, vector<2x1xf32>
    tpu.vector_store %arg11[%c0_175, %c0_176], %890 {strides = array<i32>} : memref<2x1xf32, #tpu.memory_space<vmem>>, vector<2x1xf32>,
    return
  }
}

</mosaic_0001>

<llo_original>
// kernel: forward.1
$region0: #{forward.1}
  #allocation0 [shape = 'u32[]', space=smem, size = 0x4, offset = 0x4, fixed_abs, tag = 'smem constant byte address 0x4 - core index']
  #allocation1 [shape = 'u32[144,128]{1,0:T(1,128)}', space=vmem, size = 0x12000, scoped, tag = 'internal scratch']
  %s0 = inlined_call_operand.vmem [shape: f32[16,64], index: 0, kind: input, shape index: {}]
  %s1 = inlined_call_operand.vmem [shape: f32[2,8], index: 1, kind: input, shape index: {}]
  %s2 = inlined_call_operand.vmem [shape: bf16[2,3,64,64], index: 2, kind: input, shape index: {}]
  %s3 = inlined_call_operand.vmem [shape: bf16[2,64,64], index: 3, kind: input, shape index: {}]
  %s4 = inlined_call_operand.vmem [shape: bf16[2,64,128], index: 4, kind: input, shape index: {}]
  %s5 = inlined_call_operand.vmem [shape: bf16[2,128,64], index: 5, kind: input, shape index: {}]
  %s6 = inlined_call_operand.vmem [shape: f32[2,9,64], index: 6, kind: input, shape index: {}]
  %s7 = inlined_call_operand.hbm [shape: f32[2,128], index: 7, kind: input, shape index: {}]
  %s8 = inlined_call_operand.vmem [shape: f32[96,128], index: 8, kind: input, shape index: {}]
  %s9 = inlined_call_operand.vmem [shape: f32[2,32,128], index: 9, kind: input, shape index: {}]
  %s10 = inlined_call_operand.vmem [shape: f32[4,128], index: 10, kind: input, shape index: {}]
  %s11 = inlined_call_operand.vmem [shape: f32[2,1], index: 11, kind: output, shape index: {}]
  %s12 = sld [smem:[#allocation0]]
  $region58: #{forward.1} parent=0
    _
  %s14 = ssub.s32 1, %s12
  %s15 = scalar_select 0, %s14, %s12
  $region1: #{forward.1} parent=0
    #allocation2 [shape = 'u8[1024]{0}', space=vmem, size = 0x400, scoped, tag = 'input window, operand 7, single buffered']
    #allocation3 [shape = 's32[1]{0}', space=sflag, size = 0x4, scoped, tag = 'scoped memory for forward.1']
    %16 = vsyncpa [#allocation3], 0
    // Predicated region
    $region2: #{forward.1} parent=1 // pred_check
      _
    $region3: #{forward.1} parent=1 // pred_check_branch
      %18 = sbr.rel (0) target = $region5
    $region4: #{forward.1} parent=1 // pred_region
      _
    $region5: #{forward.1} parent=1 // pred_fallthru
      _
    // Predicated region
    $region6: #{forward.1} parent=1 // pred_check
      _
    $region7: #{forward.1} parent=1 // pred_check_branch
      %20 = sbr.rel (0) target = $region9
    $region8: #{forward.1} parent=1 // pred_region
      _
    $region9: #{forward.1} parent=1 // pred_fallthru
      _
    // Predicated region
    $region10: #{forward.1} parent=1 // pred_check
      _
    $region11: #{forward.1} parent=1 // pred_check_branch
      %22 = sbr.rel (0) target = $region13
    $region12: #{forward.1} parent=1 // pred_region
      _
    $region13: #{forward.1} parent=1 // pred_fallthru
      _
    // Predicated region
    $region14: #{forward.1} parent=1 // pred_check
      _
    $region15: #{forward.1} parent=1 // pred_check_branch
      %24 = sbr.rel (0) target = $region17
    $region16: #{forward.1} parent=1 // pred_region
      _
    $region17: #{forward.1} parent=1 // pred_fallthru
      _
    // Predicated region
    $region18: #{forward.1} parent=1 // pred_check
      _
    $region19: #{forward.1} parent=1 // pred_check_branch
      %26 = sbr.rel (0) target = $region21
    $region20: #{forward.1} parent=1 // pred_region
      _
    $region21: #{forward.1} parent=1 // pred_fallthru
      _
    // Predicated region
    $region22: #{forward.1} parent=1 // pred_check
      _
    $region23: #{forward.1} parent=1 // pred_check_branch
      %28 = sbr.rel (0) target = $region25
    $region24: #{forward.1} parent=1 // pred_region
      _
    $region25: #{forward.1} parent=1 // pred_fallthru
      _
    // Predicated region
    $region26: #{forward.1} parent=1 // pred_check
      _
    $region27: #{forward.1} parent=1 // pred_check_branch
      %30 = sbr.rel (0) target = $region29
    $region28: #{forward.1} parent=1 // pred_region
      _
    $region29: #{forward.1} parent=1 // pred_fallthru
      _
    // Predicated region
    $region30: #{forward.1} parent=1 // pred_check
      _
    $region31: #{forward.1} parent=1 // pred_check_branch
      %32 = sbr.rel (0) target = $region33
    $region32: #{forward.1} parent=1 // pred_region
      %s34 = ssub.s32 32, 32
      %35 = vsyncadd [#allocation3], %s34
      %s37 = sshll.u32 [#allocation2], 4
      %s38 = int_to_ptr.vmem [resolvable:$true] %s37
      %40 = dma.hbm_to_vmem [thread:$0]  %s7, 32, %s38, [#allocation3]
    $region33: #{forward.1} parent=1 // pred_fallthru
      _
    // Predicated region
    $region34: #{forward.1} parent=1 // pred_check
      _
    $region35: #{forward.1} parent=1 // pred_check_branch
      %42 = sbr.rel (0) target = $region37
    $region36: #{forward.1} parent=1 // pred_region
      _
    $region37: #{forward.1} parent=1 // pred_fallthru
      _
    // Predicated region
    $region38: #{forward.1} parent=1 // pred_check
      _
    $region39: #{forward.1} parent=1 // pred_check_branch
      %44 = sbr.rel (0) target = $region41
    $region40: #{forward.1} parent=1 // pred_region
      _
    $region41: #{forward.1} parent=1 // pred_fallthru
      _
    // Predicated region
    $region42: #{forward.1} parent=1 // pred_check
      _
    $region43: #{forward.1} parent=1 // pred_check_branch
      %46 = sbr.rel (0) target = $region45
    $region44: #{forward.1} parent=1 // pred_region
      _
    $region45: #{forward.1} parent=1 // pred_fallthru
      _
    // Predicated region
    $region46: #{forward.1} parent=1 // pred_check
      _
    $region47: #{forward.1} parent=1 // pred_check_branch
      %48 = sbr.rel (0) target = $region49
    $region48: #{forward.1} parent=1 // pred_region
      %49 = dma.done [#allocation3], 32
    $region49: #{forward.1} parent=1 // pred_fallthru
      _
    %v51 = vld [vmem:[%s0] sm:$0xff]
    %v52 = vld [vmem:[%s0 + $0x8] sm:$0xff]
    %v53 = vld [vmem:[%s1] sm:$0x3]
    %v56 = vunpack.c.l.s4 1966171168
    %v57 = vunpack.c.0.s8 %v56
    %v58 = vlaneseq
    %v59 = vshrl.u32 %v58, 7
    %v60 = vsub.s32 %v57, %v59
    %v61 = vrot.slane %v53, %v60
    %v62 = vcombine.high %v61, %v61
    %v64 = vunpack.c.l.s4 1966171168
    %v65 = vunpack.c.0.s8 %v64
    %v66 = vlaneseq
    %v67 = vshrl.u32 %v66, 7
    %v68 = vsub.s32 %v65, %v67
    %v69 = vrot.slane %v61, %v68
    %v71 = vunpack.c.l.s4 1966171168
    %v72 = vunpack.c.0.s8 %v71
    %v73 = vlaneseq
    %v74 = vshrl.u32 %v73, 7
    %v75 = vsub.s32 %v72, %v74
    %v76 = vrot.slane %v62, %v75
    %v77 = vld [vmem:[%s2] sm:$0xf]
    %v78 = vld [vmem:[%s2 + $0x4] sm:$0xf]
    %v79 = vld [vmem:[%s2 + $0x8] sm:$0xf]
    %v80 = vld [vmem:[%s2 + $0xc] sm:$0xf]
    %v81 = vld [vmem:[%s2 + $0x10] sm:$0xf]
    %v82 = vld [vmem:[%s2 + $0x14] sm:$0xf]
    %v83 = vld [vmem:[%s2 + $0x18] sm:$0xf]
    %v84 = vld [vmem:[%s2 + $0x1c] sm:$0xf]
    %v85 = vld [vmem:[%s2 + $0x20] sm:$0xf]
    %v86 = vld [vmem:[%s2 + $0x24] sm:$0xf]
    %v87 = vld [vmem:[%s2 + $0x28] sm:$0xf]
    %v88 = vld [vmem:[%s2 + $0x2c] sm:$0xf]
    %v89 = vld [vmem:[%s2 + $0x30] sm:$0xf]
    %v90 = vld [vmem:[%s2 + $0x34] sm:$0xf]
    %v91 = vld [vmem:[%s2 + $0x38] sm:$0xf]
    %v92 = vld [vmem:[%s2 + $0x3c] sm:$0xf]
    %v93 = vld [vmem:[%s2 + $0x40] sm:$0xf]
    %v94 = vld [vmem:[%s2 + $0x44] sm:$0xf]
    %v95 = vld [vmem:[%s2 + $0x48] sm:$0xf]
    %v96 = vld [vmem:[%s2 + $0x4c] sm:$0xf]
    %v97 = vld [vmem:[%s2 + $0x50] sm:$0xf]
    %v98 = vld [vmem:[%s2 + $0x54] sm:$0xf]
    %v99 = vld [vmem:[%s2 + $0x58] sm:$0xf]
    %v100 = vld [vmem:[%s2 + $0x5c] sm:$0xf]
    %v101 = vld [vmem:[%s6] sm:$0xff]
    %v102 = vld [vmem:[%s6 + $0x8] sm:$0x1]
    %v103 = vpack.c.bf16 %v52, %v51
    %v104 = vlaneseq
    %v105 = vshrl.u32 %v104, 7
    %v106 = vsub.s32 0, %v105
    %v107 = vrot.slane %v101, %v106
    %v116 = vunpack.c.l.b16 %v77
    %v117 = vunpack.c.l.b16 %v78
    %v118 = vunpack.c.l.b16 %v79
    %v119 = vunpack.c.l.b16 %v80
    %v120 = vunpack.c.l.b16 %v81
    %v121 = vunpack.c.l.b16 %v82
    %v122 = vunpack.c.l.b16 %v83
    %v123 = vunpack.c.l.b16 %v84
    %v124 = vpack.c.b16 %v117, %v116
    %v125 = vpack.c.b16 %v119, %v118
    %v126 = vpack.c.b16 %v121, %v120
    %v127 = vpack.c.b16 %v123, %v122
    %vm132 = vcmask 523264
    %v134 = vsel %vm132, %v103, 0
    %136 = vmatprep.subr.bf16.mxu0 0
    %137 = vmatpush1.bf16.msra.mxu0 0
    %138 = vmatprep.subr.bf16.mxu0 0
    %139 = vmatpush1.bf16.msra.mxu0 0
    %140 = vmatprep.subr.bf16.mxu0 0
    %141 = vmatpush1.bf16.msra.mxu0 0
    %142 = vmatprep.subr.bf16.mxu0 0
    %143 = vmatpush1.bf16.msra.mxu0 0
    %144 = vmatprep.subr.bf16.mxu0 0
    %145 = vmatpush1.bf16.msra.mxu0 %v127
    %146 = vmatprep.subr.bf16.mxu0 0
    %147 = vmatpush1.bf16.msra.mxu0 %v126
    %148 = vmatprep.subr.bf16.mxu0 0
    %149 = vmatpush1.bf16.msra.mxu0 %v125
    %150 = vmatprep.subr.bf16.mxu0 0
    %151 = vmatpush1.bf16.msra.mxu0 %v124
    %152 = vmatprep.subr.bf16.mxu0 0
    %153 = vmatpush2.bf16.msra.mxu0 0
    %154 = vmatprep.subr.bf16.mxu0 0
    %155 = vmatpush2.bf16.msra.mxu0 0
    %156 = vmatprep.subr.bf16.mxu0 0
    %157 = vmatpush2.bf16.msra.mxu0 0
    %158 = vmatprep.subr.bf16.mxu0 0
    %159 = vmatpush2.bf16.msra.mxu0 0
    %160 = vmatprep.subr.bf16.mxu0 0
    %161 = vmatpush2.bf16.msra.mxu0 0
    %162 = vmatprep.subr.bf16.mxu0 0
    %163 = vmatpush2.bf16.msra.mxu0 0
    %164 = vmatprep.subr.bf16.mxu0 0
    %165 = vmatpush2.bf16.msra.mxu0 0
    %166 = vmatprep.subr.bf16.mxu0 0
    %167 = vmatpush2.bf16.msra.mxu0 0
    %168 = vmatprep.mubr.bf16.mxu0 0
    %169 = vmatmul.mubr.bf16.gmra.mxu0 %v134
    %v170 = vpop.f32.mrf.mxu0
    %v171 = vadd.f32 %v107, %v170
    %v172 = vpop.f32.mrf.mxu0
    %v173 = vpop.f32.mrf.mxu0
    %v174 = vadd.f32 %v107, %v173
    %v175 = vpop.f32.mrf.mxu0
    %176 = vdwg.mxu0
    %v177 = vlaneseq
    %v178 = vshrl.u32 %v177, 7
    %v179 = vsub.s32 1, %v178
    %v180 = vrot.slane %v101, %v179
    %v189 = vunpack.c.l.b16 %v85
    %v190 = vunpack.c.l.b16 %v86
    %v191 = vunpack.c.l.b16 %v87
    %v192 = vunpack.c.l.b16 %v88
    %v193 = vunpack.c.l.b16 %v89
    %v194 = vunpack.c.l.b16 %v90
    %v195 = vunpack.c.l.b16 %v91
    %v196 = vunpack.c.l.b16 %v92
    %v197 = vpack.c.b16 %v190, %v189
    %v198 = vpack.c.b16 %v192, %v191
    %v199 = vpack.c.b16 %v194, %v193
    %v200 = vpack.c.b16 %v196, %v195
    %205 = vmatprep.subr.bf16.mxu0 0
    %206 = vmatpush1.bf16.msra.mxu0 0
    %207 = vmatprep.subr.bf16.mxu0 0
    %208 = vmatpush1.bf16.msra.mxu0 0
    %209 = vmatprep.subr.bf16.mxu0 0
    %210 = vmatpush1.bf16.msra.mxu0 0
    %211 = vmatprep.subr.bf16.mxu0 0
    %212 = vmatpush1.bf16.msra.mxu0 0
    %213 = vmatprep.subr.bf16.mxu0 0
    %214 = vmatpush1.bf16.msra.mxu0 %v200
    %215 = vmatprep.subr.bf16.mxu0 0
    %216 = vmatpush1.bf16.msra.mxu0 %v199
    %217 = vmatprep.subr.bf16.mxu0 0
    %218 = vmatpush1.bf16.msra.mxu0 %v198
    %219 = vmatprep.subr.bf16.mxu0 0
    %220 = vmatpush1.bf16.msra.mxu0 %v197
    %221 = vmatprep.subr.bf16.mxu0 0
    %222 = vmatpush2.bf16.msra.mxu0 0
    %223 = vmatprep.subr.bf16.mxu0 0
    %224 = vmatpush2.bf16.msra.mxu0 0
    %225 = vmatprep.subr.bf16.mxu0 0
    %226 = vmatpush2.bf16.msra.mxu0 0
    %227 = vmatprep.subr.bf16.mxu0 0
    %228 = vmatpush2.bf16.msra.mxu0 0
    %229 = vmatprep.subr.bf16.mxu0 0
    %230 = vmatpush2.bf16.msra.mxu0 0
    %231 = vmatprep.subr.bf16.mxu0 0
    %232 = vmatpush2.bf16.msra.mxu0 0
    %233 = vmatprep.subr.bf16.mxu0 0
    %234 = vmatpush2.bf16.msra.mxu0 0
    %235 = vmatprep.subr.bf16.mxu0 0
    %236 = vmatpush2.bf16.msra.mxu0 0
    %237 = vmatprep.mubr.bf16.mxu0 0
    %238 = vmatmul.mubr.bf16.gmra.mxu0 %v134
    %v239 = vpop.f32.mrf.mxu0
    %v240 = vadd.f32 %v180, %v239
    %v241 = vpop.f32.mrf.mxu0
    %v242 = vpop.f32.mrf.mxu0
    %v243 = vadd.f32 %v180, %v242
    %v244 = vpop.f32.mrf.mxu0
    %245 = vdwg.mxu0
    %v246 = vlaneseq
    %v247 = vshrl.u32 %v246, 7
    %v248 = vsub.s32 2, %v247
    %v249 = vrot.slane %v101, %v248
    %v258 = vunpack.c.l.b16 %v93
    %v259 = vunpack.c.l.b16 %v94
    %v260 = vunpack.c.l.b16 %v95
    %v261 = vunpack.c.l.b16 %v96
    %v262 = vunpack.c.l.b16 %v97
    %v263 = vunpack.c.l.b16 %v98
    %v264 = vunpack.c.l.b16 %v99
    %v265 = vunpack.c.l.b16 %v100
    %v266 = vpack.c.b16 %v259, %v258
    %v267 = vpack.c.b16 %v261, %v260
    %v268 = vpack.c.b16 %v263, %v262
    %v269 = vpack.c.b16 %v265, %v264
    %274 = vmatprep.subr.bf16.mxu0 0
    %275 = vmatpush1.bf16.msra.mxu0 0
    %276 = vmatprep.subr.bf16.mxu0 0
    %277 = vmatpush1.bf16.msra.mxu0 0
    %278 = vmatprep.subr.bf16.mxu0 0
    %279 = vmatpush1.bf16.msra.mxu0 0
    %280 = vmatprep.subr.bf16.mxu0 0
    %281 = vmatpush1.bf16.msra.mxu0 0
    %282 = vmatprep.subr.bf16.mxu0 0
    %283 = vmatpush1.bf16.msra.mxu0 %v269
    %284 = vmatprep.subr.bf16.mxu0 0
    %285 = vmatpush1.bf16.msra.mxu0 %v268
    %286 = vmatprep.subr.bf16.mxu0 0
    %287 = vmatpush1.bf16.msra.mxu0 %v267
    %288 = vmatprep.subr.bf16.mxu0 0
    %289 = vmatpush1.bf16.msra.mxu0 %v266
    %290 = vmatprep.subr.bf16.mxu0 0
    %291 = vmatpush2.bf16.msra.mxu0 0
    %292 = vmatprep.subr.bf16.mxu0 0
    %293 = vmatpush2.bf16.msra.mxu0 0
    %294 = vmatprep.subr.bf16.mxu0 0
    %295 = vmatpush2.bf16.msra.mxu0 0
    %296 = vmatprep.subr.bf16.mxu0 0
    %297 = vmatpush2.bf16.msra.mxu0 0
    %298 = vmatprep.subr.bf16.mxu0 0
    %299 = vmatpush2.bf16.msra.mxu0 0
    %300 = vmatprep.subr.bf16.mxu0 0
    %301 = vmatpush2.bf16.msra.mxu0 0
    %302 = vmatprep.subr.bf16.mxu0 0
    %303 = vmatpush2.bf16.msra.mxu0 0
    %304 = vmatprep.subr.bf16.mxu0 0
    %305 = vmatpush2.bf16.msra.mxu0 0
    %306 = vmatprep.mubr.bf16.mxu0 0
    %307 = vmatmul.mubr.bf16.gmra.mxu0 %v134
    %v308 = vpop.f32.mrf.mxu0
    %v309 = vadd.f32 %v249, %v308
    %v310 = vpop.f32.mrf.mxu0
    %v311 = vpop.f32.mrf.mxu0
    %v312 = vadd.f32 %v249, %v311
    %v313 = vpop.f32.mrf.mxu0
    %314 = vdwg.mxu0
    %v315 = vpack.c.bf16 %v174, %v171
    %317 = vrot.lane.b32.xlu0 %v315, 112
    %v318 = vpop.permute.xlu0 %317
    %319 = vrot.lane.b32.xlu0 %v315, 96
    %v320 = vpop.permute.xlu0 %319
    %321 = vrot.lane.b32.xlu0 %v315, 80
    %v322 = vpop.permute.xlu0 %321
    %v323 = vunpack.c.l.b16 %v315
    %v324 = vunpack.c.h.b16 %v315
    %v325 = vunpack.c.l.b16 %v318
    %v326 = vunpack.c.h.b16 %v318
    %v327 = vunpack.c.l.b16 %v320
    %v328 = vunpack.c.h.b16 %v320
    %v329 = vunpack.c.l.b16 %v322
    %v330 = vunpack.c.h.b16 %v322
    %v331 = vpack.c.b16 %v323, %v323
    %v332 = vpack.c.b16 %v324, %v324
    %v333 = vpack.c.b16 %v325, %v325
    %v334 = vpack.c.b16 %v326, %v326
    %v335 = vpack.c.b16 %v327, %v327
    %v336 = vpack.c.b16 %v328, %v328
    %v337 = vpack.c.b16 %v329, %v329
    %v338 = vpack.c.b16 %v330, %v330
    %v339 = vpack.c.bf16 %v243, %v240
    %341 = vrot.lane.b32.xlu0 %v339, 112
    %v342 = vpop.permute.xlu0 %341
    %343 = vrot.lane.b32.xlu0 %v339, 96
    %v344 = vpop.permute.xlu0 %343
    %345 = vrot.lane.b32.xlu0 %v339, 80
    %v346 = vpop.permute.xlu0 %345
    %v347 = vunpack.c.l.b16 %v339
    %v348 = vunpack.c.h.b16 %v339
    %v349 = vunpack.c.l.b16 %v342
    %v350 = vunpack.c.h.b16 %v342
    %v351 = vunpack.c.l.b16 %v344
    %v352 = vunpack.c.h.b16 %v344
    %v353 = vunpack.c.l.b16 %v346
    %v354 = vunpack.c.h.b16 %v346
    %v355 = vpack.c.b16 %v347, %v347
    %v356 = vpack.c.b16 %v348, %v348
    %v357 = vpack.c.b16 %v349, %v349
    %v358 = vpack.c.b16 %v350, %v350
    %v359 = vpack.c.b16 %v351, %v351
    %v360 = vpack.c.b16 %v352, %v352
    %v361 = vpack.c.b16 %v353, %v353
    %v362 = vpack.c.b16 %v354, %v354
    %v363 = vpack.c.bf16 %v312, %v309
    %365 = vrot.lane.b32.xlu0 %v363, 112
    %v366 = vpop.permute.xlu0 %365
    %367 = vrot.lane.b32.xlu0 %v363, 96
    %v368 = vpop.permute.xlu0 %367
    %369 = vrot.lane.b32.xlu0 %v363, 80
    %v370 = vpop.permute.xlu0 %369
    %v371 = vunpack.c.l.b16 %v363
    %v372 = vunpack.c.h.b16 %v363
    %v373 = vunpack.c.l.b16 %v366
    %v374 = vunpack.c.h.b16 %v366
    %v375 = vunpack.c.l.b16 %v368
    %v376 = vunpack.c.h.b16 %v368
    %v377 = vunpack.c.l.b16 %v370
    %v378 = vunpack.c.h.b16 %v370
    %v379 = vpack.c.b16 %v371, %v371
    %v380 = vpack.c.b16 %v372, %v372
    %v381 = vpack.c.b16 %v373, %v373
    %v382 = vpack.c.b16 %v374, %v374
    %v383 = vpack.c.b16 %v375, %v375
    %v384 = vpack.c.b16 %v376, %v376
    %v385 = vpack.c.b16 %v377, %v377
    %v386 = vpack.c.b16 %v378, %v378
    %vm387 = vcmask 130048
    %v389 = vsel %vm387, %v331, 0
    %v392 = vsel %vm387, %v355, 0
    %394 = vmatprep.subr.bf16.mxu0 0
    %395 = vmatpush1.bf16.xpose.msra.mxu0 0
    %396 = vmatprep.subr.bf16.mxu0 0
    %397 = vmatpush1.bf16.xpose.msra.mxu0 0
    %398 = vmatprep.subr.bf16.mxu0 0
    %399 = vmatpush1.bf16.xpose.msra.mxu0 0
    %400 = vmatprep.subr.bf16.mxu0 0
    %401 = vmatpush1.bf16.xpose.msra.mxu0 0
    %402 = vmatprep.subr.bf16.mxu0 0
    %403 = vmatpush1.bf16.xpose.msra.mxu0 0
    %404 = vmatprep.subr.bf16.mxu0 0
    %405 = vmatpush1.bf16.xpose.msra.mxu0 0
    %406 = vmatprep.subr.bf16.mxu0 0
    %407 = vmatpush1.bf16.xpose.msra.mxu0 0
    %408 = vmatprep.subr.bf16.mxu0 0
    %409 = vmatpush1.bf16.xpose.msra.mxu0 %v392
    %410 = vmatprep.subr.bf16.mxu0 0
    %411 = vmatpush2.bf16.xpose.msra.mxu0 0
    %412 = vmatprep.subr.bf16.mxu0 0
    %413 = vmatpush2.bf16.xpose.msra.mxu0 0
    %414 = vmatprep.subr.bf16.mxu0 0
    %415 = vmatpush2.bf16.xpose.msra.mxu0 0
    %416 = vmatprep.subr.bf16.mxu0 0
    %417 = vmatpush2.bf16.xpose.msra.mxu0 0
    %418 = vmatprep.subr.bf16.mxu0 0
    %419 = vmatpush2.bf16.xpose.msra.mxu0 0
    %420 = vmatprep.subr.bf16.mxu0 0
    %421 = vmatpush2.bf16.xpose.msra.mxu0 0
    %422 = vmatprep.subr.bf16.mxu0 0
    %423 = vmatpush2.bf16.xpose.msra.mxu0 0
    %424 = vmatprep.subr.bf16.mxu0 0
    %425 = vmatpush2.bf16.xpose.msra.mxu0 0
    %426 = vmatprep.mubr.bf16.mxu0 0
    %427 = vmatmul.mubr.bf16.gmra.mxu0 %v389
    %v428 = vpop.f32.mrf.mxu0
    %v429 = vadd.f32 0.0, %v428
    %v430 = vpop.f32.mrf.mxu0
    %v431 = vpop.f32.mrf.mxu0
    %v432 = vpop.f32.mrf.mxu0
    %433 = vdwg.mxu0
    %v435 = vsel %vm387, %v332, 0
    %v438 = vsel %vm387, %v356, 0
    %440 = vmatprep.subr.bf16.mxu0 0
    %441 = vmatpush1.bf16.xpose.msra.mxu0 0
    %442 = vmatprep.subr.bf16.mxu0 0
    %443 = vmatpush1.bf16.xpose.msra.mxu0 0
    %444 = vmatprep.subr.bf16.mxu0 0
    %445 = vmatpush1.bf16.xpose.msra.mxu0 0
    %446 = vmatprep.subr.bf16.mxu0 0
    %447 = vmatpush1.bf16.xpose.msra.mxu0 0
    %448 = vmatprep.subr.bf16.mxu0 0
    %449 = vmatpush1.bf16.xpose.msra.mxu0 0
    %450 = vmatprep.subr.bf16.mxu0 0
    %451 = vmatpush1.bf16.xpose.msra.mxu0 0
    %452 = vmatprep.subr.bf16.mxu0 0
    %453 = vmatpush1.bf16.xpose.msra.mxu0 0
    %454 = vmatprep.subr.bf16.mxu0 0
    %455 = vmatpush1.bf16.xpose.msra.mxu0 %v438
    %456 = vmatprep.subr.bf16.mxu0 0
    %457 = vmatpush2.bf16.xpose.msra.mxu0 0
    %458 = vmatprep.subr.bf16.mxu0 0
    %459 = vmatpush2.bf16.xpose.msra.mxu0 0
    %460 = vmatprep.subr.bf16.mxu0 0
    %461 = vmatpush2.bf16.xpose.msra.mxu0 0
    %462 = vmatprep.subr.bf16.mxu0 0
    %463 = vmatpush2.bf16.xpose.msra.mxu0 0
    %464 = vmatprep.subr.bf16.mxu0 0
    %465 = vmatpush2.bf16.xpose.msra.mxu0 0
    %466 = vmatprep.subr.bf16.mxu0 0
    %467 = vmatpush2.bf16.xpose.msra.mxu0 0
    %468 = vmatprep.subr.bf16.mxu0 0
    %469 = vmatpush2.bf16.xpose.msra.mxu0 0
    %470 = vmatprep.subr.bf16.mxu0 0
    %471 = vmatpush2.bf16.xpose.msra.mxu0 0
    %472 = vmatprep.mubr.bf16.mxu0 0
    %473 = vmatmul.mubr.bf16.gmra.mxu0 %v435
    %v474 = vpop.f32.mrf.mxu0
    %v475 = vadd.f32 0.0, %v474
    %v476 = vpop.f32.mrf.mxu0
    %v477 = vpop.f32.mrf.mxu0
    %v478 = vpop.f32.mrf.mxu0
    %479 = vdwg.mxu0
    %v481 = vsel %vm387, %v333, 0
    %v484 = vsel %vm387, %v357, 0
    %486 = vmatprep.subr.bf16.mxu0 0
    %487 = vmatpush1.bf16.xpose.msra.mxu0 0
    %488 = vmatprep.subr.bf16.mxu0 0
    %489 = vmatpush1.bf16.xpose.msra.mxu0 0
    %490 = vmatprep.subr.bf16.mxu0 0
    %491 = vmatpush1.bf16.xpose.msra.mxu0 0
    %492 = vmatprep.subr.bf16.mxu0 0
    %493 = vmatpush1.bf16.xpose.msra.mxu0 0
    %494 = vmatprep.subr.bf16.mxu0 0
    %495 = vmatpush1.bf16.xpose.msra.mxu0 0
    %496 = vmatprep.subr.bf16.mxu0 0
    %497 = vmatpush1.bf16.xpose.msra.mxu0 0
    %498 = vmatprep.subr.bf16.mxu0 0
    %499 = vmatpush1.bf16.xpose.msra.mxu0 0
    %500 = vmatprep.subr.bf16.mxu0 0
    %501 = vmatpush1.bf16.xpose.msra.mxu0 %v484
    %502 = vmatprep.subr.bf16.mxu0 0
    %503 = vmatpush2.bf16.xpose.msra.mxu0 0
    %504 = vmatprep.subr.bf16.mxu0 0
    %505 = vmatpush2.bf16.xpose.msra.mxu0 0
    %506 = vmatprep.subr.bf16.mxu0 0
    %507 = vmatpush2.bf16.xpose.msra.mxu0 0
    %508 = vmatprep.subr.bf16.mxu0 0
    %509 = vmatpush2.bf16.xpose.msra.mxu0 0
    %510 = vmatprep.subr.bf16.mxu0 0
    %511 = vmatpush2.bf16.xpose.msra.mxu0 0
    %512 = vmatprep.subr.bf16.mxu0 0
    %513 = vmatpush2.bf16.xpose.msra.mxu0 0
    %514 = vmatprep.subr.bf16.mxu0 0
    %515 = vmatpush2.bf16.xpose.msra.mxu0 0
    %516 = vmatprep.subr.bf16.mxu0 0
    %517 = vmatpush2.bf16.xpose.msra.mxu0 0
    %518 = vmatprep.mubr.bf16.mxu0 0
    %519 = vmatmul.mubr.bf16.gmra.mxu0 %v481
    %v520 = vpop.f32.mrf.mxu0
    %v521 = vadd.f32 0.0, %v520
    %v522 = vpop.f32.mrf.mxu0
    %v523 = vpop.f32.mrf.mxu0
    %v524 = vpop.f32.mrf.mxu0
    %525 = vdwg.mxu0
    %v527 = vsel %vm387, %v334, 0
    %v530 = vsel %vm387, %v358, 0
    %532 = vmatprep.subr.bf16.mxu0 0
    %533 = vmatpush1.bf16.xpose.msra.mxu0 0
    %534 = vmatprep.subr.bf16.mxu0 0
    %535 = vmatpush1.bf16.xpose.msra.mxu0 0
    %536 = vmatprep.subr.bf16.mxu0 0
    %537 = vmatpush1.bf16.xpose.msra.mxu0 0
    %538 = vmatprep.subr.bf16.mxu0 0
    %539 = vmatpush1.bf16.xpose.msra.mxu0 0
    %540 = vmatprep.subr.bf16.mxu0 0
    %541 = vmatpush1.bf16.xpose.msra.mxu0 0
    %542 = vmatprep.subr.bf16.mxu0 0
    %543 = vmatpush1.bf16.xpose.msra.mxu0 0
    %544 = vmatprep.subr.bf16.mxu0 0
    %545 = vmatpush1.bf16.xpose.msra.mxu0 0
    %546 = vmatprep.subr.bf16.mxu0 0
    %547 = vmatpush1.bf16.xpose.msra.mxu0 %v530
    %548 = vmatprep.subr.bf16.mxu0 0
    %549 = vmatpush2.bf16.xpose.msra.mxu0 0
    %550 = vmatprep.subr.bf16.mxu0 0
    %551 = vmatpush2.bf16.xpose.msra.mxu0 0
    %552 = vmatprep.subr.bf16.mxu0 0
    %553 = vmatpush2.bf16.xpose.msra.mxu0 0
    %554 = vmatprep.subr.bf16.mxu0 0
    %555 = vmatpush2.bf16.xpose.msra.mxu0 0
    %556 = vmatprep.subr.bf16.mxu0 0
    %557 = vmatpush2.bf16.xpose.msra.mxu0 0
    %558 = vmatprep.subr.bf16.mxu0 0
    %559 = vmatpush2.bf16.xpose.msra.mxu0 0
    %560 = vmatprep.subr.bf16.mxu0 0
    %561 = vmatpush2.bf16.xpose.msra.mxu0 0
    %562 = vmatprep.subr.bf16.mxu0 0
    %563 = vmatpush2.bf16.xpose.msra.mxu0 0
    %564 = vmatprep.mubr.bf16.mxu0 0
    %565 = vmatmul.mubr.bf16.gmra.mxu0 %v527
    %v566 = vpop.f32.mrf.mxu0
    %v567 = vadd.f32 0.0, %v566
    %v568 = vpop.f32.mrf.mxu0
    %v569 = vpop.f32.mrf.mxu0
    %v570 = vpop.f32.mrf.mxu0
    %571 = vdwg.mxu0
    %v573 = vsel %vm387, %v335, 0
    %v576 = vsel %vm387, %v359, 0
    %578 = vmatprep.subr.bf16.mxu0 0
    %579 = vmatpush1.bf16.xpose.msra.mxu0 0
    %580 = vmatprep.subr.bf16.mxu0 0
    %581 = vmatpush1.bf16.xpose.msra.mxu0 0
    %582 = vmatprep.subr.bf16.mxu0 0
    %583 = vmatpush1.bf16.xpose.msra.mxu0 0
    %584 = vmatprep.subr.bf16.mxu0 0
    %585 = vmatpush1.bf16.xpose.msra.mxu0 0
    %586 = vmatprep.subr.bf16.mxu0 0
    %587 = vmatpush1.bf16.xpose.msra.mxu0 0
    %588 = vmatprep.subr.bf16.mxu0 0
    %589 = vmatpush1.bf16.xpose.msra.mxu0 0
    %590 = vmatprep.subr.bf16.mxu0 0
    %591 = vmatpush1.bf16.xpose.msra.mxu0 0
    %592 = vmatprep.subr.bf16.mxu0 0
    %593 = vmatpush1.bf16.xpose.msra.mxu0 %v576
    %594 = vmatprep.subr.bf16.mxu0 0
    %595 = vmatpush2.bf16.xpose.msra.mxu0 0
    %596 = vmatprep.subr.bf16.mxu0 0
    %597 = vmatpush2.bf16.xpose.msra.mxu0 0
    %598 = vmatprep.subr.bf16.mxu0 0
    %599 = vmatpush2.bf16.xpose.msra.mxu0 0
    %600 = vmatprep.subr.bf16.mxu0 0
    %601 = vmatpush2.bf16.xpose.msra.mxu0 0
    %602 = vmatprep.subr.bf16.mxu0 0
    %603 = vmatpush2.bf16.xpose.msra.mxu0 0
    %604 = vmatprep.subr.bf16.mxu0 0
    %605 = vmatpush2.bf16.xpose.msra.mxu0 0
    %606 = vmatprep.subr.bf16.mxu0 0
    %607 = vmatpush2.bf16.xpose.msra.mxu0 0
    %608 = vmatprep.subr.bf16.mxu0 0
    %609 = vmatpush2.bf16.xpose.msra.mxu0 0
    %610 = vmatprep.mubr.bf16.mxu0 0
    %611 = vmatmul.mubr.bf16.gmra.mxu0 %v573
    %v612 = vpop.f32.mrf.mxu0
    %v613 = vadd.f32 0.0, %v612
    %v614 = vpop.f32.mrf.mxu0
    %v615 = vpop.f32.mrf.mxu0
    %v616 = vpop.f32.mrf.mxu0
    %617 = vdwg.mxu0
    %v619 = vsel %vm387, %v336, 0
    %v622 = vsel %vm387, %v360, 0
    %624 = vmatprep.subr.bf16.mxu0 0
    %625 = vmatpush1.bf16.xpose.msra.mxu0 0
    %626 = vmatprep.subr.bf16.mxu0 0
    %627 = vmatpush1.bf16.xpose.msra.mxu0 0
    %628 = vmatprep.subr.bf16.mxu0 0
    %629 = vmatpush1.bf16.xpose.msra.mxu0 0
    %630 = vmatprep.subr.bf16.mxu0 0
    %631 = vmatpush1.bf16.xpose.msra.mxu0 0
    %632 = vmatprep.subr.bf16.mxu0 0
    %633 = vmatpush1.bf16.xpose.msra.mxu0 0
    %634 = vmatprep.subr.bf16.mxu0 0
    %635 = vmatpush1.bf16.xpose.msra.mxu0 0
    %636 = vmatprep.subr.bf16.mxu0 0
    %637 = vmatpush1.bf16.xpose.msra.mxu0 0
    %638 = vmatprep.subr.bf16.mxu0 0
    %639 = vmatpush1.bf16.xpose.msra.mxu0 %v622
    %640 = vmatprep.subr.bf16.mxu0 0
    %641 = vmatpush2.bf16.xpose.msra.mxu0 0
    %642 = vmatprep.subr.bf16.mxu0 0
    %643 = vmatpush2.bf16.xpose.msra.mxu0 0
    %644 = vmatprep.subr.bf16.mxu0 0
    %645 = vmatpush2.bf16.xpose.msra.mxu0 0
    %646 = vmatprep.subr.bf16.mxu0 0
    %647 = vmatpush2.bf16.xpose.msra.mxu0 0
    %648 = vmatprep.subr.bf16.mxu0 0
    %649 = vmatpush2.bf16.xpose.msra.mxu0 0
    %650 = vmatprep.subr.bf16.mxu0 0
    %651 = vmatpush2.bf16.xpose.msra.mxu0 0
    %652 = vmatprep.subr.bf16.mxu0 0
    %653 = vmatpush2.bf16.xpose.msra.mxu0 0
    %654 = vmatprep.subr.bf16.mxu0 0
    %655 = vmatpush2.bf16.xpose.msra.mxu0 0
    %656 = vmatprep.mubr.bf16.mxu0 0
    %657 = vmatmul.mubr.bf16.gmra.mxu0 %v619
    %v658 = vpop.f32.mrf.mxu0
    %v659 = vadd.f32 0.0, %v658
    %v660 = vpop.f32.mrf.mxu0
    %v661 = vpop.f32.mrf.mxu0
    %v662 = vpop.f32.mrf.mxu0
    %663 = vdwg.mxu0
    %v665 = vsel %vm387, %v337, 0
    %v668 = vsel %vm387, %v361, 0
    %670 = vmatprep.subr.bf16.mxu0 0
    %671 = vmatpush1.bf16.xpose.msra.mxu0 0
    %672 = vmatprep.subr.bf16.mxu0 0
    %673 = vmatpush1.bf16.xpose.msra.mxu0 0
    %674 = vmatprep.subr.bf16.mxu0 0
    %675 = vmatpush1.bf16.xpose.msra.mxu0 0
    %676 = vmatprep.subr.bf16.mxu0 0
    %677 = vmatpush1.bf16.xpose.msra.mxu0 0
    %678 = vmatprep.subr.bf16.mxu0 0
    %679 = vmatpush1.bf16.xpose.msra.mxu0 0
    %680 = vmatprep.subr.bf16.mxu0 0
    %681 = vmatpush1.bf16.xpose.msra.mxu0 0
    %682 = vmatprep.subr.bf16.mxu0 0
    %683 = vmatpush1.bf16.xpose.msra.mxu0 0
    %684 = vmatprep.subr.bf16.mxu0 0
    %685 = vmatpush1.bf16.xpose.msra.mxu0 %v668
    %686 = vmatprep.subr.bf16.mxu0 0
    %687 = vmatpush2.bf16.xpose.msra.mxu0 0
    %688 = vmatprep.subr.bf16.mxu0 0
    %689 = vmatpush2.bf16.xpose.msra.mxu0 0
    %690 = vmatprep.subr.bf16.mxu0 0
    %691 = vmatpush2.bf16.xpose.msra.mxu0 0
    %692 = vmatprep.subr.bf16.mxu0 0
    %693 = vmatpush2.bf16.xpose.msra.mxu0 0
    %694 = vmatprep.subr.bf16.mxu0 0
    %695 = vmatpush2.bf16.xpose.msra.mxu0 0
    %696 = vmatprep.subr.bf16.mxu0 0
    %697 = vmatpush2.bf16.xpose.msra.mxu0 0
    %698 = vmatprep.subr.bf16.mxu0 0
    %699 = vmatpush2.bf16.xpose.msra.mxu0 0
    %700 = vmatprep.subr.bf16.mxu0 0
    %701 = vmatpush2.bf16.xpose.msra.mxu0 0
    %702 = vmatprep.mubr.bf16.mxu0 0
    %703 = vmatmul.mubr.bf16.gmra.mxu0 %v665
    %v704 = vpop.f32.mrf.mxu0
    %v705 = vadd.f32 0.0, %v704
    %v706 = vpop.f32.mrf.mxu0
    %v707 = vpop.f32.mrf.mxu0
    %v708 = vpop.f32.mrf.mxu0
    %709 = vdwg.mxu0
    %v711 = vsel %vm387, %v338, 0
    %v714 = vsel %vm387, %v362, 0
    %716 = vmatprep.subr.bf16.mxu0 0
    %717 = vmatpush1.bf16.xpose.msra.mxu0 0
    %718 = vmatprep.subr.bf16.mxu0 0
    %719 = vmatpush1.bf16.xpose.msra.mxu0 0
    %720 = vmatprep.subr.bf16.mxu0 0
    %721 = vmatpush1.bf16.xpose.msra.mxu0 0
    %722 = vmatprep.subr.bf16.mxu0 0
    %723 = vmatpush1.bf16.xpose.msra.mxu0 0
    %724 = vmatprep.subr.bf16.mxu0 0
    %725 = vmatpush1.bf16.xpose.msra.mxu0 0
    %726 = vmatprep.subr.bf16.mxu0 0
    %727 = vmatpush1.bf16.xpose.msra.mxu0 0
    %728 = vmatprep.subr.bf16.mxu0 0
    %729 = vmatpush1.bf16.xpose.msra.mxu0 0
    %730 = vmatprep.subr.bf16.mxu0 0
    %731 = vmatpush1.bf16.xpose.msra.mxu0 %v714
    %732 = vmatprep.subr.bf16.mxu0 0
    %733 = vmatpush2.bf16.xpose.msra.mxu0 0
    %734 = vmatprep.subr.bf16.mxu0 0
    %735 = vmatpush2.bf16.xpose.msra.mxu0 0
    %736 = vmatprep.subr.bf16.mxu0 0
    %737 = vmatpush2.bf16.xpose.msra.mxu0 0
    %738 = vmatprep.subr.bf16.mxu0 0
    %739 = vmatpush2.bf16.xpose.msra.mxu0 0
    %740 = vmatprep.subr.bf16.mxu0 0
    %741 = vmatpush2.bf16.xpose.msra.mxu0 0
    %742 = vmatprep.subr.bf16.mxu0 0
    %743 = vmatpush2.bf16.xpose.msra.mxu0 0
    %744 = vmatprep.subr.bf16.mxu0 0
    %745 = vmatpush2.bf16.xpose.msra.mxu0 0
    %746 = vmatprep.subr.bf16.mxu0 0
    %747 = vmatpush2.bf16.xpose.msra.mxu0 0
    %748 = vmatprep.mubr.bf16.mxu0 0
    %749 = vmatmul.mubr.bf16.gmra.mxu0 %v711
    %v750 = vpop.f32.mrf.mxu0
    %v751 = vadd.f32 0.0, %v750
    %v752 = vpop.f32.mrf.mxu0
    %v753 = vpop.f32.mrf.mxu0
    %v754 = vpop.f32.mrf.mxu0
    %755 = vdwg.mxu0
    %v756 = vmul.f32 %v429, 0.25
    %v757 = vmul.f32 %v475, 0.25
    %v758 = vmul.f32 %v521, 0.25
    %v759 = vmul.f32 %v567, 0.25
    %v760 = vmul.f32 %v613, 0.25
    %v761 = vmul.f32 %v659, 0.25
    %v762 = vmul.f32 %v705, 0.25
    %v763 = vmul.f32 %v751, 0.25
    %v764 = vlaneseq
    %v765 = vshrl.u32 %v764, 7
    %v766 = vsub.s32 0, %v765
    %v767 = vrot.slane %v69, %v766
    %v768 = vlaneseq
    %v769 = vshrl.u32 %v768, 7
    %v770 = vsub.s32 0, %v769
    %v771 = vrot.slane %v76, %v770
    %v774 = vadd.f32 %v756, %v767
    %v775 = vadd.f32 %v757, %v771
    %v776 = vadd.f32 %v758, %v767
    %v777 = vadd.f32 %v759, %v771
    %v778 = vadd.f32 %v760, %v767
    %v779 = vadd.f32 %v761, %v771
    %v780 = vadd.f32 %v762, %v767
    %v781 = vadd.f32 %v763, %v771
    %vm782 = vcmask 64512
    %v783 = vsel %vm782, %v774, -inf
    %784 = vmax.xlane.f32.xlu0 %v783
    %v785 = vpop.xlane.xlu0 %784
    %v786 = vsel %vm782, %v775, -inf
    %787 = vmax.xlane.f32.xlu0 %v786
    %v788 = vpop.xlane.xlu0 %787
    %v789 = vsel %vm782, %v776, -inf
    %790 = vmax.xlane.f32.xlu0 %v789
    %v791 = vpop.xlane.xlu0 %790
    %v792 = vsel %vm782, %v777, -inf
    %793 = vmax.xlane.f32.xlu0 %v792
    %v794 = vpop.xlane.xlu0 %793
    %v795 = vsel %vm782, %v778, -inf
    %796 = vmax.xlane.f32.xlu0 %v795
    %v797 = vpop.xlane.xlu0 %796
    %v798 = vsel %vm782, %v779, -inf
    %799 = vmax.xlane.f32.xlu0 %v798
    %v800 = vpop.xlane.xlu0 %799
    %v801 = vsel %vm782, %v780, -inf
    %802 = vmax.xlane.f32.xlu0 %v801
    %v803 = vpop.xlane.xlu0 %802
    %v804 = vsel %vm782, %v781, -inf
    %805 = vmax.xlane.f32.xlu0 %v804
    %v806 = vpop.xlane.xlu0 %805
    %v807 = vsub.f32 %v774, %v785
    %v808 = vsub.f32 %v775, %v788
    %v809 = vsub.f32 %v776, %v791
    %v810 = vsub.f32 %v777, %v794
    %v811 = vsub.f32 %v778, %v797
    %v812 = vsub.f32 %v779, %v800
    %v813 = vsub.f32 %v780, %v803
    %v814 = vsub.f32 %v781, %v806
    %v815 = vmul.f32 %v807, 1.442695
    %v816 = vpow.pop %v815
    %v817 = vmul.f32 %v808, 1.442695
    %v818 = vpow.pop %v817
    %v819 = vmul.f32 %v809, 1.442695
    %v820 = vpow.pop %v819
    %v821 = vmul.f32 %v810, 1.442695
    %v822 = vpow.pop %v821
    %v823 = vmul.f32 %v811, 1.442695
    %v824 = vpow.pop %v823
    %v825 = vmul.f32 %v812, 1.442695
    %v826 = vpow.pop %v825
    %v827 = vmul.f32 %v813, 1.442695
    %v828 = vpow.pop %v827
    %v829 = vmul.f32 %v814, 1.442695
    %v830 = vpow.pop %v829
    %v831 = vsel %vm782, %v816, 0.0
    %832 = vadd.xlane.f32.xlu0 %v831
    %v833 = vpop.xlane.xlu0 %832
    %v834 = vsel %vm782, %v818, 0.0
    %835 = vadd.xlane.f32.xlu0 %v834
    %v836 = vpop.xlane.xlu0 %835
    %v837 = vsel %vm782, %v820, 0.0
    %838 = vadd.xlane.f32.xlu0 %v837
    %v839 = vpop.xlane.xlu0 %838
    %v840 = vsel %vm782, %v822, 0.0
    %841 = vadd.xlane.f32.xlu0 %v840
    %v842 = vpop.xlane.xlu0 %841
    %v843 = vsel %vm782, %v824, 0.0
    %844 = vadd.xlane.f32.xlu0 %v843
    %v845 = vpop.xlane.xlu0 %844
    %v846 = vsel %vm782, %v826, 0.0
    %847 = vadd.xlane.f32.xlu0 %v846
    %v848 = vpop.xlane.xlu0 %847
    %v849 = vsel %vm782, %v828, 0.0
    %850 = vadd.xlane.f32.xlu0 %v849
    %v851 = vpop.xlane.xlu0 %850
    %v852 = vsel %vm782, %v830, 0.0
    %853 = vadd.xlane.f32.xlu0 %v852
    %v854 = vpop.xlane.xlu0 %853
    %v855 = vrcp.pop %v833
    %v856 = vrcp.pop %v836
    %v857 = vrcp.pop %v839
    %v858 = vrcp.pop %v842
    %v859 = vrcp.pop %v845
    %v860 = vrcp.pop %v848
    %v861 = vrcp.pop %v851
    %v862 = vrcp.pop %v854
    %v863 = vmul.f32 %v816, %v855
    %v864 = vmul.f32 %v818, %v856
    %v865 = vmul.f32 %v820, %v857
    %v866 = vmul.f32 %v822, %v858
    %v867 = vmul.f32 %v824, %v859
    %v868 = vmul.f32 %v826, %v860
    %v869 = vmul.f32 %v828, %v861
    %v870 = vmul.f32 %v830, %v862
    %v871 = vpack.c.bf16 %v863, %v863
    %v872 = vpack.c.bf16 %v864, %v864
    %v873 = vpack.c.bf16 %v865, %v865
    %v874 = vpack.c.bf16 %v866, %v866
    %v875 = vpack.c.bf16 %v867, %v867
    %v876 = vpack.c.bf16 %v868, %v868
    %v877 = vpack.c.bf16 %v869, %v869
    %v878 = vpack.c.bf16 %v870, %v870
    %v880 = vsel %vm782, %v871, 0
    %vm882 = vcmask 1043456
    %v884 = vsel %vm882, %v379, 0
    %886 = vmatprep.subr.bf16.mxu0 0
    %887 = vmatpush1.bf16.msra.mxu0 0
    %888 = vmatprep.subr.bf16.mxu0 0
    %889 = vmatpush1.bf16.msra.mxu0 0
    %890 = vmatprep.subr.bf16.mxu0 0
    %891 = vmatpush1.bf16.msra.mxu0 0
    %892 = vmatprep.subr.bf16.mxu0 0
    %893 = vmatpush1.bf16.msra.mxu0 0
    %894 = vmatprep.subr.bf16.mxu0 0
    %895 = vmatpush1.bf16.msra.mxu0 0
    %896 = vmatprep.subr.bf16.mxu0 0
    %897 = vmatpush1.bf16.msra.mxu0 0
    %898 = vmatprep.subr.bf16.mxu0 0
    %899 = vmatpush1.bf16.msra.mxu0 0
    %900 = vmatprep.subr.bf16.mxu0 0
    %901 = vmatpush1.bf16.msra.mxu0 %v884
    %902 = vmatprep.subr.bf16.mxu0 0
    %903 = vmatpush2.bf16.msra.mxu0 0
    %904 = vmatprep.subr.bf16.mxu0 0
    %905 = vmatpush2.bf16.msra.mxu0 0
    %906 = vmatprep.subr.bf16.mxu0 0
    %907 = vmatpush2.bf16.msra.mxu0 0
    %908 = vmatprep.subr.bf16.mxu0 0
    %909 = vmatpush2.bf16.msra.mxu0 0
    %910 = vmatprep.subr.bf16.mxu0 0
    %911 = vmatpush2.bf16.msra.mxu0 0
    %912 = vmatprep.subr.bf16.mxu0 0
    %913 = vmatpush2.bf16.msra.mxu0 0
    %914 = vmatprep.subr.bf16.mxu0 0
    %915 = vmatpush2.bf16.msra.mxu0 0
    %916 = vmatprep.subr.bf16.mxu0 0
    %917 = vmatpush2.bf16.msra.mxu0 0
    %918 = vmatprep.mubr.bf16.mxu0 0
    %919 = vmatmul.mubr.bf16.gmra.mxu0 %v880
    %v920 = vpop.f32.mrf.mxu0
    %v921 = vadd.f32 0.0, %v920
    %v922 = vpop.f32.mrf.mxu0
    %v923 = vpop.f32.mrf.mxu0
    %v924 = vpop.f32.mrf.mxu0
    %925 = vdwg.mxu0
    %v927 = vsel %vm782, %v872, 0
    %v930 = vsel %vm882, %v380, 0
    %932 = vmatprep.subr.bf16.mxu0 0
    %933 = vmatpush1.bf16.msra.mxu0 0
    %934 = vmatprep.subr.bf16.mxu0 0
    %935 = vmatpush1.bf16.msra.mxu0 0
    %936 = vmatprep.subr.bf16.mxu0 0
    %937 = vmatpush1.bf16.msra.mxu0 0
    %938 = vmatprep.subr.bf16.mxu0 0
    %939 = vmatpush1.bf16.msra.mxu0 0
    %940 = vmatprep.subr.bf16.mxu0 0
    %941 = vmatpush1.bf16.msra.mxu0 0
    %942 = vmatprep.subr.bf16.mxu0 0
    %943 = vmatpush1.bf16.msra.mxu0 0
    %944 = vmatprep.subr.bf16.mxu0 0
    %945 = vmatpush1.bf16.msra.mxu0 0
    %946 = vmatprep.subr.bf16.mxu0 0
    %947 = vmatpush1.bf16.msra.mxu0 %v930
    %948 = vmatprep.subr.bf16.mxu0 0
    %949 = vmatpush2.bf16.msra.mxu0 0
    %950 = vmatprep.subr.bf16.mxu0 0
    %951 = vmatpush2.bf16.msra.mxu0 0
    %952 = vmatprep.subr.bf16.mxu0 0
    %953 = vmatpush2.bf16.msra.mxu0 0
    %954 = vmatprep.subr.bf16.mxu0 0
    %955 = vmatpush2.bf16.msra.mxu0 0
    %956 = vmatprep.subr.bf16.mxu0 0
    %957 = vmatpush2.bf16.msra.mxu0 0
    %958 = vmatprep.subr.bf16.mxu0 0
    %959 = vmatpush2.bf16.msra.mxu0 0
    %960 = vmatprep.subr.bf16.mxu0 0
    %961 = vmatpush2.bf16.msra.mxu0 0
    %962 = vmatprep.subr.bf16.mxu0 0
    %963 = vmatpush2.bf16.msra.mxu0 0
    %964 = vmatprep.mubr.bf16.mxu0 0
    %965 = vmatmul.mubr.bf16.gmra.mxu0 %v927
    %v966 = vpop.f32.mrf.mxu0
    %v967 = vadd.f32 0.0, %v966
    %v968 = vpop.f32.mrf.mxu0
    %v969 = vpop.f32.mrf.mxu0
    %v970 = vpop.f32.mrf.mxu0
    %971 = vdwg.mxu0
    %v973 = vsel %vm782, %v873, 0
    %v976 = vsel %vm882, %v381, 0
    %978 = vmatprep.subr.bf16.mxu0 0
    %979 = vmatpush1.bf16.msra.mxu0 0
    %980 = vmatprep.subr.bf16.mxu0 0
    %981 = vmatpush1.bf16.msra.mxu0 0
    %982 = vmatprep.subr.bf16.mxu0 0
    %983 = vmatpush1.bf16.msra.mxu0 0
    %984 = vmatprep.subr.bf16.mxu0 0
    %985 = vmatpush1.bf16.msra.mxu0 0
    %986 = vmatprep.subr.bf16.mxu0 0
    %987 = vmatpush1.bf16.msra.mxu0 0
    %988 = vmatprep.subr.bf16.mxu0 0
    %989 = vmatpush1.bf16.msra.mxu0 0
    %990 = vmatprep.subr.bf16.mxu0 0
    %991 = vmatpush1.bf16.msra.mxu0 0
    %992 = vmatprep.subr.bf16.mxu0 0
    %993 = vmatpush1.bf16.msra.mxu0 %v976
    %994 = vmatprep.subr.bf16.mxu0 0
    %995 = vmatpush2.bf16.msra.mxu0 0
    %996 = vmatprep.subr.bf16.mxu0 0
    %997 = vmatpush2.bf16.msra.mxu0 0
    %998 = vmatprep.subr.bf16.mxu0 0
    %999 = vmatpush2.bf16.msra.mxu0 0
    %1000 = vmatprep.subr.bf16.mxu0 0
    %1001 = vmatpush2.bf16.msra.mxu0 0
    %1002 = vmatprep.subr.bf16.mxu0 0
    %1003 = vmatpush2.bf16.msra.mxu0 0
    %1004 = vmatprep.subr.bf16.mxu0 0
    %1005 = vmatpush2.bf16.msra.mxu0 0
    %1006 = vmatprep.subr.bf16.mxu0 0
    %1007 = vmatpush2.bf16.msra.mxu0 0
    %1008 = vmatprep.subr.bf16.mxu0 0
    %1009 = vmatpush2.bf16.msra.mxu0 0
    %1010 = vmatprep.mubr.bf16.mxu0 0
    %1011 = vmatmul.mubr.bf16.gmra.mxu0 %v973
    %v1012 = vpop.f32.mrf.mxu0
    %v1013 = vadd.f32 0.0, %v1012
    %v1014 = vpop.f32.mrf.mxu0
    %v1015 = vpop.f32.mrf.mxu0
    %v1016 = vpop.f32.mrf.mxu0
    %1017 = vdwg.mxu0
    %v1019 = vsel %vm782, %v874, 0
    %v1022 = vsel %vm882, %v382, 0
    %1024 = vmatprep.subr.bf16.mxu0 0
    %1025 = vmatpush1.bf16.msra.mxu0 0
    %1026 = vmatprep.subr.bf16.mxu0 0
    %1027 = vmatpush1.bf16.msra.mxu0 0
    %1028 = vmatprep.subr.bf16.mxu0 0
    %1029 = vmatpush1.bf16.msra.mxu0 0
    %1030 = vmatprep.subr.bf16.mxu0 0
    %1031 = vmatpush1.bf16.msra.mxu0 0
    %1032 = vmatprep.subr.bf16.mxu0 0
    %1033 = vmatpush1.bf16.msra.mxu0 0
    %1034 = vmatprep.subr.bf16.mxu0 0
    %1035 = vmatpush1.bf16.msra.mxu0 0
    %1036 = vmatprep.subr.bf16.mxu0 0
    %1037 = vmatpush1.bf16.msra.mxu0 0
    %1038 = vmatprep.subr.bf16.mxu0 0
    %1039 = vmatpush1.bf16.msra.mxu0 %v1022
    %1040 = vmatprep.subr.bf16.mxu0 0
    %1041 = vmatpush2.bf16.msra.mxu0 0
    %1042 = vmatprep.subr.bf16.mxu0 0
    %1043 = vmatpush2.bf16.msra.mxu0 0
    %1044 = vmatprep.subr.bf16.mxu0 0
    %1045 = vmatpush2.bf16.msra.mxu0 0
    %1046 = vmatprep.subr.bf16.mxu0 0
    %1047 = vmatpush2.bf16.msra.mxu0 0
    %1048 = vmatprep.subr.bf16.mxu0 0
    %1049 = vmatpush2.bf16.msra.mxu0 0
    %1050 = vmatprep.subr.bf16.mxu0 0
    %1051 = vmatpush2.bf16.msra.mxu0 0
    %1052 = vmatprep.subr.bf16.mxu0 0
    %1053 = vmatpush2.bf16.msra.mxu0 0
    %1054 = vmatprep.subr.bf16.mxu0 0
    %1055 = vmatpush2.bf16.msra.mxu0 0
    %1056 = vmatprep.mubr.bf16.mxu0 0
    %1057 = vmatmul.mubr.bf16.gmra.mxu0 %v1019
    %v1058 = vpop.f32.mrf.mxu0
    %v1059 = vadd.f32 0.0, %v1058
    %v1060 = vpop.f32.mrf.mxu0
    %v1061 = vpop.f32.mrf.mxu0
    %v1062 = vpop.f32.mrf.mxu0
    %1063 = vdwg.mxu0
    %v1065 = vsel %vm782, %v875, 0
    %v1068 = vsel %vm882, %v383, 0
    %1070 = vmatprep.subr.bf16.mxu0 0
    %1071 = vmatpush1.bf16.msra.mxu0 0
    %1072 = vmatprep.subr.bf16.mxu0 0
    %1073 = vmatpush1.bf16.msra.mxu0 0
    %1074 = vmatprep.subr.bf16.mxu0 0
    %1075 = vmatpush1.bf16.msra.mxu0 0
    %1076 = vmatprep.subr.bf16.mxu0 0
    %1077 = vmatpush1.bf16.msra.mxu0 0
    %1078 = vmatprep.subr.bf16.mxu0 0
    %1079 = vmatpush1.bf16.msra.mxu0 0
    %1080 = vmatprep.subr.bf16.mxu0 0
    %1081 = vmatpush1.bf16.msra.mxu0 0
    %1082 = vmatprep.subr.bf16.mxu0 0
    %1083 = vmatpush1.bf16.msra.mxu0 0
    %1084 = vmatprep.subr.bf16.mxu0 0
    %1085 = vmatpush1.bf16.msra.mxu0 %v1068
    %1086 = vmatprep.subr.bf16.mxu0 0
    %1087 = vmatpush2.bf16.msra.mxu0 0
    %1088 = vmatprep.subr.bf16.mxu0 0
    %1089 = vmatpush2.bf16.msra.mxu0 0
    %1090 = vmatprep.subr.bf16.mxu0 0
    %1091 = vmatpush2.bf16.msra.mxu0 0
    %1092 = vmatprep.subr.bf16.mxu0 0
    %1093 = vmatpush2.bf16.msra.mxu0 0
    %1094 = vmatprep.subr.bf16.mxu0 0
    %1095 = vmatpush2.bf16.msra.mxu0 0
    %1096 = vmatprep.subr.bf16.mxu0 0
    %1097 = vmatpush2.bf16.msra.mxu0 0
    %1098 = vmatprep.subr.bf16.mxu0 0
    %1099 = vmatpush2.bf16.msra.mxu0 0
    %1100 = vmatprep.subr.bf16.mxu0 0
    %1101 = vmatpush2.bf16.msra.mxu0 0
    %1102 = vmatprep.mubr.bf16.mxu0 0
    %1103 = vmatmul.mubr.bf16.gmra.mxu0 %v1065
    %v1104 = vpop.f32.mrf.mxu0
    %v1105 = vadd.f32 0.0, %v1104
    %v1106 = vpop.f32.mrf.mxu0
    %v1107 = vpop.f32.mrf.mxu0
    %v1108 = vpop.f32.mrf.mxu0
    %1109 = vdwg.mxu0
    %v1111 = vsel %vm782, %v876, 0
    %v1114 = vsel %vm882, %v384, 0
    %1116 = vmatprep.subr.bf16.mxu0 0
    %1117 = vmatpush1.bf16.msra.mxu0 0
    %1118 = vmatprep.subr.bf16.mxu0 0
    %1119 = vmatpush1.bf16.msra.mxu0 0
    %1120 = vmatprep.subr.bf16.mxu0 0
    %1121 = vmatpush1.bf16.msra.mxu0 0
    %1122 = vmatprep.subr.bf16.mxu0 0
    %1123 = vmatpush1.bf16.msra.mxu0 0
    %1124 = vmatprep.subr.bf16.mxu0 0
    %1125 = vmatpush1.bf16.msra.mxu0 0
    %1126 = vmatprep.subr.bf16.mxu0 0
    %1127 = vmatpush1.bf16.msra.mxu0 0
    %1128 = vmatprep.subr.bf16.mxu0 0
    %1129 = vmatpush1.bf16.msra.mxu0 0
    %1130 = vmatprep.subr.bf16.mxu0 0
    %1131 = vmatpush1.bf16.msra.mxu0 %v1114
    %1132 = vmatprep.subr.bf16.mxu0 0
    %1133 = vmatpush2.bf16.msra.mxu0 0
    %1134 = vmatprep.subr.bf16.mxu0 0
    %1135 = vmatpush2.bf16.msra.mxu0 0
    %1136 = vmatprep.subr.bf16.mxu0 0
    %1137 = vmatpush2.bf16.msra.mxu0 0
    %1138 = vmatprep.subr.bf16.mxu0 0
    %1139 = vmatpush2.bf16.msra.mxu0 0
    %1140 = vmatprep.subr.bf16.mxu0 0
    %1141 = vmatpush2.bf16.msra.mxu0 0
    %1142 = vmatprep.subr.bf16.mxu0 0
    %1143 = vmatpush2.bf16.msra.mxu0 0
    %1144 = vmatprep.subr.bf16.mxu0 0
    %1145 = vmatpush2.bf16.msra.mxu0 0
    %1146 = vmatprep.subr.bf16.mxu0 0
    %1147 = vmatpush2.bf16.msra.mxu0 0
    %1148 = vmatprep.mubr.bf16.mxu0 0
    %1149 = vmatmul.mubr.bf16.gmra.mxu0 %v1111
    %v1150 = vpop.f32.mrf.mxu0
    %v1151 = vadd.f32 0.0, %v1150
    %v1152 = vpop.f32.mrf.mxu0
    %v1153 = vpop.f32.mrf.mxu0
    %v1154 = vpop.f32.mrf.mxu0
    %1155 = vdwg.mxu0
    %v1157 = vsel %vm782, %v877, 0
    %v1160 = vsel %vm882, %v385, 0
    %1162 = vmatprep.subr.bf16.mxu0 0
    %1163 = vmatpush1.bf16.msra.mxu0 0
    %1164 = vmatprep.subr.bf16.mxu0 0
    %1165 = vmatpush1.bf16.msra.mxu0 0
    %1166 = vmatprep.subr.bf16.mxu0 0
    %1167 = vmatpush1.bf16.msra.mxu0 0
    %1168 = vmatprep.subr.bf16.mxu0 0
    %1169 = vmatpush1.bf16.msra.mxu0 0
    %1170 = vmatprep.subr.bf16.mxu0 0
    %1171 = vmatpush1.bf16.msra.mxu0 0
    %1172 = vmatprep.subr.bf16.mxu0 0
    %1173 = vmatpush1.bf16.msra.mxu0 0
    %1174 = vmatprep.subr.bf16.mxu0 0
    %1175 = vmatpush1.bf16.msra.mxu0 0
    %1176 = vmatprep.subr.bf16.mxu0 0
    %1177 = vmatpush1.bf16.msra.mxu0 %v1160
    %1178 = vmatprep.subr.bf16.mxu0 0
    %1179 = vmatpush2.bf16.msra.mxu0 0
    %1180 = vmatprep.subr.bf16.mxu0 0
    %1181 = vmatpush2.bf16.msra.mxu0 0
    %1182 = vmatprep.subr.bf16.mxu0 0
    %1183 = vmatpush2.bf16.msra.mxu0 0
    %1184 = vmatprep.subr.bf16.mxu0 0
    %1185 = vmatpush2.bf16.msra.mxu0 0
    %1186 = vmatprep.subr.bf16.mxu0 0
    %1187 = vmatpush2.bf16.msra.mxu0 0
    %1188 = vmatprep.subr.bf16.mxu0 0
    %1189 = vmatpush2.bf16.msra.mxu0 0
    %1190 = vmatprep.subr.bf16.mxu0 0
    %1191 = vmatpush2.bf16.msra.mxu0 0
    %1192 = vmatprep.subr.bf16.mxu0 0
    %1193 = vmatpush2.bf16.msra.mxu0 0
    %1194 = vmatprep.mubr.bf16.mxu0 0
    %1195 = vmatmul.mubr.bf16.gmra.mxu0 %v1157
    %v1196 = vpop.f32.mrf.mxu0
    %v1197 = vadd.f32 0.0, %v1196
    %v1198 = vpop.f32.mrf.mxu0
    %v1199 = vpop.f32.mrf.mxu0
    %v1200 = vpop.f32.mrf.mxu0
    %1201 = vdwg.mxu0
    %v1203 = vsel %vm782, %v878, 0
    %v1206 = vsel %vm882, %v386, 0
    %1208 = vmatprep.subr.bf16.mxu0 0
    %1209 = vmatpush1.bf16.msra.mxu0 0
    %1210 = vmatprep.subr.bf16.mxu0 0
    %1211 = vmatpush1.bf16.msra.mxu0 0
    %1212 = vmatprep.subr.bf16.mxu0 0
    %1213 = vmatpush1.bf16.msra.mxu0 0
    %1214 = vmatprep.subr.bf16.mxu0 0
    %1215 = vmatpush1.bf16.msra.mxu0 0
    %1216 = vmatprep.subr.bf16.mxu0 0
    %1217 = vmatpush1.bf16.msra.mxu0 0
    %1218 = vmatprep.subr.bf16.mxu0 0
    %1219 = vmatpush1.bf16.msra.mxu0 0
    %1220 = vmatprep.subr.bf16.mxu0 0
    %1221 = vmatpush1.bf16.msra.mxu0 0
    %1222 = vmatprep.subr.bf16.mxu0 0
    %1223 = vmatpush1.bf16.msra.mxu0 %v1206
    %1224 = vmatprep.subr.bf16.mxu0 0
    %1225 = vmatpush2.bf16.msra.mxu0 0
    %1226 = vmatprep.subr.bf16.mxu0 0
    %1227 = vmatpush2.bf16.msra.mxu0 0
    %1228 = vmatprep.subr.bf16.mxu0 0
    %1229 = vmatpush2.bf16.msra.mxu0 0
    %1230 = vmatprep.subr.bf16.mxu0 0
    %1231 = vmatpush2.bf16.msra.mxu0 0
    %1232 = vmatprep.subr.bf16.mxu0 0
    %1233 = vmatpush2.bf16.msra.mxu0 0
    %1234 = vmatprep.subr.bf16.mxu0 0
    %1235 = vmatpush2.bf16.msra.mxu0 0
    %1236 = vmatprep.subr.bf16.mxu0 0
    %1237 = vmatpush2.bf16.msra.mxu0 0
    %1238 = vmatprep.subr.bf16.mxu0 0
    %1239 = vmatpush2.bf16.msra.mxu0 0
    %1240 = vmatprep.mubr.bf16.mxu0 0
    %1241 = vmatmul.mubr.bf16.gmra.mxu0 %v1203
    %v1242 = vpop.f32.mrf.mxu0
    %v1243 = vadd.f32 0.0, %v1242
    %v1244 = vpop.f32.mrf.mxu0
    %v1245 = vpop.f32.mrf.mxu0
    %v1246 = vpop.f32.mrf.mxu0
    %1247 = vdwg.mxu0
    %1250 = vrot.lane.b32.xlu0 %v1013, 16
    %v1251 = vpop.permute.xlu0 %1250
    %1252 = vrot.lane.b32.xlu0 %v1059, 16
    %v1253 = vpop.permute.xlu0 %1252
    %1258 = vrot.lane.b32.xlu0 %v1105, 32
    %v1259 = vpop.permute.xlu0 %1258
    %1260 = vrot.lane.b32.xlu0 %v1151, 32
    %v1261 = vpop.permute.xlu0 %1260
    %1266 = vrot.lane.b32.xlu0 %v1197, 48
    %v1267 = vpop.permute.xlu0 %1266
    %1268 = vrot.lane.b32.xlu0 %v1243, 48
    %v1269 = vpop.permute.xlu0 %1268
    %v1272 = vsel %vm387, %v921, %v1251
    %v1273 = vsel %vm387, %v967, %v1253
    %vm1274 = vcmask 261120
    %v1275 = vsel %vm1274, %v1272, %v1259
    %v1276 = vsel %vm1274, %v1273, %v1261
    %vm1277 = vcmask 392192
    %v1278 = vsel %vm1277, %v1275, %v1267
    %v1279 = vsel %vm1277, %v1276, %v1269
    %v1280 = vpack.c.bf16 %v1279, %v1278
    %v1281 = vld [vmem:[%s3] sm:$0xf]
    %v1282 = vld [vmem:[%s3 + $0x4] sm:$0xf]
    %v1283 = vld [vmem:[%s3 + $0x8] sm:$0xf]
    %v1284 = vld [vmem:[%s3 + $0xc] sm:$0xf]
    %v1285 = vld [vmem:[%s3 + $0x10] sm:$0xf]
    %v1286 = vld [vmem:[%s3 + $0x14] sm:$0xf]
    %v1287 = vld [vmem:[%s3 + $0x18] sm:$0xf]
    %v1288 = vld [vmem:[%s3 + $0x1c] sm:$0xf]
    %v1289 = vlaneseq
    %v1290 = vshrl.u32 %v1289, 7
    %v1291 = vsub.s32 3, %v1290
    %v1292 = vrot.slane %v101, %v1291
    %v1301 = vunpack.c.l.b16 %v1281
    %v1302 = vunpack.c.l.b16 %v1282
    %v1303 = vunpack.c.l.b16 %v1283
    %v1304 = vunpack.c.l.b16 %v1284
    %v1305 = vunpack.c.l.b16 %v1285
    %v1306 = vunpack.c.l.b16 %v1286
    %v1307 = vunpack.c.l.b16 %v1287
    %v1308 = vunpack.c.l.b16 %v1288
    %v1309 = vpack.c.b16 %v1302, %v1301
    %v1310 = vpack.c.b16 %v1304, %v1303
    %v1311 = vpack.c.b16 %v1306, %v1305
    %v1312 = vpack.c.b16 %v1308, %v1307
    %v1318 = vsel %vm132, %v1280, 0
    %1320 = vmatprep.subr.bf16.mxu0 0
    %1321 = vmatpush1.bf16.msra.mxu0 0
    %1322 = vmatprep.subr.bf16.mxu0 0
    %1323 = vmatpush1.bf16.msra.mxu0 0
    %1324 = vmatprep.subr.bf16.mxu0 0
    %1325 = vmatpush1.bf16.msra.mxu0 0
    %1326 = vmatprep.subr.bf16.mxu0 0
    %1327 = vmatpush1.bf16.msra.mxu0 0
    %1328 = vmatprep.subr.bf16.mxu0 0
    %1329 = vmatpush1.bf16.msra.mxu0 %v1312
    %1330 = vmatprep.subr.bf16.mxu0 0
    %1331 = vmatpush1.bf16.msra.mxu0 %v1311
    %1332 = vmatprep.subr.bf16.mxu0 0
    %1333 = vmatpush1.bf16.msra.mxu0 %v1310
    %1334 = vmatprep.subr.bf16.mxu0 0
    %1335 = vmatpush1.bf16.msra.mxu0 %v1309
    %1336 = vmatprep.subr.bf16.mxu0 0
    %1337 = vmatpush2.bf16.msra.mxu0 0
    %1338 = vmatprep.subr.bf16.mxu0 0
    %1339 = vmatpush2.bf16.msra.mxu0 0
    %1340 = vmatprep.subr.bf16.mxu0 0
    %1341 = vmatpush2.bf16.msra.mxu0 0
    %1342 = vmatprep.subr.bf16.mxu0 0
    %1343 = vmatpush2.bf16.msra.mxu0 0
    %1344 = vmatprep.subr.bf16.mxu0 0
    %1345 = vmatpush2.bf16.msra.mxu0 0
    %1346 = vmatprep.subr.bf16.mxu0 0
    %1347 = vmatpush2.bf16.msra.mxu0 0
    %1348 = vmatprep.subr.bf16.mxu0 0
    %1349 = vmatpush2.bf16.msra.mxu0 0
    %1350 = vmatprep.subr.bf16.mxu0 0
    %1351 = vmatpush2.bf16.msra.mxu0 0
    %1352 = vmatprep.mubr.bf16.mxu0 0
    %1353 = vmatmul.mubr.bf16.gmra.mxu0 %v1318
    %v1354 = vpop.f32.mrf.mxu0
    %v1355 = vadd.f32 %v1292, %v1354
    %v1356 = vpop.f32.mrf.mxu0
    %v1357 = vpop.f32.mrf.mxu0
    %v1358 = vadd.f32 %v1292, %v1357
    %v1359 = vpop.f32.mrf.mxu0
    %1360 = vdwg.mxu0
    %v1361 = vadd.f32 %v51, %v1355
    %v1362 = vadd.f32 %v52, %v1358
    %v1363 = vsel %vm132, %v1361, 0.0
    %1364 = vadd.xlane.f32.xlu0 %v1363
    %v1365 = vpop.xlane.xlu0 %1364
    %v1366 = vsel %vm132, %v1362, 0.0
    %1367 = vadd.xlane.f32.xlu0 %v1366
    %v1368 = vpop.xlane.xlu0 %1367
    %v1369 = vrcp.pop 64.0
    %v1370 = vmul.f32 %v1365, %v1369
    %v1371 = vmul.f32 %v1368, %v1369
    %v1372 = vsub.f32 %v1361, %v1370
    %v1373 = vsub.f32 %v1362, %v1371
    %v1374 = vmul.f32 %v1372, %v1372
    %v1375 = vmul.f32 %v1373, %v1373
    %v1376 = vsel %vm132, %v1374, 0.0
    %1377 = vadd.xlane.f32.xlu0 %v1376
    %v1378 = vpop.xlane.xlu0 %1377
    %v1379 = vsel %vm132, %v1375, 0.0
    %1380 = vadd.xlane.f32.xlu0 %v1379
    %v1381 = vpop.xlane.xlu0 %1380
    %v1382 = vmul.f32 %v1378, %v1369
    %v1383 = vmul.f32 %v1381, %v1369
    %v1384 = vadd.f32 %v1382, 1e-12
    %v1385 = vadd.f32 %v1383, 1e-12
    %v1386 = vrsqrt.pop %v1384
    %v1387 = vrsqrt.pop %v1385
    %v1388 = vmul.f32 %v1372, %v1386
    %v1389 = vmul.f32 %v1373, %v1387
    %v1390 = vlaneseq
    %v1391 = vshrl.u32 %v1390, 7
    %v1392 = vsub.s32 4, %v1391
    %v1393 = vrot.slane %v101, %v1392
    %v1394 = vmul.f32 %v1388, %v1393
    %v1395 = vmul.f32 %v1389, %v1393
    %v1396 = vlaneseq
    %v1397 = vshrl.u32 %v1396, 7
    %v1398 = vsub.s32 5, %v1397
    %v1399 = vrot.slane %v101, %v1398
    %v1400 = vadd.f32 %v1394, %v1399
    %v1401 = vadd.f32 %v1395, %v1399
    %v1402 = vpack.c.bf16 %v1401, %v1400
    %v1403 = vld [vmem:[%s4] sm:$0xf]
    %v1404 = vld [vmem:[%s4 + $0x4] sm:$0xf]
    %v1405 = vld [vmem:[%s4 + $0x8] sm:$0xf]
    %v1406 = vld [vmem:[%s4 + $0xc] sm:$0xf]
    %v1407 = vld [vmem:[%s4 + $0x10] sm:$0xf]
    %v1408 = vld [vmem:[%s4 + $0x14] sm:$0xf]
    %v1409 = vld [vmem:[%s4 + $0x18] sm:$0xf]
    %v1410 = vld [vmem:[%s4 + $0x1c] sm:$0xf]
    %v1411 = vld [vmem:[#allocation2] sm:$0x1]
    %v1412 = vlaneseq
    %v1413 = vshrl.u32 %v1412, 7
    %v1414 = vsub.s32 0, %v1413
    %v1415 = vrot.slane %v1411, %v1414
    %v1424 = vunpack.c.l.b16 %v1403
    %v1425 = vunpack.c.l.b16 %v1404
    %v1426 = vunpack.c.l.b16 %v1405
    %v1427 = vunpack.c.l.b16 %v1406
    %v1428 = vunpack.c.l.b16 %v1407
    %v1429 = vunpack.c.l.b16 %v1408
    %v1430 = vunpack.c.l.b16 %v1409
    %v1431 = vunpack.c.l.b16 %v1410
    %v1432 = vpack.c.b16 %v1425, %v1424
    %v1433 = vpack.c.b16 %v1427, %v1426
    %v1434 = vpack.c.b16 %v1429, %v1428
    %v1435 = vpack.c.b16 %v1431, %v1430
    %v1441 = vsel %vm132, %v1402, 0
    %1443 = vmatprep.subr.bf16.mxu0 0
    %1444 = vmatpush1.bf16.msra.mxu0 0
    %1445 = vmatprep.subr.bf16.mxu0 0
    %1446 = vmatpush1.bf16.msra.mxu0 0
    %1447 = vmatprep.subr.bf16.mxu0 0
    %1448 = vmatpush1.bf16.msra.mxu0 0
    %1449 = vmatprep.subr.bf16.mxu0 0
    %1450 = vmatpush1.bf16.msra.mxu0 0
    %1451 = vmatprep.subr.bf16.mxu0 0
    %1452 = vmatpush1.bf16.msra.mxu0 %v1435
    %1453 = vmatprep.subr.bf16.mxu0 0
    %1454 = vmatpush1.bf16.msra.mxu0 %v1434
    %1455 = vmatprep.subr.bf16.mxu0 0
    %1456 = vmatpush1.bf16.msra.mxu0 %v1433
    %1457 = vmatprep.subr.bf16.mxu0 0
    %1458 = vmatpush1.bf16.msra.mxu0 %v1432
    %1459 = vmatprep.subr.bf16.mxu0 0
    %1460 = vmatpush2.bf16.msra.mxu0 0
    %1461 = vmatprep.subr.bf16.mxu0 0
    %1462 = vmatpush2.bf16.msra.mxu0 0
    %1463 = vmatprep.subr.bf16.mxu0 0
    %1464 = vmatpush2.bf16.msra.mxu0 0
    %1465 = vmatprep.subr.bf16.mxu0 0
    %1466 = vmatpush2.bf16.msra.mxu0 0
    %1467 = vmatprep.subr.bf16.mxu0 0
    %1468 = vmatpush2.bf16.msra.mxu0 0
    %1469 = vmatprep.subr.bf16.mxu0 0
    %1470 = vmatpush2.bf16.msra.mxu0 0
    %1471 = vmatprep.subr.bf16.mxu0 0
    %1472 = vmatpush2.bf16.msra.mxu0 0
    %1473 = vmatprep.subr.bf16.mxu0 0
    %1474 = vmatpush2.bf16.msra.mxu0 0
    %1475 = vmatprep.mubr.bf16.mxu0 0
    %1476 = vmatmul.mubr.bf16.gmra.mxu0 %v1441
    %v1477 = vpop.f32.mrf.mxu0
    %v1478 = vadd.f32 %v1415, %v1477
    %v1479 = vpop.f32.mrf.mxu0
    %v1480 = vpop.f32.mrf.mxu0
    %v1481 = vadd.f32 %v1415, %v1480
    %v1482 = vpop.f32.mrf.mxu0
    %1483 = vdwg.mxu0
    %v1484 = vmul.f32 %v1478, 0.5
    %v1485 = vmul.f32 %v1481, 0.5
    %v1486 = vmul.f32 %v1478, 0.044715
    %v1487 = vmul.f32 %v1481, 0.044715
    %v1488 = vmul.f32 %v1486, %v1478
    %v1489 = vmul.f32 %v1487, %v1481
    %v1490 = vmul.f32 %v1488, %v1478
    %v1491 = vmul.f32 %v1489, %v1481
    %v1492 = vadd.f32 %v1478, %v1490
    %v1493 = vadd.f32 %v1481, %v1491
    %v1494 = vmul.f32 %v1492, 0.7978846
    %v1495 = vmul.f32 %v1493, 0.7978846
    %v1496 = vtanh.pop %v1494
    %v1497 = vtanh.pop %v1495
    %v1498 = vadd.f32 %v1496, 1.0
    %v1499 = vadd.f32 %v1497, 1.0
    %v1500 = vmul.f32 %v1484, %v1498
    %v1501 = vmul.f32 %v1485, %v1499
    %v1502 = vpack.c.bf16 %v1501, %v1500
    %v1503 = vld [vmem:[%s5] sm:$0xf]
    %v1504 = vld [vmem:[%s5 + $0x4] sm:$0xf]
    %v1505 = vld [vmem:[%s5 + $0x8] sm:$0xf]
    %v1506 = vld [vmem:[%s5 + $0xc] sm:$0xf]
    %v1507 = vld [vmem:[%s5 + $0x10] sm:$0xf]
    %v1508 = vld [vmem:[%s5 + $0x14] sm:$0xf]
    %v1509 = vld [vmem:[%s5 + $0x18] sm:$0xf]
    %v1510 = vld [vmem:[%s5 + $0x1c] sm:$0xf]
    %v1511 = vld [vmem:[%s5 + $0x20] sm:$0xf]
    %v1512 = vld [vmem:[%s5 + $0x24] sm:$0xf]
    %v1513 = vld [vmem:[%s5 + $0x28] sm:$0xf]
    %v1514 = vld [vmem:[%s5 + $0x2c] sm:$0xf]
    %v1515 = vld [vmem:[%s5 + $0x30] sm:$0xf]
    %v1516 = vld [vmem:[%s5 + $0x34] sm:$0xf]
    %v1517 = vld [vmem:[%s5 + $0x38] sm:$0xf]
    %v1518 = vld [vmem:[%s5 + $0x3c] sm:$0xf]
    %v1519 = vlaneseq
    %v1520 = vshrl.u32 %v1519, 7
    %v1521 = vsub.s32 6, %v1520
    %v1522 = vrot.slane %v101, %v1521
    %v1539 = vunpack.c.l.b16 %v1503
    %v1540 = vunpack.c.l.b16 %v1504
    %v1541 = vunpack.c.l.b16 %v1505
    %v1542 = vunpack.c.l.b16 %v1506
    %v1543 = vunpack.c.l.b16 %v1507
    %v1544 = vunpack.c.l.b16 %v1508
    %v1545 = vunpack.c.l.b16 %v1509
    %v1546 = vunpack.c.l.b16 %v1510
    %v1547 = vunpack.c.l.b16 %v1511
    %v1548 = vunpack.c.l.b16 %v1512
    %v1549 = vunpack.c.l.b16 %v1513
    %v1550 = vunpack.c.l.b16 %v1514
    %v1551 = vunpack.c.l.b16 %v1515
    %v1552 = vunpack.c.l.b16 %v1516
    %v1553 = vunpack.c.l.b16 %v1517
    %v1554 = vunpack.c.l.b16 %v1518
    %v1555 = vpack.c.b16 %v1540, %v1539
    %v1556 = vpack.c.b16 %v1542, %v1541
    %v1557 = vpack.c.b16 %v1544, %v1543
    %v1558 = vpack.c.b16 %v1546, %v1545
    %v1559 = vpack.c.b16 %v1548, %v1547
    %v1560 = vpack.c.b16 %v1550, %v1549
    %v1561 = vpack.c.b16 %v1552, %v1551
    %v1562 = vpack.c.b16 %v1554, %v1553
    %1571 = vmatprep.subr.bf16.mxu0 0
    %1572 = vmatpush1.bf16.msra.mxu0 %v1562
    %1573 = vmatprep.subr.bf16.mxu0 0
    %1574 = vmatpush1.bf16.msra.mxu0 %v1561
    %1575 = vmatprep.subr.bf16.mxu0 0
    %1576 = vmatpush1.bf16.msra.mxu0 %v1560
    %1577 = vmatprep.subr.bf16.mxu0 0
    %1578 = vmatpush1.bf16.msra.mxu0 %v1559
    %1579 = vmatprep.subr.bf16.mxu0 0
    %1580 = vmatpush1.bf16.msra.mxu0 %v1558
    %1581 = vmatprep.subr.bf16.mxu0 0
    %1582 = vmatpush1.bf16.msra.mxu0 %v1557
    %1583 = vmatprep.subr.bf16.mxu0 0
    %1584 = vmatpush1.bf16.msra.mxu0 %v1556
    %1585 = vmatprep.subr.bf16.mxu0 0
    %1586 = vmatpush1.bf16.msra.mxu0 %v1555
    %1587 = vmatprep.subr.bf16.mxu0 0
    %1588 = vmatpush2.bf16.msra.mxu0 0
    %1589 = vmatprep.subr.bf16.mxu0 0
    %1590 = vmatpush2.bf16.msra.mxu0 0
    %1591 = vmatprep.subr.bf16.mxu0 0
    %1592 = vmatpush2.bf16.msra.mxu0 0
    %1593 = vmatprep.subr.bf16.mxu0 0
    %1594 = vmatpush2.bf16.msra.mxu0 0
    %1595 = vmatprep.subr.bf16.mxu0 0
    %1596 = vmatpush2.bf16.msra.mxu0 0
    %1597 = vmatprep.subr.bf16.mxu0 0
    %1598 = vmatpush2.bf16.msra.mxu0 0
    %1599 = vmatprep.subr.bf16.mxu0 0
    %1600 = vmatpush2.bf16.msra.mxu0 0
    %1601 = vmatprep.subr.bf16.mxu0 0
    %1602 = vmatpush2.bf16.msra.mxu0 0
    %1603 = vmatprep.mubr.bf16.mxu0 0
    %1604 = vmatmul.mubr.bf16.gmra.mxu0 %v1502
    %v1605 = vpop.f32.mrf.mxu0
    %v1606 = vadd.f32 %v1522, %v1605
    %v1607 = vpop.f32.mrf.mxu0
    %v1608 = vpop.f32.mrf.mxu0
    %v1609 = vadd.f32 %v1522, %v1608
    %v1610 = vpop.f32.mrf.mxu0
    %1611 = vdwg.mxu0
    %v1612 = vadd.f32 %v1400, %v1606
    %v1613 = vadd.f32 %v1401, %v1609
    %v1614 = vsel %vm132, %v1612, 0.0
    %1615 = vadd.xlane.f32.xlu0 %v1614
    %v1616 = vpop.xlane.xlu0 %1615
    %v1617 = vsel %vm132, %v1613, 0.0
    %1618 = vadd.xlane.f32.xlu0 %v1617
    %v1619 = vpop.xlane.xlu0 %1618
    %v1620 = vmul.f32 %v1616, %v1369
    %v1621 = vmul.f32 %v1619, %v1369
    %v1622 = vsub.f32 %v1612, %v1620
    %v1623 = vsub.f32 %v1613, %v1621
    %v1624 = vmul.f32 %v1622, %v1622
    %v1625 = vmul.f32 %v1623, %v1623
    %v1626 = vsel %vm132, %v1624, 0.0
    %1627 = vadd.xlane.f32.xlu0 %v1626
    %v1628 = vpop.xlane.xlu0 %1627
    %v1629 = vsel %vm132, %v1625, 0.0
    %1630 = vadd.xlane.f32.xlu0 %v1629
    %v1631 = vpop.xlane.xlu0 %1630
    %v1632 = vmul.f32 %v1628, %v1369
    %v1633 = vmul.f32 %v1631, %v1369
    %v1634 = vadd.f32 %v1632, 1e-12
    %v1635 = vadd.f32 %v1633, 1e-12
    %v1636 = vrsqrt.pop %v1634
    %v1637 = vrsqrt.pop %v1635
    %v1638 = vmul.f32 %v1622, %v1636
    %v1639 = vmul.f32 %v1623, %v1637
    %v1640 = vlaneseq
    %v1641 = vshrl.u32 %v1640, 7
    %v1642 = vsub.s32 7, %v1641
    %v1643 = vrot.slane %v101, %v1642
    %v1644 = vmul.f32 %v1638, %v1643
    %v1645 = vmul.f32 %v1639, %v1643
    %v1646 = vlaneseq
    %v1647 = vshrl.u32 %v1646, 7
    %v1648 = vsub.s32 0, %v1647
    %v1649 = vrot.slane %v102, %v1648
    %v1650 = vadd.f32 %v1644, %v1649
    %v1651 = vadd.f32 %v1645, %v1649
    %s1652 = scalar_lea.vmem %s2, 96
    %v1653 = vld [vmem:[%s1652] sm:$0xf]
    %v1654 = vld [vmem:[%s1652 + $0x4] sm:$0xf]
    %v1655 = vld [vmem:[%s1652 + $0x8] sm:$0xf]
    %v1656 = vld [vmem:[%s1652 + $0xc] sm:$0xf]
    %v1657 = vld [vmem:[%s1652 + $0x10] sm:$0xf]
    %v1658 = vld [vmem:[%s1652 + $0x14] sm:$0xf]
    %v1659 = vld [vmem:[%s1652 + $0x18] sm:$0xf]
    %v1660 = vld [vmem:[%s1652 + $0x1c] sm:$0xf]
    %v1661 = vld [vmem:[%s1652 + $0x20] sm:$0xf]
    %v1662 = vld [vmem:[%s1652 + $0x24] sm:$0xf]
    %v1663 = vld [vmem:[%s1652 + $0x28] sm:$0xf]
    %v1664 = vld [vmem:[%s1652 + $0x2c] sm:$0xf]
    %v1665 = vld [vmem:[%s1652 + $0x30] sm:$0xf]
    %v1666 = vld [vmem:[%s1652 + $0x34] sm:$0xf]
    %v1667 = vld [vmem:[%s1652 + $0x38] sm:$0xf]
    %v1668 = vld [vmem:[%s1652 + $0x3c] sm:$0xf]
    %v1669 = vld [vmem:[%s1652 + $0x40] sm:$0xf]
    %v1670 = vld [vmem:[%s1652 + $0x44] sm:$0xf]
    %v1671 = vld [vmem:[%s1652 + $0x48] sm:$0xf]
    %v1672 = vld [vmem:[%s1652 + $0x4c] sm:$0xf]
    %v1673 = vld [vmem:[%s1652 + $0x50] sm:$0xf]
    %v1674 = vld [vmem:[%s1652 + $0x54] sm:$0xf]
    %v1675 = vld [vmem:[%s1652 + $0x58] sm:$0xf]
    %v1676 = vld [vmem:[%s1652 + $0x5c] sm:$0xf]
    %s1677 = scalar_lea.vmem %s6, 16
    %v1678 = vld [vmem:[%s1677] sm:$0xff]
    %v1679 = vld [vmem:[%s1677 + $0x8] sm:$0x1]
    %v1680 = vpack.c.bf16 %v1651, %v1650
    %v1681 = vlaneseq
    %v1682 = vshrl.u32 %v1681, 7
    %v1683 = vsub.s32 0, %v1682
    %v1684 = vrot.slane %v1678, %v1683
    %v1693 = vunpack.c.l.b16 %v1653
    %v1694 = vunpack.c.l.b16 %v1654
    %v1695 = vunpack.c.l.b16 %v1655
    %v1696 = vunpack.c.l.b16 %v1656
    %v1697 = vunpack.c.l.b16 %v1657
    %v1698 = vunpack.c.l.b16 %v1658
    %v1699 = vunpack.c.l.b16 %v1659
    %v1700 = vunpack.c.l.b16 %v1660
    %v1701 = vpack.c.b16 %v1694, %v1693
    %v1702 = vpack.c.b16 %v1696, %v1695
    %v1703 = vpack.c.b16 %v1698, %v1697
    %v1704 = vpack.c.b16 %v1700, %v1699
    %v1710 = vsel %vm132, %v1680, 0
    %1712 = vmatprep.subr.bf16.mxu0 0
    %1713 = vmatpush1.bf16.msra.mxu0 0
    %1714 = vmatprep.subr.bf16.mxu0 0
    %1715 = vmatpush1.bf16.msra.mxu0 0
    %1716 = vmatprep.subr.bf16.mxu0 0
    %1717 = vmatpush1.bf16.msra.mxu0 0
    %1718 = vmatprep.subr.bf16.mxu0 0
    %1719 = vmatpush1.bf16.msra.mxu0 0
    %1720 = vmatprep.subr.bf16.mxu0 0
    %1721 = vmatpush1.bf16.msra.mxu0 %v1704
    %1722 = vmatprep.subr.bf16.mxu0 0
    %1723 = vmatpush1.bf16.msra.mxu0 %v1703
    %1724 = vmatprep.subr.bf16.mxu0 0
    %1725 = vmatpush1.bf16.msra.mxu0 %v1702
    %1726 = vmatprep.subr.bf16.mxu0 0
    %1727 = vmatpush1.bf16.msra.mxu0 %v1701
    %1728 = vmatprep.subr.bf16.mxu0 0
    %1729 = vmatpush2.bf16.msra.mxu0 0
    %1730 = vmatprep.subr.bf16.mxu0 0
    %1731 = vmatpush2.bf16.msra.mxu0 0
    %1732 = vmatprep.subr.bf16.mxu0 0
    %1733 = vmatpush2.bf16.msra.mxu0 0
    %1734 = vmatprep.subr.bf16.mxu0 0
    %1735 = vmatpush2.bf16.msra.mxu0 0
    %1736 = vmatprep.subr.bf16.mxu0 0
    %1737 = vmatpush2.bf16.msra.mxu0 0
    %1738 = vmatprep.subr.bf16.mxu0 0
    %1739 = vmatpush2.bf16.msra.mxu0 0
    %1740 = vmatprep.subr.bf16.mxu0 0
    %1741 = vmatpush2.bf16.msra.mxu0 0
    %1742 = vmatprep.subr.bf16.mxu0 0
    %1743 = vmatpush2.bf16.msra.mxu0 0
    %1744 = vmatprep.mubr.bf16.mxu0 0
    %1745 = vmatmul.mubr.bf16.gmra.mxu0 %v1710
    %v1746 = vpop.f32.mrf.mxu0
    %v1747 = vadd.f32 %v1684, %v1746
    %v1748 = vpop.f32.mrf.mxu0
    %v1749 = vpop.f32.mrf.mxu0
    %v1750 = vadd.f32 %v1684, %v1749
    %v1751 = vpop.f32.mrf.mxu0
    %1752 = vdwg.mxu0
    %v1753 = vlaneseq
    %v1754 = vshrl.u32 %v1753, 7
    %v1755 = vsub.s32 1, %v1754
    %v1756 = vrot.slane %v1678, %v1755
    %v1765 = vunpack.c.l.b16 %v1661
    %v1766 = vunpack.c.l.b16 %v1662
    %v1767 = vunpack.c.l.b16 %v1663
    %v1768 = vunpack.c.l.b16 %v1664
    %v1769 = vunpack.c.l.b16 %v1665
    %v1770 = vunpack.c.l.b16 %v1666
    %v1771 = vunpack.c.l.b16 %v1667
    %v1772 = vunpack.c.l.b16 %v1668
    %v1773 = vpack.c.b16 %v1766, %v1765
    %v1774 = vpack.c.b16 %v1768, %v1767
    %v1775 = vpack.c.b16 %v1770, %v1769
    %v1776 = vpack.c.b16 %v1772, %v1771
    %1781 = vmatprep.subr.bf16.mxu0 0
    %1782 = vmatpush1.bf16.msra.mxu0 0
    %1783 = vmatprep.subr.bf16.mxu0 0
    %1784 = vmatpush1.bf16.msra.mxu0 0
    %1785 = vmatprep.subr.bf16.mxu0 0
    %1786 = vmatpush1.bf16.msra.mxu0 0
    %1787 = vmatprep.subr.bf16.mxu0 0
    %1788 = vmatpush1.bf16.msra.mxu0 0
    %1789 = vmatprep.subr.bf16.mxu0 0
    %1790 = vmatpush1.bf16.msra.mxu0 %v1776
    %1791 = vmatprep.subr.bf16.mxu0 0
    %1792 = vmatpush1.bf16.msra.mxu0 %v1775
    %1793 = vmatprep.subr.bf16.mxu0 0
    %1794 = vmatpush1.bf16.msra.mxu0 %v1774
    %1795 = vmatprep.subr.bf16.mxu0 0
    %1796 = vmatpush1.bf16.msra.mxu0 %v1773
    %1797 = vmatprep.subr.bf16.mxu0 0
    %1798 = vmatpush2.bf16.msra.mxu0 0
    %1799 = vmatprep.subr.bf16.mxu0 0
    %1800 = vmatpush2.bf16.msra.mxu0 0
    %1801 = vmatprep.subr.bf16.mxu0 0
    %1802 = vmatpush2.bf16.msra.mxu0 0
    %1803 = vmatprep.subr.bf16.mxu0 0
    %1804 = vmatpush2.bf16.msra.mxu0 0
    %1805 = vmatprep.subr.bf16.mxu0 0
    %1806 = vmatpush2.bf16.msra.mxu0 0
    %1807 = vmatprep.subr.bf16.mxu0 0
    %1808 = vmatpush2.bf16.msra.mxu0 0
    %1809 = vmatprep.subr.bf16.mxu0 0
    %1810 = vmatpush2.bf16.msra.mxu0 0
    %1811 = vmatprep.subr.bf16.mxu0 0
    %1812 = vmatpush2.bf16.msra.mxu0 0
    %1813 = vmatprep.mubr.bf16.mxu0 0
    %1814 = vmatmul.mubr.bf16.gmra.mxu0 %v1710
    %v1815 = vpop.f32.mrf.mxu0
    %v1816 = vadd.f32 %v1756, %v1815
    %v1817 = vpop.f32.mrf.mxu0
    %v1818 = vpop.f32.mrf.mxu0
    %v1819 = vadd.f32 %v1756, %v1818
    %v1820 = vpop.f32.mrf.mxu0
    %1821 = vdwg.mxu0
    %v1822 = vlaneseq
    %v1823 = vshrl.u32 %v1822, 7
    %v1824 = vsub.s32 2, %v1823
    %v1825 = vrot.slane %v1678, %v1824
    %v1834 = vunpack.c.l.b16 %v1669
    %v1835 = vunpack.c.l.b16 %v1670
    %v1836 = vunpack.c.l.b16 %v1671
    %v1837 = vunpack.c.l.b16 %v1672
    %v1838 = vunpack.c.l.b16 %v1673
    %v1839 = vunpack.c.l.b16 %v1674
    %v1840 = vunpack.c.l.b16 %v1675
    %v1841 = vunpack.c.l.b16 %v1676
    %v1842 = vpack.c.b16 %v1835, %v1834
    %v1843 = vpack.c.b16 %v1837, %v1836
    %v1844 = vpack.c.b16 %v1839, %v1838
    %v1845 = vpack.c.b16 %v1841, %v1840
    %1850 = vmatprep.subr.bf16.mxu0 0
    %1851 = vmatpush1.bf16.msra.mxu0 0
    %1852 = vmatprep.subr.bf16.mxu0 0
    %1853 = vmatpush1.bf16.msra.mxu0 0
    %1854 = vmatprep.subr.bf16.mxu0 0
    %1855 = vmatpush1.bf16.msra.mxu0 0
    %1856 = vmatprep.subr.bf16.mxu0 0
    %1857 = vmatpush1.bf16.msra.mxu0 0
    %1858 = vmatprep.subr.bf16.mxu0 0
    %1859 = vmatpush1.bf16.msra.mxu0 %v1845
    %1860 = vmatprep.subr.bf16.mxu0 0
    %1861 = vmatpush1.bf16.msra.mxu0 %v1844
    %1862 = vmatprep.subr.bf16.mxu0 0
    %1863 = vmatpush1.bf16.msra.mxu0 %v1843
    %1864 = vmatprep.subr.bf16.mxu0 0
    %1865 = vmatpush1.bf16.msra.mxu0 %v1842
    %1866 = vmatprep.subr.bf16.mxu0 0
    %1867 = vmatpush2.bf16.msra.mxu0 0
    %1868 = vmatprep.subr.bf16.mxu0 0
    %1869 = vmatpush2.bf16.msra.mxu0 0
    %1870 = vmatprep.subr.bf16.mxu0 0
    %1871 = vmatpush2.bf16.msra.mxu0 0
    %1872 = vmatprep.subr.bf16.mxu0 0
    %1873 = vmatpush2.bf16.msra.mxu0 0
    %1874 = vmatprep.subr.bf16.mxu0 0
    %1875 = vmatpush2.bf16.msra.mxu0 0
    %1876 = vmatprep.subr.bf16.mxu0 0
    %1877 = vmatpush2.bf16.msra.mxu0 0
    %1878 = vmatprep.subr.bf16.mxu0 0
    %1879 = vmatpush2.bf16.msra.mxu0 0
    %1880 = vmatprep.subr.bf16.mxu0 0
    %1881 = vmatpush2.bf16.msra.mxu0 0
    %1882 = vmatprep.mubr.bf16.mxu0 0
    %1883 = vmatmul.mubr.bf16.gmra.mxu0 %v1710
    %v1884 = vpop.f32.mrf.mxu0
    %v1885 = vadd.f32 %v1825, %v1884
    %v1886 = vpop.f32.mrf.mxu0
    %v1887 = vpop.f32.mrf.mxu0
    %v1888 = vadd.f32 %v1825, %v1887
    %v1889 = vpop.f32.mrf.mxu0
    %1890 = vdwg.mxu0
    %v1891 = vpack.c.bf16 %v1750, %v1747
    %1893 = vrot.lane.b32.xlu0 %v1891, 112
    %v1894 = vpop.permute.xlu0 %1893
    %1895 = vrot.lane.b32.xlu0 %v1891, 96
    %v1896 = vpop.permute.xlu0 %1895
    %1897 = vrot.lane.b32.xlu0 %v1891, 80
    %v1898 = vpop.permute.xlu0 %1897
    %v1899 = vunpack.c.l.b16 %v1891
    %v1900 = vunpack.c.h.b16 %v1891
    %v1901 = vunpack.c.l.b16 %v1894
    %v1902 = vunpack.c.h.b16 %v1894
    %v1903 = vunpack.c.l.b16 %v1896
    %v1904 = vunpack.c.h.b16 %v1896
    %v1905 = vunpack.c.l.b16 %v1898
    %v1906 = vunpack.c.h.b16 %v1898
    %v1907 = vpack.c.b16 %v1899, %v1899
    %v1908 = vpack.c.b16 %v1900, %v1900
    %v1909 = vpack.c.b16 %v1901, %v1901
    %v1910 = vpack.c.b16 %v1902, %v1902
    %v1911 = vpack.c.b16 %v1903, %v1903
    %v1912 = vpack.c.b16 %v1904, %v1904
    %v1913 = vpack.c.b16 %v1905, %v1905
    %v1914 = vpack.c.b16 %v1906, %v1906
    %v1915 = vpack.c.bf16 %v1819, %v1816
    %1917 = vrot.lane.b32.xlu0 %v1915, 112
    %v1918 = vpop.permute.xlu0 %1917
    %1919 = vrot.lane.b32.xlu0 %v1915, 96
    %v1920 = vpop.permute.xlu0 %1919
    %1921 = vrot.lane.b32.xlu0 %v1915, 80
    %v1922 = vpop.permute.xlu0 %1921
    %v1923 = vunpack.c.l.b16 %v1915
    %v1924 = vunpack.c.h.b16 %v1915
    %v1925 = vunpack.c.l.b16 %v1918
    %v1926 = vunpack.c.h.b16 %v1918
    %v1927 = vunpack.c.l.b16 %v1920
    %v1928 = vunpack.c.h.b16 %v1920
    %v1929 = vunpack.c.l.b16 %v1922
    %v1930 = vunpack.c.h.b16 %v1922
    %v1931 = vpack.c.b16 %v1923, %v1923
    %v1932 = vpack.c.b16 %v1924, %v1924
    %v1933 = vpack.c.b16 %v1925, %v1925
    %v1934 = vpack.c.b16 %v1926, %v1926
    %v1935 = vpack.c.b16 %v1927, %v1927
    %v1936 = vpack.c.b16 %v1928, %v1928
    %v1937 = vpack.c.b16 %v1929, %v1929
    %v1938 = vpack.c.b16 %v1930, %v1930
    %v1939 = vpack.c.bf16 %v1888, %v1885
    %1941 = vrot.lane.b32.xlu0 %v1939, 112
    %v1942 = vpop.permute.xlu0 %1941
    %1943 = vrot.lane.b32.xlu0 %v1939, 96
    %v1944 = vpop.permute.xlu0 %1943
    %1945 = vrot.lane.b32.xlu0 %v1939, 80
    %v1946 = vpop.permute.xlu0 %1945
    %v1947 = vunpack.c.l.b16 %v1939
    %v1948 = vunpack.c.h.b16 %v1939
    %v1949 = vunpack.c.l.b16 %v1942
    %v1950 = vunpack.c.h.b16 %v1942
    %v1951 = vunpack.c.l.b16 %v1944
    %v1952 = vunpack.c.h.b16 %v1944
    %v1953 = vunpack.c.l.b16 %v1946
    %v1954 = vunpack.c.h.b16 %v1946
    %v1955 = vpack.c.b16 %v1947, %v1947
    %v1956 = vpack.c.b16 %v1948, %v1948
    %v1957 = vpack.c.b16 %v1949, %v1949
    %v1958 = vpack.c.b16 %v1950, %v1950
    %v1959 = vpack.c.b16 %v1951, %v1951
    %v1960 = vpack.c.b16 %v1952, %v1952
    %v1961 = vpack.c.b16 %v1953, %v1953
    %v1962 = vpack.c.b16 %v1954, %v1954
    %v1964 = vsel %vm387, %v1907, 0
    %v1967 = vsel %vm387, %v1931, 0
    %1969 = vmatprep.subr.bf16.mxu0 0
    %1970 = vmatpush1.bf16.xpose.msra.mxu0 0
    %1971 = vmatprep.subr.bf16.mxu0 0
    %1972 = vmatpush1.bf16.xpose.msra.mxu0 0
    %1973 = vmatprep.subr.bf16.mxu0 0
    %1974 = vmatpush1.bf16.xpose.msra.mxu0 0
    %1975 = vmatprep.subr.bf16.mxu0 0
    %1976 = vmatpush1.bf16.xpose.msra.mxu0 0
    %1977 = vmatprep.subr.bf16.mxu0 0
    %1978 = vmatpush1.bf16.xpose.msra.mxu0 0
    %1979 = vmatprep.subr.bf16.mxu0 0
    %1980 = vmatpush1.bf16.xpose.msra.mxu0 0
    %1981 = vmatprep.subr.bf16.mxu0 0
    %1982 = vmatpush1.bf16.xpose.msra.mxu0 0
    %1983 = vmatprep.subr.bf16.mxu0 0
    %1984 = vmatpush1.bf16.xpose.msra.mxu0 %v1967
    %1985 = vmatprep.subr.bf16.mxu0 0
    %1986 = vmatpush2.bf16.xpose.msra.mxu0 0
    %1987 = vmatprep.subr.bf16.mxu0 0
    %1988 = vmatpush2.bf16.xpose.msra.mxu0 0
    %1989 = vmatprep.subr.bf16.mxu0 0
    %1990 = vmatpush2.bf16.xpose.msra.mxu0 0
    %1991 = vmatprep.subr.bf16.mxu0 0
    %1992 = vmatpush2.bf16.xpose.msra.mxu0 0
    %1993 = vmatprep.subr.bf16.mxu0 0
    %1994 = vmatpush2.bf16.xpose.msra.mxu0 0
    %1995 = vmatprep.subr.bf16.mxu0 0
    %1996 = vmatpush2.bf16.xpose.msra.mxu0 0
    %1997 = vmatprep.subr.bf16.mxu0 0
    %1998 = vmatpush2.bf16.xpose.msra.mxu0 0
    %1999 = vmatprep.subr.bf16.mxu0 0
    %2000 = vmatpush2.bf16.xpose.msra.mxu0 0
    %2001 = vmatprep.mubr.bf16.mxu0 0
    %2002 = vmatmul.mubr.bf16.gmra.mxu0 %v1964
    %v2003 = vpop.f32.mrf.mxu0
    %v2004 = vadd.f32 0.0, %v2003
    %v2005 = vpop.f32.mrf.mxu0
    %v2006 = vpop.f32.mrf.mxu0
    %v2007 = vpop.f32.mrf.mxu0
    %2008 = vdwg.mxu0
    %v2010 = vsel %vm387, %v1908, 0
    %v2013 = vsel %vm387, %v1932, 0
    %2015 = vmatprep.subr.bf16.mxu0 0
    %2016 = vmatpush1.bf16.xpose.msra.mxu0 0
    %2017 = vmatprep.subr.bf16.mxu0 0
    %2018 = vmatpush1.bf16.xpose.msra.mxu0 0
    %2019 = vmatprep.subr.bf16.mxu0 0
    %2020 = vmatpush1.bf16.xpose.msra.mxu0 0
    %2021 = vmatprep.subr.bf16.mxu0 0
    %2022 = vmatpush1.bf16.xpose.msra.mxu0 0
    %2023 = vmatprep.subr.bf16.mxu0 0
    %2024 = vmatpush1.bf16.xpose.msra.mxu0 0
    %2025 = vmatprep.subr.bf16.mxu0 0
    %2026 = vmatpush1.bf16.xpose.msra.mxu0 0
    %2027 = vmatprep.subr.bf16.mxu0 0
    %2028 = vmatpush1.bf16.xpose.msra.mxu0 0
    %2029 = vmatprep.subr.bf16.mxu0 0
    %2030 = vmatpush1.bf16.xpose.msra.mxu0 %v2013
    %2031 = vmatprep.subr.bf16.mxu0 0
    %2032 = vmatpush2.bf16.xpose.msra.mxu0 0
    %2033 = vmatprep.subr.bf16.mxu0 0
    %2034 = vmatpush2.bf16.xpose.msra.mxu0 0
    %2035 = vmatprep.subr.bf16.mxu0 0
    %2036 = vmatpush2.bf16.xpose.msra.mxu0 0
    %2037 = vmatprep.subr.bf16.mxu0 0
    %2038 = vmatpush2.bf16.xpose.msra.mxu0 0
    %2039 = vmatprep.subr.bf16.mxu0 0
    %2040 = vmatpush2.bf16.xpose.msra.mxu0 0
    %2041 = vmatprep.subr.bf16.mxu0 0
    %2042 = vmatpush2.bf16.xpose.msra.mxu0 0
    %2043 = vmatprep.subr.bf16.mxu0 0
    %2044 = vmatpush2.bf16.xpose.msra.mxu0 0
    %2045 = vmatprep.subr.bf16.mxu0 0
    %2046 = vmatpush2.bf16.xpose.msra.mxu0 0
    %2047 = vmatprep.mubr.bf16.mxu0 0
    %2048 = vmatmul.mubr.bf16.gmra.mxu0 %v2010
    %v2049 = vpop.f32.mrf.mxu0
    %v2050 = vadd.f32 0.0, %v2049
    %v2051 = vpop.f32.mrf.mxu0
    %v2052 = vpop.f32.mrf.mxu0
    %v2053 = vpop.f32.mrf.mxu0
    %2054 = vdwg.mxu0
    %v2056 = vsel %vm387, %v1909, 0
    %v2059 = vsel %vm387, %v1933, 0
    %2061 = vmatprep.subr.bf16.mxu0 0
    %2062 = vmatpush1.bf16.xpose.msra.mxu0 0
    %2063 = vmatprep.subr.bf16.mxu0 0
    %2064 = vmatpush1.bf16.xpose.msra.mxu0 0
    %2065 = vmatprep.subr.bf16.mxu0 0
    %2066 = vmatpush1.bf16.xpose.msra.mxu0 0
    %2067 = vmatprep.subr.bf16.mxu0 0
    %2068 = vmatpush1.bf16.xpose.msra.mxu0 0
    %2069 = vmatprep.subr.bf16.mxu0 0
    %2070 = vmatpush1.bf16.xpose.msra.mxu0 0
    %2071 = vmatprep.subr.bf16.mxu0 0
    %2072 = vmatpush1.bf16.xpose.msra.mxu0 0
    %2073 = vmatprep.subr.bf16.mxu0 0
    %2074 = vmatpush1.bf16.xpose.msra.mxu0 0
    %2075 = vmatprep.subr.bf16.mxu0 0
    %2076 = vmatpush1.bf16.xpose.msra.mxu0 %v2059
    %2077 = vmatprep.subr.bf16.mxu0 0
    %2078 = vmatpush2.bf16.xpose.msra.mxu0 0
    %2079 = vmatprep.subr.bf16.mxu0 0
    %2080 = vmatpush2.bf16.xpose.msra.mxu0 0
    %2081 = vmatprep.subr.bf16.mxu0 0
    %2082 = vmatpush2.bf16.xpose.msra.mxu0 0
    %2083 = vmatprep.subr.bf16.mxu0 0
    %2084 = vmatpush2.bf16.xpose.msra.mxu0 0
    %2085 = vmatprep.subr.bf16.mxu0 0
    %2086 = vmatpush2.bf16.xpose.msra.mxu0 0
    %2087 = vmatprep.subr.bf16.mxu0 0
    %2088 = vmatpush2.bf16.xpose.msra.mxu0 0
    %2089 = vmatprep.subr.bf16.mxu0 0
    %2090 = vmatpush2.bf16.xpose.msra.mxu0 0
    %2091 = vmatprep.subr.bf16.mxu0 0
    %2092 = vmatpush2.bf16.xpose.msra.mxu0 0
    %2093 = vmatprep.mubr.bf16.mxu0 0
    %2094 = vmatmul.mubr.bf16.gmra.mxu0 %v2056
    %v2095 = vpop.f32.mrf.mxu0
    %v2096 = vadd.f32 0.0, %v2095
    %v2097 = vpop.f32.mrf.mxu0
    %v2098 = vpop.f32.mrf.mxu0
    %v2099 = vpop.f32.mrf.mxu0
    %2100 = vdwg.mxu0
    %v2102 = vsel %vm387, %v1910, 0
    %v2105 = vsel %vm387, %v1934, 0
    %2107 = vmatprep.subr.bf16.mxu0 0
    %2108 = vmatpush1.bf16.xpose.msra.mxu0 0
    %2109 = vmatprep.subr.bf16.mxu0 0
    %2110 = vmatpush1.bf16.xpose.msra.mxu0 0
    %2111 = vmatprep.subr.bf16.mxu0 0
    %2112 = vmatpush1.bf16.xpose.msra.mxu0 0
    %2113 = vmatprep.subr.bf16.mxu0 0
    %2114 = vmatpush1.bf16.xpose.msra.mxu0 0
    %2115 = vmatprep.subr.bf16.mxu0 0
    %2116 = vmatpush1.bf16.xpose.msra.mxu0 0
    %2117 = vmatprep.subr.bf16.mxu0 0
    %2118 = vmatpush1.bf16.xpose.msra.mxu0 0
    %2119 = vmatprep.subr.bf16.mxu0 0
    %2120 = vmatpush1.bf16.xpose.msra.mxu0 0
    %2121 = vmatprep.subr.bf16.mxu0 0
    %2122 = vmatpush1.bf16.xpose.msra.mxu0 %v2105
    %2123 = vmatprep.subr.bf16.mxu0 0
    %2124 = vmatpush2.bf16.xpose.msra.mxu0 0
    %2125 = vmatprep.subr.bf16.mxu0 0
    %2126 = vmatpush2.bf16.xpose.msra.mxu0 0
    %2127 = vmatprep.subr.bf16.mxu0 0
    %2128 = vmatpush2.bf16.xpose.msra.mxu0 0
    %2129 = vmatprep.subr.bf16.mxu0 0
    %2130 = vmatpush2.bf16.xpose.msra.mxu0 0
    %2131 = vmatprep.subr.bf16.mxu0 0
    %2132 = vmatpush2.bf16.xpose.msra.mxu0 0
    %2133 = vmatprep.subr.bf16.mxu0 0
    %2134 = vmatpush2.bf16.xpose.msra.mxu0 0
    %2135 = vmatprep.subr.bf16.mxu0 0
    %2136 = vmatpush2.bf16.xpose.msra.mxu0 0
    %2137 = vmatprep.subr.bf16.mxu0 0
    %2138 = vmatpush2.bf16.xpose.msra.mxu0 0
    %2139 = vmatprep.mubr.bf16.mxu0 0
    %2140 = vmatmul.mubr.bf16.gmra.mxu0 %v2102
    %v2141 = vpop.f32.mrf.mxu0
    %v2142 = vadd.f32 0.0, %v2141
    %v2143 = vpop.f32.mrf.mxu0
    %v2144 = vpop.f32.mrf.mxu0
    %v2145 = vpop.f32.mrf.mxu0
    %2146 = vdwg.mxu0
    %v2148 = vsel %vm387, %v1911, 0
    %v2151 = vsel %vm387, %v1935, 0
    %2153 = vmatprep.subr.bf16.mxu0 0
    %2154 = vmatpush1.bf16.xpose.msra.mxu0 0
    %2155 = vmatprep.subr.bf16.mxu0 0
    %2156 = vmatpush1.bf16.xpose.msra.mxu0 0
    %2157 = vmatprep.subr.bf16.mxu0 0
    %2158 = vmatpush1.bf16.xpose.msra.mxu0 0
    %2159 = vmatprep.subr.bf16.mxu0 0
    %2160 = vmatpush1.bf16.xpose.msra.mxu0 0
    %2161 = vmatprep.subr.bf16.mxu0 0
    %2162 = vmatpush1.bf16.xpose.msra.mxu0 0
    %2163 = vmatprep.subr.bf16.mxu0 0
    %2164 = vmatpush1.bf16.xpose.msra.mxu0 0
    %2165 = vmatprep.subr.bf16.mxu0 0
    %2166 = vmatpush1.bf16.xpose.msra.mxu0 0
    %2167 = vmatprep.subr.bf16.mxu0 0
    %2168 = vmatpush1.bf16.xpose.msra.mxu0 %v2151
    %2169 = vmatprep.subr.bf16.mxu0 0
    %2170 = vmatpush2.bf16.xpose.msra.mxu0 0
    %2171 = vmatprep.subr.bf16.mxu0 0
    %2172 = vmatpush2.bf16.xpose.msra.mxu0 0
    %2173 = vmatprep.subr.bf16.mxu0 0
    %2174 = vmatpush2.bf16.xpose.msra.mxu0 0
    %2175 = vmatprep.subr.bf16.mxu0 0
    %2176 = vmatpush2.bf16.xpose.msra.mxu0 0
    %2177 = vmatprep.subr.bf16.mxu0 0
    %2178 = vmatpush2.bf16.xpose.msra.mxu0 0
    %2179 = vmatprep.subr.bf16.mxu0 0
    %2180 = vmatpush2.bf16.xpose.msra.mxu0 0
    %2181 = vmatprep.subr.bf16.mxu0 0
    %2182 = vmatpush2.bf16.xpose.msra.mxu0 0
    %2183 = vmatprep.subr.bf16.mxu0 0
    %2184 = vmatpush2.bf16.xpose.msra.mxu0 0
    %2185 = vmatprep.mubr.bf16.mxu0 0
    %2186 = vmatmul.mubr.bf16.gmra.mxu0 %v2148
    %v2187 = vpop.f32.mrf.mxu0
    %v2188 = vadd.f32 0.0, %v2187
    %v2189 = vpop.f32.mrf.mxu0
    %v2190 = vpop.f32.mrf.mxu0
    %v2191 = vpop.f32.mrf.mxu0
    %2192 = vdwg.mxu0
    %v2194 = vsel %vm387, %v1912, 0
    %v2197 = vsel %vm387, %v1936, 0
    %2199 = vmatprep.subr.bf16.mxu0 0
    %2200 = vmatpush1.bf16.xpose.msra.mxu0 0
    %2201 = vmatprep.subr.bf16.mxu0 0
    %2202 = vmatpush1.bf16.xpose.msra.mxu0 0
    %2203 = vmatprep.subr.bf16.mxu0 0
    %2204 = vmatpush1.bf16.xpose.msra.mxu0 0
    %2205 = vmatprep.subr.bf16.mxu0 0
    %2206 = vmatpush1.bf16.xpose.msra.mxu0 0
    %2207 = vmatprep.subr.bf16.mxu0 0
    %2208 = vmatpush1.bf16.xpose.msra.mxu0 0
    %2209 = vmatprep.subr.bf16.mxu0 0
    %2210 = vmatpush1.bf16.xpose.msra.mxu0 0
    %2211 = vmatprep.subr.bf16.mxu0 0
    %2212 = vmatpush1.bf16.xpose.msra.mxu0 0
    %2213 = vmatprep.subr.bf16.mxu0 0
    %2214 = vmatpush1.bf16.xpose.msra.mxu0 %v2197
    %2215 = vmatprep.subr.bf16.mxu0 0
    %2216 = vmatpush2.bf16.xpose.msra.mxu0 0
    %2217 = vmatprep.subr.bf16.mxu0 0
    %2218 = vmatpush2.bf16.xpose.msra.mxu0 0
    %2219 = vmatprep.subr.bf16.mxu0 0
    %2220 = vmatpush2.bf16.xpose.msra.mxu0 0
    %2221 = vmatprep.subr.bf16.mxu0 0
    %2222 = vmatpush2.bf16.xpose.msra.mxu0 0
    %2223 = vmatprep.subr.bf16.mxu0 0
    %2224 = vmatpush2.bf16.xpose.msra.mxu0 0
    %2225 = vmatprep.subr.bf16.mxu0 0
    %2226 = vmatpush2.bf16.xpose.msra.mxu0 0
    %2227 = vmatprep.subr.bf16.mxu0 0
    %2228 = vmatpush2.bf16.xpose.msra.mxu0 0
    %2229 = vmatprep.subr.bf16.mxu0 0
    %2230 = vmatpush2.bf16.xpose.msra.mxu0 0
    %2231 = vmatprep.mubr.bf16.mxu0 0
    %2232 = vmatmul.mubr.bf16.gmra.mxu0 %v2194
    %v2233 = vpop.f32.mrf.mxu0
    %v2234 = vadd.f32 0.0, %v2233
    %v2235 = vpop.f32.mrf.mxu0
    %v2236 = vpop.f32.mrf.mxu0
    %v2237 = vpop.f32.mrf.mxu0
    %2238 = vdwg.mxu0
    %v2240 = vsel %vm387, %v1913, 0
    %v2243 = vsel %vm387, %v1937, 0
    %2245 = vmatprep.subr.bf16.mxu0 0
    %2246 = vmatpush1.bf16.xpose.msra.mxu0 0
    %2247 = vmatprep.subr.bf16.mxu0 0
    %2248 = vmatpush1.bf16.xpose.msra.mxu0 0
    %2249 = vmatprep.subr.bf16.mxu0 0
    %2250 = vmatpush1.bf16.xpose.msra.mxu0 0
    %2251 = vmatprep.subr.bf16.mxu0 0
    %2252 = vmatpush1.bf16.xpose.msra.mxu0 0
    %2253 = vmatprep.subr.bf16.mxu0 0
    %2254 = vmatpush1.bf16.xpose.msra.mxu0 0
    %2255 = vmatprep.subr.bf16.mxu0 0
    %2256 = vmatpush1.bf16.xpose.msra.mxu0 0
    %2257 = vmatprep.subr.bf16.mxu0 0
    %2258 = vmatpush1.bf16.xpose.msra.mxu0 0
    %2259 = vmatprep.subr.bf16.mxu0 0
    %2260 = vmatpush1.bf16.xpose.msra.mxu0 %v2243
    %2261 = vmatprep.subr.bf16.mxu0 0
    %2262 = vmatpush2.bf16.xpose.msra.mxu0 0
    %2263 = vmatprep.subr.bf16.mxu0 0
    %2264 = vmatpush2.bf16.xpose.msra.mxu0 0
    %2265 = vmatprep.subr.bf16.mxu0 0
    %2266 = vmatpush2.bf16.xpose.msra.mxu0 0
    %2267 = vmatprep.subr.bf16.mxu0 0
    %2268 = vmatpush2.bf16.xpose.msra.mxu0 0
    %2269 = vmatprep.subr.bf16.mxu0 0
    %2270 = vmatpush2.bf16.xpose.msra.mxu0 0
    %2271 = vmatprep.subr.bf16.mxu0 0
    %2272 = vmatpush2.bf16.xpose.msra.mxu0 0
    %2273 = vmatprep.subr.bf16.mxu0 0
    %2274 = vmatpush2.bf16.xpose.msra.mxu0 0
    %2275 = vmatprep.subr.bf16.mxu0 0
    %2276 = vmatpush2.bf16.xpose.msra.mxu0 0
    %2277 = vmatprep.mubr.bf16.mxu0 0
    %2278 = vmatmul.mubr.bf16.gmra.mxu0 %v2240
    %v2279 = vpop.f32.mrf.mxu0
    %v2280 = vadd.f32 0.0, %v2279
    %v2281 = vpop.f32.mrf.mxu0
    %v2282 = vpop.f32.mrf.mxu0
    %v2283 = vpop.f32.mrf.mxu0
    %2284 = vdwg.mxu0
    %v2286 = vsel %vm387, %v1914, 0
    %v2289 = vsel %vm387, %v1938, 0
    %2291 = vmatprep.subr.bf16.mxu0 0
    %2292 = vmatpush1.bf16.xpose.msra.mxu0 0
    %2293 = vmatprep.subr.bf16.mxu0 0
    %2294 = vmatpush1.bf16.xpose.msra.mxu0 0
    %2295 = vmatprep.subr.bf16.mxu0 0
    %2296 = vmatpush1.bf16.xpose.msra.mxu0 0
    %2297 = vmatprep.subr.bf16.mxu0 0
    %2298 = vmatpush1.bf16.xpose.msra.mxu0 0
    %2299 = vmatprep.subr.bf16.mxu0 0
    %2300 = vmatpush1.bf16.xpose.msra.mxu0 0
    %2301 = vmatprep.subr.bf16.mxu0 0
    %2302 = vmatpush1.bf16.xpose.msra.mxu0 0
    %2303 = vmatprep.subr.bf16.mxu0 0
    %2304 = vmatpush1.bf16.xpose.msra.mxu0 0
    %2305 = vmatprep.subr.bf16.mxu0 0
    %2306 = vmatpush1.bf16.xpose.msra.mxu0 %v2289
    %2307 = vmatprep.subr.bf16.mxu0 0
    %2308 = vmatpush2.bf16.xpose.msra.mxu0 0
    %2309 = vmatprep.subr.bf16.mxu0 0
    %2310 = vmatpush2.bf16.xpose.msra.mxu0 0
    %2311 = vmatprep.subr.bf16.mxu0 0
    %2312 = vmatpush2.bf16.xpose.msra.mxu0 0
    %2313 = vmatprep.subr.bf16.mxu0 0
    %2314 = vmatpush2.bf16.xpose.msra.mxu0 0
    %2315 = vmatprep.subr.bf16.mxu0 0
    %2316 = vmatpush2.bf16.xpose.msra.mxu0 0
    %2317 = vmatprep.subr.bf16.mxu0 0
    %2318 = vmatpush2.bf16.xpose.msra.mxu0 0
    %2319 = vmatprep.subr.bf16.mxu0 0
    %2320 = vmatpush2.bf16.xpose.msra.mxu0 0
    %2321 = vmatprep.subr.bf16.mxu0 0
    %2322 = vmatpush2.bf16.xpose.msra.mxu0 0
    %2323 = vmatprep.mubr.bf16.mxu0 0
    %2324 = vmatmul.mubr.bf16.gmra.mxu0 %v2286
    %v2325 = vpop.f32.mrf.mxu0
    %v2326 = vadd.f32 0.0, %v2325
    %v2327 = vpop.f32.mrf.mxu0
    %v2328 = vpop.f32.mrf.mxu0
    %v2329 = vpop.f32.mrf.mxu0
    %2330 = vdwg.mxu0
    %v2331 = vmul.f32 %v2004, 0.25
    %v2332 = vmul.f32 %v2050, 0.25
    %v2333 = vmul.f32 %v2096, 0.25
    %v2334 = vmul.f32 %v2142, 0.25
    %v2335 = vmul.f32 %v2188, 0.25
    %v2336 = vmul.f32 %v2234, 0.25
    %v2337 = vmul.f32 %v2280, 0.25
    %v2338 = vmul.f32 %v2326, 0.25
    %v2339 = vadd.f32 %v2331, %v767
    %v2340 = vadd.f32 %v2332, %v771
    %v2341 = vadd.f32 %v2333, %v767
    %v2342 = vadd.f32 %v2334, %v771
    %v2343 = vadd.f32 %v2335, %v767
    %v2344 = vadd.f32 %v2336, %v771
    %v2345 = vadd.f32 %v2337, %v767
    %v2346 = vadd.f32 %v2338, %v771
    %v2347 = vsel %vm782, %v2339, -inf
    %2348 = vmax.xlane.f32.xlu0 %v2347
    %v2349 = vpop.xlane.xlu0 %2348
    %v2350 = vsel %vm782, %v2340, -inf
    %2351 = vmax.xlane.f32.xlu0 %v2350
    %v2352 = vpop.xlane.xlu0 %2351
    %v2353 = vsel %vm782, %v2341, -inf
    %2354 = vmax.xlane.f32.xlu0 %v2353
    %v2355 = vpop.xlane.xlu0 %2354
    %v2356 = vsel %vm782, %v2342, -inf
    %2357 = vmax.xlane.f32.xlu0 %v2356
    %v2358 = vpop.xlane.xlu0 %2357
    %v2359 = vsel %vm782, %v2343, -inf
    %2360 = vmax.xlane.f32.xlu0 %v2359
    %v2361 = vpop.xlane.xlu0 %2360
    %v2362 = vsel %vm782, %v2344, -inf
    %2363 = vmax.xlane.f32.xlu0 %v2362
    %v2364 = vpop.xlane.xlu0 %2363
    %v2365 = vsel %vm782, %v2345, -inf
    %2366 = vmax.xlane.f32.xlu0 %v2365
    %v2367 = vpop.xlane.xlu0 %2366
    %v2368 = vsel %vm782, %v2346, -inf
    %2369 = vmax.xlane.f32.xlu0 %v2368
    %v2370 = vpop.xlane.xlu0 %2369
    %v2371 = vsub.f32 %v2339, %v2349
    %v2372 = vsub.f32 %v2340, %v2352
    %v2373 = vsub.f32 %v2341, %v2355
    %v2374 = vsub.f32 %v2342, %v2358
    %v2375 = vsub.f32 %v2343, %v2361
    %v2376 = vsub.f32 %v2344, %v2364
    %v2377 = vsub.f32 %v2345, %v2367
    %v2378 = vsub.f32 %v2346, %v2370
    %v2379 = vmul.f32 %v2371, 1.442695
    %v2380 = vpow.pop %v2379
    %v2381 = vmul.f32 %v2372, 1.442695
    %v2382 = vpow.pop %v2381
    %v2383 = vmul.f32 %v2373, 1.442695
    %v2384 = vpow.pop %v2383
    %v2385 = vmul.f32 %v2374, 1.442695
    %v2386 = vpow.pop %v2385
    %v2387 = vmul.f32 %v2375, 1.442695
    %v2388 = vpow.pop %v2387
    %v2389 = vmul.f32 %v2376, 1.442695
    %v2390 = vpow.pop %v2389
    %v2391 = vmul.f32 %v2377, 1.442695
    %v2392 = vpow.pop %v2391
    %v2393 = vmul.f32 %v2378, 1.442695
    %v2394 = vpow.pop %v2393
    %v2395 = vsel %vm782, %v2380, 0.0
    %2396 = vadd.xlane.f32.xlu0 %v2395
    %v2397 = vpop.xlane.xlu0 %2396
    %v2398 = vsel %vm782, %v2382, 0.0
    %2399 = vadd.xlane.f32.xlu0 %v2398
    %v2400 = vpop.xlane.xlu0 %2399
    %v2401 = vsel %vm782, %v2384, 0.0
    %2402 = vadd.xlane.f32.xlu0 %v2401
    %v2403 = vpop.xlane.xlu0 %2402
    %v2404 = vsel %vm782, %v2386, 0.0
    %2405 = vadd.xlane.f32.xlu0 %v2404
    %v2406 = vpop.xlane.xlu0 %2405
    %v2407 = vsel %vm782, %v2388, 0.0
    %2408 = vadd.xlane.f32.xlu0 %v2407
    %v2409 = vpop.xlane.xlu0 %2408
    %v2410 = vsel %vm782, %v2390, 0.0
    %2411 = vadd.xlane.f32.xlu0 %v2410
    %v2412 = vpop.xlane.xlu0 %2411
    %v2413 = vsel %vm782, %v2392, 0.0
    %2414 = vadd.xlane.f32.xlu0 %v2413
    %v2415 = vpop.xlane.xlu0 %2414
    %v2416 = vsel %vm782, %v2394, 0.0
    %2417 = vadd.xlane.f32.xlu0 %v2416
    %v2418 = vpop.xlane.xlu0 %2417
    %v2419 = vrcp.pop %v2397
    %v2420 = vrcp.pop %v2400
    %v2421 = vrcp.pop %v2403
    %v2422 = vrcp.pop %v2406
    %v2423 = vrcp.pop %v2409
    %v2424 = vrcp.pop %v2412
    %v2425 = vrcp.pop %v2415
    %v2426 = vrcp.pop %v2418
    %v2427 = vmul.f32 %v2380, %v2419
    %v2428 = vmul.f32 %v2382, %v2420
    %v2429 = vmul.f32 %v2384, %v2421
    %v2430 = vmul.f32 %v2386, %v2422
    %v2431 = vmul.f32 %v2388, %v2423
    %v2432 = vmul.f32 %v2390, %v2424
    %v2433 = vmul.f32 %v2392, %v2425
    %v2434 = vmul.f32 %v2394, %v2426
    %v2435 = vpack.c.bf16 %v2427, %v2427
    %v2436 = vpack.c.bf16 %v2428, %v2428
    %v2437 = vpack.c.bf16 %v2429, %v2429
    %v2438 = vpack.c.bf16 %v2430, %v2430
    %v2439 = vpack.c.bf16 %v2431, %v2431
    %v2440 = vpack.c.bf16 %v2432, %v2432
    %v2441 = vpack.c.bf16 %v2433, %v2433
    %v2442 = vpack.c.bf16 %v2434, %v2434
    %v2444 = vsel %vm782, %v2435, 0
    %v2447 = vsel %vm882, %v1955, 0
    %2449 = vmatprep.subr.bf16.mxu0 0
    %2450 = vmatpush1.bf16.msra.mxu0 0
    %2451 = vmatprep.subr.bf16.mxu0 0
    %2452 = vmatpush1.bf16.msra.mxu0 0
    %2453 = vmatprep.subr.bf16.mxu0 0
    %2454 = vmatpush1.bf16.msra.mxu0 0
    %2455 = vmatprep.subr.bf16.mxu0 0
    %2456 = vmatpush1.bf16.msra.mxu0 0
    %2457 = vmatprep.subr.bf16.mxu0 0
    %2458 = vmatpush1.bf16.msra.mxu0 0
    %2459 = vmatprep.subr.bf16.mxu0 0
    %2460 = vmatpush1.bf16.msra.mxu0 0
    %2461 = vmatprep.subr.bf16.mxu0 0
    %2462 = vmatpush1.bf16.msra.mxu0 0
    %2463 = vmatprep.subr.bf16.mxu0 0
    %2464 = vmatpush1.bf16.msra.mxu0 %v2447
    %2465 = vmatprep.subr.bf16.mxu0 0
    %2466 = vmatpush2.bf16.msra.mxu0 0
    %2467 = vmatprep.subr.bf16.mxu0 0
    %2468 = vmatpush2.bf16.msra.mxu0 0
    %2469 = vmatprep.subr.bf16.mxu0 0
    %2470 = vmatpush2.bf16.msra.mxu0 0
    %2471 = vmatprep.subr.bf16.mxu0 0
    %2472 = vmatpush2.bf16.msra.mxu0 0
    %2473 = vmatprep.subr.bf16.mxu0 0
    %2474 = vmatpush2.bf16.msra.mxu0 0
    %2475 = vmatprep.subr.bf16.mxu0 0
    %2476 = vmatpush2.bf16.msra.mxu0 0
    %2477 = vmatprep.subr.bf16.mxu0 0
    %2478 = vmatpush2.bf16.msra.mxu0 0
    %2479 = vmatprep.subr.bf16.mxu0 0
    %2480 = vmatpush2.bf16.msra.mxu0 0
    %2481 = vmatprep.mubr.bf16.mxu0 0
    %2482 = vmatmul.mubr.bf16.gmra.mxu0 %v2444
    %v2483 = vpop.f32.mrf.mxu0
    %v2484 = vadd.f32 0.0, %v2483
    %v2485 = vpop.f32.mrf.mxu0
    %v2486 = vpop.f32.mrf.mxu0
    %v2487 = vpop.f32.mrf.mxu0
    %2488 = vdwg.mxu0
    %v2490 = vsel %vm782, %v2436, 0
    %v2493 = vsel %vm882, %v1956, 0
    %2495 = vmatprep.subr.bf16.mxu0 0
    %2496 = vmatpush1.bf16.msra.mxu0 0
    %2497 = vmatprep.subr.bf16.mxu0 0
    %2498 = vmatpush1.bf16.msra.mxu0 0
    %2499 = vmatprep.subr.bf16.mxu0 0
    %2500 = vmatpush1.bf16.msra.mxu0 0
    %2501 = vmatprep.subr.bf16.mxu0 0
    %2502 = vmatpush1.bf16.msra.mxu0 0
    %2503 = vmatprep.subr.bf16.mxu0 0
    %2504 = vmatpush1.bf16.msra.mxu0 0
    %2505 = vmatprep.subr.bf16.mxu0 0
    %2506 = vmatpush1.bf16.msra.mxu0 0
    %2507 = vmatprep.subr.bf16.mxu0 0
    %2508 = vmatpush1.bf16.msra.mxu0 0
    %2509 = vmatprep.subr.bf16.mxu0 0
    %2510 = vmatpush1.bf16.msra.mxu0 %v2493
    %2511 = vmatprep.subr.bf16.mxu0 0
    %2512 = vmatpush2.bf16.msra.mxu0 0
    %2513 = vmatprep.subr.bf16.mxu0 0
    %2514 = vmatpush2.bf16.msra.mxu0 0
    %2515 = vmatprep.subr.bf16.mxu0 0
    %2516 = vmatpush2.bf16.msra.mxu0 0
    %2517 = vmatprep.subr.bf16.mxu0 0
    %2518 = vmatpush2.bf16.msra.mxu0 0
    %2519 = vmatprep.subr.bf16.mxu0 0
    %2520 = vmatpush2.bf16.msra.mxu0 0
    %2521 = vmatprep.subr.bf16.mxu0 0
    %2522 = vmatpush2.bf16.msra.mxu0 0
    %2523 = vmatprep.subr.bf16.mxu0 0
    %2524 = vmatpush2.bf16.msra.mxu0 0
    %2525 = vmatprep.subr.bf16.mxu0 0
    %2526 = vmatpush2.bf16.msra.mxu0 0
    %2527 = vmatprep.mubr.bf16.mxu0 0
    %2528 = vmatmul.mubr.bf16.gmra.mxu0 %v2490
    %v2529 = vpop.f32.mrf.mxu0
    %v2530 = vadd.f32 0.0, %v2529
    %v2531 = vpop.f32.mrf.mxu0
    %v2532 = vpop.f32.mrf.mxu0
    %v2533 = vpop.f32.mrf.mxu0
    %2534 = vdwg.mxu0
    %v2536 = vsel %vm782, %v2437, 0
    %v2539 = vsel %vm882, %v1957, 0
    %2541 = vmatprep.subr.bf16.mxu0 0
    %2542 = vmatpush1.bf16.msra.mxu0 0
    %2543 = vmatprep.subr.bf16.mxu0 0
    %2544 = vmatpush1.bf16.msra.mxu0 0
    %2545 = vmatprep.subr.bf16.mxu0 0
    %2546 = vmatpush1.bf16.msra.mxu0 0
    %2547 = vmatprep.subr.bf16.mxu0 0
    %2548 = vmatpush1.bf16.msra.mxu0 0
    %2549 = vmatprep.subr.bf16.mxu0 0
    %2550 = vmatpush1.bf16.msra.mxu0 0
    %2551 = vmatprep.subr.bf16.mxu0 0
    %2552 = vmatpush1.bf16.msra.mxu0 0
    %2553 = vmatprep.subr.bf16.mxu0 0
    %2554 = vmatpush1.bf16.msra.mxu0 0
    %2555 = vmatprep.subr.bf16.mxu0 0
    %2556 = vmatpush1.bf16.msra.mxu0 %v2539
    %2557 = vmatprep.subr.bf16.mxu0 0
    %2558 = vmatpush2.bf16.msra.mxu0 0
    %2559 = vmatprep.subr.bf16.mxu0 0
    %2560 = vmatpush2.bf16.msra.mxu0 0
    %2561 = vmatprep.subr.bf16.mxu0 0
    %2562 = vmatpush2.bf16.msra.mxu0 0
    %2563 = vmatprep.subr.bf16.mxu0 0
    %2564 = vmatpush2.bf16.msra.mxu0 0
    %2565 = vmatprep.subr.bf16.mxu0 0
    %2566 = vmatpush2.bf16.msra.mxu0 0
    %2567 = vmatprep.subr.bf16.mxu0 0
    %2568 = vmatpush2.bf16.msra.mxu0 0
    %2569 = vmatprep.subr.bf16.mxu0 0
    %2570 = vmatpush2.bf16.msra.mxu0 0
    %2571 = vmatprep.subr.bf16.mxu0 0
    %2572 = vmatpush2.bf16.msra.mxu0 0
    %2573 = vmatprep.mubr.bf16.mxu0 0
    %2574 = vmatmul.mubr.bf16.gmra.mxu0 %v2536
    %v2575 = vpop.f32.mrf.mxu0
    %v2576 = vadd.f32 0.0, %v2575
    %v2577 = vpop.f32.mrf.mxu0
    %v2578 = vpop.f32.mrf.mxu0
    %v2579 = vpop.f32.mrf.mxu0
    %2580 = vdwg.mxu0
    %v2582 = vsel %vm782, %v2438, 0
    %v2585 = vsel %vm882, %v1958, 0
    %2587 = vmatprep.subr.bf16.mxu0 0
    %2588 = vmatpush1.bf16.msra.mxu0 0
    %2589 = vmatprep.subr.bf16.mxu0 0
    %2590 = vmatpush1.bf16.msra.mxu0 0
    %2591 = vmatprep.subr.bf16.mxu0 0
    %2592 = vmatpush1.bf16.msra.mxu0 0
    %2593 = vmatprep.subr.bf16.mxu0 0
    %2594 = vmatpush1.bf16.msra.mxu0 0
    %2595 = vmatprep.subr.bf16.mxu0 0
    %2596 = vmatpush1.bf16.msra.mxu0 0
    %2597 = vmatprep.subr.bf16.mxu0 0
    %2598 = vmatpush1.bf16.msra.mxu0 0
    %2599 = vmatprep.subr.bf16.mxu0 0
    %2600 = vmatpush1.bf16.msra.mxu0 0
    %2601 = vmatprep.subr.bf16.mxu0 0
    %2602 = vmatpush1.bf16.msra.mxu0 %v2585
    %2603 = vmatprep.subr.bf16.mxu0 0
    %2604 = vmatpush2.bf16.msra.mxu0 0
    %2605 = vmatprep.subr.bf16.mxu0 0
    %2606 = vmatpush2.bf16.msra.mxu0 0
    %2607 = vmatprep.subr.bf16.mxu0 0
    %2608 = vmatpush2.bf16.msra.mxu0 0
    %2609 = vmatprep.subr.bf16.mxu0 0
    %2610 = vmatpush2.bf16.msra.mxu0 0
    %2611 = vmatprep.subr.bf16.mxu0 0
    %2612 = vmatpush2.bf16.msra.mxu0 0
    %2613 = vmatprep.subr.bf16.mxu0 0
    %2614 = vmatpush2.bf16.msra.mxu0 0
    %2615 = vmatprep.subr.bf16.mxu0 0
    %2616 = vmatpush2.bf16.msra.mxu0 0
    %2617 = vmatprep.subr.bf16.mxu0 0
    %2618 = vmatpush2.bf16.msra.mxu0 0
    %2619 = vmatprep.mubr.bf16.mxu0 0
    %2620 = vmatmul.mubr.bf16.gmra.mxu0 %v2582
    %v2621 = vpop.f32.mrf.mxu0
    %v2622 = vadd.f32 0.0, %v2621
    %v2623 = vpop.f32.mrf.mxu0
    %v2624 = vpop.f32.mrf.mxu0
    %v2625 = vpop.f32.mrf.mxu0
    %2626 = vdwg.mxu0
    %v2628 = vsel %vm782, %v2439, 0
    %v2631 = vsel %vm882, %v1959, 0
    %2633 = vmatprep.subr.bf16.mxu0 0
    %2634 = vmatpush1.bf16.msra.mxu0 0
    %2635 = vmatprep.subr.bf16.mxu0 0
    %2636 = vmatpush1.bf16.msra.mxu0 0
    %2637 = vmatprep.subr.bf16.mxu0 0
    %2638 = vmatpush1.bf16.msra.mxu0 0
    %2639 = vmatprep.subr.bf16.mxu0 0
    %2640 = vmatpush1.bf16.msra.mxu0 0
    %2641 = vmatprep.subr.bf16.mxu0 0
    %2642 = vmatpush1.bf16.msra.mxu0 0
    %2643 = vmatprep.subr.bf16.mxu0 0
    %2644 = vmatpush1.bf16.msra.mxu0 0
    %2645 = vmatprep.subr.bf16.mxu0 0
    %2646 = vmatpush1.bf16.msra.mxu0 0
    %2647 = vmatprep.subr.bf16.mxu0 0
    %2648 = vmatpush1.bf16.msra.mxu0 %v2631
    %2649 = vmatprep.subr.bf16.mxu0 0
    %2650 = vmatpush2.bf16.msra.mxu0 0
    %2651 = vmatprep.subr.bf16.mxu0 0
    %2652 = vmatpush2.bf16.msra.mxu0 0
    %2653 = vmatprep.subr.bf16.mxu0 0
    %2654 = vmatpush2.bf16.msra.mxu0 0
    %2655 = vmatprep.subr.bf16.mxu0 0
    %2656 = vmatpush2.bf16.msra.mxu0 0
    %2657 = vmatprep.subr.bf16.mxu0 0
    %2658 = vmatpush2.bf16.msra.mxu0 0
    %2659 = vmatprep.subr.bf16.mxu0 0
    %2660 = vmatpush2.bf16.msra.mxu0 0
    %2661 = vmatprep.subr.bf16.mxu0 0
    %2662 = vmatpush2.bf16.msra.mxu0 0
    %2663 = vmatprep.subr.bf16.mxu0 0
    %2664 = vmatpush2.bf16.msra.mxu0 0
    %2665 = vmatprep.mubr.bf16.mxu0 0
    %2666 = vmatmul.mubr.bf16.gmra.mxu0 %v2628
    %v2667 = vpop.f32.mrf.mxu0
    %v2668 = vadd.f32 0.0, %v2667
    %v2669 = vpop.f32.mrf.mxu0
    %v2670 = vpop.f32.mrf.mxu0
    %v2671 = vpop.f32.mrf.mxu0
    %2672 = vdwg.mxu0
    %v2674 = vsel %vm782, %v2440, 0
    %v2677 = vsel %vm882, %v1960, 0
    %2679 = vmatprep.subr.bf16.mxu0 0
    %2680 = vmatpush1.bf16.msra.mxu0 0
    %2681 = vmatprep.subr.bf16.mxu0 0
    %2682 = vmatpush1.bf16.msra.mxu0 0
    %2683 = vmatprep.subr.bf16.mxu0 0
    %2684 = vmatpush1.bf16.msra.mxu0 0
    %2685 = vmatprep.subr.bf16.mxu0 0
    %2686 = vmatpush1.bf16.msra.mxu0 0
    %2687 = vmatprep.subr.bf16.mxu0 0
    %2688 = vmatpush1.bf16.msra.mxu0 0
    %2689 = vmatprep.subr.bf16.mxu0 0
    %2690 = vmatpush1.bf16.msra.mxu0 0
    %2691 = vmatprep.subr.bf16.mxu0 0
    %2692 = vmatpush1.bf16.msra.mxu0 0
    %2693 = vmatprep.subr.bf16.mxu0 0
    %2694 = vmatpush1.bf16.msra.mxu0 %v2677
    %2695 = vmatprep.subr.bf16.mxu0 0
    %2696 = vmatpush2.bf16.msra.mxu0 0
    %2697 = vmatprep.subr.bf16.mxu0 0
    %2698 = vmatpush2.bf16.msra.mxu0 0
    %2699 = vmatprep.subr.bf16.mxu0 0
    %2700 = vmatpush2.bf16.msra.mxu0 0
    %2701 = vmatprep.subr.bf16.mxu0 0
    %2702 = vmatpush2.bf16.msra.mxu0 0
    %2703 = vmatprep.subr.bf16.mxu0 0
    %2704 = vmatpush2.bf16.msra.mxu0 0
    %2705 = vmatprep.subr.bf16.mxu0 0
    %2706 = vmatpush2.bf16.msra.mxu0 0
    %2707 = vmatprep.subr.bf16.mxu0 0
    %2708 = vmatpush2.bf16.msra.mxu0 0
    %2709 = vmatprep.subr.bf16.mxu0 0
    %2710 = vmatpush2.bf16.msra.mxu0 0
    %2711 = vmatprep.mubr.bf16.mxu0 0
    %2712 = vmatmul.mubr.bf16.gmra.mxu0 %v2674
    %v2713 = vpop.f32.mrf.mxu0
    %v2714 = vadd.f32 0.0, %v2713
    %v2715 = vpop.f32.mrf.mxu0
    %v2716 = vpop.f32.mrf.mxu0
    %v2717 = vpop.f32.mrf.mxu0
    %2718 = vdwg.mxu0
    %v2720 = vsel %vm782, %v2441, 0
    %v2723 = vsel %vm882, %v1961, 0
    %2725 = vmatprep.subr.bf16.mxu0 0
    %2726 = vmatpush1.bf16.msra.mxu0 0
    %2727 = vmatprep.subr.bf16.mxu0 0
    %2728 = vmatpush1.bf16.msra.mxu0 0
    %2729 = vmatprep.subr.bf16.mxu0 0
    %2730 = vmatpush1.bf16.msra.mxu0 0
    %2731 = vmatprep.subr.bf16.mxu0 0
    %2732 = vmatpush1.bf16.msra.mxu0 0
    %2733 = vmatprep.subr.bf16.mxu0 0
    %2734 = vmatpush1.bf16.msra.mxu0 0
    %2735 = vmatprep.subr.bf16.mxu0 0
    %2736 = vmatpush1.bf16.msra.mxu0 0
    %2737 = vmatprep.subr.bf16.mxu0 0
    %2738 = vmatpush1.bf16.msra.mxu0 0
    %2739 = vmatprep.subr.bf16.mxu0 0
    %2740 = vmatpush1.bf16.msra.mxu0 %v2723
    %2741 = vmatprep.subr.bf16.mxu0 0
    %2742 = vmatpush2.bf16.msra.mxu0 0
    %2743 = vmatprep.subr.bf16.mxu0 0
    %2744 = vmatpush2.bf16.msra.mxu0 0
    %2745 = vmatprep.subr.bf16.mxu0 0
    %2746 = vmatpush2.bf16.msra.mxu0 0
    %2747 = vmatprep.subr.bf16.mxu0 0
    %2748 = vmatpush2.bf16.msra.mxu0 0
    %2749 = vmatprep.subr.bf16.mxu0 0
    %2750 = vmatpush2.bf16.msra.mxu0 0
    %2751 = vmatprep.subr.bf16.mxu0 0
    %2752 = vmatpush2.bf16.msra.mxu0 0
    %2753 = vmatprep.subr.bf16.mxu0 0
    %2754 = vmatpush2.bf16.msra.mxu0 0
    %2755 = vmatprep.subr.bf16.mxu0 0
    %2756 = vmatpush2.bf16.msra.mxu0 0
    %2757 = vmatprep.mubr.bf16.mxu0 0
    %2758 = vmatmul.mubr.bf16.gmra.mxu0 %v2720
    %v2759 = vpop.f32.mrf.mxu0
    %v2760 = vadd.f32 0.0, %v2759
    %v2761 = vpop.f32.mrf.mxu0
    %v2762 = vpop.f32.mrf.mxu0
    %v2763 = vpop.f32.mrf.mxu0
    %2764 = vdwg.mxu0
    %v2766 = vsel %vm782, %v2442, 0
    %v2769 = vsel %vm882, %v1962, 0
    %2771 = vmatprep.subr.bf16.mxu0 0
    %2772 = vmatpush1.bf16.msra.mxu0 0
    %2773 = vmatprep.subr.bf16.mxu0 0
    %2774 = vmatpush1.bf16.msra.mxu0 0
    %2775 = vmatprep.subr.bf16.mxu0 0
    %2776 = vmatpush1.bf16.msra.mxu0 0
    %2777 = vmatprep.subr.bf16.mxu0 0
    %2778 = vmatpush1.bf16.msra.mxu0 0
    %2779 = vmatprep.subr.bf16.mxu0 0
    %2780 = vmatpush1.bf16.msra.mxu0 0
    %2781 = vmatprep.subr.bf16.mxu0 0
    %2782 = vmatpush1.bf16.msra.mxu0 0
    %2783 = vmatprep.subr.bf16.mxu0 0
    %2784 = vmatpush1.bf16.msra.mxu0 0
    %2785 = vmatprep.subr.bf16.mxu0 0
    %2786 = vmatpush1.bf16.msra.mxu0 %v2769
    %2787 = vmatprep.subr.bf16.mxu0 0
    %2788 = vmatpush2.bf16.msra.mxu0 0
    %2789 = vmatprep.subr.bf16.mxu0 0
    %2790 = vmatpush2.bf16.msra.mxu0 0
    %2791 = vmatprep.subr.bf16.mxu0 0
    %2792 = vmatpush2.bf16.msra.mxu0 0
    %2793 = vmatprep.subr.bf16.mxu0 0
    %2794 = vmatpush2.bf16.msra.mxu0 0
    %2795 = vmatprep.subr.bf16.mxu0 0
    %2796 = vmatpush2.bf16.msra.mxu0 0
    %2797 = vmatprep.subr.bf16.mxu0 0
    %2798 = vmatpush2.bf16.msra.mxu0 0
    %2799 = vmatprep.subr.bf16.mxu0 0
    %2800 = vmatpush2.bf16.msra.mxu0 0
    %2801 = vmatprep.subr.bf16.mxu0 0
    %2802 = vmatpush2.bf16.msra.mxu0 0
    %2803 = vmatprep.mubr.bf16.mxu0 0
    %2804 = vmatmul.mubr.bf16.gmra.mxu0 %v2766
    %v2805 = vpop.f32.mrf.mxu0
    %v2806 = vadd.f32 0.0, %v2805
    %v2807 = vpop.f32.mrf.mxu0
    %v2808 = vpop.f32.mrf.mxu0
    %v2809 = vpop.f32.mrf.mxu0
    %2810 = vdwg.mxu0
    %2813 = vrot.lane.b32.xlu0 %v2576, 16
    %v2814 = vpop.permute.xlu0 %2813
    %2815 = vrot.lane.b32.xlu0 %v2622, 16
    %v2816 = vpop.permute.xlu0 %2815
    %2821 = vrot.lane.b32.xlu0 %v2668, 32
    %v2822 = vpop.permute.xlu0 %2821
    %2823 = vrot.lane.b32.xlu0 %v2714, 32
    %v2824 = vpop.permute.xlu0 %2823
    %2829 = vrot.lane.b32.xlu0 %v2760, 48
    %v2830 = vpop.permute.xlu0 %2829
    %2831 = vrot.lane.b32.xlu0 %v2806, 48
    %v2832 = vpop.permute.xlu0 %2831
    %v2835 = vsel %vm387, %v2484, %v2814
    %v2836 = vsel %vm387, %v2530, %v2816
    %v2837 = vsel %vm1274, %v2835, %v2822
    %v2838 = vsel %vm1274, %v2836, %v2824
    %v2839 = vsel %vm1277, %v2837, %v2830
    %v2840 = vsel %vm1277, %v2838, %v2832
    %v2841 = vpack.c.bf16 %v2840, %v2839
    %s2842 = scalar_lea.vmem %s3, 32
    %v2843 = vld [vmem:[%s2842] sm:$0xf]
    %v2844 = vld [vmem:[%s2842 + $0x4] sm:$0xf]
    %v2845 = vld [vmem:[%s2842 + $0x8] sm:$0xf]
    %v2846 = vld [vmem:[%s2842 + $0xc] sm:$0xf]
    %v2847 = vld [vmem:[%s2842 + $0x10] sm:$0xf]
    %v2848 = vld [vmem:[%s2842 + $0x14] sm:$0xf]
    %v2849 = vld [vmem:[%s2842 + $0x18] sm:$0xf]
    %v2850 = vld [vmem:[%s2842 + $0x1c] sm:$0xf]
    %v2851 = vlaneseq
    %v2852 = vshrl.u32 %v2851, 7
    %v2853 = vsub.s32 3, %v2852
    %v2854 = vrot.slane %v1678, %v2853
    %v2863 = vunpack.c.l.b16 %v2843
    %v2864 = vunpack.c.l.b16 %v2844
    %v2865 = vunpack.c.l.b16 %v2845
    %v2866 = vunpack.c.l.b16 %v2846
    %v2867 = vunpack.c.l.b16 %v2847
    %v2868 = vunpack.c.l.b16 %v2848
    %v2869 = vunpack.c.l.b16 %v2849
    %v2870 = vunpack.c.l.b16 %v2850
    %v2871 = vpack.c.b16 %v2864, %v2863
    %v2872 = vpack.c.b16 %v2866, %v2865
    %v2873 = vpack.c.b16 %v2868, %v2867
    %v2874 = vpack.c.b16 %v2870, %v2869
    %v2880 = vsel %vm132, %v2841, 0
    %2882 = vmatprep.subr.bf16.mxu0 0
    %2883 = vmatpush1.bf16.msra.mxu0 0
    %2884 = vmatprep.subr.bf16.mxu0 0
    %2885 = vmatpush1.bf16.msra.mxu0 0
    %2886 = vmatprep.subr.bf16.mxu0 0
    %2887 = vmatpush1.bf16.msra.mxu0 0
    %2888 = vmatprep.subr.bf16.mxu0 0
    %2889 = vmatpush1.bf16.msra.mxu0 0
    %2890 = vmatprep.subr.bf16.mxu0 0
    %2891 = vmatpush1.bf16.msra.mxu0 %v2874
    %2892 = vmatprep.subr.bf16.mxu0 0
    %2893 = vmatpush1.bf16.msra.mxu0 %v2873
    %2894 = vmatprep.subr.bf16.mxu0 0
    %2895 = vmatpush1.bf16.msra.mxu0 %v2872
    %2896 = vmatprep.subr.bf16.mxu0 0
    %2897 = vmatpush1.bf16.msra.mxu0 %v2871
    %2898 = vmatprep.subr.bf16.mxu0 0
    %2899 = vmatpush2.bf16.msra.mxu0 0
    %2900 = vmatprep.subr.bf16.mxu0 0
    %2901 = vmatpush2.bf16.msra.mxu0 0
    %2902 = vmatprep.subr.bf16.mxu0 0
    %2903 = vmatpush2.bf16.msra.mxu0 0
    %2904 = vmatprep.subr.bf16.mxu0 0
    %2905 = vmatpush2.bf16.msra.mxu0 0
    %2906 = vmatprep.subr.bf16.mxu0 0
    %2907 = vmatpush2.bf16.msra.mxu0 0
    %2908 = vmatprep.subr.bf16.mxu0 0
    %2909 = vmatpush2.bf16.msra.mxu0 0
    %2910 = vmatprep.subr.bf16.mxu0 0
    %2911 = vmatpush2.bf16.msra.mxu0 0
    %2912 = vmatprep.subr.bf16.mxu0 0
    %2913 = vmatpush2.bf16.msra.mxu0 0
    %2914 = vmatprep.mubr.bf16.mxu0 0
    %2915 = vmatmul.mubr.bf16.gmra.mxu0 %v2880
    %v2916 = vpop.f32.mrf.mxu0
    %v2917 = vadd.f32 %v2854, %v2916
    %v2918 = vpop.f32.mrf.mxu0
    %v2919 = vpop.f32.mrf.mxu0
    %v2920 = vadd.f32 %v2854, %v2919
    %v2921 = vpop.f32.mrf.mxu0
    %2922 = vdwg.mxu0
    %v2923 = vadd.f32 %v1650, %v2917
    %v2924 = vadd.f32 %v1651, %v2920
    %v2925 = vsel %vm132, %v2923, 0.0
    %2926 = vadd.xlane.f32.xlu0 %v2925
    %v2927 = vpop.xlane.xlu0 %2926
    %v2928 = vsel %vm132, %v2924, 0.0
    %2929 = vadd.xlane.f32.xlu0 %v2928
    %v2930 = vpop.xlane.xlu0 %2929
    %v2931 = vmul.f32 %v2927, %v1369
    %v2932 = vmul.f32 %v2930, %v1369
    %v2933 = vsub.f32 %v2923, %v2931
    %v2934 = vsub.f32 %v2924, %v2932
    %v2935 = vmul.f32 %v2933, %v2933
    %v2936 = vmul.f32 %v2934, %v2934
    %v2937 = vsel %vm132, %v2935, 0.0
    %2938 = vadd.xlane.f32.xlu0 %v2937
    %v2939 = vpop.xlane.xlu0 %2938
    %v2940 = vsel %vm132, %v2936, 0.0
    %2941 = vadd.xlane.f32.xlu0 %v2940
    %v2942 = vpop.xlane.xlu0 %2941
    %v2943 = vmul.f32 %v2939, %v1369
    %v2944 = vmul.f32 %v2942, %v1369
    %v2945 = vadd.f32 %v2943, 1e-12
    %v2946 = vadd.f32 %v2944, 1e-12
    %v2947 = vrsqrt.pop %v2945
    %v2948 = vrsqrt.pop %v2946
    %v2949 = vmul.f32 %v2933, %v2947
    %v2950 = vmul.f32 %v2934, %v2948
    %v2951 = vlaneseq
    %v2952 = vshrl.u32 %v2951, 7
    %v2953 = vsub.s32 4, %v2952
    %v2954 = vrot.slane %v1678, %v2953
    %v2955 = vmul.f32 %v2949, %v2954
    %v2956 = vmul.f32 %v2950, %v2954
    %v2957 = vlaneseq
    %v2958 = vshrl.u32 %v2957, 7
    %v2959 = vsub.s32 5, %v2958
    %v2960 = vrot.slane %v1678, %v2959
    %v2961 = vadd.f32 %v2955, %v2960
    %v2962 = vadd.f32 %v2956, %v2960
    %v2963 = vpack.c.bf16 %v2962, %v2961
    %s2964 = scalar_lea.vmem %s4, 32
    %v2965 = vld [vmem:[%s2964] sm:$0xf]
    %v2966 = vld [vmem:[%s2964 + $0x4] sm:$0xf]
    %v2967 = vld [vmem:[%s2964 + $0x8] sm:$0xf]
    %v2968 = vld [vmem:[%s2964 + $0xc] sm:$0xf]
    %v2969 = vld [vmem:[%s2964 + $0x10] sm:$0xf]
    %v2970 = vld [vmem:[%s2964 + $0x14] sm:$0xf]
    %v2971 = vld [vmem:[%s2964 + $0x18] sm:$0xf]
    %v2972 = vld [vmem:[%s2964 + $0x1c] sm:$0xf]
    %v2973 = vld [vmem:[#allocation2 + $0x1] sm:$0x1]
    %v2974 = vlaneseq
    %v2975 = vshrl.u32 %v2974, 7
    %v2976 = vsub.s32 0, %v2975
    %v2977 = vrot.slane %v2973, %v2976
    %v2986 = vunpack.c.l.b16 %v2965
    %v2987 = vunpack.c.l.b16 %v2966
    %v2988 = vunpack.c.l.b16 %v2967
    %v2989 = vunpack.c.l.b16 %v2968
    %v2990 = vunpack.c.l.b16 %v2969
    %v2991 = vunpack.c.l.b16 %v2970
    %v2992 = vunpack.c.l.b16 %v2971
    %v2993 = vunpack.c.l.b16 %v2972
    %v2994 = vpack.c.b16 %v2987, %v2986
    %v2995 = vpack.c.b16 %v2989, %v2988
    %v2996 = vpack.c.b16 %v2991, %v2990
    %v2997 = vpack.c.b16 %v2993, %v2992
    %v3003 = vsel %vm132, %v2963, 0
    %3005 = vmatprep.subr.bf16.mxu0 0
    %3006 = vmatpush1.bf16.msra.mxu0 0
    %3007 = vmatprep.subr.bf16.mxu0 0
    %3008 = vmatpush1.bf16.msra.mxu0 0
    %3009 = vmatprep.subr.bf16.mxu0 0
    %3010 = vmatpush1.bf16.msra.mxu0 0
    %3011 = vmatprep.subr.bf16.mxu0 0
    %3012 = vmatpush1.bf16.msra.mxu0 0
    %3013 = vmatprep.subr.bf16.mxu0 0
    %3014 = vmatpush1.bf16.msra.mxu0 %v2997
    %3015 = vmatprep.subr.bf16.mxu0 0
    %3016 = vmatpush1.bf16.msra.mxu0 %v2996
    %3017 = vmatprep.subr.bf16.mxu0 0
    %3018 = vmatpush1.bf16.msra.mxu0 %v2995
    %3019 = vmatprep.subr.bf16.mxu0 0
    %3020 = vmatpush1.bf16.msra.mxu0 %v2994
    %3021 = vmatprep.subr.bf16.mxu0 0
    %3022 = vmatpush2.bf16.msra.mxu0 0
    %3023 = vmatprep.subr.bf16.mxu0 0
    %3024 = vmatpush2.bf16.msra.mxu0 0
    %3025 = vmatprep.subr.bf16.mxu0 0
    %3026 = vmatpush2.bf16.msra.mxu0 0
    %3027 = vmatprep.subr.bf16.mxu0 0
    %3028 = vmatpush2.bf16.msra.mxu0 0
    %3029 = vmatprep.subr.bf16.mxu0 0
    %3030 = vmatpush2.bf16.msra.mxu0 0
    %3031 = vmatprep.subr.bf16.mxu0 0
    %3032 = vmatpush2.bf16.msra.mxu0 0
    %3033 = vmatprep.subr.bf16.mxu0 0
    %3034 = vmatpush2.bf16.msra.mxu0 0
    %3035 = vmatprep.subr.bf16.mxu0 0
    %3036 = vmatpush2.bf16.msra.mxu0 0
    %3037 = vmatprep.mubr.bf16.mxu0 0
    %3038 = vmatmul.mubr.bf16.gmra.mxu0 %v3003
    %v3039 = vpop.f32.mrf.mxu0
    %v3040 = vadd.f32 %v2977, %v3039
    %v3041 = vpop.f32.mrf.mxu0
    %v3042 = vpop.f32.mrf.mxu0
    %v3043 = vadd.f32 %v2977, %v3042
    %v3044 = vpop.f32.mrf.mxu0
    %3045 = vdwg.mxu0
    %v3046 = vmul.f32 %v3040, 0.5
    %v3047 = vmul.f32 %v3043, 0.5
    %v3048 = vmul.f32 %v3040, 0.044715
    %v3049 = vmul.f32 %v3043, 0.044715
    %v3050 = vmul.f32 %v3048, %v3040
    %v3051 = vmul.f32 %v3049, %v3043
    %v3052 = vmul.f32 %v3050, %v3040
    %v3053 = vmul.f32 %v3051, %v3043
    %v3054 = vadd.f32 %v3040, %v3052
    %v3055 = vadd.f32 %v3043, %v3053
    %v3056 = vmul.f32 %v3054, 0.7978846
    %v3057 = vmul.f32 %v3055, 0.7978846
    %v3058 = vtanh.pop %v3056
    %v3059 = vtanh.pop %v3057
    %v3060 = vadd.f32 %v3058, 1.0
    %v3061 = vadd.f32 %v3059, 1.0
    %v3062 = vmul.f32 %v3046, %v3060
    %v3063 = vmul.f32 %v3047, %v3061
    %v3064 = vpack.c.bf16 %v3063, %v3062
    %s3065 = scalar_lea.vmem %s5, 64
    %v3066 = vld [vmem:[%s3065] sm:$0xf]
    %v3067 = vld [vmem:[%s3065 + $0x4] sm:$0xf]
    %v3068 = vld [vmem:[%s3065 + $0x8] sm:$0xf]
    %v3069 = vld [vmem:[%s3065 + $0xc] sm:$0xf]
    %v3070 = vld [vmem:[%s3065 + $0x10] sm:$0xf]
    %v3071 = vld [vmem:[%s3065 + $0x14] sm:$0xf]
    %v3072 = vld [vmem:[%s3065 + $0x18] sm:$0xf]
    %v3073 = vld [vmem:[%s3065 + $0x1c] sm:$0xf]
    %v3074 = vld [vmem:[%s3065 + $0x20] sm:$0xf]
    %v3075 = vld [vmem:[%s3065 + $0x24] sm:$0xf]
    %v3076 = vld [vmem:[%s3065 + $0x28] sm:$0xf]
    %v3077 = vld [vmem:[%s3065 + $0x2c] sm:$0xf]
    %v3078 = vld [vmem:[%s3065 + $0x30] sm:$0xf]
    %v3079 = vld [vmem:[%s3065 + $0x34] sm:$0xf]
    %v3080 = vld [vmem:[%s3065 + $0x38] sm:$0xf]
    %v3081 = vld [vmem:[%s3065 + $0x3c] sm:$0xf]
    %v3082 = vlaneseq
    %v3083 = vshrl.u32 %v3082, 7
    %v3084 = vsub.s32 6, %v3083
    %v3085 = vrot.slane %v1678, %v3084
    %v3102 = vunpack.c.l.b16 %v3066
    %v3103 = vunpack.c.l.b16 %v3067
    %v3104 = vunpack.c.l.b16 %v3068
    %v3105 = vunpack.c.l.b16 %v3069
    %v3106 = vunpack.c.l.b16 %v3070
    %v3107 = vunpack.c.l.b16 %v3071
    %v3108 = vunpack.c.l.b16 %v3072
    %v3109 = vunpack.c.l.b16 %v3073
    %v3110 = vunpack.c.l.b16 %v3074
    %v3111 = vunpack.c.l.b16 %v3075
    %v3112 = vunpack.c.l.b16 %v3076
    %v3113 = vunpack.c.l.b16 %v3077
    %v3114 = vunpack.c.l.b16 %v3078
    %v3115 = vunpack.c.l.b16 %v3079
    %v3116 = vunpack.c.l.b16 %v3080
    %v3117 = vunpack.c.l.b16 %v3081
    %v3118 = vpack.c.b16 %v3103, %v3102
    %v3119 = vpack.c.b16 %v3105, %v3104
    %v3120 = vpack.c.b16 %v3107, %v3106
    %v3121 = vpack.c.b16 %v3109, %v3108
    %v3122 = vpack.c.b16 %v3111, %v3110
    %v3123 = vpack.c.b16 %v3113, %v3112
    %v3124 = vpack.c.b16 %v3115, %v3114
    %v3125 = vpack.c.b16 %v3117, %v3116
    %3134 = vmatprep.subr.bf16.mxu0 0
    %3135 = vmatpush1.bf16.msra.mxu0 %v3125
    %3136 = vmatprep.subr.bf16.mxu0 0
    %3137 = vmatpush1.bf16.msra.mxu0 %v3124
    %3138 = vmatprep.subr.bf16.mxu0 0
    %3139 = vmatpush1.bf16.msra.mxu0 %v3123
    %3140 = vmatprep.subr.bf16.mxu0 0
    %3141 = vmatpush1.bf16.msra.mxu0 %v3122
    %3142 = vmatprep.subr.bf16.mxu0 0
    %3143 = vmatpush1.bf16.msra.mxu0 %v3121
    %3144 = vmatprep.subr.bf16.mxu0 0
    %3145 = vmatpush1.bf16.msra.mxu0 %v3120
    %3146 = vmatprep.subr.bf16.mxu0 0
    %3147 = vmatpush1.bf16.msra.mxu0 %v3119
    %3148 = vmatprep.subr.bf16.mxu0 0
    %3149 = vmatpush1.bf16.msra.mxu0 %v3118
    %3150 = vmatprep.subr.bf16.mxu0 0
    %3151 = vmatpush2.bf16.msra.mxu0 0
    %3152 = vmatprep.subr.bf16.mxu0 0
    %3153 = vmatpush2.bf16.msra.mxu0 0
    %3154 = vmatprep.subr.bf16.mxu0 0
    %3155 = vmatpush2.bf16.msra.mxu0 0
    %3156 = vmatprep.subr.bf16.mxu0 0
    %3157 = vmatpush2.bf16.msra.mxu0 0
    %3158 = vmatprep.subr.bf16.mxu0 0
    %3159 = vmatpush2.bf16.msra.mxu0 0
    %3160 = vmatprep.subr.bf16.mxu0 0
    %3161 = vmatpush2.bf16.msra.mxu0 0
    %3162 = vmatprep.subr.bf16.mxu0 0
    %3163 = vmatpush2.bf16.msra.mxu0 0
    %3164 = vmatprep.subr.bf16.mxu0 0
    %3165 = vmatpush2.bf16.msra.mxu0 0
    %3166 = vmatprep.mubr.bf16.mxu0 0
    %3167 = vmatmul.mubr.bf16.gmra.mxu0 %v3064
    %v3168 = vpop.f32.mrf.mxu0
    %v3169 = vadd.f32 %v3085, %v3168
    %v3170 = vpop.f32.mrf.mxu0
    %v3171 = vpop.f32.mrf.mxu0
    %v3172 = vadd.f32 %v3085, %v3171
    %v3173 = vpop.f32.mrf.mxu0
    %3174 = vdwg.mxu0
    %v3175 = vadd.f32 %v2961, %v3169
    %v3176 = vadd.f32 %v2962, %v3172
    %v3177 = vsel %vm132, %v3175, 0.0
    %3178 = vadd.xlane.f32.xlu0 %v3177
    %v3179 = vpop.xlane.xlu0 %3178
    %v3180 = vsel %vm132, %v3176, 0.0
    %3181 = vadd.xlane.f32.xlu0 %v3180
    %v3182 = vpop.xlane.xlu0 %3181
    %v3183 = vmul.f32 %v3179, %v1369
    %v3184 = vmul.f32 %v3182, %v1369
    %v3185 = vsub.f32 %v3175, %v3183
    %v3186 = vsub.f32 %v3176, %v3184
    %v3187 = vmul.f32 %v3185, %v3185
    %v3188 = vmul.f32 %v3186, %v3186
    %v3189 = vsel %vm132, %v3187, 0.0
    %3190 = vadd.xlane.f32.xlu0 %v3189
    %v3191 = vpop.xlane.xlu0 %3190
    %v3192 = vsel %vm132, %v3188, 0.0
    %3193 = vadd.xlane.f32.xlu0 %v3192
    %v3194 = vpop.xlane.xlu0 %3193
    %v3195 = vmul.f32 %v3191, %v1369
    %v3196 = vmul.f32 %v3194, %v1369
    %v3197 = vadd.f32 %v3195, 1e-12
    %v3198 = vadd.f32 %v3196, 1e-12
    %v3199 = vrsqrt.pop %v3197
    %v3200 = vrsqrt.pop %v3198
    %v3201 = vmul.f32 %v3185, %v3199
    %v3202 = vmul.f32 %v3186, %v3200
    %v3203 = vlaneseq
    %v3204 = vshrl.u32 %v3203, 7
    %v3205 = vsub.s32 7, %v3204
    %v3206 = vrot.slane %v1678, %v3205
    %v3207 = vmul.f32 %v3201, %v3206
    %v3208 = vmul.f32 %v3202, %v3206
    %v3209 = vlaneseq
    %v3210 = vshrl.u32 %v3209, 7
    %v3211 = vsub.s32 0, %v3210
    %v3212 = vrot.slane %v1679, %v3211
    %v3213 = vadd.f32 %v3207, %v3212
    %v3214 = vadd.f32 %v3208, %v3212
    %v3215 = vld [vmem:[%s8] sm:$0xff]
    %v3216 = vld [vmem:[%s8 + $0x8] sm:$0xff]
    %v3217 = vld [vmem:[%s8 + $0x10] sm:$0xff]
    %v3218 = vld [vmem:[%s8 + $0x18] sm:$0xff]
    %v3219 = vld [vmem:[%s8 + $0x20] sm:$0xff]
    %v3220 = vld [vmem:[%s8 + $0x28] sm:$0xff]
    %v3221 = vld [vmem:[%s8 + $0x30] sm:$0xff]
    %v3222 = vld [vmem:[%s8 + $0x38] sm:$0xff]
    %v3223 = vld [vmem:[%s8 + $0x40] sm:$0xff]
    %v3224 = vld [vmem:[%s8 + $0x48] sm:$0xff]
    %v3225 = vld [vmem:[%s8 + $0x50] sm:$0xff]
    %v3226 = vld [vmem:[%s8 + $0x58] sm:$0xff]
    %v3227 = vld [vmem:[%s9] sm:$0xff]
    %v3228 = vld [vmem:[%s9 + $0x8] sm:$0xff]
    %v3229 = vld [vmem:[%s9 + $0x10] sm:$0xff]
    %v3230 = vld [vmem:[%s9 + $0x18] sm:$0xff]
    %s3231 = scalar_lea.vmem %s9, 32
    %v3232 = vld [vmem:[%s3231] sm:$0xff]
    %v3233 = vld [vmem:[%s3231 + $0x8] sm:$0xff]
    %v3234 = vld [vmem:[%s3231 + $0x10] sm:$0xff]
    %v3235 = vld [vmem:[%s3231 + $0x18] sm:$0xff]
    %v3236 = vld [vmem:[%s10] sm:$0xf]
    %v3237 = vlaneseq
    %v3238 = vshrl.u32 %v3237, 7
    %v3239 = vsub.s32 0, %v3238
    %v3240 = vrot.slane %v3236, %v3239
    %v3242 = vsel %vm132, %v3213, 0
    %v3245 = vsel %vm132, %v3214, 0
    %3247 = vmatprep.subr.mxu0 0.0
    %3248 = vmatpush1.msra.mxu0 0.0
    %3249 = vmatprep.subr.mxu0 0.0
    %3250 = vmatpush1.msra.mxu0 0.0
    %3251 = vmatprep.subr.mxu0 0.0
    %3252 = vmatpush1.msra.mxu0 0.0
    %3253 = vmatprep.subr.mxu0 0.0
    %3254 = vmatpush1.msra.mxu0 0.0
    %3255 = vmatprep.subr.mxu0 0.0
    %3256 = vmatpush1.msra.mxu0 0.0
    %3257 = vmatprep.subr.mxu0 0.0
    %3258 = vmatpush1.msra.mxu0 0.0
    %3259 = vmatprep.subr.mxu0 0.0
    %3260 = vmatpush1.msra.mxu0 0.0
    %3261 = vmatprep.subr.mxu0 0.0
    %3262 = vmatpush1.msra.mxu0 0.0
    %3263 = vmatprep.subr.mxu0 0.0
    %3264 = vmatpush1.msra.mxu0 %v3222
    %3265 = vmatprep.subr.mxu0 0.0
    %3266 = vmatpush1.msra.mxu0 %v3221
    %3267 = vmatprep.subr.mxu0 0.0
    %3268 = vmatpush1.msra.mxu0 %v3220
    %3269 = vmatprep.subr.mxu0 0.0
    %3270 = vmatpush1.msra.mxu0 %v3219
    %3271 = vmatprep.subr.mxu0 0.0
    %3272 = vmatpush1.msra.mxu0 %v3218
    %3273 = vmatprep.subr.mxu0 0.0
    %3274 = vmatpush1.msra.mxu0 %v3217
    %3275 = vmatprep.subr.mxu0 0.0
    %3276 = vmatpush1.msra.mxu0 %v3216
    %3277 = vmatprep.subr.mxu0 0.0
    %3278 = vmatpush1.msra.mxu0 %v3215
    %3279 = vmatprep.subr.mxu0 0.0
    %3280 = vmatpush2.msra.mxu0 0.0
    %3281 = vmatprep.subr.mxu0 0.0
    %3282 = vmatpush2.msra.mxu0 0.0
    %3283 = vmatprep.subr.mxu0 0.0
    %3284 = vmatpush2.msra.mxu0 0.0
    %3285 = vmatprep.subr.mxu0 0.0
    %3286 = vmatpush2.msra.mxu0 0.0
    %3287 = vmatprep.subr.mxu0 0.0
    %3288 = vmatpush2.msra.mxu0 0.0
    %3289 = vmatprep.subr.mxu0 0.0
    %3290 = vmatpush2.msra.mxu0 0.0
    %3291 = vmatprep.subr.mxu0 0.0
    %3292 = vmatpush2.msra.mxu0 0.0
    %3293 = vmatprep.subr.mxu0 0.0
    %3294 = vmatpush2.msra.mxu0 0.0
    %3295 = vmatprep.subr.mxu0 0.0
    %3296 = vmatpush2.msra.mxu0 0.0
    %3297 = vmatprep.subr.mxu0 0.0
    %3298 = vmatpush2.msra.mxu0 0.0
    %3299 = vmatprep.subr.mxu0 0.0
    %3300 = vmatpush2.msra.mxu0 0.0
    %3301 = vmatprep.subr.mxu0 0.0
    %3302 = vmatpush2.msra.mxu0 0.0
    %3303 = vmatprep.subr.mxu0 0.0
    %3304 = vmatpush2.msra.mxu0 0.0
    %3305 = vmatprep.subr.mxu0 0.0
    %3306 = vmatpush2.msra.mxu0 0.0
    %3307 = vmatprep.subr.mxu0 0.0
    %3308 = vmatpush2.msra.mxu0 0.0
    %3309 = vmatprep.subr.mxu0 0.0
    %3310 = vmatpush2.msra.mxu0 0.0
    %3311 = vmatprep.mubr.f32.mxu0 0.0
    %3312 = vmatmul.mubr.f32.gmra.mxu0 %v3242
    %v3313 = vpop.f32.mrf.mxu0
    %v3314 = vadd.f32 %v3240, %v3313
    %v3315 = vpop.f32.mrf.mxu0
    %3316 = vmatprep.mubr.f32.mxu0 0.0
    %3317 = vmatmul.mubr.f32.gmra.mxu0 %v3245
    %v3318 = vpop.f32.mrf.mxu0
    %v3319 = vadd.f32 %v3240, %v3318
    %v3320 = vpop.f32.mrf.mxu0
    %3321 = vdwg.mxu0
    %v3323 = vsel %vm1274, 0.0, 0
    %3325 = vmatprep.subr.mxu0 0.0
    %3326 = vmatpush1.msra.mxu0 0.0
    %3327 = vmatprep.subr.mxu0 0.0
    %3328 = vmatpush1.msra.mxu0 0.0
    %3329 = vmatprep.subr.mxu0 0.0
    %3330 = vmatpush1.msra.mxu0 0.0
    %3331 = vmatprep.subr.mxu0 0.0
    %3332 = vmatpush1.msra.mxu0 0.0
    %3333 = vmatprep.subr.mxu0 0.0
    %3334 = vmatpush1.msra.mxu0 0.0
    %3335 = vmatprep.subr.mxu0 0.0
    %3336 = vmatpush1.msra.mxu0 0.0
    %3337 = vmatprep.subr.mxu0 0.0
    %3338 = vmatpush1.msra.mxu0 0.0
    %3339 = vmatprep.subr.mxu0 0.0
    %3340 = vmatpush1.msra.mxu0 0.0
    %3341 = vmatprep.subr.mxu0 0.0
    %3342 = vmatpush1.msra.mxu0 0.0
    %3343 = vmatprep.subr.mxu0 0.0
    %3344 = vmatpush1.msra.mxu0 0.0
    %3345 = vmatprep.subr.mxu0 0.0
    %3346 = vmatpush1.msra.mxu0 0.0
    %3347 = vmatprep.subr.mxu0 0.0
    %3348 = vmatpush1.msra.mxu0 0.0
    %3349 = vmatprep.subr.mxu0 0.0
    %3350 = vmatpush1.msra.mxu0 %v3230
    %3351 = vmatprep.subr.mxu0 0.0
    %3352 = vmatpush1.msra.mxu0 %v3229
    %3353 = vmatprep.subr.mxu0 0.0
    %3354 = vmatpush1.msra.mxu0 %v3228
    %3355 = vmatprep.subr.mxu0 0.0
    %3356 = vmatpush1.msra.mxu0 %v3227
    %3357 = vmatprep.subr.mxu0 0.0
    %3358 = vmatpush2.msra.mxu0 0.0
    %3359 = vmatprep.subr.mxu0 0.0
    %3360 = vmatpush2.msra.mxu0 0.0
    %3361 = vmatprep.subr.mxu0 0.0
    %3362 = vmatpush2.msra.mxu0 0.0
    %3363 = vmatprep.subr.mxu0 0.0
    %3364 = vmatpush2.msra.mxu0 0.0
    %3365 = vmatprep.subr.mxu0 0.0
    %3366 = vmatpush2.msra.mxu0 0.0
    %3367 = vmatprep.subr.mxu0 0.0
    %3368 = vmatpush2.msra.mxu0 0.0
    %3369 = vmatprep.subr.mxu0 0.0
    %3370 = vmatpush2.msra.mxu0 0.0
    %3371 = vmatprep.subr.mxu0 0.0
    %3372 = vmatpush2.msra.mxu0 0.0
    %3373 = vmatprep.subr.mxu0 0.0
    %3374 = vmatpush2.msra.mxu0 0.0
    %3375 = vmatprep.subr.mxu0 0.0
    %3376 = vmatpush2.msra.mxu0 0.0
    %3377 = vmatprep.subr.mxu0 0.0
    %3378 = vmatpush2.msra.mxu0 0.0
    %3379 = vmatprep.subr.mxu0 0.0
    %3380 = vmatpush2.msra.mxu0 0.0
    %3381 = vmatprep.subr.mxu0 0.0
    %3382 = vmatpush2.msra.mxu0 0.0
    %3383 = vmatprep.subr.mxu0 0.0
    %3384 = vmatpush2.msra.mxu0 0.0
    %3385 = vmatprep.subr.mxu0 0.0
    %3386 = vmatpush2.msra.mxu0 0.0
    %3387 = vmatprep.subr.mxu0 0.0
    %3388 = vmatpush2.msra.mxu0 0.0
    %3389 = vmatprep.mubr.f32.mxu0 0.0
    %3390 = vmatmul.mubr.f32.gmra.mxu0 %v3323
    %v3391 = vpop.f32.mrf.mxu0
    %v3392 = vadd.f32 0.0, %v3391
    %v3393 = vpop.f32.mrf.mxu0
    %3394 = vdwg.mxu0
    %v3396 = vrot.slane %v3392, 1
    %v3399 = vadd.f32 %v3314, %v3392
    %v3400 = vadd.f32 %v3319, %v3396
    %v3401 = vxor.u32 %v3399, 2147483648
    %v3402 = vxor.u32 %v3400, 2147483648
    %v3403 = vmul.f32 %v3401, 1.442695
    %v3404 = vpow.pop %v3403
    %v3405 = vmul.f32 %v3402, 1.442695
    %v3406 = vpow.pop %v3405
    %v3407 = vadd.f32 %v3404, 1.0
    %v3408 = vadd.f32 %v3406, 1.0
    %v3409 = vrcp.pop %v3407
    %v3410 = vmul.f32 1.0, %v3409
    %v3411 = vrcp.pop %v3408
    %v3412 = vmul.f32 1.0, %v3411
    %v3413 = vtanh.pop %v3399
    %v3414 = vtanh.pop %v3400
    %v3415 = vmul.f32 %v3410, 0.0
    %v3416 = vmul.f32 %v3412, 0.0
    %3419 = vrot.lane.b32.xlu0 %v3413, 64
    %v3420 = vpop.permute.xlu0 %3419
    %3421 = vrot.lane.b32.xlu0 %v3414, 64
    %v3422 = vpop.permute.xlu0 %3421
    %v3425 = vmul.f32 %v3410, %v3420
    %v3426 = vmul.f32 %v3412, %v3422
    %3429 = vrot.lane.b32.xlu0 %v3425, 32
    %v3430 = vpop.permute.xlu0 %3429
    %3431 = vrot.lane.b32.xlu0 %v3426, 32
    %v3432 = vpop.permute.xlu0 %3431
    %v3435 = vadd.f32 %v3415, %v3430
    %v3436 = vadd.f32 %v3416, %v3432
    %v3437 = vtanh.pop %v3435
    %v3438 = vtanh.pop %v3436
    %3441 = vrot.lane.b32.xlu0 %v3437, 64
    %v3442 = vpop.permute.xlu0 %3441
    %3443 = vrot.lane.b32.xlu0 %v3438, 64
    %v3444 = vpop.permute.xlu0 %3443
    %v3447 = vmul.f32 %v3410, %v3442
    %v3448 = vmul.f32 %v3412, %v3444
    %v3449 = vlaneseq
    %v3450 = vshrl.u32 %v3449, 7
    %v3451 = vsub.s32 1, %v3450
    %v3452 = vrot.slane %v3236, %v3451
    %v3455 = vrot.slane %v3448, 7
    %vm3456 = vcmask 1041409
    %v3457 = vsel %vm3456, %v3455, %v3447
    %3458 = vrot.lane.b32.xlu0 %v3457, 32
    %v3459 = vpop.permute.xlu0 %3458
    %v3460 = vsel %vm1274, %v3459, 0
    %3462 = vmatprep.subr.mxu0 0.0
    %3463 = vmatpush1.msra.mxu0 0.0
    %3464 = vmatprep.subr.mxu0 0.0
    %3465 = vmatpush1.msra.mxu0 0.0
    %3466 = vmatprep.subr.mxu0 0.0
    %3467 = vmatpush1.msra.mxu0 0.0
    %3468 = vmatprep.subr.mxu0 0.0
    %3469 = vmatpush1.msra.mxu0 0.0
    %3470 = vmatprep.subr.mxu0 0.0
    %3471 = vmatpush1.msra.mxu0 0.0
    %3472 = vmatprep.subr.mxu0 0.0
    %3473 = vmatpush1.msra.mxu0 0.0
    %3474 = vmatprep.subr.mxu0 0.0
    %3475 = vmatpush1.msra.mxu0 0.0
    %3476 = vmatprep.subr.mxu0 0.0
    %3477 = vmatpush1.msra.mxu0 0.0
    %3478 = vmatprep.subr.mxu0 0.0
    %3479 = vmatpush1.msra.mxu0 0.0
    %3480 = vmatprep.subr.mxu0 0.0
    %3481 = vmatpush1.msra.mxu0 0.0
    %3482 = vmatprep.subr.mxu0 0.0
    %3483 = vmatpush1.msra.mxu0 0.0
    %3484 = vmatprep.subr.mxu0 0.0
    %3485 = vmatpush1.msra.mxu0 0.0
    %3486 = vmatprep.subr.mxu0 0.0
    %3487 = vmatpush1.msra.mxu0 %v3226
    %3488 = vmatprep.subr.mxu0 0.0
    %3489 = vmatpush1.msra.mxu0 %v3225
    %3490 = vmatprep.subr.mxu0 0.0
    %3491 = vmatpush1.msra.mxu0 %v3224
    %3492 = vmatprep.subr.mxu0 0.0
    %3493 = vmatpush1.msra.mxu0 %v3223
    %3494 = vmatprep.subr.mxu0 0.0
    %3495 = vmatpush2.msra.mxu0 0.0
    %3496 = vmatprep.subr.mxu0 0.0
    %3497 = vmatpush2.msra.mxu0 0.0
    %3498 = vmatprep.subr.mxu0 0.0
    %3499 = vmatpush2.msra.mxu0 0.0
    %3500 = vmatprep.subr.mxu0 0.0
    %3501 = vmatpush2.msra.mxu0 0.0
    %3502 = vmatprep.subr.mxu0 0.0
    %3503 = vmatpush2.msra.mxu0 0.0
    %3504 = vmatprep.subr.mxu0 0.0
    %3505 = vmatpush2.msra.mxu0 0.0
    %3506 = vmatprep.subr.mxu0 0.0
    %3507 = vmatpush2.msra.mxu0 0.0
    %3508 = vmatprep.subr.mxu0 0.0
    %3509 = vmatpush2.msra.mxu0 0.0
    %3510 = vmatprep.subr.mxu0 0.0
    %3511 = vmatpush2.msra.mxu0 0.0
    %3512 = vmatprep.subr.mxu0 0.0
    %3513 = vmatpush2.msra.mxu0 0.0
    %3514 = vmatprep.subr.mxu0 0.0
    %3515 = vmatpush2.msra.mxu0 0.0
    %3516 = vmatprep.subr.mxu0 0.0
    %3517 = vmatpush2.msra.mxu0 0.0
    %3518 = vmatprep.subr.mxu0 0.0
    %3519 = vmatpush2.msra.mxu0 0.0
    %3520 = vmatprep.subr.mxu0 0.0
    %3521 = vmatpush2.msra.mxu0 0.0
    %3522 = vmatprep.subr.mxu0 0.0
    %3523 = vmatpush2.msra.mxu0 0.0
    %3524 = vmatprep.subr.mxu0 0.0
    %3525 = vmatpush2.msra.mxu0 0.0
    %3526 = vmatprep.mubr.f32.mxu0 0.0
    %3527 = vmatmul.mubr.f32.gmra.mxu0 %v3460
    %v3528 = vpop.f32.mrf.mxu0
    %v3529 = vadd.f32 %v3452, %v3528
    %v3530 = vpop.f32.mrf.mxu0
    %3531 = vdwg.mxu0
    %3532 = vmatprep.subr.mxu0 0.0
    %3533 = vmatpush1.msra.mxu0 0.0
    %3534 = vmatprep.subr.mxu0 0.0
    %3535 = vmatpush1.msra.mxu0 0.0
    %3536 = vmatprep.subr.mxu0 0.0
    %3537 = vmatpush1.msra.mxu0 0.0
    %3538 = vmatprep.subr.mxu0 0.0
    %3539 = vmatpush1.msra.mxu0 0.0
    %3540 = vmatprep.subr.mxu0 0.0
    %3541 = vmatpush1.msra.mxu0 0.0
    %3542 = vmatprep.subr.mxu0 0.0
    %3543 = vmatpush1.msra.mxu0 0.0
    %3544 = vmatprep.subr.mxu0 0.0
    %3545 = vmatpush1.msra.mxu0 0.0
    %3546 = vmatprep.subr.mxu0 0.0
    %3547 = vmatpush1.msra.mxu0 0.0
    %3548 = vmatprep.subr.mxu0 0.0
    %3549 = vmatpush1.msra.mxu0 0.0
    %3550 = vmatprep.subr.mxu0 0.0
    %3551 = vmatpush1.msra.mxu0 0.0
    %3552 = vmatprep.subr.mxu0 0.0
    %3553 = vmatpush1.msra.mxu0 0.0
    %3554 = vmatprep.subr.mxu0 0.0
    %3555 = vmatpush1.msra.mxu0 0.0
    %3556 = vmatprep.subr.mxu0 0.0
    %3557 = vmatpush1.msra.mxu0 %v3235
    %3558 = vmatprep.subr.mxu0 0.0
    %3559 = vmatpush1.msra.mxu0 %v3234
    %3560 = vmatprep.subr.mxu0 0.0
    %3561 = vmatpush1.msra.mxu0 %v3233
    %3562 = vmatprep.subr.mxu0 0.0
    %3563 = vmatpush1.msra.mxu0 %v3232
    %3564 = vmatprep.subr.mxu0 0.0
    %3565 = vmatpush2.msra.mxu0 0.0
    %3566 = vmatprep.subr.mxu0 0.0
    %3567 = vmatpush2.msra.mxu0 0.0
    %3568 = vmatprep.subr.mxu0 0.0
    %3569 = vmatpush2.msra.mxu0 0.0
    %3570 = vmatprep.subr.mxu0 0.0
    %3571 = vmatpush2.msra.mxu0 0.0
    %3572 = vmatprep.subr.mxu0 0.0
    %3573 = vmatpush2.msra.mxu0 0.0
    %3574 = vmatprep.subr.mxu0 0.0
    %3575 = vmatpush2.msra.mxu0 0.0
    %3576 = vmatprep.subr.mxu0 0.0
    %3577 = vmatpush2.msra.mxu0 0.0
    %3578 = vmatprep.subr.mxu0 0.0
    %3579 = vmatpush2.msra.mxu0 0.0
    %3580 = vmatprep.subr.mxu0 0.0
    %3581 = vmatpush2.msra.mxu0 0.0
    %3582 = vmatprep.subr.mxu0 0.0
    %3583 = vmatpush2.msra.mxu0 0.0
    %3584 = vmatprep.subr.mxu0 0.0
    %3585 = vmatpush2.msra.mxu0 0.0
    %3586 = vmatprep.subr.mxu0 0.0
    %3587 = vmatpush2.msra.mxu0 0.0
    %3588 = vmatprep.subr.mxu0 0.0
    %3589 = vmatpush2.msra.mxu0 0.0
    %3590 = vmatprep.subr.mxu0 0.0
    %3591 = vmatpush2.msra.mxu0 0.0
    %3592 = vmatprep.subr.mxu0 0.0
    %3593 = vmatpush2.msra.mxu0 0.0
    %3594 = vmatprep.subr.mxu0 0.0
    %3595 = vmatpush2.msra.mxu0 0.0
    %3596 = vmatprep.mubr.f32.mxu0 0.0
    %3597 = vmatmul.mubr.f32.gmra.mxu0 %v3323
    %v3598 = vpop.f32.mrf.mxu0
    %v3599 = vadd.f32 0.0, %v3598
    %v3600 = vpop.f32.mrf.mxu0
    %3601 = vdwg.mxu0
    %v3602 = vadd.f32 %v3529, %v3599
    %v3603 = vxor.u32 %v3602, 2147483648
    %v3604 = vmul.f32 %v3603, 1.442695
    %v3605 = vpow.pop %v3604
    %v3606 = vadd.f32 %v3605, 1.0
    %v3607 = vrcp.pop %v3606
    %v3608 = vmul.f32 1.0, %v3607
    %v3609 = vtanh.pop %v3602
    %v3610 = vmul.f32 %v3608, 0.0
    %3612 = vrot.lane.b32.xlu0 %v3609, 64
    %v3613 = vpop.permute.xlu0 %3612
    %v3615 = vmul.f32 %v3608, %v3613
    %3617 = vrot.lane.b32.xlu0 %v3615, 32
    %v3618 = vpop.permute.xlu0 %3617
    %v3620 = vadd.f32 %v3610, %v3618
    %v3621 = vtanh.pop %v3620
    %3623 = vrot.lane.b32.xlu0 %v3621, 64
    %v3624 = vpop.permute.xlu0 %3623
    %v3626 = vmul.f32 %v3608, %v3624
    %3627 = vmatprep.subr.mxu0 0.0
    %3628 = vmatpush1.msra.mxu0 0.0
    %3629 = vmatprep.subr.mxu0 0.0
    %3630 = vmatpush1.msra.mxu0 0.0
    %3631 = vmatprep.subr.mxu0 0.0
    %3632 = vmatpush1.msra.mxu0 0.0
    %3633 = vmatprep.subr.mxu0 0.0
    %3634 = vmatpush1.msra.mxu0 0.0
    %3635 = vmatprep.subr.mxu0 0.0
    %3636 = vmatpush1.msra.mxu0 0.0
    %3637 = vmatprep.subr.mxu0 0.0
    %3638 = vmatpush1.msra.mxu0 0.0
    %3639 = vmatprep.subr.mxu0 0.0
    %3640 = vmatpush1.msra.mxu0 0.0
    %3641 = vmatprep.subr.mxu0 0.0
    %3642 = vmatpush1.msra.mxu0 0.0
    %3643 = vmatprep.subr.mxu0 0.0
    %3644 = vmatpush1.msra.mxu0 0.0
    %3645 = vmatprep.subr.mxu0 0.0
    %3646 = vmatpush1.msra.mxu0 0.0
    %3647 = vmatprep.subr.mxu0 0.0
    %3648 = vmatpush1.msra.mxu0 0.0
    %3649 = vmatprep.subr.mxu0 0.0
    %3650 = vmatpush1.msra.mxu0 0.0
    %3651 = vmatprep.subr.mxu0 0.0
    %3652 = vmatpush1.msra.mxu0 %v3230
    %3653 = vmatprep.subr.mxu0 0.0
    %3654 = vmatpush1.msra.mxu0 %v3229
    %3655 = vmatprep.subr.mxu0 0.0
    %3656 = vmatpush1.msra.mxu0 %v3228
    %3657 = vmatprep.subr.mxu0 0.0
    %3658 = vmatpush1.msra.mxu0 %v3227
    %3659 = vmatprep.subr.mxu0 0.0
    %3660 = vmatpush2.msra.mxu0 0.0
    %3661 = vmatprep.subr.mxu0 0.0
    %3662 = vmatpush2.msra.mxu0 0.0
    %3663 = vmatprep.subr.mxu0 0.0
    %3664 = vmatpush2.msra.mxu0 0.0
    %3665 = vmatprep.subr.mxu0 0.0
    %3666 = vmatpush2.msra.mxu0 0.0
    %3667 = vmatprep.subr.mxu0 0.0
    %3668 = vmatpush2.msra.mxu0 0.0
    %3669 = vmatprep.subr.mxu0 0.0
    %3670 = vmatpush2.msra.mxu0 0.0
    %3671 = vmatprep.subr.mxu0 0.0
    %3672 = vmatpush2.msra.mxu0 0.0
    %3673 = vmatprep.subr.mxu0 0.0
    %3674 = vmatpush2.msra.mxu0 0.0
    %3675 = vmatprep.subr.mxu0 0.0
    %3676 = vmatpush2.msra.mxu0 0.0
    %3677 = vmatprep.subr.mxu0 0.0
    %3678 = vmatpush2.msra.mxu0 0.0
    %3679 = vmatprep.subr.mxu0 0.0
    %3680 = vmatpush2.msra.mxu0 0.0
    %3681 = vmatprep.subr.mxu0 0.0
    %3682 = vmatpush2.msra.mxu0 0.0
    %3683 = vmatprep.subr.mxu0 0.0
    %3684 = vmatpush2.msra.mxu0 0.0
    %3685 = vmatprep.subr.mxu0 0.0
    %3686 = vmatpush2.msra.mxu0 0.0
    %3687 = vmatprep.subr.mxu0 0.0
    %3688 = vmatpush2.msra.mxu0 0.0
    %3689 = vmatprep.subr.mxu0 0.0
    %3690 = vmatpush2.msra.mxu0 0.0
    %3691 = vmatprep.mubr.f32.mxu0 0.0
    %3692 = vmatmul.mubr.f32.gmra.mxu0 %v3460
    %v3693 = vpop.f32.mrf.mxu0
    %v3694 = vadd.f32 0.0, %v3693
    %v3695 = vpop.f32.mrf.mxu0
    %3696 = vdwg.mxu0
    %v3698 = vrot.slane %v3694, 7
    %v3701 = vadd.f32 %v3314, %v3698
    %v3702 = vadd.f32 %v3319, %v3694
    %v3703 = vxor.u32 %v3701, 2147483648
    %v3704 = vxor.u32 %v3702, 2147483648
    %v3705 = vmul.f32 %v3703, 1.442695
    %v3706 = vpow.pop %v3705
    %v3707 = vmul.f32 %v3704, 1.442695
    %v3708 = vpow.pop %v3707
    %v3709 = vadd.f32 %v3706, 1.0
    %v3710 = vadd.f32 %v3708, 1.0
    %v3711 = vrcp.pop %v3709
    %v3712 = vmul.f32 1.0, %v3711
    %v3713 = vrcp.pop %v3710
    %v3714 = vmul.f32 1.0, %v3713
    %v3715 = vtanh.pop %v3701
    %v3716 = vtanh.pop %v3702
    %v3719 = vrot.slane %v3435, 7
    %v3720 = vrot.slane %v3436, 7
    %v3723 = vmul.f32 %v3712, %v3719
    %v3724 = vmul.f32 %v3714, %v3720
    %3727 = vrot.lane.b32.xlu0 %v3715, 64
    %v3728 = vpop.permute.xlu0 %3727
    %3729 = vrot.lane.b32.xlu0 %v3716, 64
    %v3730 = vpop.permute.xlu0 %3729
    %v3733 = vmul.f32 %v3712, %v3728
    %v3734 = vmul.f32 %v3714, %v3730
    %3737 = vrot.lane.b32.xlu0 %v3733, 32
    %v3738 = vpop.permute.xlu0 %3737
    %3739 = vrot.lane.b32.xlu0 %v3734, 32
    %v3740 = vpop.permute.xlu0 %3739
    %v3743 = vadd.f32 %v3723, %v3738
    %v3744 = vadd.f32 %v3724, %v3740
    %v3745 = vtanh.pop %v3743
    %v3746 = vtanh.pop %v3744
    %3749 = vrot.lane.b32.xlu0 %v3745, 64
    %v3750 = vpop.permute.xlu0 %3749
    %3751 = vrot.lane.b32.xlu0 %v3746, 64
    %v3752 = vpop.permute.xlu0 %3751
    %v3755 = vmul.f32 %v3712, %v3750
    %v3756 = vmul.f32 %v3714, %v3752
    %v3759 = vrot.slane %v3755, 1
    %v3760 = vsel %vm3456, %v3756, %v3759
    %3761 = vrot.lane.b32.xlu0 %v3760, 32
    %v3762 = vpop.permute.xlu0 %3761
    %v3763 = vsel %vm1274, %v3762, 0
    %3765 = vmatprep.subr.mxu0 0.0
    %3766 = vmatpush1.msra.mxu0 0.0
    %3767 = vmatprep.subr.mxu0 0.0
    %3768 = vmatpush1.msra.mxu0 0.0
    %3769 = vmatprep.subr.mxu0 0.0
    %3770 = vmatpush1.msra.mxu0 0.0
    %3771 = vmatprep.subr.mxu0 0.0
    %3772 = vmatpush1.msra.mxu0 0.0
    %3773 = vmatprep.subr.mxu0 0.0
    %3774 = vmatpush1.msra.mxu0 0.0
    %3775 = vmatprep.subr.mxu0 0.0
    %3776 = vmatpush1.msra.mxu0 0.0
    %3777 = vmatprep.subr.mxu0 0.0
    %3778 = vmatpush1.msra.mxu0 0.0
    %3779 = vmatprep.subr.mxu0 0.0
    %3780 = vmatpush1.msra.mxu0 0.0
    %3781 = vmatprep.subr.mxu0 0.0
    %3782 = vmatpush1.msra.mxu0 0.0
    %3783 = vmatprep.subr.mxu0 0.0
    %3784 = vmatpush1.msra.mxu0 0.0
    %3785 = vmatprep.subr.mxu0 0.0
    %3786 = vmatpush1.msra.mxu0 0.0
    %3787 = vmatprep.subr.mxu0 0.0
    %3788 = vmatpush1.msra.mxu0 0.0
    %3789 = vmatprep.subr.mxu0 0.0
    %3790 = vmatpush1.msra.mxu0 %v3226
    %3791 = vmatprep.subr.mxu0 0.0
    %3792 = vmatpush1.msra.mxu0 %v3225
    %3793 = vmatprep.subr.mxu0 0.0
    %3794 = vmatpush1.msra.mxu0 %v3224
    %3795 = vmatprep.subr.mxu0 0.0
    %3796 = vmatpush1.msra.mxu0 %v3223
    %3797 = vmatprep.subr.mxu0 0.0
    %3798 = vmatpush2.msra.mxu0 0.0
    %3799 = vmatprep.subr.mxu0 0.0
    %3800 = vmatpush2.msra.mxu0 0.0
    %3801 = vmatprep.subr.mxu0 0.0
    %3802 = vmatpush2.msra.mxu0 0.0
    %3803 = vmatprep.subr.mxu0 0.0
    %3804 = vmatpush2.msra.mxu0 0.0
    %3805 = vmatprep.subr.mxu0 0.0
    %3806 = vmatpush2.msra.mxu0 0.0
    %3807 = vmatprep.subr.mxu0 0.0
    %3808 = vmatpush2.msra.mxu0 0.0
    %3809 = vmatprep.subr.mxu0 0.0
    %3810 = vmatpush2.msra.mxu0 0.0
    %3811 = vmatprep.subr.mxu0 0.0
    %3812 = vmatpush2.msra.mxu0 0.0
    %3813 = vmatprep.subr.mxu0 0.0
    %3814 = vmatpush2.msra.mxu0 0.0
    %3815 = vmatprep.subr.mxu0 0.0
    %3816 = vmatpush2.msra.mxu0 0.0
    %3817 = vmatprep.subr.mxu0 0.0
    %3818 = vmatpush2.msra.mxu0 0.0
    %3819 = vmatprep.subr.mxu0 0.0
    %3820 = vmatpush2.msra.mxu0 0.0
    %3821 = vmatprep.subr.mxu0 0.0
    %3822 = vmatpush2.msra.mxu0 0.0
    %3823 = vmatprep.subr.mxu0 0.0
    %3824 = vmatpush2.msra.mxu0 0.0
    %3825 = vmatprep.subr.mxu0 0.0
    %3826 = vmatpush2.msra.mxu0 0.0
    %3827 = vmatprep.subr.mxu0 0.0
    %3828 = vmatpush2.msra.mxu0 0.0
    %3829 = vmatprep.mubr.f32.mxu0 0.0
    %3830 = vmatmul.mubr.f32.gmra.mxu0 %v3763
    %v3831 = vpop.f32.mrf.mxu0
    %v3832 = vadd.f32 %v3452, %v3831
    %v3833 = vpop.f32.mrf.mxu0
    %3834 = vdwg.mxu0
    %3836 = vrot.lane.b32.xlu0 %v3626, 32
    %v3837 = vpop.permute.xlu0 %3836
    %v3838 = vsel %vm1274, %v3837, 0
    %3840 = vmatprep.subr.mxu0 0.0
    %3841 = vmatpush1.msra.mxu0 0.0
    %3842 = vmatprep.subr.mxu0 0.0
    %3843 = vmatpush1.msra.mxu0 0.0
    %3844 = vmatprep.subr.mxu0 0.0
    %3845 = vmatpush1.msra.mxu0 0.0
    %3846 = vmatprep.subr.mxu0 0.0
    %3847 = vmatpush1.msra.mxu0 0.0
    %3848 = vmatprep.subr.mxu0 0.0
    %3849 = vmatpush1.msra.mxu0 0.0
    %3850 = vmatprep.subr.mxu0 0.0
    %3851 = vmatpush1.msra.mxu0 0.0
    %3852 = vmatprep.subr.mxu0 0.0
    %3853 = vmatpush1.msra.mxu0 0.0
    %3854 = vmatprep.subr.mxu0 0.0
    %3855 = vmatpush1.msra.mxu0 0.0
    %3856 = vmatprep.subr.mxu0 0.0
    %3857 = vmatpush1.msra.mxu0 0.0
    %3858 = vmatprep.subr.mxu0 0.0
    %3859 = vmatpush1.msra.mxu0 0.0
    %3860 = vmatprep.subr.mxu0 0.0
    %3861 = vmatpush1.msra.mxu0 0.0
    %3862 = vmatprep.subr.mxu0 0.0
    %3863 = vmatpush1.msra.mxu0 0.0
    %3864 = vmatprep.subr.mxu0 0.0
    %3865 = vmatpush1.msra.mxu0 %v3235
    %3866 = vmatprep.subr.mxu0 0.0
    %3867 = vmatpush1.msra.mxu0 %v3234
    %3868 = vmatprep.subr.mxu0 0.0
    %3869 = vmatpush1.msra.mxu0 %v3233
    %3870 = vmatprep.subr.mxu0 0.0
    %3871 = vmatpush1.msra.mxu0 %v3232
    %3872 = vmatprep.subr.mxu0 0.0
    %3873 = vmatpush2.msra.mxu0 0.0
    %3874 = vmatprep.subr.mxu0 0.0
    %3875 = vmatpush2.msra.mxu0 0.0
    %3876 = vmatprep.subr.mxu0 0.0
    %3877 = vmatpush2.msra.mxu0 0.0
    %3878 = vmatprep.subr.mxu0 0.0
    %3879 = vmatpush2.msra.mxu0 0.0
    %3880 = vmatprep.subr.mxu0 0.0
    %3881 = vmatpush2.msra.mxu0 0.0
    %3882 = vmatprep.subr.mxu0 0.0
    %3883 = vmatpush2.msra.mxu0 0.0
    %3884 = vmatprep.subr.mxu0 0.0
    %3885 = vmatpush2.msra.mxu0 0.0
    %3886 = vmatprep.subr.mxu0 0.0
    %3887 = vmatpush2.msra.mxu0 0.0
    %3888 = vmatprep.subr.mxu0 0.0
    %3889 = vmatpush2.msra.mxu0 0.0
    %3890 = vmatprep.subr.mxu0 0.0
    %3891 = vmatpush2.msra.mxu0 0.0
    %3892 = vmatprep.subr.mxu0 0.0
    %3893 = vmatpush2.msra.mxu0 0.0
    %3894 = vmatprep.subr.mxu0 0.0
    %3895 = vmatpush2.msra.mxu0 0.0
    %3896 = vmatprep.subr.mxu0 0.0
    %3897 = vmatpush2.msra.mxu0 0.0
    %3898 = vmatprep.subr.mxu0 0.0
    %3899 = vmatpush2.msra.mxu0 0.0
    %3900 = vmatprep.subr.mxu0 0.0
    %3901 = vmatpush2.msra.mxu0 0.0
    %3902 = vmatprep.subr.mxu0 0.0
    %3903 = vmatpush2.msra.mxu0 0.0
    %3904 = vmatprep.mubr.f32.mxu0 0.0
    %3905 = vmatmul.mubr.f32.gmra.mxu0 %v3838
    %v3906 = vpop.f32.mrf.mxu0
    %v3907 = vadd.f32 0.0, %v3906
    %v3908 = vpop.f32.mrf.mxu0
    %3909 = vdwg.mxu0
    %v3910 = vadd.f32 %v3832, %v3907
    %v3911 = vxor.u32 %v3910, 2147483648
    %v3912 = vmul.f32 %v3911, 1.442695
    %v3913 = vpow.pop %v3912
    %v3914 = vadd.f32 %v3913, 1.0
    %v3915 = vrcp.pop %v3914
    %v3916 = vmul.f32 1.0, %v3915
    %v3917 = vtanh.pop %v3910
    %v3918 = vmul.f32 %v3916, %v3620
    %3920 = vrot.lane.b32.xlu0 %v3917, 64
    %v3921 = vpop.permute.xlu0 %3920
    %v3923 = vmul.f32 %v3916, %v3921
    %3925 = vrot.lane.b32.xlu0 %v3923, 32
    %v3926 = vpop.permute.xlu0 %3925
    %v3928 = vadd.f32 %v3918, %v3926
    %v3929 = vtanh.pop %v3928
    %3931 = vrot.lane.b32.xlu0 %v3929, 64
    %v3932 = vpop.permute.xlu0 %3931
    %v3934 = vmul.f32 %v3916, %v3932
    %3935 = vmatprep.subr.mxu0 0.0
    %3936 = vmatpush1.msra.mxu0 0.0
    %3937 = vmatprep.subr.mxu0 0.0
    %3938 = vmatpush1.msra.mxu0 0.0
    %3939 = vmatprep.subr.mxu0 0.0
    %3940 = vmatpush1.msra.mxu0 0.0
    %3941 = vmatprep.subr.mxu0 0.0
    %3942 = vmatpush1.msra.mxu0 0.0
    %3943 = vmatprep.subr.mxu0 0.0
    %3944 = vmatpush1.msra.mxu0 0.0
    %3945 = vmatprep.subr.mxu0 0.0
    %3946 = vmatpush1.msra.mxu0 0.0
    %3947 = vmatprep.subr.mxu0 0.0
    %3948 = vmatpush1.msra.mxu0 0.0
    %3949 = vmatprep.subr.mxu0 0.0
    %3950 = vmatpush1.msra.mxu0 0.0
    %3951 = vmatprep.subr.mxu0 0.0
    %3952 = vmatpush1.msra.mxu0 0.0
    %3953 = vmatprep.subr.mxu0 0.0
    %3954 = vmatpush1.msra.mxu0 0.0
    %3955 = vmatprep.subr.mxu0 0.0
    %3956 = vmatpush1.msra.mxu0 0.0
    %3957 = vmatprep.subr.mxu0 0.0
    %3958 = vmatpush1.msra.mxu0 0.0
    %3959 = vmatprep.subr.mxu0 0.0
    %3960 = vmatpush1.msra.mxu0 %v3230
    %3961 = vmatprep.subr.mxu0 0.0
    %3962 = vmatpush1.msra.mxu0 %v3229
    %3963 = vmatprep.subr.mxu0 0.0
    %3964 = vmatpush1.msra.mxu0 %v3228
    %3965 = vmatprep.subr.mxu0 0.0
    %3966 = vmatpush1.msra.mxu0 %v3227
    %3967 = vmatprep.subr.mxu0 0.0
    %3968 = vmatpush2.msra.mxu0 0.0
    %3969 = vmatprep.subr.mxu0 0.0
    %3970 = vmatpush2.msra.mxu0 0.0
    %3971 = vmatprep.subr.mxu0 0.0
    %3972 = vmatpush2.msra.mxu0 0.0
    %3973 = vmatprep.subr.mxu0 0.0
    %3974 = vmatpush2.msra.mxu0 0.0
    %3975 = vmatprep.subr.mxu0 0.0
    %3976 = vmatpush2.msra.mxu0 0.0
    %3977 = vmatprep.subr.mxu0 0.0
    %3978 = vmatpush2.msra.mxu0 0.0
    %3979 = vmatprep.subr.mxu0 0.0
    %3980 = vmatpush2.msra.mxu0 0.0
    %3981 = vmatprep.subr.mxu0 0.0
    %3982 = vmatpush2.msra.mxu0 0.0
    %3983 = vmatprep.subr.mxu0 0.0
    %3984 = vmatpush2.msra.mxu0 0.0
    %3985 = vmatprep.subr.mxu0 0.0
    %3986 = vmatpush2.msra.mxu0 0.0
    %3987 = vmatprep.subr.mxu0 0.0
    %3988 = vmatpush2.msra.mxu0 0.0
    %3989 = vmatprep.subr.mxu0 0.0
    %3990 = vmatpush2.msra.mxu0 0.0
    %3991 = vmatprep.subr.mxu0 0.0
    %3992 = vmatpush2.msra.mxu0 0.0
    %3993 = vmatprep.subr.mxu0 0.0
    %3994 = vmatpush2.msra.mxu0 0.0
    %3995 = vmatprep.subr.mxu0 0.0
    %3996 = vmatpush2.msra.mxu0 0.0
    %3997 = vmatprep.subr.mxu0 0.0
    %3998 = vmatpush2.msra.mxu0 0.0
    %3999 = vmatprep.mubr.f32.mxu0 0.0
    %4000 = vmatmul.mubr.f32.gmra.mxu0 %v3763
    %v4001 = vpop.f32.mrf.mxu0
    %v4002 = vadd.f32 0.0, %v4001
    %v4003 = vpop.f32.mrf.mxu0
    %4004 = vdwg.mxu0
    %v4006 = vrot.slane %v4002, 6
    %v4007 = vrot.slane %v4002, 7
    %v4010 = vadd.f32 %v3314, %v4006
    %v4011 = vadd.f32 %v3319, %v4007
    %v4012 = vxor.u32 %v4010, 2147483648
    %v4013 = vxor.u32 %v4011, 2147483648
    %v4014 = vmul.f32 %v4012, 1.442695
    %v4015 = vpow.pop %v4014
    %v4016 = vmul.f32 %v4013, 1.442695
    %v4017 = vpow.pop %v4016
    %v4018 = vadd.f32 %v4015, 1.0
    %v4019 = vadd.f32 %v4017, 1.0
    %v4020 = vrcp.pop %v4018
    %v4021 = vmul.f32 1.0, %v4020
    %v4022 = vrcp.pop %v4019
    %v4023 = vmul.f32 1.0, %v4022
    %v4024 = vtanh.pop %v4010
    %v4025 = vtanh.pop %v4011
    %v4028 = vrot.slane %v3743, 7
    %v4029 = vrot.slane %v3744, 7
    %v4032 = vmul.f32 %v4021, %v4028
    %v4033 = vmul.f32 %v4023, %v4029
    %4036 = vrot.lane.b32.xlu0 %v4024, 64
    %v4037 = vpop.permute.xlu0 %4036
    %4038 = vrot.lane.b32.xlu0 %v4025, 64
    %v4039 = vpop.permute.xlu0 %4038
    %v4042 = vmul.f32 %v4021, %v4037
    %v4043 = vmul.f32 %v4023, %v4039
    %4046 = vrot.lane.b32.xlu0 %v4042, 32
    %v4047 = vpop.permute.xlu0 %4046
    %4048 = vrot.lane.b32.xlu0 %v4043, 32
    %v4049 = vpop.permute.xlu0 %4048
    %v4052 = vadd.f32 %v4032, %v4047
    %v4053 = vadd.f32 %v4033, %v4049
    %v4054 = vtanh.pop %v4052
    %v4055 = vtanh.pop %v4053
    %4058 = vrot.lane.b32.xlu0 %v4054, 64
    %v4059 = vpop.permute.xlu0 %4058
    %4060 = vrot.lane.b32.xlu0 %v4055, 64
    %v4061 = vpop.permute.xlu0 %4060
    %v4064 = vmul.f32 %v4021, %v4059
    %v4065 = vmul.f32 %v4023, %v4061
    %v4068 = vrot.slane %v4064, 2
    %v4069 = vrot.slane %v4065, 1
    %v4070 = vsel %vm3456, %v4069, %v4068
    %4071 = vrot.lane.b32.xlu0 %v4070, 32
    %v4072 = vpop.permute.xlu0 %4071
    %v4073 = vsel %vm1274, %v4072, 0
    %4075 = vmatprep.subr.mxu0 0.0
    %4076 = vmatpush1.msra.mxu0 0.0
    %4077 = vmatprep.subr.mxu0 0.0
    %4078 = vmatpush1.msra.mxu0 0.0
    %4079 = vmatprep.subr.mxu0 0.0
    %4080 = vmatpush1.msra.mxu0 0.0
    %4081 = vmatprep.subr.mxu0 0.0
    %4082 = vmatpush1.msra.mxu0 0.0
    %4083 = vmatprep.subr.mxu0 0.0
    %4084 = vmatpush1.msra.mxu0 0.0
    %4085 = vmatprep.subr.mxu0 0.0
    %4086 = vmatpush1.msra.mxu0 0.0
    %4087 = vmatprep.subr.mxu0 0.0
    %4088 = vmatpush1.msra.mxu0 0.0
    %4089 = vmatprep.subr.mxu0 0.0
    %4090 = vmatpush1.msra.mxu0 0.0
    %4091 = vmatprep.subr.mxu0 0.0
    %4092 = vmatpush1.msra.mxu0 0.0
    %4093 = vmatprep.subr.mxu0 0.0
    %4094 = vmatpush1.msra.mxu0 0.0
    %4095 = vmatprep.subr.mxu0 0.0
    %4096 = vmatpush1.msra.mxu0 0.0
    %4097 = vmatprep.subr.mxu0 0.0
    %4098 = vmatpush1.msra.mxu0 0.0
    %4099 = vmatprep.subr.mxu0 0.0
    %4100 = vmatpush1.msra.mxu0 %v3226
    %4101 = vmatprep.subr.mxu0 0.0
    %4102 = vmatpush1.msra.mxu0 %v3225
    %4103 = vmatprep.subr.mxu0 0.0
    %4104 = vmatpush1.msra.mxu0 %v3224
    %4105 = vmatprep.subr.mxu0 0.0
    %4106 = vmatpush1.msra.mxu0 %v3223
    %4107 = vmatprep.subr.mxu0 0.0
    %4108 = vmatpush2.msra.mxu0 0.0
    %4109 = vmatprep.subr.mxu0 0.0
    %4110 = vmatpush2.msra.mxu0 0.0
    %4111 = vmatprep.subr.mxu0 0.0
    %4112 = vmatpush2.msra.mxu0 0.0
    %4113 = vmatprep.subr.mxu0 0.0
    %4114 = vmatpush2.msra.mxu0 0.0
    %4115 = vmatprep.subr.mxu0 0.0
    %4116 = vmatpush2.msra.mxu0 0.0
    %4117 = vmatprep.subr.mxu0 0.0
    %4118 = vmatpush2.msra.mxu0 0.0
    %4119 = vmatprep.subr.mxu0 0.0
    %4120 = vmatpush2.msra.mxu0 0.0
    %4121 = vmatprep.subr.mxu0 0.0
    %4122 = vmatpush2.msra.mxu0 0.0
    %4123 = vmatprep.subr.mxu0 0.0
    %4124 = vmatpush2.msra.mxu0 0.0
    %4125 = vmatprep.subr.mxu0 0.0
    %4126 = vmatpush2.msra.mxu0 0.0
    %4127 = vmatprep.subr.mxu0 0.0
    %4128 = vmatpush2.msra.mxu0 0.0
    %4129 = vmatprep.subr.mxu0 0.0
    %4130 = vmatpush2.msra.mxu0 0.0
    %4131 = vmatprep.subr.mxu0 0.0
    %4132 = vmatpush2.msra.mxu0 0.0
    %4133 = vmatprep.subr.mxu0 0.0
    %4134 = vmatpush2.msra.mxu0 0.0
    %4135 = vmatprep.subr.mxu0 0.0
    %4136 = vmatpush2.msra.mxu0 0.0
    %4137 = vmatprep.subr.mxu0 0.0
    %4138 = vmatpush2.msra.mxu0 0.0
    %4139 = vmatprep.mubr.f32.mxu0 0.0
    %4140 = vmatmul.mubr.f32.gmra.mxu0 %v4073
    %v4141 = vpop.f32.mrf.mxu0
    %v4142 = vadd.f32 %v3452, %v4141
    %v4143 = vpop.f32.mrf.mxu0
    %4144 = vdwg.mxu0
    %4146 = vrot.lane.b32.xlu0 %v3934, 32
    %v4147 = vpop.permute.xlu0 %4146
    %v4148 = vsel %vm1274, %v4147, 0
    %4150 = vmatprep.subr.mxu0 0.0
    %4151 = vmatpush1.msra.mxu0 0.0
    %4152 = vmatprep.subr.mxu0 0.0
    %4153 = vmatpush1.msra.mxu0 0.0
    %4154 = vmatprep.subr.mxu0 0.0
    %4155 = vmatpush1.msra.mxu0 0.0
    %4156 = vmatprep.subr.mxu0 0.0
    %4157 = vmatpush1.msra.mxu0 0.0
    %4158 = vmatprep.subr.mxu0 0.0
    %4159 = vmatpush1.msra.mxu0 0.0
    %4160 = vmatprep.subr.mxu0 0.0
    %4161 = vmatpush1.msra.mxu0 0.0
    %4162 = vmatprep.subr.mxu0 0.0
    %4163 = vmatpush1.msra.mxu0 0.0
    %4164 = vmatprep.subr.mxu0 0.0
    %4165 = vmatpush1.msra.mxu0 0.0
    %4166 = vmatprep.subr.mxu0 0.0
    %4167 = vmatpush1.msra.mxu0 0.0
    %4168 = vmatprep.subr.mxu0 0.0
    %4169 = vmatpush1.msra.mxu0 0.0
    %4170 = vmatprep.subr.mxu0 0.0
    %4171 = vmatpush1.msra.mxu0 0.0
    %4172 = vmatprep.subr.mxu0 0.0
    %4173 = vmatpush1.msra.mxu0 0.0
    %4174 = vmatprep.subr.mxu0 0.0
    %4175 = vmatpush1.msra.mxu0 %v3235
    %4176 = vmatprep.subr.mxu0 0.0
    %4177 = vmatpush1.msra.mxu0 %v3234
    %4178 = vmatprep.subr.mxu0 0.0
    %4179 = vmatpush1.msra.mxu0 %v3233
    %4180 = vmatprep.subr.mxu0 0.0
    %4181 = vmatpush1.msra.mxu0 %v3232
    %4182 = vmatprep.subr.mxu0 0.0
    %4183 = vmatpush2.msra.mxu0 0.0
    %4184 = vmatprep.subr.mxu0 0.0
    %4185 = vmatpush2.msra.mxu0 0.0
    %4186 = vmatprep.subr.mxu0 0.0
    %4187 = vmatpush2.msra.mxu0 0.0
    %4188 = vmatprep.subr.mxu0 0.0
    %4189 = vmatpush2.msra.mxu0 0.0
    %4190 = vmatprep.subr.mxu0 0.0
    %4191 = vmatpush2.msra.mxu0 0.0
    %4192 = vmatprep.subr.mxu0 0.0
    %4193 = vmatpush2.msra.mxu0 0.0
    %4194 = vmatprep.subr.mxu0 0.0
    %4195 = vmatpush2.msra.mxu0 0.0
    %4196 = vmatprep.subr.mxu0 0.0
    %4197 = vmatpush2.msra.mxu0 0.0
    %4198 = vmatprep.subr.mxu0 0.0
    %4199 = vmatpush2.msra.mxu0 0.0
    %4200 = vmatprep.subr.mxu0 0.0
    %4201 = vmatpush2.msra.mxu0 0.0
    %4202 = vmatprep.subr.mxu0 0.0
    %4203 = vmatpush2.msra.mxu0 0.0
    %4204 = vmatprep.subr.mxu0 0.0
    %4205 = vmatpush2.msra.mxu0 0.0
    %4206 = vmatprep.subr.mxu0 0.0
    %4207 = vmatpush2.msra.mxu0 0.0
    %4208 = vmatprep.subr.mxu0 0.0
    %4209 = vmatpush2.msra.mxu0 0.0
    %4210 = vmatprep.subr.mxu0 0.0
    %4211 = vmatpush2.msra.mxu0 0.0
    %4212 = vmatprep.subr.mxu0 0.0
    %4213 = vmatpush2.msra.mxu0 0.0
    %4214 = vmatprep.mubr.f32.mxu0 0.0
    %4215 = vmatmul.mubr.f32.gmra.mxu0 %v4148
    %v4216 = vpop.f32.mrf.mxu0
    %v4217 = vadd.f32 0.0, %v4216
    %v4218 = vpop.f32.mrf.mxu0
    %4219 = vdwg.mxu0
    %v4220 = vadd.f32 %v4142, %v4217
    %v4221 = vxor.u32 %v4220, 2147483648
    %v4222 = vmul.f32 %v4221, 1.442695
    %v4223 = vpow.pop %v4222
    %v4224 = vadd.f32 %v4223, 1.0
    %v4225 = vrcp.pop %v4224
    %v4226 = vmul.f32 1.0, %v4225
    %v4227 = vtanh.pop %v4220
    %v4228 = vmul.f32 %v4226, %v3928
    %4230 = vrot.lane.b32.xlu0 %v4227, 64
    %v4231 = vpop.permute.xlu0 %4230
    %v4233 = vmul.f32 %v4226, %v4231
    %4235 = vrot.lane.b32.xlu0 %v4233, 32
    %v4236 = vpop.permute.xlu0 %4235
    %v4238 = vadd.f32 %v4228, %v4236
    %v4239 = vtanh.pop %v4238
    %4241 = vrot.lane.b32.xlu0 %v4239, 64
    %v4242 = vpop.permute.xlu0 %4241
    %v4244 = vmul.f32 %v4226, %v4242
    %4245 = vmatprep.subr.mxu0 0.0
    %4246 = vmatpush1.msra.mxu0 0.0
    %4247 = vmatprep.subr.mxu0 0.0
    %4248 = vmatpush1.msra.mxu0 0.0
    %4249 = vmatprep.subr.mxu0 0.0
    %4250 = vmatpush1.msra.mxu0 0.0
    %4251 = vmatprep.subr.mxu0 0.0
    %4252 = vmatpush1.msra.mxu0 0.0
    %4253 = vmatprep.subr.mxu0 0.0
    %4254 = vmatpush1.msra.mxu0 0.0
    %4255 = vmatprep.subr.mxu0 0.0
    %4256 = vmatpush1.msra.mxu0 0.0
    %4257 = vmatprep.subr.mxu0 0.0
    %4258 = vmatpush1.msra.mxu0 0.0
    %4259 = vmatprep.subr.mxu0 0.0
    %4260 = vmatpush1.msra.mxu0 0.0
    %4261 = vmatprep.subr.mxu0 0.0
    %4262 = vmatpush1.msra.mxu0 0.0
    %4263 = vmatprep.subr.mxu0 0.0
    %4264 = vmatpush1.msra.mxu0 0.0
    %4265 = vmatprep.subr.mxu0 0.0
    %4266 = vmatpush1.msra.mxu0 0.0
    %4267 = vmatprep.subr.mxu0 0.0
    %4268 = vmatpush1.msra.mxu0 0.0
    %4269 = vmatprep.subr.mxu0 0.0
    %4270 = vmatpush1.msra.mxu0 %v3230
    %4271 = vmatprep.subr.mxu0 0.0
    %4272 = vmatpush1.msra.mxu0 %v3229
    %4273 = vmatprep.subr.mxu0 0.0
    %4274 = vmatpush1.msra.mxu0 %v3228
    %4275 = vmatprep.subr.mxu0 0.0
    %4276 = vmatpush1.msra.mxu0 %v3227
    %4277 = vmatprep.subr.mxu0 0.0
    %4278 = vmatpush2.msra.mxu0 0.0
    %4279 = vmatprep.subr.mxu0 0.0
    %4280 = vmatpush2.msra.mxu0 0.0
    %4281 = vmatprep.subr.mxu0 0.0
    %4282 = vmatpush2.msra.mxu0 0.0
    %4283 = vmatprep.subr.mxu0 0.0
    %4284 = vmatpush2.msra.mxu0 0.0
    %4285 = vmatprep.subr.mxu0 0.0
    %4286 = vmatpush2.msra.mxu0 0.0
    %4287 = vmatprep.subr.mxu0 0.0
    %4288 = vmatpush2.msra.mxu0 0.0
    %4289 = vmatprep.subr.mxu0 0.0
    %4290 = vmatpush2.msra.mxu0 0.0
    %4291 = vmatprep.subr.mxu0 0.0
    %4292 = vmatpush2.msra.mxu0 0.0
    %4293 = vmatprep.subr.mxu0 0.0
    %4294 = vmatpush2.msra.mxu0 0.0
    %4295 = vmatprep.subr.mxu0 0.0
    %4296 = vmatpush2.msra.mxu0 0.0
    %4297 = vmatprep.subr.mxu0 0.0
    %4298 = vmatpush2.msra.mxu0 0.0
    %4299 = vmatprep.subr.mxu0 0.0
    %4300 = vmatpush2.msra.mxu0 0.0
    %4301 = vmatprep.subr.mxu0 0.0
    %4302 = vmatpush2.msra.mxu0 0.0
    %4303 = vmatprep.subr.mxu0 0.0
    %4304 = vmatpush2.msra.mxu0 0.0
    %4305 = vmatprep.subr.mxu0 0.0
    %4306 = vmatpush2.msra.mxu0 0.0
    %4307 = vmatprep.subr.mxu0 0.0
    %4308 = vmatpush2.msra.mxu0 0.0
    %4309 = vmatprep.mubr.f32.mxu0 0.0
    %4310 = vmatmul.mubr.f32.gmra.mxu0 %v4073
    %v4311 = vpop.f32.mrf.mxu0
    %v4312 = vadd.f32 0.0, %v4311
    %v4313 = vpop.f32.mrf.mxu0
    %4314 = vdwg.mxu0
    %v4316 = vrot.slane %v4312, 5
    %v4317 = vrot.slane %v4312, 6
    %v4320 = vadd.f32 %v3314, %v4316
    %v4321 = vadd.f32 %v3319, %v4317
    %v4322 = vxor.u32 %v4320, 2147483648
    %v4323 = vxor.u32 %v4321, 2147483648
    %v4324 = vmul.f32 %v4322, 1.442695
    %v4325 = vpow.pop %v4324
    %v4326 = vmul.f32 %v4323, 1.442695
    %v4327 = vpow.pop %v4326
    %v4328 = vadd.f32 %v4325, 1.0
    %v4329 = vadd.f32 %v4327, 1.0
    %v4330 = vrcp.pop %v4328
    %v4331 = vmul.f32 1.0, %v4330
    %v4332 = vrcp.pop %v4329
    %v4333 = vmul.f32 1.0, %v4332
    %v4334 = vtanh.pop %v4320
    %v4335 = vtanh.pop %v4321
    %v4338 = vrot.slane %v4052, 7
    %v4339 = vrot.slane %v4053, 7
    %v4342 = vmul.f32 %v4331, %v4338
    %v4343 = vmul.f32 %v4333, %v4339
    %4346 = vrot.lane.b32.xlu0 %v4334, 64
    %v4347 = vpop.permute.xlu0 %4346
    %4348 = vrot.lane.b32.xlu0 %v4335, 64
    %v4349 = vpop.permute.xlu0 %4348
    %v4352 = vmul.f32 %v4331, %v4347
    %v4353 = vmul.f32 %v4333, %v4349
    %4356 = vrot.lane.b32.xlu0 %v4352, 32
    %v4357 = vpop.permute.xlu0 %4356
    %4358 = vrot.lane.b32.xlu0 %v4353, 32
    %v4359 = vpop.permute.xlu0 %4358
    %v4362 = vadd.f32 %v4342, %v4357
    %v4363 = vadd.f32 %v4343, %v4359
    %v4364 = vtanh.pop %v4362
    %v4365 = vtanh.pop %v4363
    %4368 = vrot.lane.b32.xlu0 %v4364, 64
    %v4369 = vpop.permute.xlu0 %4368
    %4370 = vrot.lane.b32.xlu0 %v4365, 64
    %v4371 = vpop.permute.xlu0 %4370
    %v4374 = vmul.f32 %v4331, %v4369
    %v4375 = vmul.f32 %v4333, %v4371
    %v4378 = vrot.slane %v4374, 3
    %v4379 = vrot.slane %v4375, 2
    %v4380 = vsel %vm3456, %v4379, %v4378
    %4381 = vrot.lane.b32.xlu0 %v4380, 32
    %v4382 = vpop.permute.xlu0 %4381
    %v4383 = vsel %vm1274, %v4382, 0
    %4385 = vmatprep.subr.mxu0 0.0
    %4386 = vmatpush1.msra.mxu0 0.0
    %4387 = vmatprep.subr.mxu0 0.0
    %4388 = vmatpush1.msra.mxu0 0.0
    %4389 = vmatprep.subr.mxu0 0.0
    %4390 = vmatpush1.msra.mxu0 0.0
    %4391 = vmatprep.subr.mxu0 0.0
    %4392 = vmatpush1.msra.mxu0 0.0
    %4393 = vmatprep.subr.mxu0 0.0
    %4394 = vmatpush1.msra.mxu0 0.0
    %4395 = vmatprep.subr.mxu0 0.0
    %4396 = vmatpush1.msra.mxu0 0.0
    %4397 = vmatprep.subr.mxu0 0.0
    %4398 = vmatpush1.msra.mxu0 0.0
    %4399 = vmatprep.subr.mxu0 0.0
    %4400 = vmatpush1.msra.mxu0 0.0
    %4401 = vmatprep.subr.mxu0 0.0
    %4402 = vmatpush1.msra.mxu0 0.0
    %4403 = vmatprep.subr.mxu0 0.0
    %4404 = vmatpush1.msra.mxu0 0.0
    %4405 = vmatprep.subr.mxu0 0.0
    %4406 = vmatpush1.msra.mxu0 0.0
    %4407 = vmatprep.subr.mxu0 0.0
    %4408 = vmatpush1.msra.mxu0 0.0
    %4409 = vmatprep.subr.mxu0 0.0
    %4410 = vmatpush1.msra.mxu0 %v3226
    %4411 = vmatprep.subr.mxu0 0.0
    %4412 = vmatpush1.msra.mxu0 %v3225
    %4413 = vmatprep.subr.mxu0 0.0
    %4414 = vmatpush1.msra.mxu0 %v3224
    %4415 = vmatprep.subr.mxu0 0.0
    %4416 = vmatpush1.msra.mxu0 %v3223
    %4417 = vmatprep.subr.mxu0 0.0
    %4418 = vmatpush2.msra.mxu0 0.0
    %4419 = vmatprep.subr.mxu0 0.0
    %4420 = vmatpush2.msra.mxu0 0.0
    %4421 = vmatprep.subr.mxu0 0.0
    %4422 = vmatpush2.msra.mxu0 0.0
    %4423 = vmatprep.subr.mxu0 0.0
    %4424 = vmatpush2.msra.mxu0 0.0
    %4425 = vmatprep.subr.mxu0 0.0
    %4426 = vmatpush2.msra.mxu0 0.0
    %4427 = vmatprep.subr.mxu0 0.0
    %4428 = vmatpush2.msra.mxu0 0.0
    %4429 = vmatprep.subr.mxu0 0.0
    %4430 = vmatpush2.msra.mxu0 0.0
    %4431 = vmatprep.subr.mxu0 0.0
    %4432 = vmatpush2.msra.mxu0 0.0
    %4433 = vmatprep.subr.mxu0 0.0
    %4434 = vmatpush2.msra.mxu0 0.0
    %4435 = vmatprep.subr.mxu0 0.0
    %4436 = vmatpush2.msra.mxu0 0.0
    %4437 = vmatprep.subr.mxu0 0.0
    %4438 = vmatpush2.msra.mxu0 0.0
    %4439 = vmatprep.subr.mxu0 0.0
    %4440 = vmatpush2.msra.mxu0 0.0
    %4441 = vmatprep.subr.mxu0 0.0
    %4442 = vmatpush2.msra.mxu0 0.0
    %4443 = vmatprep.subr.mxu0 0.0
    %4444 = vmatpush2.msra.mxu0 0.0
    %4445 = vmatprep.subr.mxu0 0.0
    %4446 = vmatpush2.msra.mxu0 0.0
    %4447 = vmatprep.subr.mxu0 0.0
    %4448 = vmatpush2.msra.mxu0 0.0
    %4449 = vmatprep.mubr.f32.mxu0 0.0
    %4450 = vmatmul.mubr.f32.gmra.mxu0 %v4383
    %v4451 = vpop.f32.mrf.mxu0
    %v4452 = vadd.f32 %v3452, %v4451
    %v4453 = vpop.f32.mrf.mxu0
    %4454 = vdwg.mxu0
    %4456 = vrot.lane.b32.xlu0 %v4244, 32
    %v4457 = vpop.permute.xlu0 %4456
    %v4458 = vsel %vm1274, %v4457, 0
    %4460 = vmatprep.subr.mxu0 0.0
    %4461 = vmatpush1.msra.mxu0 0.0
    %4462 = vmatprep.subr.mxu0 0.0
    %4463 = vmatpush1.msra.mxu0 0.0
    %4464 = vmatprep.subr.mxu0 0.0
    %4465 = vmatpush1.msra.mxu0 0.0
    %4466 = vmatprep.subr.mxu0 0.0
    %4467 = vmatpush1.msra.mxu0 0.0
    %4468 = vmatprep.subr.mxu0 0.0
    %4469 = vmatpush1.msra.mxu0 0.0
    %4470 = vmatprep.subr.mxu0 0.0
    %4471 = vmatpush1.msra.mxu0 0.0
    %4472 = vmatprep.subr.mxu0 0.0
    %4473 = vmatpush1.msra.mxu0 0.0
    %4474 = vmatprep.subr.mxu0 0.0
    %4475 = vmatpush1.msra.mxu0 0.0
    %4476 = vmatprep.subr.mxu0 0.0
    %4477 = vmatpush1.msra.mxu0 0.0
    %4478 = vmatprep.subr.mxu0 0.0
    %4479 = vmatpush1.msra.mxu0 0.0
    %4480 = vmatprep.subr.mxu0 0.0
    %4481 = vmatpush1.msra.mxu0 0.0
    %4482 = vmatprep.subr.mxu0 0.0
    %4483 = vmatpush1.msra.mxu0 0.0
    %4484 = vmatprep.subr.mxu0 0.0
    %4485 = vmatpush1.msra.mxu0 %v3235
    %4486 = vmatprep.subr.mxu0 0.0
    %4487 = vmatpush1.msra.mxu0 %v3234
    %4488 = vmatprep.subr.mxu0 0.0
    %4489 = vmatpush1.msra.mxu0 %v3233
    %4490 = vmatprep.subr.mxu0 0.0
    %4491 = vmatpush1.msra.mxu0 %v3232
    %4492 = vmatprep.subr.mxu0 0.0
    %4493 = vmatpush2.msra.mxu0 0.0
    %4494 = vmatprep.subr.mxu0 0.0
    %4495 = vmatpush2.msra.mxu0 0.0
    %4496 = vmatprep.subr.mxu0 0.0
    %4497 = vmatpush2.msra.mxu0 0.0
    %4498 = vmatprep.subr.mxu0 0.0
    %4499 = vmatpush2.msra.mxu0 0.0
    %4500 = vmatprep.subr.mxu0 0.0
    %4501 = vmatpush2.msra.mxu0 0.0
    %4502 = vmatprep.subr.mxu0 0.0
    %4503 = vmatpush2.msra.mxu0 0.0
    %4504 = vmatprep.subr.mxu0 0.0
    %4505 = vmatpush2.msra.mxu0 0.0
    %4506 = vmatprep.subr.mxu0 0.0
    %4507 = vmatpush2.msra.mxu0 0.0
    %4508 = vmatprep.subr.mxu0 0.0
    %4509 = vmatpush2.msra.mxu0 0.0
    %4510 = vmatprep.subr.mxu0 0.0
    %4511 = vmatpush2.msra.mxu0 0.0
    %4512 = vmatprep.subr.mxu0 0.0
    %4513 = vmatpush2.msra.mxu0 0.0
    %4514 = vmatprep.subr.mxu0 0.0
    %4515 = vmatpush2.msra.mxu0 0.0
    %4516 = vmatprep.subr.mxu0 0.0
    %4517 = vmatpush2.msra.mxu0 0.0
    %4518 = vmatprep.subr.mxu0 0.0
    %4519 = vmatpush2.msra.mxu0 0.0
    %4520 = vmatprep.subr.mxu0 0.0
    %4521 = vmatpush2.msra.mxu0 0.0
    %4522 = vmatprep.subr.mxu0 0.0
    %4523 = vmatpush2.msra.mxu0 0.0
    %4524 = vmatprep.mubr.f32.mxu0 0.0
    %4525 = vmatmul.mubr.f32.gmra.mxu0 %v4458
    %v4526 = vpop.f32.mrf.mxu0
    %v4527 = vadd.f32 0.0, %v4526
    %v4528 = vpop.f32.mrf.mxu0
    %4529 = vdwg.mxu0
    %v4530 = vadd.f32 %v4452, %v4527
    %v4531 = vxor.u32 %v4530, 2147483648
    %v4532 = vmul.f32 %v4531, 1.442695
    %v4533 = vpow.pop %v4532
    %v4534 = vadd.f32 %v4533, 1.0
    %v4535 = vrcp.pop %v4534
    %v4536 = vmul.f32 1.0, %v4535
    %v4537 = vtanh.pop %v4530
    %v4538 = vmul.f32 %v4536, %v4238
    %4540 = vrot.lane.b32.xlu0 %v4537, 64
    %v4541 = vpop.permute.xlu0 %4540
    %v4543 = vmul.f32 %v4536, %v4541
    %4545 = vrot.lane.b32.xlu0 %v4543, 32
    %v4546 = vpop.permute.xlu0 %4545
    %v4548 = vadd.f32 %v4538, %v4546
    %v4549 = vtanh.pop %v4548
    %4551 = vrot.lane.b32.xlu0 %v4549, 64
    %v4552 = vpop.permute.xlu0 %4551
    %v4554 = vmul.f32 %v4536, %v4552
    %4555 = vmatprep.subr.mxu0 0.0
    %4556 = vmatpush1.msra.mxu0 0.0
    %4557 = vmatprep.subr.mxu0 0.0
    %4558 = vmatpush1.msra.mxu0 0.0
    %4559 = vmatprep.subr.mxu0 0.0
    %4560 = vmatpush1.msra.mxu0 0.0
    %4561 = vmatprep.subr.mxu0 0.0
    %4562 = vmatpush1.msra.mxu0 0.0
    %4563 = vmatprep.subr.mxu0 0.0
    %4564 = vmatpush1.msra.mxu0 0.0
    %4565 = vmatprep.subr.mxu0 0.0
    %4566 = vmatpush1.msra.mxu0 0.0
    %4567 = vmatprep.subr.mxu0 0.0
    %4568 = vmatpush1.msra.mxu0 0.0
    %4569 = vmatprep.subr.mxu0 0.0
    %4570 = vmatpush1.msra.mxu0 0.0
    %4571 = vmatprep.subr.mxu0 0.0
    %4572 = vmatpush1.msra.mxu0 0.0
    %4573 = vmatprep.subr.mxu0 0.0
    %4574 = vmatpush1.msra.mxu0 0.0
    %4575 = vmatprep.subr.mxu0 0.0
    %4576 = vmatpush1.msra.mxu0 0.0
    %4577 = vmatprep.subr.mxu0 0.0
    %4578 = vmatpush1.msra.mxu0 0.0
    %4579 = vmatprep.subr.mxu0 0.0
    %4580 = vmatpush1.msra.mxu0 %v3230
    %4581 = vmatprep.subr.mxu0 0.0
    %4582 = vmatpush1.msra.mxu0 %v3229
    %4583 = vmatprep.subr.mxu0 0.0
    %4584 = vmatpush1.msra.mxu0 %v3228
    %4585 = vmatprep.subr.mxu0 0.0
    %4586 = vmatpush1.msra.mxu0 %v3227
    %4587 = vmatprep.subr.mxu0 0.0
    %4588 = vmatpush2.msra.mxu0 0.0
    %4589 = vmatprep.subr.mxu0 0.0
    %4590 = vmatpush2.msra.mxu0 0.0
    %4591 = vmatprep.subr.mxu0 0.0
    %4592 = vmatpush2.msra.mxu0 0.0
    %4593 = vmatprep.subr.mxu0 0.0
    %4594 = vmatpush2.msra.mxu0 0.0
    %4595 = vmatprep.subr.mxu0 0.0
    %4596 = vmatpush2.msra.mxu0 0.0
    %4597 = vmatprep.subr.mxu0 0.0
    %4598 = vmatpush2.msra.mxu0 0.0
    %4599 = vmatprep.subr.mxu0 0.0
    %4600 = vmatpush2.msra.mxu0 0.0
    %4601 = vmatprep.subr.mxu0 0.0
    %4602 = vmatpush2.msra.mxu0 0.0
    %4603 = vmatprep.subr.mxu0 0.0
    %4604 = vmatpush2.msra.mxu0 0.0
    %4605 = vmatprep.subr.mxu0 0.0
    %4606 = vmatpush2.msra.mxu0 0.0
    %4607 = vmatprep.subr.mxu0 0.0
    %4608 = vmatpush2.msra.mxu0 0.0
    %4609 = vmatprep.subr.mxu0 0.0
    %4610 = vmatpush2.msra.mxu0 0.0
    %4611 = vmatprep.subr.mxu0 0.0
    %4612 = vmatpush2.msra.mxu0 0.0
    %4613 = vmatprep.subr.mxu0 0.0
    %4614 = vmatpush2.msra.mxu0 0.0
    %4615 = vmatprep.subr.mxu0 0.0
    %4616 = vmatpush2.msra.mxu0 0.0
    %4617 = vmatprep.subr.mxu0 0.0
    %4618 = vmatpush2.msra.mxu0 0.0
    %4619 = vmatprep.mubr.f32.mxu0 0.0
    %4620 = vmatmul.mubr.f32.gmra.mxu0 %v4383
    %v4621 = vpop.f32.mrf.mxu0
    %v4622 = vadd.f32 0.0, %v4621
    %v4623 = vpop.f32.mrf.mxu0
    %4624 = vdwg.mxu0
    %v4626 = vrot.slane %v4622, 4
    %v4627 = vrot.slane %v4622, 5
    %v4630 = vadd.f32 %v3314, %v4626
    %v4631 = vadd.f32 %v3319, %v4627
    %v4632 = vxor.u32 %v4630, 2147483648
    %v4633 = vxor.u32 %v4631, 2147483648
    %v4634 = vmul.f32 %v4632, 1.442695
    %v4635 = vpow.pop %v4634
    %v4636 = vmul.f32 %v4633, 1.442695
    %v4637 = vpow.pop %v4636
    %v4638 = vadd.f32 %v4635, 1.0
    %v4639 = vadd.f32 %v4637, 1.0
    %v4640 = vrcp.pop %v4638
    %v4641 = vmul.f32 1.0, %v4640
    %v4642 = vrcp.pop %v4639
    %v4643 = vmul.f32 1.0, %v4642
    %v4644 = vtanh.pop %v4630
    %v4645 = vtanh.pop %v4631
    %v4648 = vrot.slane %v4362, 7
    %v4649 = vrot.slane %v4363, 7
    %v4652 = vmul.f32 %v4641, %v4648
    %v4653 = vmul.f32 %v4643, %v4649
    %4656 = vrot.lane.b32.xlu0 %v4644, 64
    %v4657 = vpop.permute.xlu0 %4656
    %4658 = vrot.lane.b32.xlu0 %v4645, 64
    %v4659 = vpop.permute.xlu0 %4658
    %v4662 = vmul.f32 %v4641, %v4657
    %v4663 = vmul.f32 %v4643, %v4659
    %4666 = vrot.lane.b32.xlu0 %v4662, 32
    %v4667 = vpop.permute.xlu0 %4666
    %4668 = vrot.lane.b32.xlu0 %v4663, 32
    %v4669 = vpop.permute.xlu0 %4668
    %v4672 = vadd.f32 %v4652, %v4667
    %v4673 = vadd.f32 %v4653, %v4669
    %v4674 = vtanh.pop %v4672
    %v4675 = vtanh.pop %v4673
    %4678 = vrot.lane.b32.xlu0 %v4674, 64
    %v4679 = vpop.permute.xlu0 %4678
    %4680 = vrot.lane.b32.xlu0 %v4675, 64
    %v4681 = vpop.permute.xlu0 %4680
    %v4684 = vmul.f32 %v4641, %v4679
    %v4685 = vmul.f32 %v4643, %v4681
    %v4688 = vrot.slane %v4684, 4
    %v4689 = vrot.slane %v4685, 3
    %v4690 = vsel %vm3456, %v4689, %v4688
    %4691 = vrot.lane.b32.xlu0 %v4690, 32
    %v4692 = vpop.permute.xlu0 %4691
    %v4693 = vsel %vm1274, %v4692, 0
    %4695 = vmatprep.subr.mxu0 0.0
    %4696 = vmatpush1.msra.mxu0 0.0
    %4697 = vmatprep.subr.mxu0 0.0
    %4698 = vmatpush1.msra.mxu0 0.0
    %4699 = vmatprep.subr.mxu0 0.0
    %4700 = vmatpush1.msra.mxu0 0.0
    %4701 = vmatprep.subr.mxu0 0.0
    %4702 = vmatpush1.msra.mxu0 0.0
    %4703 = vmatprep.subr.mxu0 0.0
    %4704 = vmatpush1.msra.mxu0 0.0
    %4705 = vmatprep.subr.mxu0 0.0
    %4706 = vmatpush1.msra.mxu0 0.0
    %4707 = vmatprep.subr.mxu0 0.0
    %4708 = vmatpush1.msra.mxu0 0.0
    %4709 = vmatprep.subr.mxu0 0.0
    %4710 = vmatpush1.msra.mxu0 0.0
    %4711 = vmatprep.subr.mxu0 0.0
    %4712 = vmatpush1.msra.mxu0 0.0
    %4713 = vmatprep.subr.mxu0 0.0
    %4714 = vmatpush1.msra.mxu0 0.0
    %4715 = vmatprep.subr.mxu0 0.0
    %4716 = vmatpush1.msra.mxu0 0.0
    %4717 = vmatprep.subr.mxu0 0.0
    %4718 = vmatpush1.msra.mxu0 0.0
    %4719 = vmatprep.subr.mxu0 0.0
    %4720 = vmatpush1.msra.mxu0 %v3226
    %4721 = vmatprep.subr.mxu0 0.0
    %4722 = vmatpush1.msra.mxu0 %v3225
    %4723 = vmatprep.subr.mxu0 0.0
    %4724 = vmatpush1.msra.mxu0 %v3224
    %4725 = vmatprep.subr.mxu0 0.0
    %4726 = vmatpush1.msra.mxu0 %v3223
    %4727 = vmatprep.subr.mxu0 0.0
    %4728 = vmatpush2.msra.mxu0 0.0
    %4729 = vmatprep.subr.mxu0 0.0
    %4730 = vmatpush2.msra.mxu0 0.0
    %4731 = vmatprep.subr.mxu0 0.0
    %4732 = vmatpush2.msra.mxu0 0.0
    %4733 = vmatprep.subr.mxu0 0.0
    %4734 = vmatpush2.msra.mxu0 0.0
    %4735 = vmatprep.subr.mxu0 0.0
    %4736 = vmatpush2.msra.mxu0 0.0
    %4737 = vmatprep.subr.mxu0 0.0
    %4738 = vmatpush2.msra.mxu0 0.0
    %4739 = vmatprep.subr.mxu0 0.0
    %4740 = vmatpush2.msra.mxu0 0.0
    %4741 = vmatprep.subr.mxu0 0.0
    %4742 = vmatpush2.msra.mxu0 0.0
    %4743 = vmatprep.subr.mxu0 0.0
    %4744 = vmatpush2.msra.mxu0 0.0
    %4745 = vmatprep.subr.mxu0 0.0
    %4746 = vmatpush2.msra.mxu0 0.0
    %4747 = vmatprep.subr.mxu0 0.0
    %4748 = vmatpush2.msra.mxu0 0.0
    %4749 = vmatprep.subr.mxu0 0.0
    %4750 = vmatpush2.msra.mxu0 0.0
    %4751 = vmatprep.subr.mxu0 0.0
    %4752 = vmatpush2.msra.mxu0 0.0
    %4753 = vmatprep.subr.mxu0 0.0
    %4754 = vmatpush2.msra.mxu0 0.0
    %4755 = vmatprep.subr.mxu0 0.0
    %4756 = vmatpush2.msra.mxu0 0.0
    %4757 = vmatprep.subr.mxu0 0.0
    %4758 = vmatpush2.msra.mxu0 0.0
    %4759 = vmatprep.mubr.f32.mxu0 0.0
    %4760 = vmatmul.mubr.f32.gmra.mxu0 %v4693
    %v4761 = vpop.f32.mrf.mxu0
    %v4762 = vadd.f32 %v3452, %v4761
    %v4763 = vpop.f32.mrf.mxu0
    %4764 = vdwg.mxu0
    %4766 = vrot.lane.b32.xlu0 %v4554, 32
    %v4767 = vpop.permute.xlu0 %4766
    %v4768 = vsel %vm1274, %v4767, 0
    %4770 = vmatprep.subr.mxu0 0.0
    %4771 = vmatpush1.msra.mxu0 0.0
    %4772 = vmatprep.subr.mxu0 0.0
    %4773 = vmatpush1.msra.mxu0 0.0
    %4774 = vmatprep.subr.mxu0 0.0
    %4775 = vmatpush1.msra.mxu0 0.0
    %4776 = vmatprep.subr.mxu0 0.0
    %4777 = vmatpush1.msra.mxu0 0.0
    %4778 = vmatprep.subr.mxu0 0.0
    %4779 = vmatpush1.msra.mxu0 0.0
    %4780 = vmatprep.subr.mxu0 0.0
    %4781 = vmatpush1.msra.mxu0 0.0
    %4782 = vmatprep.subr.mxu0 0.0
    %4783 = vmatpush1.msra.mxu0 0.0
    %4784 = vmatprep.subr.mxu0 0.0
    %4785 = vmatpush1.msra.mxu0 0.0
    %4786 = vmatprep.subr.mxu0 0.0
    %4787 = vmatpush1.msra.mxu0 0.0
    %4788 = vmatprep.subr.mxu0 0.0
    %4789 = vmatpush1.msra.mxu0 0.0
    %4790 = vmatprep.subr.mxu0 0.0
    %4791 = vmatpush1.msra.mxu0 0.0
    %4792 = vmatprep.subr.mxu0 0.0
    %4793 = vmatpush1.msra.mxu0 0.0
    %4794 = vmatprep.subr.mxu0 0.0
    %4795 = vmatpush1.msra.mxu0 %v3235
    %4796 = vmatprep.subr.mxu0 0.0
    %4797 = vmatpush1.msra.mxu0 %v3234
    %4798 = vmatprep.subr.mxu0 0.0
    %4799 = vmatpush1.msra.mxu0 %v3233
    %4800 = vmatprep.subr.mxu0 0.0
    %4801 = vmatpush1.msra.mxu0 %v3232
    %4802 = vmatprep.subr.mxu0 0.0
    %4803 = vmatpush2.msra.mxu0 0.0
    %4804 = vmatprep.subr.mxu0 0.0
    %4805 = vmatpush2.msra.mxu0 0.0
    %4806 = vmatprep.subr.mxu0 0.0
    %4807 = vmatpush2.msra.mxu0 0.0
    %4808 = vmatprep.subr.mxu0 0.0
    %4809 = vmatpush2.msra.mxu0 0.0
    %4810 = vmatprep.subr.mxu0 0.0
    %4811 = vmatpush2.msra.mxu0 0.0
    %4812 = vmatprep.subr.mxu0 0.0
    %4813 = vmatpush2.msra.mxu0 0.0
    %4814 = vmatprep.subr.mxu0 0.0
    %4815 = vmatpush2.msra.mxu0 0.0
    %4816 = vmatprep.subr.mxu0 0.0
    %4817 = vmatpush2.msra.mxu0 0.0
    %4818 = vmatprep.subr.mxu0 0.0
    %4819 = vmatpush2.msra.mxu0 0.0
    %4820 = vmatprep.subr.mxu0 0.0
    %4821 = vmatpush2.msra.mxu0 0.0
    %4822 = vmatprep.subr.mxu0 0.0
    %4823 = vmatpush2.msra.mxu0 0.0
    %4824 = vmatprep.subr.mxu0 0.0
    %4825 = vmatpush2.msra.mxu0 0.0
    %4826 = vmatprep.subr.mxu0 0.0
    %4827 = vmatpush2.msra.mxu0 0.0
    %4828 = vmatprep.subr.mxu0 0.0
    %4829 = vmatpush2.msra.mxu0 0.0
    %4830 = vmatprep.subr.mxu0 0.0
    %4831 = vmatpush2.msra.mxu0 0.0
    %4832 = vmatprep.subr.mxu0 0.0
    %4833 = vmatpush2.msra.mxu0 0.0
    %4834 = vmatprep.mubr.f32.mxu0 0.0
    %4835 = vmatmul.mubr.f32.gmra.mxu0 %v4768
    %v4836 = vpop.f32.mrf.mxu0
    %v4837 = vadd.f32 0.0, %v4836
    %v4838 = vpop.f32.mrf.mxu0
    %4839 = vdwg.mxu0
    %v4840 = vadd.f32 %v4762, %v4837
    %v4841 = vxor.u32 %v4840, 2147483648
    %v4842 = vmul.f32 %v4841, 1.442695
    %v4843 = vpow.pop %v4842
    %v4844 = vadd.f32 %v4843, 1.0
    %v4845 = vrcp.pop %v4844
    %v4846 = vmul.f32 1.0, %v4845
    %v4847 = vtanh.pop %v4840
    %v4848 = vmul.f32 %v4846, %v4548
    %4850 = vrot.lane.b32.xlu0 %v4847, 64
    %v4851 = vpop.permute.xlu0 %4850
    %v4853 = vmul.f32 %v4846, %v4851
    %4855 = vrot.lane.b32.xlu0 %v4853, 32
    %v4856 = vpop.permute.xlu0 %4855
    %v4858 = vadd.f32 %v4848, %v4856
    %v4859 = vtanh.pop %v4858
    %4861 = vrot.lane.b32.xlu0 %v4859, 64
    %v4862 = vpop.permute.xlu0 %4861
    %v4864 = vmul.f32 %v4846, %v4862
    %4865 = vmatprep.subr.mxu0 0.0
    %4866 = vmatpush1.msra.mxu0 0.0
    %4867 = vmatprep.subr.mxu0 0.0
    %4868 = vmatpush1.msra.mxu0 0.0
    %4869 = vmatprep.subr.mxu0 0.0
    %4870 = vmatpush1.msra.mxu0 0.0
    %4871 = vmatprep.subr.mxu0 0.0
    %4872 = vmatpush1.msra.mxu0 0.0
    %4873 = vmatprep.subr.mxu0 0.0
    %4874 = vmatpush1.msra.mxu0 0.0
    %4875 = vmatprep.subr.mxu0 0.0
    %4876 = vmatpush1.msra.mxu0 0.0
    %4877 = vmatprep.subr.mxu0 0.0
    %4878 = vmatpush1.msra.mxu0 0.0
    %4879 = vmatprep.subr.mxu0 0.0
    %4880 = vmatpush1.msra.mxu0 0.0
    %4881 = vmatprep.subr.mxu0 0.0
    %4882 = vmatpush1.msra.mxu0 0.0
    %4883 = vmatprep.subr.mxu0 0.0
    %4884 = vmatpush1.msra.mxu0 0.0
    %4885 = vmatprep.subr.mxu0 0.0
    %4886 = vmatpush1.msra.mxu0 0.0
    %4887 = vmatprep.subr.mxu0 0.0
    %4888 = vmatpush1.msra.mxu0 0.0
    %4889 = vmatprep.subr.mxu0 0.0
    %4890 = vmatpush1.msra.mxu0 %v3230
    %4891 = vmatprep.subr.mxu0 0.0
    %4892 = vmatpush1.msra.mxu0 %v3229
    %4893 = vmatprep.subr.mxu0 0.0
    %4894 = vmatpush1.msra.mxu0 %v3228
    %4895 = vmatprep.subr.mxu0 0.0
    %4896 = vmatpush1.msra.mxu0 %v3227
    %4897 = vmatprep.subr.mxu0 0.0
    %4898 = vmatpush2.msra.mxu0 0.0
    %4899 = vmatprep.subr.mxu0 0.0
    %4900 = vmatpush2.msra.mxu0 0.0
    %4901 = vmatprep.subr.mxu0 0.0
    %4902 = vmatpush2.msra.mxu0 0.0
    %4903 = vmatprep.subr.mxu0 0.0
    %4904 = vmatpush2.msra.mxu0 0.0
    %4905 = vmatprep.subr.mxu0 0.0
    %4906 = vmatpush2.msra.mxu0 0.0
    %4907 = vmatprep.subr.mxu0 0.0
    %4908 = vmatpush2.msra.mxu0 0.0
    %4909 = vmatprep.subr.mxu0 0.0
    %4910 = vmatpush2.msra.mxu0 0.0
    %4911 = vmatprep.subr.mxu0 0.0
    %4912 = vmatpush2.msra.mxu0 0.0
    %4913 = vmatprep.subr.mxu0 0.0
    %4914 = vmatpush2.msra.mxu0 0.0
    %4915 = vmatprep.subr.mxu0 0.0
    %4916 = vmatpush2.msra.mxu0 0.0
    %4917 = vmatprep.subr.mxu0 0.0
    %4918 = vmatpush2.msra.mxu0 0.0
    %4919 = vmatprep.subr.mxu0 0.0
    %4920 = vmatpush2.msra.mxu0 0.0
    %4921 = vmatprep.subr.mxu0 0.0
    %4922 = vmatpush2.msra.mxu0 0.0
    %4923 = vmatprep.subr.mxu0 0.0
    %4924 = vmatpush2.msra.mxu0 0.0
    %4925 = vmatprep.subr.mxu0 0.0
    %4926 = vmatpush2.msra.mxu0 0.0
    %4927 = vmatprep.subr.mxu0 0.0
    %4928 = vmatpush2.msra.mxu0 0.0
    %4929 = vmatprep.mubr.f32.mxu0 0.0
    %4930 = vmatmul.mubr.f32.gmra.mxu0 %v4693
    %v4931 = vpop.f32.mrf.mxu0
    %v4932 = vadd.f32 0.0, %v4931
    %v4933 = vpop.f32.mrf.mxu0
    %4934 = vdwg.mxu0
    %v4936 = vrot.slane %v4932, 3
    %v4937 = vrot.slane %v4932, 4
    %v4940 = vadd.f32 %v3314, %v4936
    %v4941 = vadd.f32 %v3319, %v4937
    %v4942 = vxor.u32 %v4940, 2147483648
    %v4943 = vxor.u32 %v4941, 2147483648
    %v4944 = vmul.f32 %v4942, 1.442695
    %v4945 = vpow.pop %v4944
    %v4946 = vmul.f32 %v4943, 1.442695
    %v4947 = vpow.pop %v4946
    %v4948 = vadd.f32 %v4945, 1.0
    %v4949 = vadd.f32 %v4947, 1.0
    %v4950 = vrcp.pop %v4948
    %v4951 = vmul.f32 1.0, %v4950
    %v4952 = vrcp.pop %v4949
    %v4953 = vmul.f32 1.0, %v4952
    %v4954 = vtanh.pop %v4940
    %v4955 = vtanh.pop %v4941
    %v4958 = vrot.slane %v4672, 7
    %v4959 = vrot.slane %v4673, 7
    %v4962 = vmul.f32 %v4951, %v4958
    %v4963 = vmul.f32 %v4953, %v4959
    %4966 = vrot.lane.b32.xlu0 %v4954, 64
    %v4967 = vpop.permute.xlu0 %4966
    %4968 = vrot.lane.b32.xlu0 %v4955, 64
    %v4969 = vpop.permute.xlu0 %4968
    %v4972 = vmul.f32 %v4951, %v4967
    %v4973 = vmul.f32 %v4953, %v4969
    %4976 = vrot.lane.b32.xlu0 %v4972, 32
    %v4977 = vpop.permute.xlu0 %4976
    %4978 = vrot.lane.b32.xlu0 %v4973, 32
    %v4979 = vpop.permute.xlu0 %4978
    %v4982 = vadd.f32 %v4962, %v4977
    %v4983 = vadd.f32 %v4963, %v4979
    %v4984 = vtanh.pop %v4982
    %v4985 = vtanh.pop %v4983
    %4988 = vrot.lane.b32.xlu0 %v4984, 64
    %v4989 = vpop.permute.xlu0 %4988
    %4990 = vrot.lane.b32.xlu0 %v4985, 64
    %v4991 = vpop.permute.xlu0 %4990
    %v4994 = vmul.f32 %v4951, %v4989
    %v4995 = vmul.f32 %v4953, %v4991
    %v4998 = vrot.slane %v4994, 5
    %v4999 = vrot.slane %v4995, 4
    %v5000 = vsel %vm3456, %v4999, %v4998
    %5001 = vrot.lane.b32.xlu0 %v5000, 32
    %v5002 = vpop.permute.xlu0 %5001
    %v5003 = vsel %vm1274, %v5002, 0
    %5005 = vmatprep.subr.mxu0 0.0
    %5006 = vmatpush1.msra.mxu0 0.0
    %5007 = vmatprep.subr.mxu0 0.0
    %5008 = vmatpush1.msra.mxu0 0.0
    %5009 = vmatprep.subr.mxu0 0.0
    %5010 = vmatpush1.msra.mxu0 0.0
    %5011 = vmatprep.subr.mxu0 0.0
    %5012 = vmatpush1.msra.mxu0 0.0
    %5013 = vmatprep.subr.mxu0 0.0
    %5014 = vmatpush1.msra.mxu0 0.0
    %5015 = vmatprep.subr.mxu0 0.0
    %5016 = vmatpush1.msra.mxu0 0.0
    %5017 = vmatprep.subr.mxu0 0.0
    %5018 = vmatpush1.msra.mxu0 0.0
    %5019 = vmatprep.subr.mxu0 0.0
    %5020 = vmatpush1.msra.mxu0 0.0
    %5021 = vmatprep.subr.mxu0 0.0
    %5022 = vmatpush1.msra.mxu0 0.0
    %5023 = vmatprep.subr.mxu0 0.0
    %5024 = vmatpush1.msra.mxu0 0.0
    %5025 = vmatprep.subr.mxu0 0.0
    %5026 = vmatpush1.msra.mxu0 0.0
    %5027 = vmatprep.subr.mxu0 0.0
    %5028 = vmatpush1.msra.mxu0 0.0
    %5029 = vmatprep.subr.mxu0 0.0
    %5030 = vmatpush1.msra.mxu0 %v3226
    %5031 = vmatprep.subr.mxu0 0.0
    %5032 = vmatpush1.msra.mxu0 %v3225
    %5033 = vmatprep.subr.mxu0 0.0
    %5034 = vmatpush1.msra.mxu0 %v3224
    %5035 = vmatprep.subr.mxu0 0.0
    %5036 = vmatpush1.msra.mxu0 %v3223
    %5037 = vmatprep.subr.mxu0 0.0
    %5038 = vmatpush2.msra.mxu0 0.0
    %5039 = vmatprep.subr.mxu0 0.0
    %5040 = vmatpush2.msra.mxu0 0.0
    %5041 = vmatprep.subr.mxu0 0.0
    %5042 = vmatpush2.msra.mxu0 0.0
    %5043 = vmatprep.subr.mxu0 0.0
    %5044 = vmatpush2.msra.mxu0 0.0
    %5045 = vmatprep.subr.mxu0 0.0
    %5046 = vmatpush2.msra.mxu0 0.0
    %5047 = vmatprep.subr.mxu0 0.0
    %5048 = vmatpush2.msra.mxu0 0.0
    %5049 = vmatprep.subr.mxu0 0.0
    %5050 = vmatpush2.msra.mxu0 0.0
    %5051 = vmatprep.subr.mxu0 0.0
    %5052 = vmatpush2.msra.mxu0 0.0
    %5053 = vmatprep.subr.mxu0 0.0
    %5054 = vmatpush2.msra.mxu0 0.0
    %5055 = vmatprep.subr.mxu0 0.0
    %5056 = vmatpush2.msra.mxu0 0.0
    %5057 = vmatprep.subr.mxu0 0.0
    %5058 = vmatpush2.msra.mxu0 0.0
    %5059 = vmatprep.subr.mxu0 0.0
    %5060 = vmatpush2.msra.mxu0 0.0
    %5061 = vmatprep.subr.mxu0 0.0
    %5062 = vmatpush2.msra.mxu0 0.0
    %5063 = vmatprep.subr.mxu0 0.0
    %5064 = vmatpush2.msra.mxu0 0.0
    %5065 = vmatprep.subr.mxu0 0.0
    %5066 = vmatpush2.msra.mxu0 0.0
    %5067 = vmatprep.subr.mxu0 0.0
    %5068 = vmatpush2.msra.mxu0 0.0
    %5069 = vmatprep.mubr.f32.mxu0 0.0
    %5070 = vmatmul.mubr.f32.gmra.mxu0 %v5003
    %v5071 = vpop.f32.mrf.mxu0
    %v5072 = vadd.f32 %v3452, %v5071
    %v5073 = vpop.f32.mrf.mxu0
    %5074 = vdwg.mxu0
    %5076 = vrot.lane.b32.xlu0 %v4864, 32
    %v5077 = vpop.permute.xlu0 %5076
    %v5078 = vsel %vm1274, %v5077, 0
    %5080 = vmatprep.subr.mxu0 0.0
    %5081 = vmatpush1.msra.mxu0 0.0
    %5082 = vmatprep.subr.mxu0 0.0
    %5083 = vmatpush1.msra.mxu0 0.0
    %5084 = vmatprep.subr.mxu0 0.0
    %5085 = vmatpush1.msra.mxu0 0.0
    %5086 = vmatprep.subr.mxu0 0.0
    %5087 = vmatpush1.msra.mxu0 0.0
    %5088 = vmatprep.subr.mxu0 0.0
    %5089 = vmatpush1.msra.mxu0 0.0
    %5090 = vmatprep.subr.mxu0 0.0
    %5091 = vmatpush1.msra.mxu0 0.0
    %5092 = vmatprep.subr.mxu0 0.0
    %5093 = vmatpush1.msra.mxu0 0.0
    %5094 = vmatprep.subr.mxu0 0.0
    %5095 = vmatpush1.msra.mxu0 0.0
    %5096 = vmatprep.subr.mxu0 0.0
    %5097 = vmatpush1.msra.mxu0 0.0
    %5098 = vmatprep.subr.mxu0 0.0
    %5099 = vmatpush1.msra.mxu0 0.0
    %5100 = vmatprep.subr.mxu0 0.0
    %5101 = vmatpush1.msra.mxu0 0.0
    %5102 = vmatprep.subr.mxu0 0.0
    %5103 = vmatpush1.msra.mxu0 0.0
    %5104 = vmatprep.subr.mxu0 0.0
    %5105 = vmatpush1.msra.mxu0 %v3235
    %5106 = vmatprep.subr.mxu0 0.0
    %5107 = vmatpush1.msra.mxu0 %v3234
    %5108 = vmatprep.subr.mxu0 0.0
    %5109 = vmatpush1.msra.mxu0 %v3233
    %5110 = vmatprep.subr.mxu0 0.0
    %5111 = vmatpush1.msra.mxu0 %v3232
    %5112 = vmatprep.subr.mxu0 0.0
    %5113 = vmatpush2.msra.mxu0 0.0
    %5114 = vmatprep.subr.mxu0 0.0
    %5115 = vmatpush2.msra.mxu0 0.0
    %5116 = vmatprep.subr.mxu0 0.0
    %5117 = vmatpush2.msra.mxu0 0.0
    %5118 = vmatprep.subr.mxu0 0.0
    %5119 = vmatpush2.msra.mxu0 0.0
    %5120 = vmatprep.subr.mxu0 0.0
    %5121 = vmatpush2.msra.mxu0 0.0
    %5122 = vmatprep.subr.mxu0 0.0
    %5123 = vmatpush2.msra.mxu0 0.0
    %5124 = vmatprep.subr.mxu0 0.0
    %5125 = vmatpush2.msra.mxu0 0.0
    %5126 = vmatprep.subr.mxu0 0.0
    %5127 = vmatpush2.msra.mxu0 0.0
    %5128 = vmatprep.subr.mxu0 0.0
    %5129 = vmatpush2.msra.mxu0 0.0
    %5130 = vmatprep.subr.mxu0 0.0
    %5131 = vmatpush2.msra.mxu0 0.0
    %5132 = vmatprep.subr.mxu0 0.0
    %5133 = vmatpush2.msra.mxu0 0.0
    %5134 = vmatprep.subr.mxu0 0.0
    %5135 = vmatpush2.msra.mxu0 0.0
    %5136 = vmatprep.subr.mxu0 0.0
    %5137 = vmatpush2.msra.mxu0 0.0
    %5138 = vmatprep.subr.mxu0 0.0
    %5139 = vmatpush2.msra.mxu0 0.0
    %5140 = vmatprep.subr.mxu0 0.0
    %5141 = vmatpush2.msra.mxu0 0.0
    %5142 = vmatprep.subr.mxu0 0.0
    %5143 = vmatpush2.msra.mxu0 0.0
    %5144 = vmatprep.mubr.f32.mxu0 0.0
    %5145 = vmatmul.mubr.f32.gmra.mxu0 %v5078
    %v5146 = vpop.f32.mrf.mxu0
    %v5147 = vadd.f32 0.0, %v5146
    %v5148 = vpop.f32.mrf.mxu0
    %5149 = vdwg.mxu0
    %v5150 = vadd.f32 %v5072, %v5147
    %v5151 = vxor.u32 %v5150, 2147483648
    %v5152 = vmul.f32 %v5151, 1.442695
    %v5153 = vpow.pop %v5152
    %v5154 = vadd.f32 %v5153, 1.0
    %v5155 = vrcp.pop %v5154
    %v5156 = vmul.f32 1.0, %v5155
    %v5157 = vtanh.pop %v5150
    %v5158 = vmul.f32 %v5156, %v4858
    %5160 = vrot.lane.b32.xlu0 %v5157, 64
    %v5161 = vpop.permute.xlu0 %5160
    %v5163 = vmul.f32 %v5156, %v5161
    %5165 = vrot.lane.b32.xlu0 %v5163, 32
    %v5166 = vpop.permute.xlu0 %5165
    %v5168 = vadd.f32 %v5158, %v5166
    %v5169 = vtanh.pop %v5168
    %5171 = vrot.lane.b32.xlu0 %v5169, 64
    %v5172 = vpop.permute.xlu0 %5171
    %v5174 = vmul.f32 %v5156, %v5172
    %5175 = vmatprep.subr.mxu0 0.0
    %5176 = vmatpush1.msra.mxu0 0.0
    %5177 = vmatprep.subr.mxu0 0.0
    %5178 = vmatpush1.msra.mxu0 0.0
    %5179 = vmatprep.subr.mxu0 0.0
    %5180 = vmatpush1.msra.mxu0 0.0
    %5181 = vmatprep.subr.mxu0 0.0
    %5182 = vmatpush1.msra.mxu0 0.0
    %5183 = vmatprep.subr.mxu0 0.0
    %5184 = vmatpush1.msra.mxu0 0.0
    %5185 = vmatprep.subr.mxu0 0.0
    %5186 = vmatpush1.msra.mxu0 0.0
    %5187 = vmatprep.subr.mxu0 0.0
    %5188 = vmatpush1.msra.mxu0 0.0
    %5189 = vmatprep.subr.mxu0 0.0
    %5190 = vmatpush1.msra.mxu0 0.0
    %5191 = vmatprep.subr.mxu0 0.0
    %5192 = vmatpush1.msra.mxu0 0.0
    %5193 = vmatprep.subr.mxu0 0.0
    %5194 = vmatpush1.msra.mxu0 0.0
    %5195 = vmatprep.subr.mxu0 0.0
    %5196 = vmatpush1.msra.mxu0 0.0
    %5197 = vmatprep.subr.mxu0 0.0
    %5198 = vmatpush1.msra.mxu0 0.0
    %5199 = vmatprep.subr.mxu0 0.0
    %5200 = vmatpush1.msra.mxu0 %v3230
    %5201 = vmatprep.subr.mxu0 0.0
    %5202 = vmatpush1.msra.mxu0 %v3229
    %5203 = vmatprep.subr.mxu0 0.0
    %5204 = vmatpush1.msra.mxu0 %v3228
    %5205 = vmatprep.subr.mxu0 0.0
    %5206 = vmatpush1.msra.mxu0 %v3227
    %5207 = vmatprep.subr.mxu0 0.0
    %5208 = vmatpush2.msra.mxu0 0.0
    %5209 = vmatprep.subr.mxu0 0.0
    %5210 = vmatpush2.msra.mxu0 0.0
    %5211 = vmatprep.subr.mxu0 0.0
    %5212 = vmatpush2.msra.mxu0 0.0
    %5213 = vmatprep.subr.mxu0 0.0
    %5214 = vmatpush2.msra.mxu0 0.0
    %5215 = vmatprep.subr.mxu0 0.0
    %5216 = vmatpush2.msra.mxu0 0.0
    %5217 = vmatprep.subr.mxu0 0.0
    %5218 = vmatpush2.msra.mxu0 0.0
    %5219 = vmatprep.subr.mxu0 0.0
    %5220 = vmatpush2.msra.mxu0 0.0
    %5221 = vmatprep.subr.mxu0 0.0
    %5222 = vmatpush2.msra.mxu0 0.0
    %5223 = vmatprep.subr.mxu0 0.0
    %5224 = vmatpush2.msra.mxu0 0.0
    %5225 = vmatprep.subr.mxu0 0.0
    %5226 = vmatpush2.msra.mxu0 0.0
    %5227 = vmatprep.subr.mxu0 0.0
    %5228 = vmatpush2.msra.mxu0 0.0
    %5229 = vmatprep.subr.mxu0 0.0
    %5230 = vmatpush2.msra.mxu0 0.0
    %5231 = vmatprep.subr.mxu0 0.0
    %5232 = vmatpush2.msra.mxu0 0.0
    %5233 = vmatprep.subr.mxu0 0.0
    %5234 = vmatpush2.msra.mxu0 0.0
    %5235 = vmatprep.subr.mxu0 0.0
    %5236 = vmatpush2.msra.mxu0 0.0
    %5237 = vmatprep.subr.mxu0 0.0
    %5238 = vmatpush2.msra.mxu0 0.0
    %5239 = vmatprep.mubr.f32.mxu0 0.0
    %5240 = vmatmul.mubr.f32.gmra.mxu0 %v5003
    %v5241 = vpop.f32.mrf.mxu0
    %v5242 = vadd.f32 0.0, %v5241
    %v5243 = vpop.f32.mrf.mxu0
    %5244 = vdwg.mxu0
    %v5246 = vrot.slane %v5242, 2
    %v5247 = vrot.slane %v5242, 3
    %v5250 = vadd.f32 %v3314, %v5246
    %v5251 = vadd.f32 %v3319, %v5247
    %v5252 = vxor.u32 %v5250, 2147483648
    %v5253 = vxor.u32 %v5251, 2147483648
    %v5254 = vmul.f32 %v5252, 1.442695
    %v5255 = vpow.pop %v5254
    %v5256 = vmul.f32 %v5253, 1.442695
    %v5257 = vpow.pop %v5256
    %v5258 = vadd.f32 %v5255, 1.0
    %v5259 = vadd.f32 %v5257, 1.0
    %v5260 = vrcp.pop %v5258
    %v5261 = vmul.f32 1.0, %v5260
    %v5262 = vrcp.pop %v5259
    %v5263 = vmul.f32 1.0, %v5262
    %v5264 = vtanh.pop %v5250
    %v5265 = vtanh.pop %v5251
    %v5268 = vrot.slane %v4982, 7
    %v5269 = vrot.slane %v4983, 7
    %v5272 = vmul.f32 %v5261, %v5268
    %v5273 = vmul.f32 %v5263, %v5269
    %5276 = vrot.lane.b32.xlu0 %v5264, 64
    %v5277 = vpop.permute.xlu0 %5276
    %5278 = vrot.lane.b32.xlu0 %v5265, 64
    %v5279 = vpop.permute.xlu0 %5278
    %v5282 = vmul.f32 %v5261, %v5277
    %v5283 = vmul.f32 %v5263, %v5279
    %5286 = vrot.lane.b32.xlu0 %v5282, 32
    %v5287 = vpop.permute.xlu0 %5286
    %5288 = vrot.lane.b32.xlu0 %v5283, 32
    %v5289 = vpop.permute.xlu0 %5288
    %v5292 = vadd.f32 %v5272, %v5287
    %v5293 = vadd.f32 %v5273, %v5289
    %v5294 = vtanh.pop %v5292
    %v5295 = vtanh.pop %v5293
    %5298 = vrot.lane.b32.xlu0 %v5294, 64
    %v5299 = vpop.permute.xlu0 %5298
    %5300 = vrot.lane.b32.xlu0 %v5295, 64
    %v5301 = vpop.permute.xlu0 %5300
    %v5304 = vmul.f32 %v5261, %v5299
    %v5305 = vmul.f32 %v5263, %v5301
    %v5308 = vrot.slane %v5304, 6
    %v5309 = vrot.slane %v5305, 5
    %v5310 = vsel %vm3456, %v5309, %v5308
    %5311 = vrot.lane.b32.xlu0 %v5310, 32
    %v5312 = vpop.permute.xlu0 %5311
    %v5313 = vsel %vm1274, %v5312, 0
    %5315 = vmatprep.subr.mxu0 0.0
    %5316 = vmatpush1.msra.mxu0 0.0
    %5317 = vmatprep.subr.mxu0 0.0
    %5318 = vmatpush1.msra.mxu0 0.0
    %5319 = vmatprep.subr.mxu0 0.0
    %5320 = vmatpush1.msra.mxu0 0.0
    %5321 = vmatprep.subr.mxu0 0.0
    %5322 = vmatpush1.msra.mxu0 0.0
    %5323 = vmatprep.subr.mxu0 0.0
    %5324 = vmatpush1.msra.mxu0 0.0
    %5325 = vmatprep.subr.mxu0 0.0
    %5326 = vmatpush1.msra.mxu0 0.0
    %5327 = vmatprep.subr.mxu0 0.0
    %5328 = vmatpush1.msra.mxu0 0.0
    %5329 = vmatprep.subr.mxu0 0.0
    %5330 = vmatpush1.msra.mxu0 0.0
    %5331 = vmatprep.subr.mxu0 0.0
    %5332 = vmatpush1.msra.mxu0 0.0
    %5333 = vmatprep.subr.mxu0 0.0
    %5334 = vmatpush1.msra.mxu0 0.0
    %5335 = vmatprep.subr.mxu0 0.0
    %5336 = vmatpush1.msra.mxu0 0.0
    %5337 = vmatprep.subr.mxu0 0.0
    %5338 = vmatpush1.msra.mxu0 0.0
    %5339 = vmatprep.subr.mxu0 0.0
    %5340 = vmatpush1.msra.mxu0 %v3226
    %5341 = vmatprep.subr.mxu0 0.0
    %5342 = vmatpush1.msra.mxu0 %v3225
    %5343 = vmatprep.subr.mxu0 0.0
    %5344 = vmatpush1.msra.mxu0 %v3224
    %5345 = vmatprep.subr.mxu0 0.0
    %5346 = vmatpush1.msra.mxu0 %v3223
    %5347 = vmatprep.subr.mxu0 0.0
    %5348 = vmatpush2.msra.mxu0 0.0
    %5349 = vmatprep.subr.mxu0 0.0
    %5350 = vmatpush2.msra.mxu0 0.0
    %5351 = vmatprep.subr.mxu0 0.0
    %5352 = vmatpush2.msra.mxu0 0.0
    %5353 = vmatprep.subr.mxu0 0.0
    %5354 = vmatpush2.msra.mxu0 0.0
    %5355 = vmatprep.subr.mxu0 0.0
    %5356 = vmatpush2.msra.mxu0 0.0
    %5357 = vmatprep.subr.mxu0 0.0
    %5358 = vmatpush2.msra.mxu0 0.0
    %5359 = vmatprep.subr.mxu0 0.0
    %5360 = vmatpush2.msra.mxu0 0.0
    %5361 = vmatprep.subr.mxu0 0.0
    %5362 = vmatpush2.msra.mxu0 0.0
    %5363 = vmatprep.subr.mxu0 0.0
    %5364 = vmatpush2.msra.mxu0 0.0
    %5365 = vmatprep.subr.mxu0 0.0
    %5366 = vmatpush2.msra.mxu0 0.0
    %5367 = vmatprep.subr.mxu0 0.0
    %5368 = vmatpush2.msra.mxu0 0.0
    %5369 = vmatprep.subr.mxu0 0.0
    %5370 = vmatpush2.msra.mxu0 0.0
    %5371 = vmatprep.subr.mxu0 0.0
    %5372 = vmatpush2.msra.mxu0 0.0
    %5373 = vmatprep.subr.mxu0 0.0
    %5374 = vmatpush2.msra.mxu0 0.0
    %5375 = vmatprep.subr.mxu0 0.0
    %5376 = vmatpush2.msra.mxu0 0.0
    %5377 = vmatprep.subr.mxu0 0.0
    %5378 = vmatpush2.msra.mxu0 0.0
    %5379 = vmatprep.mubr.f32.mxu0 0.0
    %5380 = vmatmul.mubr.f32.gmra.mxu0 %v5313
    %v5381 = vpop.f32.mrf.mxu0
    %v5382 = vadd.f32 %v3452, %v5381
    %v5383 = vpop.f32.mrf.mxu0
    %5384 = vdwg.mxu0
    %5386 = vrot.lane.b32.xlu0 %v5174, 32
    %v5387 = vpop.permute.xlu0 %5386
    %v5388 = vsel %vm1274, %v5387, 0
    %5390 = vmatprep.subr.mxu0 0.0
    %5391 = vmatpush1.msra.mxu0 0.0
    %5392 = vmatprep.subr.mxu0 0.0
    %5393 = vmatpush1.msra.mxu0 0.0
    %5394 = vmatprep.subr.mxu0 0.0
    %5395 = vmatpush1.msra.mxu0 0.0
    %5396 = vmatprep.subr.mxu0 0.0
    %5397 = vmatpush1.msra.mxu0 0.0
    %5398 = vmatprep.subr.mxu0 0.0
    %5399 = vmatpush1.msra.mxu0 0.0
    %5400 = vmatprep.subr.mxu0 0.0
    %5401 = vmatpush1.msra.mxu0 0.0
    %5402 = vmatprep.subr.mxu0 0.0
    %5403 = vmatpush1.msra.mxu0 0.0
    %5404 = vmatprep.subr.mxu0 0.0
    %5405 = vmatpush1.msra.mxu0 0.0
    %5406 = vmatprep.subr.mxu0 0.0
    %5407 = vmatpush1.msra.mxu0 0.0
    %5408 = vmatprep.subr.mxu0 0.0
    %5409 = vmatpush1.msra.mxu0 0.0
    %5410 = vmatprep.subr.mxu0 0.0
    %5411 = vmatpush1.msra.mxu0 0.0
    %5412 = vmatprep.subr.mxu0 0.0
    %5413 = vmatpush1.msra.mxu0 0.0
    %5414 = vmatprep.subr.mxu0 0.0
    %5415 = vmatpush1.msra.mxu0 %v3235
    %5416 = vmatprep.subr.mxu0 0.0
    %5417 = vmatpush1.msra.mxu0 %v3234
    %5418 = vmatprep.subr.mxu0 0.0
    %5419 = vmatpush1.msra.mxu0 %v3233
    %5420 = vmatprep.subr.mxu0 0.0
    %5421 = vmatpush1.msra.mxu0 %v3232
    %5422 = vmatprep.subr.mxu0 0.0
    %5423 = vmatpush2.msra.mxu0 0.0
    %5424 = vmatprep.subr.mxu0 0.0
    %5425 = vmatpush2.msra.mxu0 0.0
    %5426 = vmatprep.subr.mxu0 0.0
    %5427 = vmatpush2.msra.mxu0 0.0
    %5428 = vmatprep.subr.mxu0 0.0
    %5429 = vmatpush2.msra.mxu0 0.0
    %5430 = vmatprep.subr.mxu0 0.0
    %5431 = vmatpush2.msra.mxu0 0.0
    %5432 = vmatprep.subr.mxu0 0.0
    %5433 = vmatpush2.msra.mxu0 0.0
    %5434 = vmatprep.subr.mxu0 0.0
    %5435 = vmatpush2.msra.mxu0 0.0
    %5436 = vmatprep.subr.mxu0 0.0
    %5437 = vmatpush2.msra.mxu0 0.0
    %5438 = vmatprep.subr.mxu0 0.0
    %5439 = vmatpush2.msra.mxu0 0.0
    %5440 = vmatprep.subr.mxu0 0.0
    %5441 = vmatpush2.msra.mxu0 0.0
    %5442 = vmatprep.subr.mxu0 0.0
    %5443 = vmatpush2.msra.mxu0 0.0
    %5444 = vmatprep.subr.mxu0 0.0
    %5445 = vmatpush2.msra.mxu0 0.0
    %5446 = vmatprep.subr.mxu0 0.0
    %5447 = vmatpush2.msra.mxu0 0.0
    %5448 = vmatprep.subr.mxu0 0.0
    %5449 = vmatpush2.msra.mxu0 0.0
    %5450 = vmatprep.subr.mxu0 0.0
    %5451 = vmatpush2.msra.mxu0 0.0
    %5452 = vmatprep.subr.mxu0 0.0
    %5453 = vmatpush2.msra.mxu0 0.0
    %5454 = vmatprep.mubr.f32.mxu0 0.0
    %5455 = vmatmul.mubr.f32.gmra.mxu0 %v5388
    %v5456 = vpop.f32.mrf.mxu0
    %v5457 = vadd.f32 0.0, %v5456
    %v5458 = vpop.f32.mrf.mxu0
    %5459 = vdwg.mxu0
    %v5460 = vadd.f32 %v5382, %v5457
    %v5461 = vxor.u32 %v5460, 2147483648
    %v5462 = vmul.f32 %v5461, 1.442695
    %v5463 = vpow.pop %v5462
    %v5464 = vadd.f32 %v5463, 1.0
    %v5465 = vrcp.pop %v5464
    %v5466 = vmul.f32 1.0, %v5465
    %v5467 = vtanh.pop %v5460
    %v5468 = vmul.f32 %v5466, %v5168
    %5470 = vrot.lane.b32.xlu0 %v5467, 64
    %v5471 = vpop.permute.xlu0 %5470
    %v5473 = vmul.f32 %v5466, %v5471
    %5475 = vrot.lane.b32.xlu0 %v5473, 32
    %v5476 = vpop.permute.xlu0 %5475
    %v5478 = vadd.f32 %v5468, %v5476
    %v5479 = vtanh.pop %v5478
    %5481 = vrot.lane.b32.xlu0 %v5479, 64
    %v5482 = vpop.permute.xlu0 %5481
    %v5484 = vmul.f32 %v5466, %v5482
    %5485 = vmatprep.subr.mxu0 0.0
    %5486 = vmatpush1.msra.mxu0 0.0
    %5487 = vmatprep.subr.mxu0 0.0
    %5488 = vmatpush1.msra.mxu0 0.0
    %5489 = vmatprep.subr.mxu0 0.0
    %5490 = vmatpush1.msra.mxu0 0.0
    %5491 = vmatprep.subr.mxu0 0.0
    %5492 = vmatpush1.msra.mxu0 0.0
    %5493 = vmatprep.subr.mxu0 0.0
    %5494 = vmatpush1.msra.mxu0 0.0
    %5495 = vmatprep.subr.mxu0 0.0
    %5496 = vmatpush1.msra.mxu0 0.0
    %5497 = vmatprep.subr.mxu0 0.0
    %5498 = vmatpush1.msra.mxu0 0.0
    %5499 = vmatprep.subr.mxu0 0.0
    %5500 = vmatpush1.msra.mxu0 0.0
    %5501 = vmatprep.subr.mxu0 0.0
    %5502 = vmatpush1.msra.mxu0 0.0
    %5503 = vmatprep.subr.mxu0 0.0
    %5504 = vmatpush1.msra.mxu0 0.0
    %5505 = vmatprep.subr.mxu0 0.0
    %5506 = vmatpush1.msra.mxu0 0.0
    %5507 = vmatprep.subr.mxu0 0.0
    %5508 = vmatpush1.msra.mxu0 0.0
    %5509 = vmatprep.subr.mxu0 0.0
    %5510 = vmatpush1.msra.mxu0 %v3230
    %5511 = vmatprep.subr.mxu0 0.0
    %5512 = vmatpush1.msra.mxu0 %v3229
    %5513 = vmatprep.subr.mxu0 0.0
    %5514 = vmatpush1.msra.mxu0 %v3228
    %5515 = vmatprep.subr.mxu0 0.0
    %5516 = vmatpush1.msra.mxu0 %v3227
    %5517 = vmatprep.subr.mxu0 0.0
    %5518 = vmatpush2.msra.mxu0 0.0
    %5519 = vmatprep.subr.mxu0 0.0
    %5520 = vmatpush2.msra.mxu0 0.0
    %5521 = vmatprep.subr.mxu0 0.0
    %5522 = vmatpush2.msra.mxu0 0.0
    %5523 = vmatprep.subr.mxu0 0.0
    %5524 = vmatpush2.msra.mxu0 0.0
    %5525 = vmatprep.subr.mxu0 0.0
    %5526 = vmatpush2.msra.mxu0 0.0
    %5527 = vmatprep.subr.mxu0 0.0
    %5528 = vmatpush2.msra.mxu0 0.0
    %5529 = vmatprep.subr.mxu0 0.0
    %5530 = vmatpush2.msra.mxu0 0.0
    %5531 = vmatprep.subr.mxu0 0.0
    %5532 = vmatpush2.msra.mxu0 0.0
    %5533 = vmatprep.subr.mxu0 0.0
    %5534 = vmatpush2.msra.mxu0 0.0
    %5535 = vmatprep.subr.mxu0 0.0
    %5536 = vmatpush2.msra.mxu0 0.0
    %5537 = vmatprep.subr.mxu0 0.0
    %5538 = vmatpush2.msra.mxu0 0.0
    %5539 = vmatprep.subr.mxu0 0.0
    %5540 = vmatpush2.msra.mxu0 0.0
    %5541 = vmatprep.subr.mxu0 0.0
    %5542 = vmatpush2.msra.mxu0 0.0
    %5543 = vmatprep.subr.mxu0 0.0
    %5544 = vmatpush2.msra.mxu0 0.0
    %5545 = vmatprep.subr.mxu0 0.0
    %5546 = vmatpush2.msra.mxu0 0.0
    %5547 = vmatprep.subr.mxu0 0.0
    %5548 = vmatpush2.msra.mxu0 0.0
    %5549 = vmatprep.mubr.f32.mxu0 0.0
    %5550 = vmatmul.mubr.f32.gmra.mxu0 %v5313
    %v5551 = vpop.f32.mrf.mxu0
    %v5552 = vadd.f32 0.0, %v5551
    %v5553 = vpop.f32.mrf.mxu0
    %5554 = vdwg.mxu0
    %v5556 = vrot.slane %v5552, 1
    %v5557 = vrot.slane %v5552, 2
    %v5560 = vadd.f32 %v3314, %v5556
    %v5561 = vadd.f32 %v3319, %v5557
    %v5562 = vxor.u32 %v5560, 2147483648
    %v5563 = vxor.u32 %v5561, 2147483648
    %v5564 = vmul.f32 %v5562, 1.442695
    %v5565 = vpow.pop %v5564
    %v5566 = vmul.f32 %v5563, 1.442695
    %v5567 = vpow.pop %v5566
    %v5568 = vadd.f32 %v5565, 1.0
    %v5569 = vadd.f32 %v5567, 1.0
    %v5570 = vrcp.pop %v5568
    %v5571 = vmul.f32 1.0, %v5570
    %v5572 = vrcp.pop %v5569
    %v5573 = vmul.f32 1.0, %v5572
    %v5574 = vtanh.pop %v5560
    %v5575 = vtanh.pop %v5561
    %v5578 = vrot.slane %v5292, 7
    %v5579 = vrot.slane %v5293, 7
    %v5582 = vmul.f32 %v5571, %v5578
    %v5583 = vmul.f32 %v5573, %v5579
    %5586 = vrot.lane.b32.xlu0 %v5574, 64
    %v5587 = vpop.permute.xlu0 %5586
    %5588 = vrot.lane.b32.xlu0 %v5575, 64
    %v5589 = vpop.permute.xlu0 %5588
    %v5592 = vmul.f32 %v5571, %v5587
    %v5593 = vmul.f32 %v5573, %v5589
    %5596 = vrot.lane.b32.xlu0 %v5592, 32
    %v5597 = vpop.permute.xlu0 %5596
    %5598 = vrot.lane.b32.xlu0 %v5593, 32
    %v5599 = vpop.permute.xlu0 %5598
    %v5602 = vadd.f32 %v5582, %v5597
    %v5603 = vadd.f32 %v5583, %v5599
    %v5604 = vtanh.pop %v5602
    %v5605 = vtanh.pop %v5603
    %5608 = vrot.lane.b32.xlu0 %v5604, 64
    %v5609 = vpop.permute.xlu0 %5608
    %5610 = vrot.lane.b32.xlu0 %v5605, 64
    %v5611 = vpop.permute.xlu0 %5610
    %v5614 = vmul.f32 %v5571, %v5609
    %v5615 = vmul.f32 %v5573, %v5611
    %v5618 = vrot.slane %v5614, 7
    %v5619 = vrot.slane %v5615, 6
    %v5620 = vsel %vm3456, %v5619, %v5618
    %5621 = vrot.lane.b32.xlu0 %v5620, 32
    %v5622 = vpop.permute.xlu0 %5621
    %v5623 = vsel %vm1274, %v5622, 0
    %5625 = vmatprep.subr.mxu0 0.0
    %5626 = vmatpush1.msra.mxu0 0.0
    %5627 = vmatprep.subr.mxu0 0.0
    %5628 = vmatpush1.msra.mxu0 0.0
    %5629 = vmatprep.subr.mxu0 0.0
    %5630 = vmatpush1.msra.mxu0 0.0
    %5631 = vmatprep.subr.mxu0 0.0
    %5632 = vmatpush1.msra.mxu0 0.0
    %5633 = vmatprep.subr.mxu0 0.0
    %5634 = vmatpush1.msra.mxu0 0.0
    %5635 = vmatprep.subr.mxu0 0.0
    %5636 = vmatpush1.msra.mxu0 0.0
    %5637 = vmatprep.subr.mxu0 0.0
    %5638 = vmatpush1.msra.mxu0 0.0
    %5639 = vmatprep.subr.mxu0 0.0
    %5640 = vmatpush1.msra.mxu0 0.0
    %5641 = vmatprep.subr.mxu0 0.0
    %5642 = vmatpush1.msra.mxu0 0.0
    %5643 = vmatprep.subr.mxu0 0.0
    %5644 = vmatpush1.msra.mxu0 0.0
    %5645 = vmatprep.subr.mxu0 0.0
    %5646 = vmatpush1.msra.mxu0 0.0
    %5647 = vmatprep.subr.mxu0 0.0
    %5648 = vmatpush1.msra.mxu0 0.0
    %5649 = vmatprep.subr.mxu0 0.0
    %5650 = vmatpush1.msra.mxu0 %v3226
    %5651 = vmatprep.subr.mxu0 0.0
    %5652 = vmatpush1.msra.mxu0 %v3225
    %5653 = vmatprep.subr.mxu0 0.0
    %5654 = vmatpush1.msra.mxu0 %v3224
    %5655 = vmatprep.subr.mxu0 0.0
    %5656 = vmatpush1.msra.mxu0 %v3223
    %5657 = vmatprep.subr.mxu0 0.0
    %5658 = vmatpush2.msra.mxu0 0.0
    %5659 = vmatprep.subr.mxu0 0.0
    %5660 = vmatpush2.msra.mxu0 0.0
    %5661 = vmatprep.subr.mxu0 0.0
    %5662 = vmatpush2.msra.mxu0 0.0
    %5663 = vmatprep.subr.mxu0 0.0
    %5664 = vmatpush2.msra.mxu0 0.0
    %5665 = vmatprep.subr.mxu0 0.0
    %5666 = vmatpush2.msra.mxu0 0.0
    %5667 = vmatprep.subr.mxu0 0.0
    %5668 = vmatpush2.msra.mxu0 0.0
    %5669 = vmatprep.subr.mxu0 0.0
    %5670 = vmatpush2.msra.mxu0 0.0
    %5671 = vmatprep.subr.mxu0 0.0
    %5672 = vmatpush2.msra.mxu0 0.0
    %5673 = vmatprep.subr.mxu0 0.0
    %5674 = vmatpush2.msra.mxu0 0.0
    %5675 = vmatprep.subr.mxu0 0.0
    %5676 = vmatpush2.msra.mxu0 0.0
    %5677 = vmatprep.subr.mxu0 0.0
    %5678 = vmatpush2.msra.mxu0 0.0
    %5679 = vmatprep.subr.mxu0 0.0
    %5680 = vmatpush2.msra.mxu0 0.0
    %5681 = vmatprep.subr.mxu0 0.0
    %5682 = vmatpush2.msra.mxu0 0.0
    %5683 = vmatprep.subr.mxu0 0.0
    %5684 = vmatpush2.msra.mxu0 0.0
    %5685 = vmatprep.subr.mxu0 0.0
    %5686 = vmatpush2.msra.mxu0 0.0
    %5687 = vmatprep.subr.mxu0 0.0
    %5688 = vmatpush2.msra.mxu0 0.0
    %5689 = vmatprep.mubr.f32.mxu0 0.0
    %5690 = vmatmul.mubr.f32.gmra.mxu0 %v5623
    %v5691 = vpop.f32.mrf.mxu0
    %v5692 = vadd.f32 %v3452, %v5691
    %v5693 = vpop.f32.mrf.mxu0
    %5694 = vdwg.mxu0
    %5696 = vrot.lane.b32.xlu0 %v5484, 32
    %v5697 = vpop.permute.xlu0 %5696
    %v5698 = vsel %vm1274, %v5697, 0
    %5700 = vmatprep.subr.mxu0 0.0
    %5701 = vmatpush1.msra.mxu0 0.0
    %5702 = vmatprep.subr.mxu0 0.0
    %5703 = vmatpush1.msra.mxu0 0.0
    %5704 = vmatprep.subr.mxu0 0.0
    %5705 = vmatpush1.msra.mxu0 0.0
    %5706 = vmatprep.subr.mxu0 0.0
    %5707 = vmatpush1.msra.mxu0 0.0
    %5708 = vmatprep.subr.mxu0 0.0
    %5709 = vmatpush1.msra.mxu0 0.0
    %5710 = vmatprep.subr.mxu0 0.0
    %5711 = vmatpush1.msra.mxu0 0.0
    %5712 = vmatprep.subr.mxu0 0.0
    %5713 = vmatpush1.msra.mxu0 0.0
    %5714 = vmatprep.subr.mxu0 0.0
    %5715 = vmatpush1.msra.mxu0 0.0
    %5716 = vmatprep.subr.mxu0 0.0
    %5717 = vmatpush1.msra.mxu0 0.0
    %5718 = vmatprep.subr.mxu0 0.0
    %5719 = vmatpush1.msra.mxu0 0.0
    %5720 = vmatprep.subr.mxu0 0.0
    %5721 = vmatpush1.msra.mxu0 0.0
    %5722 = vmatprep.subr.mxu0 0.0
    %5723 = vmatpush1.msra.mxu0 0.0
    %5724 = vmatprep.subr.mxu0 0.0
    %5725 = vmatpush1.msra.mxu0 %v3235
    %5726 = vmatprep.subr.mxu0 0.0
    %5727 = vmatpush1.msra.mxu0 %v3234
    %5728 = vmatprep.subr.mxu0 0.0
    %5729 = vmatpush1.msra.mxu0 %v3233
    %5730 = vmatprep.subr.mxu0 0.0
    %5731 = vmatpush1.msra.mxu0 %v3232
    %5732 = vmatprep.subr.mxu0 0.0
    %5733 = vmatpush2.msra.mxu0 0.0
    %5734 = vmatprep.subr.mxu0 0.0
    %5735 = vmatpush2.msra.mxu0 0.0
    %5736 = vmatprep.subr.mxu0 0.0
    %5737 = vmatpush2.msra.mxu0 0.0
    %5738 = vmatprep.subr.mxu0 0.0
    %5739 = vmatpush2.msra.mxu0 0.0
    %5740 = vmatprep.subr.mxu0 0.0
    %5741 = vmatpush2.msra.mxu0 0.0
    %5742 = vmatprep.subr.mxu0 0.0
    %5743 = vmatpush2.msra.mxu0 0.0
    %5744 = vmatprep.subr.mxu0 0.0
    %5745 = vmatpush2.msra.mxu0 0.0
    %5746 = vmatprep.subr.mxu0 0.0
    %5747 = vmatpush2.msra.mxu0 0.0
    %5748 = vmatprep.subr.mxu0 0.0
    %5749 = vmatpush2.msra.mxu0 0.0
    %5750 = vmatprep.subr.mxu0 0.0
    %5751 = vmatpush2.msra.mxu0 0.0
    %5752 = vmatprep.subr.mxu0 0.0
    %5753 = vmatpush2.msra.mxu0 0.0
    %5754 = vmatprep.subr.mxu0 0.0
    %5755 = vmatpush2.msra.mxu0 0.0
    %5756 = vmatprep.subr.mxu0 0.0
    %5757 = vmatpush2.msra.mxu0 0.0
    %5758 = vmatprep.subr.mxu0 0.0
    %5759 = vmatpush2.msra.mxu0 0.0
    %5760 = vmatprep.subr.mxu0 0.0
    %5761 = vmatpush2.msra.mxu0 0.0
    %5762 = vmatprep.subr.mxu0 0.0
    %5763 = vmatpush2.msra.mxu0 0.0
    %5764 = vmatprep.mubr.f32.mxu0 0.0
    %5765 = vmatmul.mubr.f32.gmra.mxu0 %v5698
    %v5766 = vpop.f32.mrf.mxu0
    %v5767 = vadd.f32 0.0, %v5766
    %v5768 = vpop.f32.mrf.mxu0
    %5769 = vdwg.mxu0
    %v5770 = vadd.f32 %v5692, %v5767
    %v5771 = vxor.u32 %v5770, 2147483648
    %v5772 = vmul.f32 %v5771, 1.442695
    %v5773 = vpow.pop %v5772
    %v5774 = vadd.f32 %v5773, 1.0
    %v5775 = vrcp.pop %v5774
    %v5776 = vmul.f32 1.0, %v5775
    %v5777 = vtanh.pop %v5770
    %v5778 = vmul.f32 %v5776, %v5478
    %5780 = vrot.lane.b32.xlu0 %v5777, 64
    %v5781 = vpop.permute.xlu0 %5780
    %v5783 = vmul.f32 %v5776, %v5781
    %5785 = vrot.lane.b32.xlu0 %v5783, 32
    %v5786 = vpop.permute.xlu0 %5785
    %v5788 = vadd.f32 %v5778, %v5786
    %v5789 = vtanh.pop %v5788
    %5791 = vrot.lane.b32.xlu0 %v5789, 64
    %v5792 = vpop.permute.xlu0 %5791
    %v5794 = vmul.f32 %v5776, %v5792
    %v5795 = vlaneseq
    %v5796 = vshrl.u32 %v5795, 7
    %v5797 = vsub.s32 2, %v5796
    %v5798 = vrot.slane %v3236, %v5797
    %5800 = vrot.lane.b32.xlu0 %v5798, 96
    %v5801 = vpop.permute.xlu0 %5800
    %v5803 = vmul.f32 %v5794, %v5801
    %5805 = vrot.lane.b32.xlu0 %v5803, 32
    %v5806 = vpop.permute.xlu0 %5805
    %vm5808 = vcmask 254976
    %v5809 = vsel %vm5808, %v5806, 0.0
    %5810 = vadd.xlane.f32.xlu0 %v5809
    %v5811 = vpop.xlane.xlu0 %5810
    %v5812 = vlaneseq
    %v5813 = vshrl.u32 %v5812, 7
    %v5814 = vsub.s32 3, %v5813
    %v5815 = vrot.slane %v3236, %v5814
    %v5816 = vadd.f32 %v5811, %v5815
    %vm5817 = vcmask 1024
    %5818 = vst.msk [vmem:[%s11] sm:$0x3] %vm5817, %v5816
    // Predicated region
    $region50: #{forward.1} parent=1 // pred_check
      _
    $region51: #{forward.1} parent=1 // pred_check_branch
      %5820 = sbr.rel (0) target = $region53
    $region52: #{forward.1} parent=1 // pred_region
      _
    $region53: #{forward.1} parent=1 // pred_fallthru
      _
    // Predicated region
    $region54: #{forward.1} parent=1 // pred_check
      _
    $region55: #{forward.1} parent=1 // pred_check_branch
      %5822 = sbr.rel (0) target = $region57
    $region56: #{forward.1} parent=1 // pred_region
      _
    $region57: #{forward.1} parent=1 // pred_fallthru
      _
    %5823 = vsyncpa [#allocation3], 1

</llo_original>
